<compile_context>
chip_gen: v7x
topology: tpu7x:2x2x1
jax: 0.10.0
libtpu: 0.0.40
codegen_flags: <defaults>
</compile_context>

<pallas_src>
import math

import jax
import jax.numpy as jnp
from jax.experimental import pallas as pl
from jax.experimental.pallas import tpu as pltpu

# Full-precision f32 matmuls everywhere (kernel trace + reference) so the
# numerical comparison is not polluted by TPU's default bf16 matmul passes.
jax.config.update("jax_default_matmul_precision", "highest")

# ---- model hyperparameters (small, deterministic) ----
BATCH = 2
SEQ = 16
HIDDEN = 32
NUM_HEADS = 4
HEAD_DIM = HIDDEN // NUM_HEADS   # 8
BS = BATCH * SEQ                 # packed rows
LN_EPS = 1e-12                   # BERT layer_norm_eps default
MASK_VALUE = -10000.0

# packed "vecs" operand row layout: rows 0..nH-1 head masks, then params
_ROW_BQ = NUM_HEADS + 0
_ROW_BK = NUM_HEADS + 1
_ROW_BV = NUM_HEADS + 2
_ROW_BO = NUM_HEADS + 3
_ROW_GAMMA = NUM_HEADS + 4
_ROW_BETA = NUM_HEADS + 5
_N_VEC_ROWS = NUM_HEADS + 6


def _bert_attention_kernel(x_ref, w_ref, vec_ref, mask_ref, o_ref):
    """Fused BertSelfAttention + BertSelfOutput forward (single invocation).

    x_ref:    (BS, H)            packed hidden states (batch flattened into rows)
    w_ref:    (4, H, H)          stacked pre-transposed (in,out) weights
                                 [Wq^T * 1/sqrt(dH), Wk^T, Wv^T, Wo^T]
    vec_ref:  (nH+6, H)          rows: head masks, bq*scale, bk, bv, bo, gamma, beta
    mask_ref: (nH*BS, BS)        additive attention mask pre-broadcast to the
                                 stacked per-head scores layout
    o_ref:    (BS, H)
    """
    f32 = jnp.float32
    x = x_ref[...]                                      # (BS, H)
    vecs = vec_ref[...]                                 # (nH+6, H)
    hm = vecs[0:NUM_HEADS, :]                           # (nH, H) head lane masks
    bq = vecs[_ROW_BQ:_ROW_BQ + 1, :]                   # (1, H), scale folded in
    bk = vecs[_ROW_BK:_ROW_BK + 1, :]
    bv = vecs[_ROW_BV:_ROW_BV + 1, :]
    bo = vecs[_ROW_BO:_ROW_BO + 1, :]
    gamma = vecs[_ROW_GAMMA:_ROW_GAMMA + 1, :]
    beta = vecs[_ROW_BETA:_ROW_BETA + 1, :]

    # Three separate QKV projections (no non-128-aligned lane slicing of a
    # fused 96-lane result).  Score scale is folded into Wq/bq in the wrapper.
    q = jnp.dot(x, w_ref[0], preferred_element_type=f32) + bq   # (BS, H)
    k = jnp.dot(x, w_ref[1], preferred_element_type=f32) + bk
    v = jnp.dot(x, w_ref[2], preferred_element_type=f32) + bv

    # Per-head masked copies stacked along the row (sublane) axis:
    #   row h*BS + i  <-  q[i] * head_mask[h].   Shape (nH*BS, H) = (128, 32).
    qs = (hm[:, None, :] * q[None, :, :]).reshape(NUM_HEADS * BS, HIDDEN)
    vs = (hm[:, None, :] * v[None, :, :]).reshape(NUM_HEADS * BS, HIDDEN)

    # Stacked scores: one MXU pass, M = nH*BS = 128, K = H = 32.
    # scores[h*BS+i, j] = sum_d q[i,d]*mask_h[d]*k[j,d]  (== per-head q_h . k_h)
    scores = jax.lax.dot_general(qs, k, (((1,), (1,)), ((), ())),
                                 preferred_element_type=f32)
    scores = scores + mask_ref[...]                     # plain full-vreg VPU add

    # One softmax over keys for all heads at once (exact normalization).
    m = jnp.max(scores, axis=-1, keepdims=True)
    e = jnp.exp(scores - m)
    probs = e / jnp.sum(e, axis=-1, keepdims=True)
    # TODO(synk): attention_probs / hidden dropout are identity (inference only).

    # Context accumulated directly in the (BS, H) lane layout:
    # probs_h @ (v * mask_h) lands in head h's lanes only; summing over heads
    # reproduces the head-major concatenation with zero transposes.
    ctx = jnp.dot(probs[0:BS, :], vs[0:BS, :], preferred_element_type=f32)
    for h in range(1, NUM_HEADS):                       # static unroll, 8-aligned slices
        r = h * BS
        ctx = ctx + jnp.dot(probs[r:r + BS, :], vs[r:r + BS, :],
                            preferred_element_type=f32)

    # BertSelfOutput: dense + residual + LayerNorm.
    attn = jnp.dot(ctx, w_ref[3], preferred_element_type=f32) + bo
    resid = attn + x
    mean = jnp.mean(resid, axis=-1, keepdims=True)
    cent = resid - mean
    var = jnp.mean(cent * cent, axis=-1, keepdims=True)
    out = cent * jax.lax.rsqrt(var + LN_EPS) * gamma + beta

    # NOTE: (32, 32) f32 output; lane-packing to a 128-multiple would cost more
    # relayout than the handful of masked stores it saves at this size.
    o_ref[...] = out.astype(o_ref.dtype)


def bert_attention(hidden_states, attention_mask,
                   wq, bq, wk, bk, wv, bv, wo, bo, gamma, beta):
    """Full BertAttention forward.

    hidden_states: (B, S, H) f32; attention_mask: (B, 1, 1, S) additive mask.
    wq/wk/wv/wo: (out, in) torch nn.Linear layout; b*: (out,); gamma/beta: (H,).
    """
    B, S, H = hidden_states.shape
    assert (B, S, H) == (BATCH, SEQ, HIDDEN)
    scale = 1.0 / math.sqrt(HEAD_DIM)

    # --- wrapper glue (cheap one-time XLA ops) ---
    # Stacked, pre-transposed (in, out) weights; score scale folded into Wq.
    w_stack = jnp.stack([wq.T * scale, wk.T, wv.T, wo.T], axis=0)       # (4, H, H)

    # Per-head lane masks (nH, H): 1.0 on the lanes belonging to head h.
    head_of_lane = jnp.arange(H, dtype=jnp.int32) // HEAD_DIM
    hmask = (head_of_lane[None, :] ==
             jnp.arange(NUM_HEADS, dtype=jnp.int32)[:, None]).astype(jnp.float32)

    # One small packed operand for all per-lane vectors (head masks, biases, LN).
    vecs = jnp.concatenate(
        [hmask,
         (bq * scale)[None, :], bk[None, :], bv[None, :],
         bo[None, :], gamma[None, :], beta[None, :]], axis=0)           # (nH+6, H)
    assert vecs.shape == (_N_VEC_ROWS, H)

    # Flatten batch into rows; batch separation via a block-diagonal additive
    # mask carrying the original per-key bias, pre-broadcast to the stacked
    # scores layout (nH*BS, BS) so the in-kernel add is a plain VPU add.
    x2d = hidden_states.reshape(BS, H)
    key_bias = attention_mask.reshape(BS).astype(jnp.float32)
    batch_id = jnp.arange(BS, dtype=jnp.int32) // S
    same_batch = batch_id[:, None] == batch_id[None, :]                 # (BS, BS)
    mask2d = jnp.where(same_batch, key_bias[None, :], jnp.float32(MASK_VALUE))
    mask_stack = jnp.broadcast_to(mask2d[None], (NUM_HEADS, BS, BS))
    mask_stack = mask_stack.reshape(NUM_HEADS * BS, BS)                 # (128, 32)

    vmem = pltpu.MemorySpace.VMEM
    out2d = pl.pallas_call(
        _bert_attention_kernel,
        out_shape=jax.ShapeDtypeStruct((BS, H), hidden_states.dtype),
        # No grid: the whole working set lives in VMEM for a single invocation
        # -> every operand DMA'd exactly once, no pipeline bookkeeping.
        in_specs=[pl.BlockSpec(memory_space=vmem)] * 4,
        out_specs=pl.BlockSpec(memory_space=vmem),
    )(x2d, w_stack, vecs, mask_stack)
    return out2d.reshape(B, S, H)


def _reference(hidden_states, attention_mask,
               wq, bq, wk, bk, wv, bv, wo, bo, gamma, beta):
    """Pure-JAX reference mirroring the PyTorch BertAttention forward exactly."""
    P = jax.lax.Precision.HIGHEST
    B, S, H = hidden_states.shape
    q = jnp.matmul(hidden_states, wq.T, precision=P) + bq
    k = jnp.matmul(hidden_states, wk.T, precision=P) + bk
    v = jnp.matmul(hidden_states, wv.T, precision=P) + bv

    def split(x):
        return x.reshape(B, S, NUM_HEADS, HEAD_DIM).transpose(0, 2, 1, 3)

    qh, kh, vh = split(q), split(k), split(v)
    scores = jnp.einsum('bhqd,bhkd->bhqk', qh, kh, precision=P) / math.sqrt(HEAD_DIM)
    scores = scores + attention_mask                 # (B,1,1,S) broadcast
    probs = jax.nn.softmax(scores, axis=-1)
    ctx = jnp.einsum('bhqk,bhkd->bhqd', probs, vh, precision=P)
    ctx = ctx.transpose(0, 2, 1, 3).reshape(B, S, H)

    attn_out = jnp.matmul(ctx, wo.T, precision=P) + bo
    resid = attn_out + hidden_states
    mean = resid.mean(-1, keepdims=True)
    var = ((resid - mean) ** 2).mean(-1, keepdims=True)
    return (resid - mean) / jnp.sqrt(var + LN_EPS) * gamma + beta


if __name__ == "__main__":
    key = jax.random.PRNGKey(0)
    (k_h, k_wq, k_bq, k_wk, k_bk, k_wv, k_bv,
     k_wo, k_bo, k_g, k_b) = jax.random.split(key, 11)

    hidden_states = jax.random.normal(k_h, (BATCH, SEQ, HIDDEN), jnp.float32)

    # Deterministic "Linear" parameters (torch layout: (out, in) / (out,))
    wscale = 1.0 / math.sqrt(HIDDEN)
    wq = jax.random.normal(k_wq, (HIDDEN, HIDDEN), jnp.float32) * wscale
    bq = jax.random.normal(k_bq, (HIDDEN,), jnp.float32) * 0.1
    wk = jax.random.normal(k_wk, (HIDDEN, HIDDEN), jnp.float32) * wscale
    bk = jax.random.normal(k_bk, (HIDDEN,), jnp.float32) * 0.1
    wv = jax.random.normal(k_wv, (HIDDEN, HIDDEN), jnp.float32) * wscale
    bv = jax.random.normal(k_bv, (HIDDEN,), jnp.float32) * 0.1
    wo = jax.random.normal(k_wo, (HIDDEN, HIDDEN), jnp.float32) * wscale
    bo = jax.random.normal(k_bo, (HIDDEN,), jnp.float32) * 0.1
    gamma = 1.0 + 0.1 * jax.random.normal(k_g, (HIDDEN,), jnp.float32)
    beta = 0.1 * jax.random.normal(k_b, (HIDDEN,), jnp.float32)

    # Additive attention mask (B,1,1,S): 0 for valid tokens, -10000 for padding
    lengths = jnp.array([SEQ, SEQ - 4], dtype=jnp.int32)
    pos = jnp.arange(SEQ)[None, :]
    valid = pos < lengths[:, None]                               # (B, S)
    attention_mask = jnp.where(valid, 0.0, MASK_VALUE).astype(jnp.float32)
    attention_mask = attention_mask[:, None, None, :]            # (B,1,1,S)

    out = bert_attention(hidden_states, attention_mask,
                         wq, bq, wk, bk, wv, bv, wo, bo, gamma, beta)
    out = jax.block_until_ready(out)

    ref = _reference(hidden_states, attention_mask,
                     wq, bq, wk, bk, wv, bv, wo, bo, gamma, beta)
    assert out.shape == (BATCH, SEQ, HIDDEN)
    assert jnp.allclose(out, ref, atol=2e-3, rtol=2e-3), (
        "mismatch vs reference: max abs diff = "
        f"{float(jnp.max(jnp.abs(out - ref)))}")

    print("KERNEL_OK")
</pallas_src>

<mosaic_0001>
module attributes {stable_mosaic.version = 11 : i64} {
  func.func @_bert_attention_kernel(%arg0: memref<32x32xf32, #tpu.memory_space<vmem>>, %arg1: memref<4x32x32xf32, #tpu.memory_space<vmem>>, %arg2: memref<10x32xf32, #tpu.memory_space<vmem>>, %arg3: memref<128x32xf32, #tpu.memory_space<vmem>>, %arg4: memref<32x32xf32, #tpu.memory_space<vmem>>) attributes {dimension_semantics = [], scalar_prefetch = 0 : i64, scratch_operands = 0 : i64, tpu.core_type = #tpu.core_type<tc>} {
    %c0 = arith.constant 0 : index
    %c0_0 = arith.constant 0 : index
    %0 = vector.load %arg0[%c0, %c0_0] : memref<32x32xf32, #tpu.memory_space<vmem>>, vector<32x32xf32>
    %c0_1 = arith.constant 0 : index
    %c0_2 = arith.constant 0 : index
    %1 = vector.load %arg2[%c0_1, %c0_2] : memref<10x32xf32, #tpu.memory_space<vmem>>, vector<10x32xf32>
    %2 = vector.extract_strided_slice %1 {offsets = [0, 0], sizes = [4, 32], strides = [1, 1]} : vector<10x32xf32> to vector<4x32xf32>
    %3 = vector.extract_strided_slice %1 {offsets = [4, 0], sizes = [1, 32], strides = [1, 1]} : vector<10x32xf32> to vector<1x32xf32>
    %4 = vector.extract_strided_slice %1 {offsets = [5, 0], sizes = [1, 32], strides = [1, 1]} : vector<10x32xf32> to vector<1x32xf32>
    %5 = vector.extract_strided_slice %1 {offsets = [6, 0], sizes = [1, 32], strides = [1, 1]} : vector<10x32xf32> to vector<1x32xf32>
    %6 = vector.extract_strided_slice %1 {offsets = [7, 0], sizes = [1, 32], strides = [1, 1]} : vector<10x32xf32> to vector<1x32xf32>
    %7 = vector.extract_strided_slice %1 {offsets = [8, 0], sizes = [1, 32], strides = [1, 1]} : vector<10x32xf32> to vector<1x32xf32>
    %8 = vector.extract_strided_slice %1 {offsets = [9, 0], sizes = [1, 32], strides = [1, 1]} : vector<10x32xf32> to vector<1x32xf32>
    %c0_3 = arith.constant 0 : index
    %c0_4 = arith.constant 0 : index
    %c0_5 = arith.constant 0 : index
    %9 = vector.load %arg1[%c0_3, %c0_4, %c0_5] : memref<4x32x32xf32, #tpu.memory_space<vmem>>, vector<1x32x32xf32>
    %10 = vector.shape_cast %9 : vector<1x32x32xf32> to vector<32x32xf32>
    %cst = arith.constant dense<0.000000e+00> : vector<32x32xf32>
    %11 = tpu.matmul %0, %10, %cst {dimension_numbers = #tpu.dot_dimension_numbers<[1], [0], [0], [1], [0, 0, 1, 1], [], []>, precision = #tpu.contract_precision<fp32>} : vector<32x32xf32>, vector<32x32xf32>, vector<32x32xf32> -> vector<32x32xf32>
    %12 = vector.broadcast %3 : vector<1x32xf32> to vector<32x32xf32>
    %13 = arith.addf %11, %12 : vector<32x32xf32>
    %c1 = arith.constant 1 : index
    %c0_6 = arith.constant 0 : index
    %c0_7 = arith.constant 0 : index
    %14 = vector.load %arg1[%c1, %c0_6, %c0_7] : memref<4x32x32xf32, #tpu.memory_space<vmem>>, vector<1x32x32xf32>
    %15 = vector.shape_cast %14 : vector<1x32x32xf32> to vector<32x32xf32>
    %cst_8 = arith.constant dense<0.000000e+00> : vector<32x32xf32>
    %16 = tpu.matmul %0, %15, %cst_8 {dimension_numbers = #tpu.dot_dimension_numbers<[1], [0], [0], [1], [0, 0, 1, 1], [], []>, precision = #tpu.contract_precision<fp32>} : vector<32x32xf32>, vector<32x32xf32>, vector<32x32xf32> -> vector<32x32xf32>
    %17 = vector.broadcast %4 : vector<1x32xf32> to vector<32x32xf32>
    %18 = arith.addf %16, %17 : vector<32x32xf32>
    %c2 = arith.constant 2 : index
    %c0_9 = arith.constant 0 : index
    %c0_10 = arith.constant 0 : index
    %19 = vector.load %arg1[%c2, %c0_9, %c0_10] : memref<4x32x32xf32, #tpu.memory_space<vmem>>, vector<1x32x32xf32>
    %20 = vector.shape_cast %19 : vector<1x32x32xf32> to vector<32x32xf32>
    %cst_11 = arith.constant dense<0.000000e+00> : vector<32x32xf32>
    %21 = tpu.matmul %0, %20, %cst_11 {dimension_numbers = #tpu.dot_dimension_numbers<[1], [0], [0], [1], [0, 0, 1, 1], [], []>, precision = #tpu.contract_precision<fp32>} : vector<32x32xf32>, vector<32x32xf32>, vector<32x32xf32> -> vector<32x32xf32>
    %22 = vector.broadcast %5 : vector<1x32xf32> to vector<32x32xf32>
    %23 = arith.addf %21, %22 : vector<32x32xf32>
    %24 = vector.shape_cast %2 : vector<4x32xf32> to vector<4x1x32xf32>
    %25 = vector.shape_cast %13 : vector<32x32xf32> to vector<1x32x32xf32>
    %26 = vector.broadcast %24 : vector<4x1x32xf32> to vector<4x32x32xf32>
    %27 = vector.broadcast %25 : vector<1x32x32xf32> to vector<4x32x32xf32>
    %28 = arith.mulf %26, %27 : vector<4x32x32xf32>
    %29 = vector.shape_cast %28 : vector<4x32x32xf32> to vector<128x32xf32>
    %30 = vector.shape_cast %2 : vector<4x32xf32> to vector<4x1x32xf32>
    %31 = vector.shape_cast %23 : vector<32x32xf32> to vector<1x32x32xf32>
    %32 = vector.broadcast %30 : vector<4x1x32xf32> to vector<4x32x32xf32>
    %33 = vector.broadcast %31 : vector<1x32x32xf32> to vector<4x32x32xf32>
    %34 = arith.mulf %32, %33 : vector<4x32x32xf32>
    %35 = vector.shape_cast %34 : vector<4x32x32xf32> to vector<128x32xf32>
    %cst_12 = arith.constant dense<0.000000e+00> : vector<128x32xf32>
    %36 = tpu.matmul %29, %18, %cst_12 {dimension_numbers = #tpu.dot_dimension_numbers<[1], [1], [0], [0], [0, 0, 1, 0], [], []>, precision = #tpu.contract_precision<fp32>} : vector<128x32xf32>, vector<32x32xf32>, vector<128x32xf32> -> vector<128x32xf32>
    %c0_13 = arith.constant 0 : index
    %c0_14 = arith.constant 0 : index
    %37 = vector.load %arg3[%c0_13, %c0_14] : memref<128x32xf32, #tpu.memory_space<vmem>>, vector<128x32xf32>
    %38 = arith.addf %36, %37 : vector<128x32xf32>
    %cst_15 = arith.constant dense<0xFF800000> : vector<128xf32>
    %39 = vector.multi_reduction <maximumf>, %38, %cst_15 [1] : vector<128x32xf32> to vector<128xf32>
    %40 = vector.shape_cast %39 : vector<128xf32> to vector<128x1xf32>
    %41 = vector.broadcast %40 : vector<128x1xf32> to vector<128x32xf32>
    %42 = arith.subf %38, %41 : vector<128x32xf32>
    %43 = math.exp %42 : vector<128x32xf32>
    %cst_16 = arith.constant dense<0.000000e+00> : vector<128xf32>
    %44 = vector.multi_reduction <add>, %43, %cst_16 [1] : vector<128x32xf32> to vector<128xf32>
    %45 = vector.shape_cast %44 : vector<128xf32> to vector<128x1xf32>
    %46 = vector.broadcast %45 : vector<128x1xf32> to vector<128x32xf32>
    %47 = arith.divf %43, %46 : vector<128x32xf32>
    %48 = vector.extract_strided_slice %47 {offsets = [0, 0], sizes = [32, 32], strides = [1, 1]} : vector<128x32xf32> to vector<32x32xf32>
    %49 = vector.extract_strided_slice %35 {offsets = [0, 0], sizes = [32, 32], strides = [1, 1]} : vector<128x32xf32> to vector<32x32xf32>
    %cst_17 = arith.constant dense<0.000000e+00> : vector<32x32xf32>
    %50 = tpu.matmul %48, %49, %cst_17 {dimension_numbers = #tpu.dot_dimension_numbers<[1], [0], [0], [1], [0, 0, 1, 1], [], []>, precision = #tpu.contract_precision<fp32>} : vector<32x32xf32>, vector<32x32xf32>, vector<32x32xf32> -> vector<32x32xf32>
    %51 = vector.extract_strided_slice %47 {offsets = [32, 0], sizes = [32, 32], strides = [1, 1]} : vector<128x32xf32> to vector<32x32xf32>
    %52 = vector.extract_strided_slice %35 {offsets = [32, 0], sizes = [32, 32], strides = [1, 1]} : vector<128x32xf32> to vector<32x32xf32>
    %cst_18 = arith.constant dense<0.000000e+00> : vector<32x32xf32>
    %53 = tpu.matmul %51, %52, %cst_18 {dimension_numbers = #tpu.dot_dimension_numbers<[1], [0], [0], [1], [0, 0, 1, 1], [], []>, precision = #tpu.contract_precision<fp32>} : vector<32x32xf32>, vector<32x32xf32>, vector<32x32xf32> -> vector<32x32xf32>
    %54 = arith.addf %50, %53 : vector<32x32xf32>
    %55 = vector.extract_strided_slice %47 {offsets = [64, 0], sizes = [32, 32], strides = [1, 1]} : vector<128x32xf32> to vector<32x32xf32>
    %56 = vector.extract_strided_slice %35 {offsets = [64, 0], sizes = [32, 32], strides = [1, 1]} : vector<128x32xf32> to vector<32x32xf32>
    %cst_19 = arith.constant dense<0.000000e+00> : vector<32x32xf32>
    %57 = tpu.matmul %55, %56, %cst_19 {dimension_numbers = #tpu.dot_dimension_numbers<[1], [0], [0], [1], [0, 0, 1, 1], [], []>, precision = #tpu.contract_precision<fp32>} : vector<32x32xf32>, vector<32x32xf32>, vector<32x32xf32> -> vector<32x32xf32>
    %58 = arith.addf %54, %57 : vector<32x32xf32>
    %59 = vector.extract_strided_slice %47 {offsets = [96, 0], sizes = [32, 32], strides = [1, 1]} : vector<128x32xf32> to vector<32x32xf32>
    %60 = vector.extract_strided_slice %35 {offsets = [96, 0], sizes = [32, 32], strides = [1, 1]} : vector<128x32xf32> to vector<32x32xf32>
    %cst_20 = arith.constant dense<0.000000e+00> : vector<32x32xf32>
    %61 = tpu.matmul %59, %60, %cst_20 {dimension_numbers = #tpu.dot_dimension_numbers<[1], [0], [0], [1], [0, 0, 1, 1], [], []>, precision = #tpu.contract_precision<fp32>} : vector<32x32xf32>, vector<32x32xf32>, vector<32x32xf32> -> vector<32x32xf32>
    %62 = arith.addf %58, %61 : vector<32x32xf32>
    %c3 = arith.constant 3 : index
    %c0_21 = arith.constant 0 : index
    %c0_22 = arith.constant 0 : index
    %63 = vector.load %arg1[%c3, %c0_21, %c0_22] : memref<4x32x32xf32, #tpu.memory_space<vmem>>, vector<1x32x32xf32>
    %64 = vector.shape_cast %63 : vector<1x32x32xf32> to vector<32x32xf32>
    %cst_23 = arith.constant dense<0.000000e+00> : vector<32x32xf32>
    %65 = tpu.matmul %62, %64, %cst_23 {dimension_numbers = #tpu.dot_dimension_numbers<[1], [0], [0], [1], [0, 0, 1, 1], [], []>, precision = #tpu.contract_precision<fp32>} : vector<32x32xf32>, vector<32x32xf32>, vector<32x32xf32> -> vector<32x32xf32>
    %66 = vector.broadcast %6 : vector<1x32xf32> to vector<32x32xf32>
    %67 = arith.addf %65, %66 : vector<32x32xf32>
    %68 = arith.addf %67, %0 : vector<32x32xf32>
    %cst_24 = arith.constant dense<0.000000e+00> : vector<32xf32>
    %69 = vector.multi_reduction <add>, %68, %cst_24 [1] : vector<32x32xf32> to vector<32xf32>
    %70 = vector.shape_cast %69 : vector<32xf32> to vector<32x1xf32>
    %cst_25 = arith.constant 3.200000e+01 : f32
    %71 = vector.broadcast %cst_25 : f32 to vector<32x1xf32>
    %72 = arith.divf %70, %71 : vector<32x1xf32>
    %73 = vector.broadcast %72 : vector<32x1xf32> to vector<32x32xf32>
    %74 = arith.subf %68, %73 : vector<32x32xf32>
    %75 = arith.mulf %74, %74 : vector<32x32xf32>
    %cst_26 = arith.constant dense<0.000000e+00> : vector<32xf32>
    %76 = vector.multi_reduction <add>, %75, %cst_26 [1] : vector<32x32xf32> to vector<32xf32>
    %77 = vector.shape_cast %76 : vector<32xf32> to vector<32x1xf32>
    %cst_27 = arith.constant 3.200000e+01 : f32
    %78 = vector.broadcast %cst_27 : f32 to vector<32x1xf32>
    %79 = arith.divf %77, %78 : vector<32x1xf32>
    %cst_28 = arith.constant 9.99999996E-13 : f32
    %80 = vector.broadcast %cst_28 : f32 to vector<32x1xf32>
    %81 = arith.addf %79, %80 : vector<32x1xf32>
    %82 = math.rsqrt %81 : vector<32x1xf32>
    %83 = vector.broadcast %82 : vector<32x1xf32> to vector<32x32xf32>
    %84 = arith.mulf %74, %83 : vector<32x32xf32>
    %85 = vector.broadcast %7 : vector<1x32xf32> to vector<32x32xf32>
    %86 = arith.mulf %84, %85 : vector<32x32xf32>
    %87 = vector.broadcast %8 : vector<1x32xf32> to vector<32x32xf32>
    %88 = arith.addf %86, %87 : vector<32x32xf32>
    %c0_29 = arith.constant 0 : index
    %c0_30 = arith.constant 0 : index
    %89 = vector.load %arg4[%c0_29, %c0_30] : memref<32x32xf32, #tpu.memory_space<vmem>>, vector<32x32xf32>
    tpu.vector_store %arg4[%c0_29, %c0_30], %88 {strides = array<i32>} : memref<32x32xf32, #tpu.memory_space<vmem>>, vector<32x32xf32>,
    return
  }
}

</mosaic_0001>

<llo_original>
// kernel: tpu_custom_call.1
$region0: #{tpu_custom_call.1}
  #allocation0 [shape = 'u32[]', space=smem, size = 0x4, offset = 0x4, fixed_abs, tag = 'smem constant byte address 0x4 - core index']
  #allocation1 [shape = 'u32[144,128]{1,0:T(1,128)}', space=vmem, size = 0x12000, scoped, tag = 'internal scratch']
  %s0 = inlined_call_operand.vmem [shape: f32[32,32], index: 0, kind: input, shape index: {}]
  %s1 = inlined_call_operand.vmem [shape: f32[4,32,32], index: 1, kind: input, shape index: {}]
  %s2 = inlined_call_operand.hbm [shape: f32[10,32], index: 2, kind: input, shape index: {}]
  %s3 = inlined_call_operand.vmem [shape: f32[128,32], index: 3, kind: input, shape index: {}]
  %s4 = inlined_call_operand.hbm [shape: f32[32,32], index: 4, kind: output, shape index: {}]
  %s5 = sld [smem:[#allocation0]]
  $region30: #{tpu_custom_call.1} parent=0
    _
  %s7 = ssub.s32 1, %s5
  %s8 = scalar_select 0, %s7, %s5
  $region1: #{tpu_custom_call.1} parent=0
    #allocation2 [shape = 'u8[8192]{0}', space=vmem, size = 0x2000, scoped, tag = 'input window, operand 2, single buffered']
    #allocation3 [shape = 's32[1]{0}', space=sflag, size = 0x4, scoped, tag = 'scoped memory for tpu_custom_call.1']
    #allocation4 [shape = 's32[1]{0}', space=sflag, size = 0x4, scoped, tag = 'scoped memory for tpu_custom_call.1']
    #allocation5 [shape = 'u8[16384]{0}', space=vmem, size = 0x4000, scoped, tag = 'output window, operand 0, single buffered']
    %9 = vsyncpa [#allocation3], 0
    %10 = vsyncpa [#allocation4], 0
    // Predicated region
    $region2: #{tpu_custom_call.1} parent=1 // pred_check
      _
    $region3: #{tpu_custom_call.1} parent=1 // pred_check_branch
      %12 = sbr.rel (0) target = $region5
    $region4: #{tpu_custom_call.1} parent=1 // pred_region
      _
    $region5: #{tpu_custom_call.1} parent=1 // pred_fallthru
      _
    // Predicated region
    $region6: #{tpu_custom_call.1} parent=1 // pred_check
      _
    $region7: #{tpu_custom_call.1} parent=1 // pred_check_branch
      %14 = sbr.rel (0) target = $region9
    $region8: #{tpu_custom_call.1} parent=1 // pred_region
      _
    $region9: #{tpu_custom_call.1} parent=1 // pred_fallthru
      _
    // Predicated region
    $region10: #{tpu_custom_call.1} parent=1 // pred_check
      _
    $region11: #{tpu_custom_call.1} parent=1 // pred_check_branch
      %16 = sbr.rel (0) target = $region13
    $region12: #{tpu_custom_call.1} parent=1 // pred_region
      %s18 = ssub.s32 256, 256
      %19 = vsyncadd [#allocation3], %s18
      %s20 = sshll.u32 [#allocation2], 4
      %s21 = int_to_ptr.vmem [resolvable:$true] %s20
      %26 = dma.hbm_to_vmem [thread:$0]  %s2, 256, %s21, [#allocation3], 128, 128, 8
    $region13: #{tpu_custom_call.1} parent=1 // pred_fallthru
      _
    // Predicated region
    $region14: #{tpu_custom_call.1} parent=1 // pred_check
      _
    $region15: #{tpu_custom_call.1} parent=1 // pred_check_branch
      %28 = sbr.rel (0) target = $region17
    $region16: #{tpu_custom_call.1} parent=1 // pred_region
      _
    $region17: #{tpu_custom_call.1} parent=1 // pred_fallthru
      _
    // Predicated region
    $region18: #{tpu_custom_call.1} parent=1 // pred_check
      _
    $region19: #{tpu_custom_call.1} parent=1 // pred_check_branch
      %30 = sbr.rel (0) target = $region21
    $region20: #{tpu_custom_call.1} parent=1 // pred_region
      %31 = dma.done [#allocation3], 256
    $region21: #{tpu_custom_call.1} parent=1 // pred_fallthru
      _
    %v32 = vld [vmem:[%s0] sm:$0xff]
    %v33 = vld [vmem:[%s0 + $0x8] sm:$0xff]
    %v34 = vld [vmem:[%s0 + $0x10] sm:$0xff]
    %v35 = vld [vmem:[%s0 + $0x18] sm:$0xff]
    %v36 = vld [vmem:[#allocation2] sm:$0xff]
    %v37 = vld [vmem:[#allocation2 + $0x8] sm:$0x3]
    %v38 = vld [vmem:[%s1] sm:$0xff]
    %v39 = vld [vmem:[%s1 + $0x8] sm:$0xff]
    %v40 = vld [vmem:[%s1 + $0x10] sm:$0xff]
    %v41 = vld [vmem:[%s1 + $0x18] sm:$0xff]
    %v42 = vlaneseq
    %v43 = vshrl.u32 %v42, 7
    %v44 = vsub.s32 4, %v43
    %v45 = vrot.slane %v36, %v44
    %vm46 = vcmask 261120
    %v48 = vsel %vm46, %v32, 0
    %v51 = vsel %vm46, %v33, 0
    %v54 = vsel %vm46, %v34, 0
    %v57 = vsel %vm46, %v35, 0
    %59 = vmatprep.subr.mxu0 0.0
    %v60 = vand.u32 %v38, 4294901760
    %61 = vmatpush1.msra.mxu0 %v60
    %62 = vmatprep.subr.mxu0 0.0
    %v63 = vand.u32 %v39, 4294901760
    %64 = vmatpush1.msra.mxu0 %v63
    %65 = vmatprep.subr.mxu0 0.0
    %v66 = vand.u32 %v40, 4294901760
    %67 = vmatpush1.msra.mxu0 %v66
    %68 = vmatprep.subr.mxu0 0.0
    %v69 = vand.u32 %v41, 4294901760
    %70 = vmatpush1.msra.mxu0 %v69
    %71 = vmatprep.subr.mxu0 0.0
    %72 = vmatpush1.msra.mxu0 0.0
    %73 = vmatprep.subr.mxu0 0.0
    %74 = vmatpush1.msra.mxu0 0.0
    %75 = vmatprep.subr.mxu0 0.0
    %76 = vmatpush1.msra.mxu0 0.0
    %77 = vmatprep.subr.mxu0 0.0
    %78 = vmatpush1.msra.mxu0 0.0
    %79 = vmatprep.subr.mxu0 0.0
    %80 = vmatpush1.msra.mxu0 0.0
    %81 = vmatprep.subr.mxu0 0.0
    %82 = vmatpush1.msra.mxu0 0.0
    %83 = vmatprep.subr.mxu0 0.0
    %84 = vmatpush1.msra.mxu0 0.0
    %85 = vmatprep.subr.mxu0 0.0
    %86 = vmatpush1.msra.mxu0 0.0
    %87 = vmatprep.subr.mxu0 0.0
    %88 = vmatpush1.msra.mxu0 0.0
    %89 = vmatprep.subr.mxu0 0.0
    %90 = vmatpush1.msra.mxu0 0.0
    %91 = vmatprep.subr.mxu0 0.0
    %92 = vmatpush1.msra.mxu0 0.0
    %93 = vmatprep.subr.mxu0 0.0
    %94 = vmatpush1.msra.mxu0 0.0
    %95 = vmatprep.subr.mxu0 0.0
    %96 = vmatpush1.msra.mxu0 0.0
    %97 = vmatprep.subr.mxu0 0.0
    %98 = vmatpush1.msra.mxu0 0.0
    %99 = vmatprep.subr.mxu0 0.0
    %100 = vmatpush1.msra.mxu0 0.0
    %101 = vmatprep.subr.mxu0 0.0
    %102 = vmatpush1.msra.mxu0 0.0
    %103 = vmatprep.subr.mxu0 0.0
    %104 = vmatpush1.msra.mxu0 0.0
    %105 = vmatprep.subr.mxu0 0.0
    %106 = vmatpush1.msra.mxu0 0.0
    %107 = vmatprep.subr.mxu0 0.0
    %108 = vmatpush1.msra.mxu0 0.0
    %109 = vmatprep.subr.mxu0 0.0
    %110 = vmatpush1.msra.mxu0 0.0
    %111 = vmatprep.subr.mxu0 0.0
    %112 = vmatpush1.msra.mxu0 0.0
    %113 = vmatprep.subr.mxu0 0.0
    %114 = vmatpush1.msra.mxu0 0.0
    %115 = vmatprep.subr.mxu0 0.0
    %116 = vmatpush1.msra.mxu0 0.0
    %117 = vmatprep.subr.mxu0 0.0
    %118 = vmatpush1.msra.mxu0 0.0
    %119 = vmatprep.subr.mxu0 0.0
    %120 = vmatpush1.msra.mxu0 0.0
    %121 = vmatprep.subr.mxu0 0.0
    %122 = vmatpush1.msra.mxu0 0.0
    %123 = vmatprep.subr.mxu0 0.0
    %124 = vmatpush1.msra.mxu0 0.0
    %125 = vmatprep.subr.mxu0 0.0
    %126 = vmatpush1.msra.mxu0 0.0
    %127 = vmatprep.mubr.f32.mxu0 0.0
    %v128 = vand.u32 %v48, 4294901760
    %v129 = vsub.f32 %v48, %v128
    %v130 = vand.u32 %v129, 4294901760
    %v131 = vsub.f32 %v129, %v130
    %v132 = vand.u32 %v131, 4294901760
    %133 = vmatmul.mubr.f32.gmra.mrb[0].mxu0 %v132
    %v134 = vpop.f32.mrb[0].mxu0
    %v135 = vadd.f32 %v45, %v134
    %v136 = vpop.f32.mrb[0].mxu0
    %137 = vmatprep.mubr.f32.mxu0 0.0
    %v138 = vand.u32 %v51, 4294901760
    %v139 = vsub.f32 %v51, %v138
    %v140 = vand.u32 %v139, 4294901760
    %v141 = vsub.f32 %v139, %v140
    %v142 = vand.u32 %v141, 4294901760
    %143 = vmatmul.mubr.f32.gmra.mrb[0].mxu0 %v142
    %v144 = vpop.f32.mrb[0].mxu0
    %v145 = vadd.f32 %v45, %v144
    %v146 = vpop.f32.mrb[0].mxu0
    %147 = vmatprep.mubr.f32.mxu0 0.0
    %v148 = vand.u32 %v54, 4294901760
    %v149 = vsub.f32 %v54, %v148
    %v150 = vand.u32 %v149, 4294901760
    %v151 = vsub.f32 %v149, %v150
    %v152 = vand.u32 %v151, 4294901760
    %153 = vmatmul.mubr.f32.gmra.mrb[0].mxu0 %v152
    %v154 = vpop.f32.mrb[0].mxu0
    %v155 = vadd.f32 %v45, %v154
    %v156 = vpop.f32.mrb[0].mxu0
    %157 = vmatprep.mubr.f32.mxu0 0.0
    %v158 = vand.u32 %v57, 4294901760
    %v159 = vsub.f32 %v57, %v158
    %v160 = vand.u32 %v159, 4294901760
    %v161 = vsub.f32 %v159, %v160
    %v162 = vand.u32 %v161, 4294901760
    %163 = vmatmul.mubr.f32.gmra.mrb[0].mxu0 %v162
    %v164 = vpop.f32.mrb[0].mxu0
    %v165 = vadd.f32 %v45, %v164
    %v166 = vpop.f32.mrb[0].mxu0
    %167 = vdwg.mxu0
    %168 = vmatprep.subr.mxu0 0.0
    %v169 = vand.u32 %v38, 4294901760
    %v170 = vsub.f32 %v38, %v169
    %v171 = vand.u32 %v170, 4294901760
    %v172 = vsub.f32 %v170, %v171
    %v173 = vand.u32 %v172, 4294901760
    %174 = vmatpush1.msra.mxu0 %v173
    %175 = vmatprep.subr.mxu0 0.0
    %v176 = vand.u32 %v39, 4294901760
    %v177 = vsub.f32 %v39, %v176
    %v178 = vand.u32 %v177, 4294901760
    %v179 = vsub.f32 %v177, %v178
    %v180 = vand.u32 %v179, 4294901760
    %181 = vmatpush1.msra.mxu0 %v180
    %182 = vmatprep.subr.mxu0 0.0
    %v183 = vand.u32 %v40, 4294901760
    %v184 = vsub.f32 %v40, %v183
    %v185 = vand.u32 %v184, 4294901760
    %v186 = vsub.f32 %v184, %v185
    %v187 = vand.u32 %v186, 4294901760
    %188 = vmatpush1.msra.mxu0 %v187
    %189 = vmatprep.subr.mxu0 0.0
    %v190 = vand.u32 %v41, 4294901760
    %v191 = vsub.f32 %v41, %v190
    %v192 = vand.u32 %v191, 4294901760
    %v193 = vsub.f32 %v191, %v192
    %v194 = vand.u32 %v193, 4294901760
    %195 = vmatpush1.msra.mxu0 %v194
    %196 = vmatprep.subr.mxu0 0.0
    %197 = vmatpush1.msra.mxu0 0.0
    %198 = vmatprep.subr.mxu0 0.0
    %199 = vmatpush1.msra.mxu0 0.0
    %200 = vmatprep.subr.mxu0 0.0
    %201 = vmatpush1.msra.mxu0 0.0
    %202 = vmatprep.subr.mxu0 0.0
    %203 = vmatpush1.msra.mxu0 0.0
    %204 = vmatprep.subr.mxu0 0.0
    %205 = vmatpush1.msra.mxu0 0.0
    %206 = vmatprep.subr.mxu0 0.0
    %207 = vmatpush1.msra.mxu0 0.0
    %208 = vmatprep.subr.mxu0 0.0
    %209 = vmatpush1.msra.mxu0 0.0
    %210 = vmatprep.subr.mxu0 0.0
    %211 = vmatpush1.msra.mxu0 0.0
    %212 = vmatprep.subr.mxu0 0.0
    %213 = vmatpush1.msra.mxu0 0.0
    %214 = vmatprep.subr.mxu0 0.0
    %215 = vmatpush1.msra.mxu0 0.0
    %216 = vmatprep.subr.mxu0 0.0
    %217 = vmatpush1.msra.mxu0 0.0
    %218 = vmatprep.subr.mxu0 0.0
    %219 = vmatpush1.msra.mxu0 0.0
    %220 = vmatprep.subr.mxu0 0.0
    %221 = vmatpush1.msra.mxu0 0.0
    %222 = vmatprep.subr.mxu0 0.0
    %223 = vmatpush1.msra.mxu0 0.0
    %224 = vmatprep.subr.mxu0 0.0
    %225 = vmatpush1.msra.mxu0 0.0
    %226 = vmatprep.subr.mxu0 0.0
    %227 = vmatpush1.msra.mxu0 0.0
    %228 = vmatprep.subr.mxu0 0.0
    %229 = vmatpush1.msra.mxu0 0.0
    %230 = vmatprep.subr.mxu0 0.0
    %231 = vmatpush1.msra.mxu0 0.0
    %232 = vmatprep.subr.mxu0 0.0
    %233 = vmatpush1.msra.mxu0 0.0
    %234 = vmatprep.subr.mxu0 0.0
    %235 = vmatpush1.msra.mxu0 0.0
    %236 = vmatprep.subr.mxu0 0.0
    %237 = vmatpush1.msra.mxu0 0.0
    %238 = vmatprep.subr.mxu0 0.0
    %239 = vmatpush1.msra.mxu0 0.0
    %240 = vmatprep.subr.mxu0 0.0
    %241 = vmatpush1.msra.mxu0 0.0
    %242 = vmatprep.subr.mxu0 0.0
    %243 = vmatpush1.msra.mxu0 0.0
    %244 = vmatprep.subr.mxu0 0.0
    %245 = vmatpush1.msra.mxu0 0.0
    %246 = vmatprep.subr.mxu0 0.0
    %247 = vmatpush1.msra.mxu0 0.0
    %248 = vmatprep.subr.mxu0 0.0
    %249 = vmatpush1.msra.mxu0 0.0
    %250 = vmatprep.subr.mxu0 0.0
    %251 = vmatpush1.msra.mxu0 0.0
    %252 = vmatprep.mubr.f32.mxu0 0.0
    %v253 = vand.u32 %v48, 4294901760
    %254 = vmatmul.mubr.f32.gmra.mrb[0].mxu0 %v253
    %v255 = vpop.f32.mrb[0].mxu0
    %v256 = vadd.f32 %v135, %v255
    %v257 = vpop.f32.mrb[0].mxu0
    %258 = vmatprep.mubr.f32.mxu0 0.0
    %v259 = vand.u32 %v51, 4294901760
    %260 = vmatmul.mubr.f32.gmra.mrb[0].mxu0 %v259
    %v261 = vpop.f32.mrb[0].mxu0
    %v262 = vadd.f32 %v145, %v261
    %v263 = vpop.f32.mrb[0].mxu0
    %264 = vmatprep.mubr.f32.mxu0 0.0
    %v265 = vand.u32 %v54, 4294901760
    %266 = vmatmul.mubr.f32.gmra.mrb[0].mxu0 %v265
    %v267 = vpop.f32.mrb[0].mxu0
    %v268 = vadd.f32 %v155, %v267
    %v269 = vpop.f32.mrb[0].mxu0
    %270 = vmatprep.mubr.f32.mxu0 0.0
    %v271 = vand.u32 %v57, 4294901760
    %272 = vmatmul.mubr.f32.gmra.mrb[0].mxu0 %v271
    %v273 = vpop.f32.mrb[0].mxu0
    %v274 = vadd.f32 %v165, %v273
    %v275 = vpop.f32.mrb[0].mxu0
    %276 = vdwg.mxu0
    %277 = vmatprep.subr.mxu0 0.0
    %v278 = vand.u32 %v38, 4294901760
    %v279 = vsub.f32 %v38, %v278
    %280 = vmatpush1.msra.mxu0 %v279
    %281 = vmatprep.subr.mxu0 0.0
    %v282 = vand.u32 %v39, 4294901760
    %v283 = vsub.f32 %v39, %v282
    %284 = vmatpush1.msra.mxu0 %v283
    %285 = vmatprep.subr.mxu0 0.0
    %v286 = vand.u32 %v40, 4294901760
    %v287 = vsub.f32 %v40, %v286
    %288 = vmatpush1.msra.mxu0 %v287
    %289 = vmatprep.subr.mxu0 0.0
    %v290 = vand.u32 %v41, 4294901760
    %v291 = vsub.f32 %v41, %v290
    %292 = vmatpush1.msra.mxu0 %v291
    %293 = vmatprep.subr.mxu0 0.0
    %294 = vmatpush1.msra.mxu0 0.0
    %295 = vmatprep.subr.mxu0 0.0
    %296 = vmatpush1.msra.mxu0 0.0
    %297 = vmatprep.subr.mxu0 0.0
    %298 = vmatpush1.msra.mxu0 0.0
    %299 = vmatprep.subr.mxu0 0.0
    %300 = vmatpush1.msra.mxu0 0.0
    %301 = vmatprep.subr.mxu0 0.0
    %302 = vmatpush1.msra.mxu0 0.0
    %303 = vmatprep.subr.mxu0 0.0
    %304 = vmatpush1.msra.mxu0 0.0
    %305 = vmatprep.subr.mxu0 0.0
    %306 = vmatpush1.msra.mxu0 0.0
    %307 = vmatprep.subr.mxu0 0.0
    %308 = vmatpush1.msra.mxu0 0.0
    %309 = vmatprep.subr.mxu0 0.0
    %310 = vmatpush1.msra.mxu0 0.0
    %311 = vmatprep.subr.mxu0 0.0
    %312 = vmatpush1.msra.mxu0 0.0
    %313 = vmatprep.subr.mxu0 0.0
    %314 = vmatpush1.msra.mxu0 0.0
    %315 = vmatprep.subr.mxu0 0.0
    %316 = vmatpush1.msra.mxu0 0.0
    %317 = vmatprep.subr.mxu0 0.0
    %318 = vmatpush1.msra.mxu0 0.0
    %319 = vmatprep.subr.mxu0 0.0
    %320 = vmatpush1.msra.mxu0 0.0
    %321 = vmatprep.subr.mxu0 0.0
    %322 = vmatpush1.msra.mxu0 0.0
    %323 = vmatprep.subr.mxu0 0.0
    %324 = vmatpush1.msra.mxu0 0.0
    %325 = vmatprep.subr.mxu0 0.0
    %326 = vmatpush1.msra.mxu0 0.0
    %327 = vmatprep.subr.mxu0 0.0
    %328 = vmatpush1.msra.mxu0 0.0
    %329 = vmatprep.subr.mxu0 0.0
    %330 = vmatpush1.msra.mxu0 0.0
    %331 = vmatprep.subr.mxu0 0.0
    %332 = vmatpush1.msra.mxu0 0.0
    %333 = vmatprep.subr.mxu0 0.0
    %334 = vmatpush1.msra.mxu0 0.0
    %335 = vmatprep.subr.mxu0 0.0
    %336 = vmatpush1.msra.mxu0 0.0
    %337 = vmatprep.subr.mxu0 0.0
    %338 = vmatpush1.msra.mxu0 0.0
    %339 = vmatprep.subr.mxu0 0.0
    %340 = vmatpush1.msra.mxu0 0.0
    %341 = vmatprep.subr.mxu0 0.0
    %342 = vmatpush1.msra.mxu0 0.0
    %343 = vmatprep.subr.mxu0 0.0
    %344 = vmatpush1.msra.mxu0 0.0
    %345 = vmatprep.subr.mxu0 0.0
    %346 = vmatpush1.msra.mxu0 0.0
    %347 = vmatprep.subr.mxu0 0.0
    %348 = vmatpush1.msra.mxu0 0.0
    %349 = vmatprep.mubr.f32.mxu0 0.0
    %v350 = vand.u32 %v48, 4294901760
    %v351 = vsub.f32 %v48, %v350
    %352 = vmatmul.mubr.f32.gmra.mrb[0].mxu0 %v351
    %v353 = vpop.f32.mrb[0].mxu0
    %v354 = vadd.f32 %v256, %v353
    %v355 = vpop.f32.mrb[0].mxu0
    %356 = vmatprep.mubr.f32.mxu0 0.0
    %v357 = vand.u32 %v51, 4294901760
    %v358 = vsub.f32 %v51, %v357
    %359 = vmatmul.mubr.f32.gmra.mrb[0].mxu0 %v358
    %v360 = vpop.f32.mrb[0].mxu0
    %v361 = vadd.f32 %v262, %v360
    %v362 = vpop.f32.mrb[0].mxu0
    %363 = vmatprep.mubr.f32.mxu0 0.0
    %v364 = vand.u32 %v54, 4294901760
    %v365 = vsub.f32 %v54, %v364
    %366 = vmatmul.mubr.f32.gmra.mrb[0].mxu0 %v365
    %v367 = vpop.f32.mrb[0].mxu0
    %v368 = vadd.f32 %v268, %v367
    %v369 = vpop.f32.mrb[0].mxu0
    %370 = vmatprep.mubr.f32.mxu0 0.0
    %v371 = vand.u32 %v57, 4294901760
    %v372 = vsub.f32 %v57, %v371
    %373 = vmatmul.mubr.f32.gmra.mrb[0].mxu0 %v372
    %v374 = vpop.f32.mrb[0].mxu0
    %v375 = vadd.f32 %v274, %v374
    %v376 = vpop.f32.mrb[0].mxu0
    %377 = vdwg.mxu0
    %378 = vmatprep.subr.mxu0 0.0
    %v379 = vand.u32 %v38, 4294901760
    %380 = vmatpush1.msra.mxu0 %v379
    %381 = vmatprep.subr.mxu0 0.0
    %v382 = vand.u32 %v39, 4294901760
    %383 = vmatpush1.msra.mxu0 %v382
    %384 = vmatprep.subr.mxu0 0.0
    %v385 = vand.u32 %v40, 4294901760
    %386 = vmatpush1.msra.mxu0 %v385
    %387 = vmatprep.subr.mxu0 0.0
    %v388 = vand.u32 %v41, 4294901760
    %389 = vmatpush1.msra.mxu0 %v388
    %390 = vmatprep.subr.mxu0 0.0
    %391 = vmatpush1.msra.mxu0 0.0
    %392 = vmatprep.subr.mxu0 0.0
    %393 = vmatpush1.msra.mxu0 0.0
    %394 = vmatprep.subr.mxu0 0.0
    %395 = vmatpush1.msra.mxu0 0.0
    %396 = vmatprep.subr.mxu0 0.0
    %397 = vmatpush1.msra.mxu0 0.0
    %398 = vmatprep.subr.mxu0 0.0
    %399 = vmatpush1.msra.mxu0 0.0
    %400 = vmatprep.subr.mxu0 0.0
    %401 = vmatpush1.msra.mxu0 0.0
    %402 = vmatprep.subr.mxu0 0.0
    %403 = vmatpush1.msra.mxu0 0.0
    %404 = vmatprep.subr.mxu0 0.0
    %405 = vmatpush1.msra.mxu0 0.0
    %406 = vmatprep.subr.mxu0 0.0
    %407 = vmatpush1.msra.mxu0 0.0
    %408 = vmatprep.subr.mxu0 0.0
    %409 = vmatpush1.msra.mxu0 0.0
    %410 = vmatprep.subr.mxu0 0.0
    %411 = vmatpush1.msra.mxu0 0.0
    %412 = vmatprep.subr.mxu0 0.0
    %413 = vmatpush1.msra.mxu0 0.0
    %414 = vmatprep.subr.mxu0 0.0
    %415 = vmatpush1.msra.mxu0 0.0
    %416 = vmatprep.subr.mxu0 0.0
    %417 = vmatpush1.msra.mxu0 0.0
    %418 = vmatprep.subr.mxu0 0.0
    %419 = vmatpush1.msra.mxu0 0.0
    %420 = vmatprep.subr.mxu0 0.0
    %421 = vmatpush1.msra.mxu0 0.0
    %422 = vmatprep.subr.mxu0 0.0
    %423 = vmatpush1.msra.mxu0 0.0
    %424 = vmatprep.subr.mxu0 0.0
    %425 = vmatpush1.msra.mxu0 0.0
    %426 = vmatprep.subr.mxu0 0.0
    %427 = vmatpush1.msra.mxu0 0.0
    %428 = vmatprep.subr.mxu0 0.0
    %429 = vmatpush1.msra.mxu0 0.0
    %430 = vmatprep.subr.mxu0 0.0
    %431 = vmatpush1.msra.mxu0 0.0
    %432 = vmatprep.subr.mxu0 0.0
    %433 = vmatpush1.msra.mxu0 0.0
    %434 = vmatprep.subr.mxu0 0.0
    %435 = vmatpush1.msra.mxu0 0.0
    %436 = vmatprep.subr.mxu0 0.0
    %437 = vmatpush1.msra.mxu0 0.0
    %438 = vmatprep.subr.mxu0 0.0
    %439 = vmatpush1.msra.mxu0 0.0
    %440 = vmatprep.subr.mxu0 0.0
    %441 = vmatpush1.msra.mxu0 0.0
    %442 = vmatprep.subr.mxu0 0.0
    %443 = vmatpush1.msra.mxu0 0.0
    %444 = vmatprep.subr.mxu0 0.0
    %445 = vmatpush1.msra.mxu0 0.0
    %446 = vmatprep.mubr.f32.mxu0 0.0
    %v447 = vand.u32 %v48, 4294901760
    %v448 = vsub.f32 %v48, %v447
    %v449 = vand.u32 %v448, 4294901760
    %450 = vmatmul.mubr.f32.gmra.mrb[0].mxu0 %v449
    %v451 = vpop.f32.mrb[0].mxu0
    %v452 = vadd.f32 %v354, %v451
    %v453 = vpop.f32.mrb[0].mxu0
    %454 = vmatprep.mubr.f32.mxu0 0.0
    %v455 = vand.u32 %v51, 4294901760
    %v456 = vsub.f32 %v51, %v455
    %v457 = vand.u32 %v456, 4294901760
    %458 = vmatmul.mubr.f32.gmra.mrb[0].mxu0 %v457
    %v459 = vpop.f32.mrb[0].mxu0
    %v460 = vadd.f32 %v361, %v459
    %v461 = vpop.f32.mrb[0].mxu0
    %462 = vmatprep.mubr.f32.mxu0 0.0
    %v463 = vand.u32 %v54, 4294901760
    %v464 = vsub.f32 %v54, %v463
    %v465 = vand.u32 %v464, 4294901760
    %466 = vmatmul.mubr.f32.gmra.mrb[0].mxu0 %v465
    %v467 = vpop.f32.mrb[0].mxu0
    %v468 = vadd.f32 %v368, %v467
    %v469 = vpop.f32.mrb[0].mxu0
    %470 = vmatprep.mubr.f32.mxu0 0.0
    %v471 = vand.u32 %v57, 4294901760
    %v472 = vsub.f32 %v57, %v471
    %v473 = vand.u32 %v472, 4294901760
    %474 = vmatmul.mubr.f32.gmra.mrb[0].mxu0 %v473
    %v475 = vpop.f32.mrb[0].mxu0
    %v476 = vadd.f32 %v375, %v475
    %v477 = vpop.f32.mrb[0].mxu0
    %478 = vdwg.mxu0
    %479 = vmatprep.subr.mxu0 0.0
    %v480 = vand.u32 %v38, 4294901760
    %v481 = vsub.f32 %v38, %v480
    %v482 = vand.u32 %v481, 4294901760
    %483 = vmatpush1.msra.mxu0 %v482
    %484 = vmatprep.subr.mxu0 0.0
    %v485 = vand.u32 %v39, 4294901760
    %v486 = vsub.f32 %v39, %v485
    %v487 = vand.u32 %v486, 4294901760
    %488 = vmatpush1.msra.mxu0 %v487
    %489 = vmatprep.subr.mxu0 0.0
    %v490 = vand.u32 %v40, 4294901760
    %v491 = vsub.f32 %v40, %v490
    %v492 = vand.u32 %v491, 4294901760
    %493 = vmatpush1.msra.mxu0 %v492
    %494 = vmatprep.subr.mxu0 0.0
    %v495 = vand.u32 %v41, 4294901760
    %v496 = vsub.f32 %v41, %v495
    %v497 = vand.u32 %v496, 4294901760
    %498 = vmatpush1.msra.mxu0 %v497
    %499 = vmatprep.subr.mxu0 0.0
    %500 = vmatpush1.msra.mxu0 0.0
    %501 = vmatprep.subr.mxu0 0.0
    %502 = vmatpush1.msra.mxu0 0.0
    %503 = vmatprep.subr.mxu0 0.0
    %504 = vmatpush1.msra.mxu0 0.0
    %505 = vmatprep.subr.mxu0 0.0
    %506 = vmatpush1.msra.mxu0 0.0
    %507 = vmatprep.subr.mxu0 0.0
    %508 = vmatpush1.msra.mxu0 0.0
    %509 = vmatprep.subr.mxu0 0.0
    %510 = vmatpush1.msra.mxu0 0.0
    %511 = vmatprep.subr.mxu0 0.0
    %512 = vmatpush1.msra.mxu0 0.0
    %513 = vmatprep.subr.mxu0 0.0
    %514 = vmatpush1.msra.mxu0 0.0
    %515 = vmatprep.subr.mxu0 0.0
    %516 = vmatpush1.msra.mxu0 0.0
    %517 = vmatprep.subr.mxu0 0.0
    %518 = vmatpush1.msra.mxu0 0.0
    %519 = vmatprep.subr.mxu0 0.0
    %520 = vmatpush1.msra.mxu0 0.0
    %521 = vmatprep.subr.mxu0 0.0
    %522 = vmatpush1.msra.mxu0 0.0
    %523 = vmatprep.subr.mxu0 0.0
    %524 = vmatpush1.msra.mxu0 0.0
    %525 = vmatprep.subr.mxu0 0.0
    %526 = vmatpush1.msra.mxu0 0.0
    %527 = vmatprep.subr.mxu0 0.0
    %528 = vmatpush1.msra.mxu0 0.0
    %529 = vmatprep.subr.mxu0 0.0
    %530 = vmatpush1.msra.mxu0 0.0
    %531 = vmatprep.subr.mxu0 0.0
    %532 = vmatpush1.msra.mxu0 0.0
    %533 = vmatprep.subr.mxu0 0.0
    %534 = vmatpush1.msra.mxu0 0.0
    %535 = vmatprep.subr.mxu0 0.0
    %536 = vmatpush1.msra.mxu0 0.0
    %537 = vmatprep.subr.mxu0 0.0
    %538 = vmatpush1.msra.mxu0 0.0
    %539 = vmatprep.subr.mxu0 0.0
    %540 = vmatpush1.msra.mxu0 0.0
    %541 = vmatprep.subr.mxu0 0.0
    %542 = vmatpush1.msra.mxu0 0.0
    %543 = vmatprep.subr.mxu0 0.0
    %544 = vmatpush1.msra.mxu0 0.0
    %545 = vmatprep.subr.mxu0 0.0
    %546 = vmatpush1.msra.mxu0 0.0
    %547 = vmatprep.subr.mxu0 0.0
    %548 = vmatpush1.msra.mxu0 0.0
    %549 = vmatprep.subr.mxu0 0.0
    %550 = vmatpush1.msra.mxu0 0.0
    %551 = vmatprep.subr.mxu0 0.0
    %552 = vmatpush1.msra.mxu0 0.0
    %553 = vmatprep.subr.mxu0 0.0
    %554 = vmatpush1.msra.mxu0 0.0
    %555 = vmatprep.mubr.f32.mxu0 0.0
    %v556 = vand.u32 %v48, 4294901760
    %557 = vmatmul.mubr.f32.gmra.mrb[0].mxu0 %v556
    %v558 = vpop.f32.mrb[0].mxu0
    %v559 = vadd.f32 %v452, %v558
    %v560 = vpop.f32.mrb[0].mxu0
    %561 = vmatprep.mubr.f32.mxu0 0.0
    %v562 = vand.u32 %v51, 4294901760
    %563 = vmatmul.mubr.f32.gmra.mrb[0].mxu0 %v562
    %v564 = vpop.f32.mrb[0].mxu0
    %v565 = vadd.f32 %v460, %v564
    %v566 = vpop.f32.mrb[0].mxu0
    %567 = vmatprep.mubr.f32.mxu0 0.0
    %v568 = vand.u32 %v54, 4294901760
    %569 = vmatmul.mubr.f32.gmra.mrb[0].mxu0 %v568
    %v570 = vpop.f32.mrb[0].mxu0
    %v571 = vadd.f32 %v468, %v570
    %v572 = vpop.f32.mrb[0].mxu0
    %573 = vmatprep.mubr.f32.mxu0 0.0
    %v574 = vand.u32 %v57, 4294901760
    %575 = vmatmul.mubr.f32.gmra.mrb[0].mxu0 %v574
    %v576 = vpop.f32.mrb[0].mxu0
    %v577 = vadd.f32 %v476, %v576
    %v578 = vpop.f32.mrb[0].mxu0
    %579 = vdwg.mxu0
    %580 = vmatprep.subr.mxu0 0.0
    %v581 = vand.u32 %v38, 4294901760
    %582 = vmatpush1.msra.mxu0 %v581
    %583 = vmatprep.subr.mxu0 0.0
    %v584 = vand.u32 %v39, 4294901760
    %585 = vmatpush1.msra.mxu0 %v584
    %586 = vmatprep.subr.mxu0 0.0
    %v587 = vand.u32 %v40, 4294901760
    %588 = vmatpush1.msra.mxu0 %v587
    %589 = vmatprep.subr.mxu0 0.0
    %v590 = vand.u32 %v41, 4294901760
    %591 = vmatpush1.msra.mxu0 %v590
    %592 = vmatprep.subr.mxu0 0.0
    %593 = vmatpush1.msra.mxu0 0.0
    %594 = vmatprep.subr.mxu0 0.0
    %595 = vmatpush1.msra.mxu0 0.0
    %596 = vmatprep.subr.mxu0 0.0
    %597 = vmatpush1.msra.mxu0 0.0
    %598 = vmatprep.subr.mxu0 0.0
    %599 = vmatpush1.msra.mxu0 0.0
    %600 = vmatprep.subr.mxu0 0.0
    %601 = vmatpush1.msra.mxu0 0.0
    %602 = vmatprep.subr.mxu0 0.0
    %603 = vmatpush1.msra.mxu0 0.0
    %604 = vmatprep.subr.mxu0 0.0
    %605 = vmatpush1.msra.mxu0 0.0
    %606 = vmatprep.subr.mxu0 0.0
    %607 = vmatpush1.msra.mxu0 0.0
    %608 = vmatprep.subr.mxu0 0.0
    %609 = vmatpush1.msra.mxu0 0.0
    %610 = vmatprep.subr.mxu0 0.0
    %611 = vmatpush1.msra.mxu0 0.0
    %612 = vmatprep.subr.mxu0 0.0
    %613 = vmatpush1.msra.mxu0 0.0
    %614 = vmatprep.subr.mxu0 0.0
    %615 = vmatpush1.msra.mxu0 0.0
    %616 = vmatprep.subr.mxu0 0.0
    %617 = vmatpush1.msra.mxu0 0.0
    %618 = vmatprep.subr.mxu0 0.0
    %619 = vmatpush1.msra.mxu0 0.0
    %620 = vmatprep.subr.mxu0 0.0
    %621 = vmatpush1.msra.mxu0 0.0
    %622 = vmatprep.subr.mxu0 0.0
    %623 = vmatpush1.msra.mxu0 0.0
    %624 = vmatprep.subr.mxu0 0.0
    %625 = vmatpush1.msra.mxu0 0.0
    %626 = vmatprep.subr.mxu0 0.0
    %627 = vmatpush1.msra.mxu0 0.0
    %628 = vmatprep.subr.mxu0 0.0
    %629 = vmatpush1.msra.mxu0 0.0
    %630 = vmatprep.subr.mxu0 0.0
    %631 = vmatpush1.msra.mxu0 0.0
    %632 = vmatprep.subr.mxu0 0.0
    %633 = vmatpush1.msra.mxu0 0.0
    %634 = vmatprep.subr.mxu0 0.0
    %635 = vmatpush1.msra.mxu0 0.0
    %636 = vmatprep.subr.mxu0 0.0
    %637 = vmatpush1.msra.mxu0 0.0
    %638 = vmatprep.subr.mxu0 0.0
    %639 = vmatpush1.msra.mxu0 0.0
    %640 = vmatprep.subr.mxu0 0.0
    %641 = vmatpush1.msra.mxu0 0.0
    %642 = vmatprep.subr.mxu0 0.0
    %643 = vmatpush1.msra.mxu0 0.0
    %644 = vmatprep.subr.mxu0 0.0
    %645 = vmatpush1.msra.mxu0 0.0
    %646 = vmatprep.subr.mxu0 0.0
    %647 = vmatpush1.msra.mxu0 0.0
    %648 = vmatprep.mubr.f32.mxu0 0.0
    %v649 = vand.u32 %v48, 4294901760
    %650 = vmatmul.mubr.f32.gmra.mrb[0].mxu0 %v649
    %v651 = vpop.f32.mrb[0].mxu0
    %v652 = vadd.f32 %v559, %v651
    %v653 = vpop.f32.mrb[0].mxu0
    %654 = vmatprep.mubr.f32.mxu0 0.0
    %v655 = vand.u32 %v51, 4294901760
    %656 = vmatmul.mubr.f32.gmra.mrb[0].mxu0 %v655
    %v657 = vpop.f32.mrb[0].mxu0
    %v658 = vadd.f32 %v565, %v657
    %v659 = vpop.f32.mrb[0].mxu0
    %660 = vmatprep.mubr.f32.mxu0 0.0
    %v661 = vand.u32 %v54, 4294901760
    %662 = vmatmul.mubr.f32.gmra.mrb[0].mxu0 %v661
    %v663 = vpop.f32.mrb[0].mxu0
    %v664 = vadd.f32 %v571, %v663
    %v665 = vpop.f32.mrb[0].mxu0
    %666 = vmatprep.mubr.f32.mxu0 0.0
    %v667 = vand.u32 %v57, 4294901760
    %668 = vmatmul.mubr.f32.gmra.mrb[0].mxu0 %v667
    %v669 = vpop.f32.mrb[0].mxu0
    %v670 = vadd.f32 %v577, %v669
    %v671 = vpop.f32.mrb[0].mxu0
    %672 = vdwg.mxu0
    %s673 = scalar_lea.vmem %s1, 32
    %v674 = vld [vmem:[%s673] sm:$0xff]
    %v675 = vld [vmem:[%s673 + $0x8] sm:$0xff]
    %v676 = vld [vmem:[%s673 + $0x10] sm:$0xff]
    %v677 = vld [vmem:[%s673 + $0x18] sm:$0xff]
    %v678 = vlaneseq
    %v679 = vshrl.u32 %v678, 7
    %v680 = vsub.s32 5, %v679
    %v681 = vrot.slane %v36, %v680
    %682 = vmatprep.subr.mxu0 0.0
    %v683 = vand.u32 %v674, 4294901760
    %684 = vmatpush1.msra.mxu0 %v683
    %685 = vmatprep.subr.mxu0 0.0
    %v686 = vand.u32 %v675, 4294901760
    %687 = vmatpush1.msra.mxu0 %v686
    %688 = vmatprep.subr.mxu0 0.0
    %v689 = vand.u32 %v676, 4294901760
    %690 = vmatpush1.msra.mxu0 %v689
    %691 = vmatprep.subr.mxu0 0.0
    %v692 = vand.u32 %v677, 4294901760
    %693 = vmatpush1.msra.mxu0 %v692
    %694 = vmatprep.subr.mxu0 0.0
    %695 = vmatpush1.msra.mxu0 0.0
    %696 = vmatprep.subr.mxu0 0.0
    %697 = vmatpush1.msra.mxu0 0.0
    %698 = vmatprep.subr.mxu0 0.0
    %699 = vmatpush1.msra.mxu0 0.0
    %700 = vmatprep.subr.mxu0 0.0
    %701 = vmatpush1.msra.mxu0 0.0
    %702 = vmatprep.subr.mxu0 0.0
    %703 = vmatpush1.msra.mxu0 0.0
    %704 = vmatprep.subr.mxu0 0.0
    %705 = vmatpush1.msra.mxu0 0.0
    %706 = vmatprep.subr.mxu0 0.0
    %707 = vmatpush1.msra.mxu0 0.0
    %708 = vmatprep.subr.mxu0 0.0
    %709 = vmatpush1.msra.mxu0 0.0
    %710 = vmatprep.subr.mxu0 0.0
    %711 = vmatpush1.msra.mxu0 0.0
    %712 = vmatprep.subr.mxu0 0.0
    %713 = vmatpush1.msra.mxu0 0.0
    %714 = vmatprep.subr.mxu0 0.0
    %715 = vmatpush1.msra.mxu0 0.0
    %716 = vmatprep.subr.mxu0 0.0
    %717 = vmatpush1.msra.mxu0 0.0
    %718 = vmatprep.subr.mxu0 0.0
    %719 = vmatpush1.msra.mxu0 0.0
    %720 = vmatprep.subr.mxu0 0.0
    %721 = vmatpush1.msra.mxu0 0.0
    %722 = vmatprep.subr.mxu0 0.0
    %723 = vmatpush1.msra.mxu0 0.0
    %724 = vmatprep.subr.mxu0 0.0
    %725 = vmatpush1.msra.mxu0 0.0
    %726 = vmatprep.subr.mxu0 0.0
    %727 = vmatpush1.msra.mxu0 0.0
    %728 = vmatprep.subr.mxu0 0.0
    %729 = vmatpush1.msra.mxu0 0.0
    %730 = vmatprep.subr.mxu0 0.0
    %731 = vmatpush1.msra.mxu0 0.0
    %732 = vmatprep.subr.mxu0 0.0
    %733 = vmatpush1.msra.mxu0 0.0
    %734 = vmatprep.subr.mxu0 0.0
    %735 = vmatpush1.msra.mxu0 0.0
    %736 = vmatprep.subr.mxu0 0.0
    %737 = vmatpush1.msra.mxu0 0.0
    %738 = vmatprep.subr.mxu0 0.0
    %739 = vmatpush1.msra.mxu0 0.0
    %740 = vmatprep.subr.mxu0 0.0
    %741 = vmatpush1.msra.mxu0 0.0
    %742 = vmatprep.subr.mxu0 0.0
    %743 = vmatpush1.msra.mxu0 0.0
    %744 = vmatprep.subr.mxu0 0.0
    %745 = vmatpush1.msra.mxu0 0.0
    %746 = vmatprep.subr.mxu0 0.0
    %747 = vmatpush1.msra.mxu0 0.0
    %748 = vmatprep.subr.mxu0 0.0
    %749 = vmatpush1.msra.mxu0 0.0
    %750 = vmatprep.mubr.f32.mxu0 0.0
    %v751 = vand.u32 %v48, 4294901760
    %v752 = vsub.f32 %v48, %v751
    %v753 = vand.u32 %v752, 4294901760
    %v754 = vsub.f32 %v752, %v753
    %v755 = vand.u32 %v754, 4294901760
    %756 = vmatmul.mubr.f32.gmra.mrb[0].mxu0 %v755
    %v757 = vpop.f32.mrb[0].mxu0
    %v758 = vadd.f32 %v681, %v757
    %v759 = vpop.f32.mrb[0].mxu0
    %760 = vmatprep.mubr.f32.mxu0 0.0
    %v761 = vand.u32 %v51, 4294901760
    %v762 = vsub.f32 %v51, %v761
    %v763 = vand.u32 %v762, 4294901760
    %v764 = vsub.f32 %v762, %v763
    %v765 = vand.u32 %v764, 4294901760
    %766 = vmatmul.mubr.f32.gmra.mrb[0].mxu0 %v765
    %v767 = vpop.f32.mrb[0].mxu0
    %v768 = vadd.f32 %v681, %v767
    %v769 = vpop.f32.mrb[0].mxu0
    %770 = vmatprep.mubr.f32.mxu0 0.0
    %v771 = vand.u32 %v54, 4294901760
    %v772 = vsub.f32 %v54, %v771
    %v773 = vand.u32 %v772, 4294901760
    %v774 = vsub.f32 %v772, %v773
    %v775 = vand.u32 %v774, 4294901760
    %776 = vmatmul.mubr.f32.gmra.mrb[0].mxu0 %v775
    %v777 = vpop.f32.mrb[0].mxu0
    %v778 = vadd.f32 %v681, %v777
    %v779 = vpop.f32.mrb[0].mxu0
    %780 = vmatprep.mubr.f32.mxu0 0.0
    %v781 = vand.u32 %v57, 4294901760
    %v782 = vsub.f32 %v57, %v781
    %v783 = vand.u32 %v782, 4294901760
    %v784 = vsub.f32 %v782, %v783
    %v785 = vand.u32 %v784, 4294901760
    %786 = vmatmul.mubr.f32.gmra.mrb[0].mxu0 %v785
    %v787 = vpop.f32.mrb[0].mxu0
    %v788 = vadd.f32 %v681, %v787
    %v789 = vpop.f32.mrb[0].mxu0
    %790 = vdwg.mxu0
    %791 = vmatprep.subr.mxu0 0.0
    %v792 = vand.u32 %v674, 4294901760
    %v793 = vsub.f32 %v674, %v792
    %v794 = vand.u32 %v793, 4294901760
    %v795 = vsub.f32 %v793, %v794
    %v796 = vand.u32 %v795, 4294901760
    %797 = vmatpush1.msra.mxu0 %v796
    %798 = vmatprep.subr.mxu0 0.0
    %v799 = vand.u32 %v675, 4294901760
    %v800 = vsub.f32 %v675, %v799
    %v801 = vand.u32 %v800, 4294901760
    %v802 = vsub.f32 %v800, %v801
    %v803 = vand.u32 %v802, 4294901760
    %804 = vmatpush1.msra.mxu0 %v803
    %805 = vmatprep.subr.mxu0 0.0
    %v806 = vand.u32 %v676, 4294901760
    %v807 = vsub.f32 %v676, %v806
    %v808 = vand.u32 %v807, 4294901760
    %v809 = vsub.f32 %v807, %v808
    %v810 = vand.u32 %v809, 4294901760
    %811 = vmatpush1.msra.mxu0 %v810
    %812 = vmatprep.subr.mxu0 0.0
    %v813 = vand.u32 %v677, 4294901760
    %v814 = vsub.f32 %v677, %v813
    %v815 = vand.u32 %v814, 4294901760
    %v816 = vsub.f32 %v814, %v815
    %v817 = vand.u32 %v816, 4294901760
    %818 = vmatpush1.msra.mxu0 %v817
    %819 = vmatprep.subr.mxu0 0.0
    %820 = vmatpush1.msra.mxu0 0.0
    %821 = vmatprep.subr.mxu0 0.0
    %822 = vmatpush1.msra.mxu0 0.0
    %823 = vmatprep.subr.mxu0 0.0
    %824 = vmatpush1.msra.mxu0 0.0
    %825 = vmatprep.subr.mxu0 0.0
    %826 = vmatpush1.msra.mxu0 0.0
    %827 = vmatprep.subr.mxu0 0.0
    %828 = vmatpush1.msra.mxu0 0.0
    %829 = vmatprep.subr.mxu0 0.0
    %830 = vmatpush1.msra.mxu0 0.0
    %831 = vmatprep.subr.mxu0 0.0
    %832 = vmatpush1.msra.mxu0 0.0
    %833 = vmatprep.subr.mxu0 0.0
    %834 = vmatpush1.msra.mxu0 0.0
    %835 = vmatprep.subr.mxu0 0.0
    %836 = vmatpush1.msra.mxu0 0.0
    %837 = vmatprep.subr.mxu0 0.0
    %838 = vmatpush1.msra.mxu0 0.0
    %839 = vmatprep.subr.mxu0 0.0
    %840 = vmatpush1.msra.mxu0 0.0
    %841 = vmatprep.subr.mxu0 0.0
    %842 = vmatpush1.msra.mxu0 0.0
    %843 = vmatprep.subr.mxu0 0.0
    %844 = vmatpush1.msra.mxu0 0.0
    %845 = vmatprep.subr.mxu0 0.0
    %846 = vmatpush1.msra.mxu0 0.0
    %847 = vmatprep.subr.mxu0 0.0
    %848 = vmatpush1.msra.mxu0 0.0
    %849 = vmatprep.subr.mxu0 0.0
    %850 = vmatpush1.msra.mxu0 0.0
    %851 = vmatprep.subr.mxu0 0.0
    %852 = vmatpush1.msra.mxu0 0.0
    %853 = vmatprep.subr.mxu0 0.0
    %854 = vmatpush1.msra.mxu0 0.0
    %855 = vmatprep.subr.mxu0 0.0
    %856 = vmatpush1.msra.mxu0 0.0
    %857 = vmatprep.subr.mxu0 0.0
    %858 = vmatpush1.msra.mxu0 0.0
    %859 = vmatprep.subr.mxu0 0.0
    %860 = vmatpush1.msra.mxu0 0.0
    %861 = vmatprep.subr.mxu0 0.0
    %862 = vmatpush1.msra.mxu0 0.0
    %863 = vmatprep.subr.mxu0 0.0
    %864 = vmatpush1.msra.mxu0 0.0
    %865 = vmatprep.subr.mxu0 0.0
    %866 = vmatpush1.msra.mxu0 0.0
    %867 = vmatprep.subr.mxu0 0.0
    %868 = vmatpush1.msra.mxu0 0.0
    %869 = vmatprep.subr.mxu0 0.0
    %870 = vmatpush1.msra.mxu0 0.0
    %871 = vmatprep.subr.mxu0 0.0
    %872 = vmatpush1.msra.mxu0 0.0
    %873 = vmatprep.subr.mxu0 0.0
    %874 = vmatpush1.msra.mxu0 0.0
    %875 = vmatprep.mubr.f32.mxu0 0.0
    %v876 = vand.u32 %v48, 4294901760
    %877 = vmatmul.mubr.f32.gmra.mrb[0].mxu0 %v876
    %v878 = vpop.f32.mrb[0].mxu0
    %v879 = vadd.f32 %v758, %v878
    %v880 = vpop.f32.mrb[0].mxu0
    %881 = vmatprep.mubr.f32.mxu0 0.0
    %v882 = vand.u32 %v51, 4294901760
    %883 = vmatmul.mubr.f32.gmra.mrb[0].mxu0 %v882
    %v884 = vpop.f32.mrb[0].mxu0
    %v885 = vadd.f32 %v768, %v884
    %v886 = vpop.f32.mrb[0].mxu0
    %887 = vmatprep.mubr.f32.mxu0 0.0
    %v888 = vand.u32 %v54, 4294901760
    %889 = vmatmul.mubr.f32.gmra.mrb[0].mxu0 %v888
    %v890 = vpop.f32.mrb[0].mxu0
    %v891 = vadd.f32 %v778, %v890
    %v892 = vpop.f32.mrb[0].mxu0
    %893 = vmatprep.mubr.f32.mxu0 0.0
    %v894 = vand.u32 %v57, 4294901760
    %895 = vmatmul.mubr.f32.gmra.mrb[0].mxu0 %v894
    %v896 = vpop.f32.mrb[0].mxu0
    %v897 = vadd.f32 %v788, %v896
    %v898 = vpop.f32.mrb[0].mxu0
    %899 = vdwg.mxu0
    %900 = vmatprep.subr.mxu0 0.0
    %v901 = vand.u32 %v674, 4294901760
    %v902 = vsub.f32 %v674, %v901
    %903 = vmatpush1.msra.mxu0 %v902
    %904 = vmatprep.subr.mxu0 0.0
    %v905 = vand.u32 %v675, 4294901760
    %v906 = vsub.f32 %v675, %v905
    %907 = vmatpush1.msra.mxu0 %v906
    %908 = vmatprep.subr.mxu0 0.0
    %v909 = vand.u32 %v676, 4294901760
    %v910 = vsub.f32 %v676, %v909
    %911 = vmatpush1.msra.mxu0 %v910
    %912 = vmatprep.subr.mxu0 0.0
    %v913 = vand.u32 %v677, 4294901760
    %v914 = vsub.f32 %v677, %v913
    %915 = vmatpush1.msra.mxu0 %v914
    %916 = vmatprep.subr.mxu0 0.0
    %917 = vmatpush1.msra.mxu0 0.0
    %918 = vmatprep.subr.mxu0 0.0
    %919 = vmatpush1.msra.mxu0 0.0
    %920 = vmatprep.subr.mxu0 0.0
    %921 = vmatpush1.msra.mxu0 0.0
    %922 = vmatprep.subr.mxu0 0.0
    %923 = vmatpush1.msra.mxu0 0.0
    %924 = vmatprep.subr.mxu0 0.0
    %925 = vmatpush1.msra.mxu0 0.0
    %926 = vmatprep.subr.mxu0 0.0
    %927 = vmatpush1.msra.mxu0 0.0
    %928 = vmatprep.subr.mxu0 0.0
    %929 = vmatpush1.msra.mxu0 0.0
    %930 = vmatprep.subr.mxu0 0.0
    %931 = vmatpush1.msra.mxu0 0.0
    %932 = vmatprep.subr.mxu0 0.0
    %933 = vmatpush1.msra.mxu0 0.0
    %934 = vmatprep.subr.mxu0 0.0
    %935 = vmatpush1.msra.mxu0 0.0
    %936 = vmatprep.subr.mxu0 0.0
    %937 = vmatpush1.msra.mxu0 0.0
    %938 = vmatprep.subr.mxu0 0.0
    %939 = vmatpush1.msra.mxu0 0.0
    %940 = vmatprep.subr.mxu0 0.0
    %941 = vmatpush1.msra.mxu0 0.0
    %942 = vmatprep.subr.mxu0 0.0
    %943 = vmatpush1.msra.mxu0 0.0
    %944 = vmatprep.subr.mxu0 0.0
    %945 = vmatpush1.msra.mxu0 0.0
    %946 = vmatprep.subr.mxu0 0.0
    %947 = vmatpush1.msra.mxu0 0.0
    %948 = vmatprep.subr.mxu0 0.0
    %949 = vmatpush1.msra.mxu0 0.0
    %950 = vmatprep.subr.mxu0 0.0
    %951 = vmatpush1.msra.mxu0 0.0
    %952 = vmatprep.subr.mxu0 0.0
    %953 = vmatpush1.msra.mxu0 0.0
    %954 = vmatprep.subr.mxu0 0.0
    %955 = vmatpush1.msra.mxu0 0.0
    %956 = vmatprep.subr.mxu0 0.0
    %957 = vmatpush1.msra.mxu0 0.0
    %958 = vmatprep.subr.mxu0 0.0
    %959 = vmatpush1.msra.mxu0 0.0
    %960 = vmatprep.subr.mxu0 0.0
    %961 = vmatpush1.msra.mxu0 0.0
    %962 = vmatprep.subr.mxu0 0.0
    %963 = vmatpush1.msra.mxu0 0.0
    %964 = vmatprep.subr.mxu0 0.0
    %965 = vmatpush1.msra.mxu0 0.0
    %966 = vmatprep.subr.mxu0 0.0
    %967 = vmatpush1.msra.mxu0 0.0
    %968 = vmatprep.subr.mxu0 0.0
    %969 = vmatpush1.msra.mxu0 0.0
    %970 = vmatprep.subr.mxu0 0.0
    %971 = vmatpush1.msra.mxu0 0.0
    %972 = vmatprep.mubr.f32.mxu0 0.0
    %v973 = vand.u32 %v48, 4294901760
    %v974 = vsub.f32 %v48, %v973
    %975 = vmatmul.mubr.f32.gmra.mrb[0].mxu0 %v974
    %v976 = vpop.f32.mrb[0].mxu0
    %v977 = vadd.f32 %v879, %v976
    %v978 = vpop.f32.mrb[0].mxu0
    %979 = vmatprep.mubr.f32.mxu0 0.0
    %v980 = vand.u32 %v51, 4294901760
    %v981 = vsub.f32 %v51, %v980
    %982 = vmatmul.mubr.f32.gmra.mrb[0].mxu0 %v981
    %v983 = vpop.f32.mrb[0].mxu0
    %v984 = vadd.f32 %v885, %v983
    %v985 = vpop.f32.mrb[0].mxu0
    %986 = vmatprep.mubr.f32.mxu0 0.0
    %v987 = vand.u32 %v54, 4294901760
    %v988 = vsub.f32 %v54, %v987
    %989 = vmatmul.mubr.f32.gmra.mrb[0].mxu0 %v988
    %v990 = vpop.f32.mrb[0].mxu0
    %v991 = vadd.f32 %v891, %v990
    %v992 = vpop.f32.mrb[0].mxu0
    %993 = vmatprep.mubr.f32.mxu0 0.0
    %v994 = vand.u32 %v57, 4294901760
    %v995 = vsub.f32 %v57, %v994
    %996 = vmatmul.mubr.f32.gmra.mrb[0].mxu0 %v995
    %v997 = vpop.f32.mrb[0].mxu0
    %v998 = vadd.f32 %v897, %v997
    %v999 = vpop.f32.mrb[0].mxu0
    %1000 = vdwg.mxu0
    %1001 = vmatprep.subr.mxu0 0.0
    %v1002 = vand.u32 %v674, 4294901760
    %1003 = vmatpush1.msra.mxu0 %v1002
    %1004 = vmatprep.subr.mxu0 0.0
    %v1005 = vand.u32 %v675, 4294901760
    %1006 = vmatpush1.msra.mxu0 %v1005
    %1007 = vmatprep.subr.mxu0 0.0
    %v1008 = vand.u32 %v676, 4294901760
    %1009 = vmatpush1.msra.mxu0 %v1008
    %1010 = vmatprep.subr.mxu0 0.0
    %v1011 = vand.u32 %v677, 4294901760
    %1012 = vmatpush1.msra.mxu0 %v1011
    %1013 = vmatprep.subr.mxu0 0.0
    %1014 = vmatpush1.msra.mxu0 0.0
    %1015 = vmatprep.subr.mxu0 0.0
    %1016 = vmatpush1.msra.mxu0 0.0
    %1017 = vmatprep.subr.mxu0 0.0
    %1018 = vmatpush1.msra.mxu0 0.0
    %1019 = vmatprep.subr.mxu0 0.0
    %1020 = vmatpush1.msra.mxu0 0.0
    %1021 = vmatprep.subr.mxu0 0.0
    %1022 = vmatpush1.msra.mxu0 0.0
    %1023 = vmatprep.subr.mxu0 0.0
    %1024 = vmatpush1.msra.mxu0 0.0
    %1025 = vmatprep.subr.mxu0 0.0
    %1026 = vmatpush1.msra.mxu0 0.0
    %1027 = vmatprep.subr.mxu0 0.0
    %1028 = vmatpush1.msra.mxu0 0.0
    %1029 = vmatprep.subr.mxu0 0.0
    %1030 = vmatpush1.msra.mxu0 0.0
    %1031 = vmatprep.subr.mxu0 0.0
    %1032 = vmatpush1.msra.mxu0 0.0
    %1033 = vmatprep.subr.mxu0 0.0
    %1034 = vmatpush1.msra.mxu0 0.0
    %1035 = vmatprep.subr.mxu0 0.0
    %1036 = vmatpush1.msra.mxu0 0.0
    %1037 = vmatprep.subr.mxu0 0.0
    %1038 = vmatpush1.msra.mxu0 0.0
    %1039 = vmatprep.subr.mxu0 0.0
    %1040 = vmatpush1.msra.mxu0 0.0
    %1041 = vmatprep.subr.mxu0 0.0
    %1042 = vmatpush1.msra.mxu0 0.0
    %1043 = vmatprep.subr.mxu0 0.0
    %1044 = vmatpush1.msra.mxu0 0.0
    %1045 = vmatprep.subr.mxu0 0.0
    %1046 = vmatpush1.msra.mxu0 0.0
    %1047 = vmatprep.subr.mxu0 0.0
    %1048 = vmatpush1.msra.mxu0 0.0
    %1049 = vmatprep.subr.mxu0 0.0
    %1050 = vmatpush1.msra.mxu0 0.0
    %1051 = vmatprep.subr.mxu0 0.0
    %1052 = vmatpush1.msra.mxu0 0.0
    %1053 = vmatprep.subr.mxu0 0.0
    %1054 = vmatpush1.msra.mxu0 0.0
    %1055 = vmatprep.subr.mxu0 0.0
    %1056 = vmatpush1.msra.mxu0 0.0
    %1057 = vmatprep.subr.mxu0 0.0
    %1058 = vmatpush1.msra.mxu0 0.0
    %1059 = vmatprep.subr.mxu0 0.0
    %1060 = vmatpush1.msra.mxu0 0.0
    %1061 = vmatprep.subr.mxu0 0.0
    %1062 = vmatpush1.msra.mxu0 0.0
    %1063 = vmatprep.subr.mxu0 0.0
    %1064 = vmatpush1.msra.mxu0 0.0
    %1065 = vmatprep.subr.mxu0 0.0
    %1066 = vmatpush1.msra.mxu0 0.0
    %1067 = vmatprep.subr.mxu0 0.0
    %1068 = vmatpush1.msra.mxu0 0.0
    %1069 = vmatprep.mubr.f32.mxu0 0.0
    %v1070 = vand.u32 %v48, 4294901760
    %v1071 = vsub.f32 %v48, %v1070
    %v1072 = vand.u32 %v1071, 4294901760
    %1073 = vmatmul.mubr.f32.gmra.mrb[0].mxu0 %v1072
    %v1074 = vpop.f32.mrb[0].mxu0
    %v1075 = vadd.f32 %v977, %v1074
    %v1076 = vpop.f32.mrb[0].mxu0
    %1077 = vmatprep.mubr.f32.mxu0 0.0
    %v1078 = vand.u32 %v51, 4294901760
    %v1079 = vsub.f32 %v51, %v1078
    %v1080 = vand.u32 %v1079, 4294901760
    %1081 = vmatmul.mubr.f32.gmra.mrb[0].mxu0 %v1080
    %v1082 = vpop.f32.mrb[0].mxu0
    %v1083 = vadd.f32 %v984, %v1082
    %v1084 = vpop.f32.mrb[0].mxu0
    %1085 = vmatprep.mubr.f32.mxu0 0.0
    %v1086 = vand.u32 %v54, 4294901760
    %v1087 = vsub.f32 %v54, %v1086
    %v1088 = vand.u32 %v1087, 4294901760
    %1089 = vmatmul.mubr.f32.gmra.mrb[0].mxu0 %v1088
    %v1090 = vpop.f32.mrb[0].mxu0
    %v1091 = vadd.f32 %v991, %v1090
    %v1092 = vpop.f32.mrb[0].mxu0
    %1093 = vmatprep.mubr.f32.mxu0 0.0
    %v1094 = vand.u32 %v57, 4294901760
    %v1095 = vsub.f32 %v57, %v1094
    %v1096 = vand.u32 %v1095, 4294901760
    %1097 = vmatmul.mubr.f32.gmra.mrb[0].mxu0 %v1096
    %v1098 = vpop.f32.mrb[0].mxu0
    %v1099 = vadd.f32 %v998, %v1098
    %v1100 = vpop.f32.mrb[0].mxu0
    %1101 = vdwg.mxu0
    %1102 = vmatprep.subr.mxu0 0.0
    %v1103 = vand.u32 %v674, 4294901760
    %v1104 = vsub.f32 %v674, %v1103
    %v1105 = vand.u32 %v1104, 4294901760
    %1106 = vmatpush1.msra.mxu0 %v1105
    %1107 = vmatprep.subr.mxu0 0.0
    %v1108 = vand.u32 %v675, 4294901760
    %v1109 = vsub.f32 %v675, %v1108
    %v1110 = vand.u32 %v1109, 4294901760
    %1111 = vmatpush1.msra.mxu0 %v1110
    %1112 = vmatprep.subr.mxu0 0.0
    %v1113 = vand.u32 %v676, 4294901760
    %v1114 = vsub.f32 %v676, %v1113
    %v1115 = vand.u32 %v1114, 4294901760
    %1116 = vmatpush1.msra.mxu0 %v1115
    %1117 = vmatprep.subr.mxu0 0.0
    %v1118 = vand.u32 %v677, 4294901760
    %v1119 = vsub.f32 %v677, %v1118
    %v1120 = vand.u32 %v1119, 4294901760
    %1121 = vmatpush1.msra.mxu0 %v1120
    %1122 = vmatprep.subr.mxu0 0.0
    %1123 = vmatpush1.msra.mxu0 0.0
    %1124 = vmatprep.subr.mxu0 0.0
    %1125 = vmatpush1.msra.mxu0 0.0
    %1126 = vmatprep.subr.mxu0 0.0
    %1127 = vmatpush1.msra.mxu0 0.0
    %1128 = vmatprep.subr.mxu0 0.0
    %1129 = vmatpush1.msra.mxu0 0.0
    %1130 = vmatprep.subr.mxu0 0.0
    %1131 = vmatpush1.msra.mxu0 0.0
    %1132 = vmatprep.subr.mxu0 0.0
    %1133 = vmatpush1.msra.mxu0 0.0
    %1134 = vmatprep.subr.mxu0 0.0
    %1135 = vmatpush1.msra.mxu0 0.0
    %1136 = vmatprep.subr.mxu0 0.0
    %1137 = vmatpush1.msra.mxu0 0.0
    %1138 = vmatprep.subr.mxu0 0.0
    %1139 = vmatpush1.msra.mxu0 0.0
    %1140 = vmatprep.subr.mxu0 0.0
    %1141 = vmatpush1.msra.mxu0 0.0
    %1142 = vmatprep.subr.mxu0 0.0
    %1143 = vmatpush1.msra.mxu0 0.0
    %1144 = vmatprep.subr.mxu0 0.0
    %1145 = vmatpush1.msra.mxu0 0.0
    %1146 = vmatprep.subr.mxu0 0.0
    %1147 = vmatpush1.msra.mxu0 0.0
    %1148 = vmatprep.subr.mxu0 0.0
    %1149 = vmatpush1.msra.mxu0 0.0
    %1150 = vmatprep.subr.mxu0 0.0
    %1151 = vmatpush1.msra.mxu0 0.0
    %1152 = vmatprep.subr.mxu0 0.0
    %1153 = vmatpush1.msra.mxu0 0.0
    %1154 = vmatprep.subr.mxu0 0.0
    %1155 = vmatpush1.msra.mxu0 0.0
    %1156 = vmatprep.subr.mxu0 0.0
    %1157 = vmatpush1.msra.mxu0 0.0
    %1158 = vmatprep.subr.mxu0 0.0
    %1159 = vmatpush1.msra.mxu0 0.0
    %1160 = vmatprep.subr.mxu0 0.0
    %1161 = vmatpush1.msra.mxu0 0.0
    %1162 = vmatprep.subr.mxu0 0.0
    %1163 = vmatpush1.msra.mxu0 0.0
    %1164 = vmatprep.subr.mxu0 0.0
    %1165 = vmatpush1.msra.mxu0 0.0
    %1166 = vmatprep.subr.mxu0 0.0
    %1167 = vmatpush1.msra.mxu0 0.0
    %1168 = vmatprep.subr.mxu0 0.0
    %1169 = vmatpush1.msra.mxu0 0.0
    %1170 = vmatprep.subr.mxu0 0.0
    %1171 = vmatpush1.msra.mxu0 0.0
    %1172 = vmatprep.subr.mxu0 0.0
    %1173 = vmatpush1.msra.mxu0 0.0
    %1174 = vmatprep.subr.mxu0 0.0
    %1175 = vmatpush1.msra.mxu0 0.0
    %1176 = vmatprep.subr.mxu0 0.0
    %1177 = vmatpush1.msra.mxu0 0.0
    %1178 = vmatprep.mubr.f32.mxu0 0.0
    %v1179 = vand.u32 %v48, 4294901760
    %1180 = vmatmul.mubr.f32.gmra.mrb[0].mxu0 %v1179
    %v1181 = vpop.f32.mrb[0].mxu0
    %v1182 = vadd.f32 %v1075, %v1181
    %v1183 = vpop.f32.mrb[0].mxu0
    %1184 = vmatprep.mubr.f32.mxu0 0.0
    %v1185 = vand.u32 %v51, 4294901760
    %1186 = vmatmul.mubr.f32.gmra.mrb[0].mxu0 %v1185
    %v1187 = vpop.f32.mrb[0].mxu0
    %v1188 = vadd.f32 %v1083, %v1187
    %v1189 = vpop.f32.mrb[0].mxu0
    %1190 = vmatprep.mubr.f32.mxu0 0.0
    %v1191 = vand.u32 %v54, 4294901760
    %1192 = vmatmul.mubr.f32.gmra.mrb[0].mxu0 %v1191
    %v1193 = vpop.f32.mrb[0].mxu0
    %v1194 = vadd.f32 %v1091, %v1193
    %v1195 = vpop.f32.mrb[0].mxu0
    %1196 = vmatprep.mubr.f32.mxu0 0.0
    %v1197 = vand.u32 %v57, 4294901760
    %1198 = vmatmul.mubr.f32.gmra.mrb[0].mxu0 %v1197
    %v1199 = vpop.f32.mrb[0].mxu0
    %v1200 = vadd.f32 %v1099, %v1199
    %v1201 = vpop.f32.mrb[0].mxu0
    %1202 = vdwg.mxu0
    %1203 = vmatprep.subr.mxu0 0.0
    %v1204 = vand.u32 %v674, 4294901760
    %1205 = vmatpush1.msra.mxu0 %v1204
    %1206 = vmatprep.subr.mxu0 0.0
    %v1207 = vand.u32 %v675, 4294901760
    %1208 = vmatpush1.msra.mxu0 %v1207
    %1209 = vmatprep.subr.mxu0 0.0
    %v1210 = vand.u32 %v676, 4294901760
    %1211 = vmatpush1.msra.mxu0 %v1210
    %1212 = vmatprep.subr.mxu0 0.0
    %v1213 = vand.u32 %v677, 4294901760
    %1214 = vmatpush1.msra.mxu0 %v1213
    %1215 = vmatprep.subr.mxu0 0.0
    %1216 = vmatpush1.msra.mxu0 0.0
    %1217 = vmatprep.subr.mxu0 0.0
    %1218 = vmatpush1.msra.mxu0 0.0
    %1219 = vmatprep.subr.mxu0 0.0
    %1220 = vmatpush1.msra.mxu0 0.0
    %1221 = vmatprep.subr.mxu0 0.0
    %1222 = vmatpush1.msra.mxu0 0.0
    %1223 = vmatprep.subr.mxu0 0.0
    %1224 = vmatpush1.msra.mxu0 0.0
    %1225 = vmatprep.subr.mxu0 0.0
    %1226 = vmatpush1.msra.mxu0 0.0
    %1227 = vmatprep.subr.mxu0 0.0
    %1228 = vmatpush1.msra.mxu0 0.0
    %1229 = vmatprep.subr.mxu0 0.0
    %1230 = vmatpush1.msra.mxu0 0.0
    %1231 = vmatprep.subr.mxu0 0.0
    %1232 = vmatpush1.msra.mxu0 0.0
    %1233 = vmatprep.subr.mxu0 0.0
    %1234 = vmatpush1.msra.mxu0 0.0
    %1235 = vmatprep.subr.mxu0 0.0
    %1236 = vmatpush1.msra.mxu0 0.0
    %1237 = vmatprep.subr.mxu0 0.0
    %1238 = vmatpush1.msra.mxu0 0.0
    %1239 = vmatprep.subr.mxu0 0.0
    %1240 = vmatpush1.msra.mxu0 0.0
    %1241 = vmatprep.subr.mxu0 0.0
    %1242 = vmatpush1.msra.mxu0 0.0
    %1243 = vmatprep.subr.mxu0 0.0
    %1244 = vmatpush1.msra.mxu0 0.0
    %1245 = vmatprep.subr.mxu0 0.0
    %1246 = vmatpush1.msra.mxu0 0.0
    %1247 = vmatprep.subr.mxu0 0.0
    %1248 = vmatpush1.msra.mxu0 0.0
    %1249 = vmatprep.subr.mxu0 0.0
    %1250 = vmatpush1.msra.mxu0 0.0
    %1251 = vmatprep.subr.mxu0 0.0
    %1252 = vmatpush1.msra.mxu0 0.0
    %1253 = vmatprep.subr.mxu0 0.0
    %1254 = vmatpush1.msra.mxu0 0.0
    %1255 = vmatprep.subr.mxu0 0.0
    %1256 = vmatpush1.msra.mxu0 0.0
    %1257 = vmatprep.subr.mxu0 0.0
    %1258 = vmatpush1.msra.mxu0 0.0
    %1259 = vmatprep.subr.mxu0 0.0
    %1260 = vmatpush1.msra.mxu0 0.0
    %1261 = vmatprep.subr.mxu0 0.0
    %1262 = vmatpush1.msra.mxu0 0.0
    %1263 = vmatprep.subr.mxu0 0.0
    %1264 = vmatpush1.msra.mxu0 0.0
    %1265 = vmatprep.subr.mxu0 0.0
    %1266 = vmatpush1.msra.mxu0 0.0
    %1267 = vmatprep.subr.mxu0 0.0
    %1268 = vmatpush1.msra.mxu0 0.0
    %1269 = vmatprep.subr.mxu0 0.0
    %1270 = vmatpush1.msra.mxu0 0.0
    %1271 = vmatprep.mubr.f32.mxu0 0.0
    %v1272 = vand.u32 %v48, 4294901760
    %1273 = vmatmul.mubr.f32.gmra.mrb[0].mxu0 %v1272
    %v1274 = vpop.f32.mrb[0].mxu0
    %v1275 = vadd.f32 %v1182, %v1274
    %v1276 = vpop.f32.mrb[0].mxu0
    %1277 = vmatprep.mubr.f32.mxu0 0.0
    %v1278 = vand.u32 %v51, 4294901760
    %1279 = vmatmul.mubr.f32.gmra.mrb[0].mxu0 %v1278
    %v1280 = vpop.f32.mrb[0].mxu0
    %v1281 = vadd.f32 %v1188, %v1280
    %v1282 = vpop.f32.mrb[0].mxu0
    %1283 = vmatprep.mubr.f32.mxu0 0.0
    %v1284 = vand.u32 %v54, 4294901760
    %1285 = vmatmul.mubr.f32.gmra.mrb[0].mxu0 %v1284
    %v1286 = vpop.f32.mrb[0].mxu0
    %v1287 = vadd.f32 %v1194, %v1286
    %v1288 = vpop.f32.mrb[0].mxu0
    %1289 = vmatprep.mubr.f32.mxu0 0.0
    %v1290 = vand.u32 %v57, 4294901760
    %1291 = vmatmul.mubr.f32.gmra.mrb[0].mxu0 %v1290
    %v1292 = vpop.f32.mrb[0].mxu0
    %v1293 = vadd.f32 %v1200, %v1292
    %v1294 = vpop.f32.mrb[0].mxu0
    %1295 = vdwg.mxu0
    %s1296 = scalar_lea.vmem %s1, 64
    %v1297 = vld [vmem:[%s1296] sm:$0xff]
    %v1298 = vld [vmem:[%s1296 + $0x8] sm:$0xff]
    %v1299 = vld [vmem:[%s1296 + $0x10] sm:$0xff]
    %v1300 = vld [vmem:[%s1296 + $0x18] sm:$0xff]
    %v1301 = vlaneseq
    %v1302 = vshrl.u32 %v1301, 7
    %v1303 = vsub.s32 6, %v1302
    %v1304 = vrot.slane %v36, %v1303
    %1305 = vmatprep.subr.mxu0 0.0
    %v1306 = vand.u32 %v1297, 4294901760
    %1307 = vmatpush1.msra.mxu0 %v1306
    %1308 = vmatprep.subr.mxu0 0.0
    %v1309 = vand.u32 %v1298, 4294901760
    %1310 = vmatpush1.msra.mxu0 %v1309
    %1311 = vmatprep.subr.mxu0 0.0
    %v1312 = vand.u32 %v1299, 4294901760
    %1313 = vmatpush1.msra.mxu0 %v1312
    %1314 = vmatprep.subr.mxu0 0.0
    %v1315 = vand.u32 %v1300, 4294901760
    %1316 = vmatpush1.msra.mxu0 %v1315
    %1317 = vmatprep.subr.mxu0 0.0
    %1318 = vmatpush1.msra.mxu0 0.0
    %1319 = vmatprep.subr.mxu0 0.0
    %1320 = vmatpush1.msra.mxu0 0.0
    %1321 = vmatprep.subr.mxu0 0.0
    %1322 = vmatpush1.msra.mxu0 0.0
    %1323 = vmatprep.subr.mxu0 0.0
    %1324 = vmatpush1.msra.mxu0 0.0
    %1325 = vmatprep.subr.mxu0 0.0
    %1326 = vmatpush1.msra.mxu0 0.0
    %1327 = vmatprep.subr.mxu0 0.0
    %1328 = vmatpush1.msra.mxu0 0.0
    %1329 = vmatprep.subr.mxu0 0.0
    %1330 = vmatpush1.msra.mxu0 0.0
    %1331 = vmatprep.subr.mxu0 0.0
    %1332 = vmatpush1.msra.mxu0 0.0
    %1333 = vmatprep.subr.mxu0 0.0
    %1334 = vmatpush1.msra.mxu0 0.0
    %1335 = vmatprep.subr.mxu0 0.0
    %1336 = vmatpush1.msra.mxu0 0.0
    %1337 = vmatprep.subr.mxu0 0.0
    %1338 = vmatpush1.msra.mxu0 0.0
    %1339 = vmatprep.subr.mxu0 0.0
    %1340 = vmatpush1.msra.mxu0 0.0
    %1341 = vmatprep.subr.mxu0 0.0
    %1342 = vmatpush1.msra.mxu0 0.0
    %1343 = vmatprep.subr.mxu0 0.0
    %1344 = vmatpush1.msra.mxu0 0.0
    %1345 = vmatprep.subr.mxu0 0.0
    %1346 = vmatpush1.msra.mxu0 0.0
    %1347 = vmatprep.subr.mxu0 0.0
    %1348 = vmatpush1.msra.mxu0 0.0
    %1349 = vmatprep.subr.mxu0 0.0
    %1350 = vmatpush1.msra.mxu0 0.0
    %1351 = vmatprep.subr.mxu0 0.0
    %1352 = vmatpush1.msra.mxu0 0.0
    %1353 = vmatprep.subr.mxu0 0.0
    %1354 = vmatpush1.msra.mxu0 0.0
    %1355 = vmatprep.subr.mxu0 0.0
    %1356 = vmatpush1.msra.mxu0 0.0
    %1357 = vmatprep.subr.mxu0 0.0
    %1358 = vmatpush1.msra.mxu0 0.0
    %1359 = vmatprep.subr.mxu0 0.0
    %1360 = vmatpush1.msra.mxu0 0.0
    %1361 = vmatprep.subr.mxu0 0.0
    %1362 = vmatpush1.msra.mxu0 0.0
    %1363 = vmatprep.subr.mxu0 0.0
    %1364 = vmatpush1.msra.mxu0 0.0
    %1365 = vmatprep.subr.mxu0 0.0
    %1366 = vmatpush1.msra.mxu0 0.0
    %1367 = vmatprep.subr.mxu0 0.0
    %1368 = vmatpush1.msra.mxu0 0.0
    %1369 = vmatprep.subr.mxu0 0.0
    %1370 = vmatpush1.msra.mxu0 0.0
    %1371 = vmatprep.subr.mxu0 0.0
    %1372 = vmatpush1.msra.mxu0 0.0
    %1373 = vmatprep.mubr.f32.mxu0 0.0
    %v1374 = vand.u32 %v48, 4294901760
    %v1375 = vsub.f32 %v48, %v1374
    %v1376 = vand.u32 %v1375, 4294901760
    %v1377 = vsub.f32 %v1375, %v1376
    %v1378 = vand.u32 %v1377, 4294901760
    %1379 = vmatmul.mubr.f32.gmra.mrb[0].mxu0 %v1378
    %v1380 = vpop.f32.mrb[0].mxu0
    %v1381 = vadd.f32 %v1304, %v1380
    %v1382 = vpop.f32.mrb[0].mxu0
    %1383 = vmatprep.mubr.f32.mxu0 0.0
    %v1384 = vand.u32 %v51, 4294901760
    %v1385 = vsub.f32 %v51, %v1384
    %v1386 = vand.u32 %v1385, 4294901760
    %v1387 = vsub.f32 %v1385, %v1386
    %v1388 = vand.u32 %v1387, 4294901760
    %1389 = vmatmul.mubr.f32.gmra.mrb[0].mxu0 %v1388
    %v1390 = vpop.f32.mrb[0].mxu0
    %v1391 = vadd.f32 %v1304, %v1390
    %v1392 = vpop.f32.mrb[0].mxu0
    %1393 = vmatprep.mubr.f32.mxu0 0.0
    %v1394 = vand.u32 %v54, 4294901760
    %v1395 = vsub.f32 %v54, %v1394
    %v1396 = vand.u32 %v1395, 4294901760
    %v1397 = vsub.f32 %v1395, %v1396
    %v1398 = vand.u32 %v1397, 4294901760
    %1399 = vmatmul.mubr.f32.gmra.mrb[0].mxu0 %v1398
    %v1400 = vpop.f32.mrb[0].mxu0
    %v1401 = vadd.f32 %v1304, %v1400
    %v1402 = vpop.f32.mrb[0].mxu0
    %1403 = vmatprep.mubr.f32.mxu0 0.0
    %v1404 = vand.u32 %v57, 4294901760
    %v1405 = vsub.f32 %v57, %v1404
    %v1406 = vand.u32 %v1405, 4294901760
    %v1407 = vsub.f32 %v1405, %v1406
    %v1408 = vand.u32 %v1407, 4294901760
    %1409 = vmatmul.mubr.f32.gmra.mrb[0].mxu0 %v1408
    %v1410 = vpop.f32.mrb[0].mxu0
    %v1411 = vadd.f32 %v1304, %v1410
    %v1412 = vpop.f32.mrb[0].mxu0
    %1413 = vdwg.mxu0
    %1414 = vmatprep.subr.mxu0 0.0
    %v1415 = vand.u32 %v1297, 4294901760
    %v1416 = vsub.f32 %v1297, %v1415
    %v1417 = vand.u32 %v1416, 4294901760
    %v1418 = vsub.f32 %v1416, %v1417
    %v1419 = vand.u32 %v1418, 4294901760
    %1420 = vmatpush1.msra.mxu0 %v1419
    %1421 = vmatprep.subr.mxu0 0.0
    %v1422 = vand.u32 %v1298, 4294901760
    %v1423 = vsub.f32 %v1298, %v1422
    %v1424 = vand.u32 %v1423, 4294901760
    %v1425 = vsub.f32 %v1423, %v1424
    %v1426 = vand.u32 %v1425, 4294901760
    %1427 = vmatpush1.msra.mxu0 %v1426
    %1428 = vmatprep.subr.mxu0 0.0
    %v1429 = vand.u32 %v1299, 4294901760
    %v1430 = vsub.f32 %v1299, %v1429
    %v1431 = vand.u32 %v1430, 4294901760
    %v1432 = vsub.f32 %v1430, %v1431
    %v1433 = vand.u32 %v1432, 4294901760
    %1434 = vmatpush1.msra.mxu0 %v1433
    %1435 = vmatprep.subr.mxu0 0.0
    %v1436 = vand.u32 %v1300, 4294901760
    %v1437 = vsub.f32 %v1300, %v1436
    %v1438 = vand.u32 %v1437, 4294901760
    %v1439 = vsub.f32 %v1437, %v1438
    %v1440 = vand.u32 %v1439, 4294901760
    %1441 = vmatpush1.msra.mxu0 %v1440
    %1442 = vmatprep.subr.mxu0 0.0
    %1443 = vmatpush1.msra.mxu0 0.0
    %1444 = vmatprep.subr.mxu0 0.0
    %1445 = vmatpush1.msra.mxu0 0.0
    %1446 = vmatprep.subr.mxu0 0.0
    %1447 = vmatpush1.msra.mxu0 0.0
    %1448 = vmatprep.subr.mxu0 0.0
    %1449 = vmatpush1.msra.mxu0 0.0
    %1450 = vmatprep.subr.mxu0 0.0
    %1451 = vmatpush1.msra.mxu0 0.0
    %1452 = vmatprep.subr.mxu0 0.0
    %1453 = vmatpush1.msra.mxu0 0.0
    %1454 = vmatprep.subr.mxu0 0.0
    %1455 = vmatpush1.msra.mxu0 0.0
    %1456 = vmatprep.subr.mxu0 0.0
    %1457 = vmatpush1.msra.mxu0 0.0
    %1458 = vmatprep.subr.mxu0 0.0
    %1459 = vmatpush1.msra.mxu0 0.0
    %1460 = vmatprep.subr.mxu0 0.0
    %1461 = vmatpush1.msra.mxu0 0.0
    %1462 = vmatprep.subr.mxu0 0.0
    %1463 = vmatpush1.msra.mxu0 0.0
    %1464 = vmatprep.subr.mxu0 0.0
    %1465 = vmatpush1.msra.mxu0 0.0
    %1466 = vmatprep.subr.mxu0 0.0
    %1467 = vmatpush1.msra.mxu0 0.0
    %1468 = vmatprep.subr.mxu0 0.0
    %1469 = vmatpush1.msra.mxu0 0.0
    %1470 = vmatprep.subr.mxu0 0.0
    %1471 = vmatpush1.msra.mxu0 0.0
    %1472 = vmatprep.subr.mxu0 0.0
    %1473 = vmatpush1.msra.mxu0 0.0
    %1474 = vmatprep.subr.mxu0 0.0
    %1475 = vmatpush1.msra.mxu0 0.0
    %1476 = vmatprep.subr.mxu0 0.0
    %1477 = vmatpush1.msra.mxu0 0.0
    %1478 = vmatprep.subr.mxu0 0.0
    %1479 = vmatpush1.msra.mxu0 0.0
    %1480 = vmatprep.subr.mxu0 0.0
    %1481 = vmatpush1.msra.mxu0 0.0
    %1482 = vmatprep.subr.mxu0 0.0
    %1483 = vmatpush1.msra.mxu0 0.0
    %1484 = vmatprep.subr.mxu0 0.0
    %1485 = vmatpush1.msra.mxu0 0.0
    %1486 = vmatprep.subr.mxu0 0.0
    %1487 = vmatpush1.msra.mxu0 0.0
    %1488 = vmatprep.subr.mxu0 0.0
    %1489 = vmatpush1.msra.mxu0 0.0
    %1490 = vmatprep.subr.mxu0 0.0
    %1491 = vmatpush1.msra.mxu0 0.0
    %1492 = vmatprep.subr.mxu0 0.0
    %1493 = vmatpush1.msra.mxu0 0.0
    %1494 = vmatprep.subr.mxu0 0.0
    %1495 = vmatpush1.msra.mxu0 0.0
    %1496 = vmatprep.subr.mxu0 0.0
    %1497 = vmatpush1.msra.mxu0 0.0
    %1498 = vmatprep.mubr.f32.mxu0 0.0
    %v1499 = vand.u32 %v48, 4294901760
    %1500 = vmatmul.mubr.f32.gmra.mrb[0].mxu0 %v1499
    %v1501 = vpop.f32.mrb[0].mxu0
    %v1502 = vadd.f32 %v1381, %v1501
    %v1503 = vpop.f32.mrb[0].mxu0
    %1504 = vmatprep.mubr.f32.mxu0 0.0
    %v1505 = vand.u32 %v51, 4294901760
    %1506 = vmatmul.mubr.f32.gmra.mrb[0].mxu0 %v1505
    %v1507 = vpop.f32.mrb[0].mxu0
    %v1508 = vadd.f32 %v1391, %v1507
    %v1509 = vpop.f32.mrb[0].mxu0
    %1510 = vmatprep.mubr.f32.mxu0 0.0
    %v1511 = vand.u32 %v54, 4294901760
    %1512 = vmatmul.mubr.f32.gmra.mrb[0].mxu0 %v1511
    %v1513 = vpop.f32.mrb[0].mxu0
    %v1514 = vadd.f32 %v1401, %v1513
    %v1515 = vpop.f32.mrb[0].mxu0
    %1516 = vmatprep.mubr.f32.mxu0 0.0
    %v1517 = vand.u32 %v57, 4294901760
    %1518 = vmatmul.mubr.f32.gmra.mrb[0].mxu0 %v1517
    %v1519 = vpop.f32.mrb[0].mxu0
    %v1520 = vadd.f32 %v1411, %v1519
    %v1521 = vpop.f32.mrb[0].mxu0
    %1522 = vdwg.mxu0
    %1523 = vmatprep.subr.mxu0 0.0
    %v1524 = vand.u32 %v1297, 4294901760
    %v1525 = vsub.f32 %v1297, %v1524
    %1526 = vmatpush1.msra.mxu0 %v1525
    %1527 = vmatprep.subr.mxu0 0.0
    %v1528 = vand.u32 %v1298, 4294901760
    %v1529 = vsub.f32 %v1298, %v1528
    %1530 = vmatpush1.msra.mxu0 %v1529
    %1531 = vmatprep.subr.mxu0 0.0
    %v1532 = vand.u32 %v1299, 4294901760
    %v1533 = vsub.f32 %v1299, %v1532
    %1534 = vmatpush1.msra.mxu0 %v1533
    %1535 = vmatprep.subr.mxu0 0.0
    %v1536 = vand.u32 %v1300, 4294901760
    %v1537 = vsub.f32 %v1300, %v1536
    %1538 = vmatpush1.msra.mxu0 %v1537
    %1539 = vmatprep.subr.mxu0 0.0
    %1540 = vmatpush1.msra.mxu0 0.0
    %1541 = vmatprep.subr.mxu0 0.0
    %1542 = vmatpush1.msra.mxu0 0.0
    %1543 = vmatprep.subr.mxu0 0.0
    %1544 = vmatpush1.msra.mxu0 0.0
    %1545 = vmatprep.subr.mxu0 0.0
    %1546 = vmatpush1.msra.mxu0 0.0
    %1547 = vmatprep.subr.mxu0 0.0
    %1548 = vmatpush1.msra.mxu0 0.0
    %1549 = vmatprep.subr.mxu0 0.0
    %1550 = vmatpush1.msra.mxu0 0.0
    %1551 = vmatprep.subr.mxu0 0.0
    %1552 = vmatpush1.msra.mxu0 0.0
    %1553 = vmatprep.subr.mxu0 0.0
    %1554 = vmatpush1.msra.mxu0 0.0
    %1555 = vmatprep.subr.mxu0 0.0
    %1556 = vmatpush1.msra.mxu0 0.0
    %1557 = vmatprep.subr.mxu0 0.0
    %1558 = vmatpush1.msra.mxu0 0.0
    %1559 = vmatprep.subr.mxu0 0.0
    %1560 = vmatpush1.msra.mxu0 0.0
    %1561 = vmatprep.subr.mxu0 0.0
    %1562 = vmatpush1.msra.mxu0 0.0
    %1563 = vmatprep.subr.mxu0 0.0
    %1564 = vmatpush1.msra.mxu0 0.0
    %1565 = vmatprep.subr.mxu0 0.0
    %1566 = vmatpush1.msra.mxu0 0.0
    %1567 = vmatprep.subr.mxu0 0.0
    %1568 = vmatpush1.msra.mxu0 0.0
    %1569 = vmatprep.subr.mxu0 0.0
    %1570 = vmatpush1.msra.mxu0 0.0
    %1571 = vmatprep.subr.mxu0 0.0
    %1572 = vmatpush1.msra.mxu0 0.0
    %1573 = vmatprep.subr.mxu0 0.0
    %1574 = vmatpush1.msra.mxu0 0.0
    %1575 = vmatprep.subr.mxu0 0.0
    %1576 = vmatpush1.msra.mxu0 0.0
    %1577 = vmatprep.subr.mxu0 0.0
    %1578 = vmatpush1.msra.mxu0 0.0
    %1579 = vmatprep.subr.mxu0 0.0
    %1580 = vmatpush1.msra.mxu0 0.0
    %1581 = vmatprep.subr.mxu0 0.0
    %1582 = vmatpush1.msra.mxu0 0.0
    %1583 = vmatprep.subr.mxu0 0.0
    %1584 = vmatpush1.msra.mxu0 0.0
    %1585 = vmatprep.subr.mxu0 0.0
    %1586 = vmatpush1.msra.mxu0 0.0
    %1587 = vmatprep.subr.mxu0 0.0
    %1588 = vmatpush1.msra.mxu0 0.0
    %1589 = vmatprep.subr.mxu0 0.0
    %1590 = vmatpush1.msra.mxu0 0.0
    %1591 = vmatprep.subr.mxu0 0.0
    %1592 = vmatpush1.msra.mxu0 0.0
    %1593 = vmatprep.subr.mxu0 0.0
    %1594 = vmatpush1.msra.mxu0 0.0
    %1595 = vmatprep.mubr.f32.mxu0 0.0
    %v1596 = vand.u32 %v48, 4294901760
    %v1597 = vsub.f32 %v48, %v1596
    %1598 = vmatmul.mubr.f32.gmra.mrb[0].mxu0 %v1597
    %v1599 = vpop.f32.mrb[0].mxu0
    %v1600 = vadd.f32 %v1502, %v1599
    %v1601 = vpop.f32.mrb[0].mxu0
    %1602 = vmatprep.mubr.f32.mxu0 0.0
    %v1603 = vand.u32 %v51, 4294901760
    %v1604 = vsub.f32 %v51, %v1603
    %1605 = vmatmul.mubr.f32.gmra.mrb[0].mxu0 %v1604
    %v1606 = vpop.f32.mrb[0].mxu0
    %v1607 = vadd.f32 %v1508, %v1606
    %v1608 = vpop.f32.mrb[0].mxu0
    %1609 = vmatprep.mubr.f32.mxu0 0.0
    %v1610 = vand.u32 %v54, 4294901760
    %v1611 = vsub.f32 %v54, %v1610
    %1612 = vmatmul.mubr.f32.gmra.mrb[0].mxu0 %v1611
    %v1613 = vpop.f32.mrb[0].mxu0
    %v1614 = vadd.f32 %v1514, %v1613
    %v1615 = vpop.f32.mrb[0].mxu0
    %1616 = vmatprep.mubr.f32.mxu0 0.0
    %v1617 = vand.u32 %v57, 4294901760
    %v1618 = vsub.f32 %v57, %v1617
    %1619 = vmatmul.mubr.f32.gmra.mrb[0].mxu0 %v1618
    %v1620 = vpop.f32.mrb[0].mxu0
    %v1621 = vadd.f32 %v1520, %v1620
    %v1622 = vpop.f32.mrb[0].mxu0
    %1623 = vdwg.mxu0
    %1624 = vmatprep.subr.mxu0 0.0
    %v1625 = vand.u32 %v1297, 4294901760
    %1626 = vmatpush1.msra.mxu0 %v1625
    %1627 = vmatprep.subr.mxu0 0.0
    %v1628 = vand.u32 %v1298, 4294901760
    %1629 = vmatpush1.msra.mxu0 %v1628
    %1630 = vmatprep.subr.mxu0 0.0
    %v1631 = vand.u32 %v1299, 4294901760
    %1632 = vmatpush1.msra.mxu0 %v1631
    %1633 = vmatprep.subr.mxu0 0.0
    %v1634 = vand.u32 %v1300, 4294901760
    %1635 = vmatpush1.msra.mxu0 %v1634
    %1636 = vmatprep.subr.mxu0 0.0
    %1637 = vmatpush1.msra.mxu0 0.0
    %1638 = vmatprep.subr.mxu0 0.0
    %1639 = vmatpush1.msra.mxu0 0.0
    %1640 = vmatprep.subr.mxu0 0.0
    %1641 = vmatpush1.msra.mxu0 0.0
    %1642 = vmatprep.subr.mxu0 0.0
    %1643 = vmatpush1.msra.mxu0 0.0
    %1644 = vmatprep.subr.mxu0 0.0
    %1645 = vmatpush1.msra.mxu0 0.0
    %1646 = vmatprep.subr.mxu0 0.0
    %1647 = vmatpush1.msra.mxu0 0.0
    %1648 = vmatprep.subr.mxu0 0.0
    %1649 = vmatpush1.msra.mxu0 0.0
    %1650 = vmatprep.subr.mxu0 0.0
    %1651 = vmatpush1.msra.mxu0 0.0
    %1652 = vmatprep.subr.mxu0 0.0
    %1653 = vmatpush1.msra.mxu0 0.0
    %1654 = vmatprep.subr.mxu0 0.0
    %1655 = vmatpush1.msra.mxu0 0.0
    %1656 = vmatprep.subr.mxu0 0.0
    %1657 = vmatpush1.msra.mxu0 0.0
    %1658 = vmatprep.subr.mxu0 0.0
    %1659 = vmatpush1.msra.mxu0 0.0
    %1660 = vmatprep.subr.mxu0 0.0
    %1661 = vmatpush1.msra.mxu0 0.0
    %1662 = vmatprep.subr.mxu0 0.0
    %1663 = vmatpush1.msra.mxu0 0.0
    %1664 = vmatprep.subr.mxu0 0.0
    %1665 = vmatpush1.msra.mxu0 0.0
    %1666 = vmatprep.subr.mxu0 0.0
    %1667 = vmatpush1.msra.mxu0 0.0
    %1668 = vmatprep.subr.mxu0 0.0
    %1669 = vmatpush1.msra.mxu0 0.0
    %1670 = vmatprep.subr.mxu0 0.0
    %1671 = vmatpush1.msra.mxu0 0.0
    %1672 = vmatprep.subr.mxu0 0.0
    %1673 = vmatpush1.msra.mxu0 0.0
    %1674 = vmatprep.subr.mxu0 0.0
    %1675 = vmatpush1.msra.mxu0 0.0
    %1676 = vmatprep.subr.mxu0 0.0
    %1677 = vmatpush1.msra.mxu0 0.0
    %1678 = vmatprep.subr.mxu0 0.0
    %1679 = vmatpush1.msra.mxu0 0.0
    %1680 = vmatprep.subr.mxu0 0.0
    %1681 = vmatpush1.msra.mxu0 0.0
    %1682 = vmatprep.subr.mxu0 0.0
    %1683 = vmatpush1.msra.mxu0 0.0
    %1684 = vmatprep.subr.mxu0 0.0
    %1685 = vmatpush1.msra.mxu0 0.0
    %1686 = vmatprep.subr.mxu0 0.0
    %1687 = vmatpush1.msra.mxu0 0.0
    %1688 = vmatprep.subr.mxu0 0.0
    %1689 = vmatpush1.msra.mxu0 0.0
    %1690 = vmatprep.subr.mxu0 0.0
    %1691 = vmatpush1.msra.mxu0 0.0
    %1692 = vmatprep.mubr.f32.mxu0 0.0
    %v1693 = vand.u32 %v48, 4294901760
    %v1694 = vsub.f32 %v48, %v1693
    %v1695 = vand.u32 %v1694, 4294901760
    %1696 = vmatmul.mubr.f32.gmra.mrb[0].mxu0 %v1695
    %v1697 = vpop.f32.mrb[0].mxu0
    %v1698 = vadd.f32 %v1600, %v1697
    %v1699 = vpop.f32.mrb[0].mxu0
    %1700 = vmatprep.mubr.f32.mxu0 0.0
    %v1701 = vand.u32 %v51, 4294901760
    %v1702 = vsub.f32 %v51, %v1701
    %v1703 = vand.u32 %v1702, 4294901760
    %1704 = vmatmul.mubr.f32.gmra.mrb[0].mxu0 %v1703
    %v1705 = vpop.f32.mrb[0].mxu0
    %v1706 = vadd.f32 %v1607, %v1705
    %v1707 = vpop.f32.mrb[0].mxu0
    %1708 = vmatprep.mubr.f32.mxu0 0.0
    %v1709 = vand.u32 %v54, 4294901760
    %v1710 = vsub.f32 %v54, %v1709
    %v1711 = vand.u32 %v1710, 4294901760
    %1712 = vmatmul.mubr.f32.gmra.mrb[0].mxu0 %v1711
    %v1713 = vpop.f32.mrb[0].mxu0
    %v1714 = vadd.f32 %v1614, %v1713
    %v1715 = vpop.f32.mrb[0].mxu0
    %1716 = vmatprep.mubr.f32.mxu0 0.0
    %v1717 = vand.u32 %v57, 4294901760
    %v1718 = vsub.f32 %v57, %v1717
    %v1719 = vand.u32 %v1718, 4294901760
    %1720 = vmatmul.mubr.f32.gmra.mrb[0].mxu0 %v1719
    %v1721 = vpop.f32.mrb[0].mxu0
    %v1722 = vadd.f32 %v1621, %v1721
    %v1723 = vpop.f32.mrb[0].mxu0
    %1724 = vdwg.mxu0
    %1725 = vmatprep.subr.mxu0 0.0
    %v1726 = vand.u32 %v1297, 4294901760
    %v1727 = vsub.f32 %v1297, %v1726
    %v1728 = vand.u32 %v1727, 4294901760
    %1729 = vmatpush1.msra.mxu0 %v1728
    %1730 = vmatprep.subr.mxu0 0.0
    %v1731 = vand.u32 %v1298, 4294901760
    %v1732 = vsub.f32 %v1298, %v1731
    %v1733 = vand.u32 %v1732, 4294901760
    %1734 = vmatpush1.msra.mxu0 %v1733
    %1735 = vmatprep.subr.mxu0 0.0
    %v1736 = vand.u32 %v1299, 4294901760
    %v1737 = vsub.f32 %v1299, %v1736
    %v1738 = vand.u32 %v1737, 4294901760
    %1739 = vmatpush1.msra.mxu0 %v1738
    %1740 = vmatprep.subr.mxu0 0.0
    %v1741 = vand.u32 %v1300, 4294901760
    %v1742 = vsub.f32 %v1300, %v1741
    %v1743 = vand.u32 %v1742, 4294901760
    %1744 = vmatpush1.msra.mxu0 %v1743
    %1745 = vmatprep.subr.mxu0 0.0
    %1746 = vmatpush1.msra.mxu0 0.0
    %1747 = vmatprep.subr.mxu0 0.0
    %1748 = vmatpush1.msra.mxu0 0.0
    %1749 = vmatprep.subr.mxu0 0.0
    %1750 = vmatpush1.msra.mxu0 0.0
    %1751 = vmatprep.subr.mxu0 0.0
    %1752 = vmatpush1.msra.mxu0 0.0
    %1753 = vmatprep.subr.mxu0 0.0
    %1754 = vmatpush1.msra.mxu0 0.0
    %1755 = vmatprep.subr.mxu0 0.0
    %1756 = vmatpush1.msra.mxu0 0.0
    %1757 = vmatprep.subr.mxu0 0.0
    %1758 = vmatpush1.msra.mxu0 0.0
    %1759 = vmatprep.subr.mxu0 0.0
    %1760 = vmatpush1.msra.mxu0 0.0
    %1761 = vmatprep.subr.mxu0 0.0
    %1762 = vmatpush1.msra.mxu0 0.0
    %1763 = vmatprep.subr.mxu0 0.0
    %1764 = vmatpush1.msra.mxu0 0.0
    %1765 = vmatprep.subr.mxu0 0.0
    %1766 = vmatpush1.msra.mxu0 0.0
    %1767 = vmatprep.subr.mxu0 0.0
    %1768 = vmatpush1.msra.mxu0 0.0
    %1769 = vmatprep.subr.mxu0 0.0
    %1770 = vmatpush1.msra.mxu0 0.0
    %1771 = vmatprep.subr.mxu0 0.0
    %1772 = vmatpush1.msra.mxu0 0.0
    %1773 = vmatprep.subr.mxu0 0.0
    %1774 = vmatpush1.msra.mxu0 0.0
    %1775 = vmatprep.subr.mxu0 0.0
    %1776 = vmatpush1.msra.mxu0 0.0
    %1777 = vmatprep.subr.mxu0 0.0
    %1778 = vmatpush1.msra.mxu0 0.0
    %1779 = vmatprep.subr.mxu0 0.0
    %1780 = vmatpush1.msra.mxu0 0.0
    %1781 = vmatprep.subr.mxu0 0.0
    %1782 = vmatpush1.msra.mxu0 0.0
    %1783 = vmatprep.subr.mxu0 0.0
    %1784 = vmatpush1.msra.mxu0 0.0
    %1785 = vmatprep.subr.mxu0 0.0
    %1786 = vmatpush1.msra.mxu0 0.0
    %1787 = vmatprep.subr.mxu0 0.0
    %1788 = vmatpush1.msra.mxu0 0.0
    %1789 = vmatprep.subr.mxu0 0.0
    %1790 = vmatpush1.msra.mxu0 0.0
    %1791 = vmatprep.subr.mxu0 0.0
    %1792 = vmatpush1.msra.mxu0 0.0
    %1793 = vmatprep.subr.mxu0 0.0
    %1794 = vmatpush1.msra.mxu0 0.0
    %1795 = vmatprep.subr.mxu0 0.0
    %1796 = vmatpush1.msra.mxu0 0.0
    %1797 = vmatprep.subr.mxu0 0.0
    %1798 = vmatpush1.msra.mxu0 0.0
    %1799 = vmatprep.subr.mxu0 0.0
    %1800 = vmatpush1.msra.mxu0 0.0
    %1801 = vmatprep.mubr.f32.mxu0 0.0
    %v1802 = vand.u32 %v48, 4294901760
    %1803 = vmatmul.mubr.f32.gmra.mrb[0].mxu0 %v1802
    %v1804 = vpop.f32.mrb[0].mxu0
    %v1805 = vadd.f32 %v1698, %v1804
    %v1806 = vpop.f32.mrb[0].mxu0
    %1807 = vmatprep.mubr.f32.mxu0 0.0
    %v1808 = vand.u32 %v51, 4294901760
    %1809 = vmatmul.mubr.f32.gmra.mrb[0].mxu0 %v1808
    %v1810 = vpop.f32.mrb[0].mxu0
    %v1811 = vadd.f32 %v1706, %v1810
    %v1812 = vpop.f32.mrb[0].mxu0
    %1813 = vmatprep.mubr.f32.mxu0 0.0
    %v1814 = vand.u32 %v54, 4294901760
    %1815 = vmatmul.mubr.f32.gmra.mrb[0].mxu0 %v1814
    %v1816 = vpop.f32.mrb[0].mxu0
    %v1817 = vadd.f32 %v1714, %v1816
    %v1818 = vpop.f32.mrb[0].mxu0
    %1819 = vmatprep.mubr.f32.mxu0 0.0
    %v1820 = vand.u32 %v57, 4294901760
    %1821 = vmatmul.mubr.f32.gmra.mrb[0].mxu0 %v1820
    %v1822 = vpop.f32.mrb[0].mxu0
    %v1823 = vadd.f32 %v1722, %v1822
    %v1824 = vpop.f32.mrb[0].mxu0
    %1825 = vdwg.mxu0
    %1826 = vmatprep.subr.mxu0 0.0
    %v1827 = vand.u32 %v1297, 4294901760
    %1828 = vmatpush1.msra.mxu0 %v1827
    %1829 = vmatprep.subr.mxu0 0.0
    %v1830 = vand.u32 %v1298, 4294901760
    %1831 = vmatpush1.msra.mxu0 %v1830
    %1832 = vmatprep.subr.mxu0 0.0
    %v1833 = vand.u32 %v1299, 4294901760
    %1834 = vmatpush1.msra.mxu0 %v1833
    %1835 = vmatprep.subr.mxu0 0.0
    %v1836 = vand.u32 %v1300, 4294901760
    %1837 = vmatpush1.msra.mxu0 %v1836
    %1838 = vmatprep.subr.mxu0 0.0
    %1839 = vmatpush1.msra.mxu0 0.0
    %1840 = vmatprep.subr.mxu0 0.0
    %1841 = vmatpush1.msra.mxu0 0.0
    %1842 = vmatprep.subr.mxu0 0.0
    %1843 = vmatpush1.msra.mxu0 0.0
    %1844 = vmatprep.subr.mxu0 0.0
    %1845 = vmatpush1.msra.mxu0 0.0
    %1846 = vmatprep.subr.mxu0 0.0
    %1847 = vmatpush1.msra.mxu0 0.0
    %1848 = vmatprep.subr.mxu0 0.0
    %1849 = vmatpush1.msra.mxu0 0.0
    %1850 = vmatprep.subr.mxu0 0.0
    %1851 = vmatpush1.msra.mxu0 0.0
    %1852 = vmatprep.subr.mxu0 0.0
    %1853 = vmatpush1.msra.mxu0 0.0
    %1854 = vmatprep.subr.mxu0 0.0
    %1855 = vmatpush1.msra.mxu0 0.0
    %1856 = vmatprep.subr.mxu0 0.0
    %1857 = vmatpush1.msra.mxu0 0.0
    %1858 = vmatprep.subr.mxu0 0.0
    %1859 = vmatpush1.msra.mxu0 0.0
    %1860 = vmatprep.subr.mxu0 0.0
    %1861 = vmatpush1.msra.mxu0 0.0
    %1862 = vmatprep.subr.mxu0 0.0
    %1863 = vmatpush1.msra.mxu0 0.0
    %1864 = vmatprep.subr.mxu0 0.0
    %1865 = vmatpush1.msra.mxu0 0.0
    %1866 = vmatprep.subr.mxu0 0.0
    %1867 = vmatpush1.msra.mxu0 0.0
    %1868 = vmatprep.subr.mxu0 0.0
    %1869 = vmatpush1.msra.mxu0 0.0
    %1870 = vmatprep.subr.mxu0 0.0
    %1871 = vmatpush1.msra.mxu0 0.0
    %1872 = vmatprep.subr.mxu0 0.0
    %1873 = vmatpush1.msra.mxu0 0.0
    %1874 = vmatprep.subr.mxu0 0.0
    %1875 = vmatpush1.msra.mxu0 0.0
    %1876 = vmatprep.subr.mxu0 0.0
    %1877 = vmatpush1.msra.mxu0 0.0
    %1878 = vmatprep.subr.mxu0 0.0
    %1879 = vmatpush1.msra.mxu0 0.0
    %1880 = vmatprep.subr.mxu0 0.0
    %1881 = vmatpush1.msra.mxu0 0.0
    %1882 = vmatprep.subr.mxu0 0.0
    %1883 = vmatpush1.msra.mxu0 0.0
    %1884 = vmatprep.subr.mxu0 0.0
    %1885 = vmatpush1.msra.mxu0 0.0
    %1886 = vmatprep.subr.mxu0 0.0
    %1887 = vmatpush1.msra.mxu0 0.0
    %1888 = vmatprep.subr.mxu0 0.0
    %1889 = vmatpush1.msra.mxu0 0.0
    %1890 = vmatprep.subr.mxu0 0.0
    %1891 = vmatpush1.msra.mxu0 0.0
    %1892 = vmatprep.subr.mxu0 0.0
    %1893 = vmatpush1.msra.mxu0 0.0
    %1894 = vmatprep.mubr.f32.mxu0 0.0
    %v1895 = vand.u32 %v48, 4294901760
    %1896 = vmatmul.mubr.f32.gmra.mrb[0].mxu0 %v1895
    %v1897 = vpop.f32.mrb[0].mxu0
    %v1898 = vadd.f32 %v1805, %v1897
    %v1899 = vpop.f32.mrb[0].mxu0
    %1900 = vmatprep.mubr.f32.mxu0 0.0
    %v1901 = vand.u32 %v51, 4294901760
    %1902 = vmatmul.mubr.f32.gmra.mrb[0].mxu0 %v1901
    %v1903 = vpop.f32.mrb[0].mxu0
    %v1904 = vadd.f32 %v1811, %v1903
    %v1905 = vpop.f32.mrb[0].mxu0
    %1906 = vmatprep.mubr.f32.mxu0 0.0
    %v1907 = vand.u32 %v54, 4294901760
    %1908 = vmatmul.mubr.f32.gmra.mrb[0].mxu0 %v1907
    %v1909 = vpop.f32.mrb[0].mxu0
    %v1910 = vadd.f32 %v1817, %v1909
    %v1911 = vpop.f32.mrb[0].mxu0
    %1912 = vmatprep.mubr.f32.mxu0 0.0
    %v1913 = vand.u32 %v57, 4294901760
    %1914 = vmatmul.mubr.f32.gmra.mrb[0].mxu0 %v1913
    %v1915 = vpop.f32.mrb[0].mxu0
    %v1916 = vadd.f32 %v1823, %v1915
    %v1917 = vpop.f32.mrb[0].mxu0
    %1918 = vdwg.mxu0
    %v1921 = vunpack.c.l.s4 1966171168
    %v1922 = vunpack.c.0.s8 %v1921
    %v1923 = vlaneseq
    %v1924 = vshrl.u32 %v1923, 7
    %v1925 = vsub.s32 %v1922, %v1924
    %v1926 = vrot.slane %v36, %v1925
    %v1927 = vcombine.high %v1926, %v1926
    %v1929 = vunpack.c.l.s4 1966171168
    %v1930 = vunpack.c.0.s8 %v1929
    %v1931 = vlaneseq
    %v1932 = vshrl.u32 %v1931, 7
    %v1933 = vsub.s32 %v1930, %v1932
    %v1934 = vrot.slane %v1926, %v1933
    %v1936 = vunpack.c.l.s4 1966171168
    %v1937 = vunpack.c.0.s8 %v1936
    %v1938 = vlaneseq
    %v1939 = vshrl.u32 %v1938, 7
    %v1940 = vsub.s32 %v1937, %v1939
    %v1941 = vrot.slane %v1927, %v1940
    %v1942 = vcombine.high %v1934, %v1934
    %v1943 = vcombine.high %v1941, %v1941
    %v1944 = vlaneseq
    %v1945 = vshrl.u32 %v1944, 7
    %v1946 = vsub.s32 0, %v1945
    %v1947 = vrot.slane %v1934, %v1946
    %v1948 = vlaneseq
    %v1949 = vshrl.u32 %v1948, 7
    %v1950 = vsub.s32 0, %v1949
    %v1951 = vrot.slane %v1941, %v1950
    %v1952 = vlaneseq
    %v1953 = vshrl.u32 %v1952, 7
    %v1954 = vsub.s32 0, %v1953
    %v1955 = vrot.slane %v1942, %v1954
    %v1956 = vlaneseq
    %v1957 = vshrl.u32 %v1956, 7
    %v1958 = vsub.s32 0, %v1957
    %v1959 = vrot.slane %v1943, %v1958
    %v1964 = vmul.f32 %v1947, %v652
    %v1965 = vmul.f32 %v1947, %v658
    %v1966 = vmul.f32 %v1947, %v664
    %v1967 = vmul.f32 %v1947, %v670
    %v1968 = vmul.f32 %v1951, %v652
    %v1969 = vmul.f32 %v1951, %v658
    %v1970 = vmul.f32 %v1951, %v664
    %v1971 = vmul.f32 %v1951, %v670
    %v1972 = vmul.f32 %v1955, %v652
    %v1973 = vmul.f32 %v1955, %v658
    %v1974 = vmul.f32 %v1955, %v664
    %v1975 = vmul.f32 %v1955, %v670
    %v1976 = vmul.f32 %v1959, %v652
    %v1977 = vmul.f32 %v1959, %v658
    %v1978 = vmul.f32 %v1959, %v664
    %v1979 = vmul.f32 %v1959, %v670
    %v1980 = vmul.f32 %v1947, %v1898
    %v1981 = vmul.f32 %v1947, %v1904
    %v1982 = vmul.f32 %v1947, %v1910
    %v1983 = vmul.f32 %v1947, %v1916
    %v1984 = vmul.f32 %v1951, %v1898
    %v1985 = vmul.f32 %v1951, %v1904
    %v1986 = vmul.f32 %v1951, %v1910
    %v1987 = vmul.f32 %v1951, %v1916
    %v1988 = vmul.f32 %v1955, %v1898
    %v1989 = vmul.f32 %v1955, %v1904
    %v1990 = vmul.f32 %v1955, %v1910
    %v1991 = vmul.f32 %v1955, %v1916
    %v1992 = vmul.f32 %v1959, %v1898
    %v1993 = vmul.f32 %v1959, %v1904
    %v1994 = vmul.f32 %v1959, %v1910
    %v1995 = vmul.f32 %v1959, %v1916
    %v1996 = vld [vmem:[%s3] sm:$0xff]
    %v1997 = vld [vmem:[%s3 + $0x8] sm:$0xff]
    %v1998 = vld [vmem:[%s3 + $0x10] sm:$0xff]
    %v1999 = vld [vmem:[%s3 + $0x18] sm:$0xff]
    %v2000 = vld [vmem:[%s3 + $0x20] sm:$0xff]
    %v2001 = vld [vmem:[%s3 + $0x28] sm:$0xff]
    %v2002 = vld [vmem:[%s3 + $0x30] sm:$0xff]
    %v2003 = vld [vmem:[%s3 + $0x38] sm:$0xff]
    %v2004 = vld [vmem:[%s3 + $0x40] sm:$0xff]
    %v2005 = vld [vmem:[%s3 + $0x48] sm:$0xff]
    %v2006 = vld [vmem:[%s3 + $0x50] sm:$0xff]
    %v2007 = vld [vmem:[%s3 + $0x58] sm:$0xff]
    %v2008 = vld [vmem:[%s3 + $0x60] sm:$0xff]
    %v2009 = vld [vmem:[%s3 + $0x68] sm:$0xff]
    %v2010 = vld [vmem:[%s3 + $0x70] sm:$0xff]
    %v2011 = vld [vmem:[%s3 + $0x78] sm:$0xff]
    %v2013 = vsel %vm46, %v1964, 0
    %v2016 = vsel %vm46, %v1965, 0
    %v2019 = vsel %vm46, %v1966, 0
    %v2022 = vsel %vm46, %v1967, 0
    %v2025 = vsel %vm46, %v1968, 0
    %v2028 = vsel %vm46, %v1969, 0
    %v2031 = vsel %vm46, %v1970, 0
    %v2034 = vsel %vm46, %v1971, 0
    %v2037 = vsel %vm46, %v1972, 0
    %v2040 = vsel %vm46, %v1973, 0
    %v2043 = vsel %vm46, %v1974, 0
    %v2046 = vsel %vm46, %v1975, 0
    %v2049 = vsel %vm46, %v1976, 0
    %v2052 = vsel %vm46, %v1977, 0
    %v2055 = vsel %vm46, %v1978, 0
    %v2058 = vsel %vm46, %v1979, 0
    %v2061 = vsel %vm46, %v1275, 0
    %v2064 = vsel %vm46, %v1281, 0
    %v2067 = vsel %vm46, %v1287, 0
    %v2070 = vsel %vm46, %v1293, 0
    %2072 = vmatprep.subr.mxu0 0.0
    %v2073 = vand.u32 %v2061, 4294901760
    %2074 = vmatpush1.xpose.msra.mxu0 %v2073
    %2075 = vmatprep.subr.mxu0 0.0
    %v2076 = vand.u32 %v2064, 4294901760
    %2077 = vmatpush1.xpose.msra.mxu0 %v2076
    %2078 = vmatprep.subr.mxu0 0.0
    %v2079 = vand.u32 %v2067, 4294901760
    %2080 = vmatpush1.xpose.msra.mxu0 %v2079
    %2081 = vmatprep.subr.mxu0 0.0
    %v2082 = vand.u32 %v2070, 4294901760
    %2083 = vmatpush1.xpose.msra.mxu0 %v2082
    %2084 = vmatprep.subr.mxu0 0.0
    %2085 = vmatpush1.xpose.msra.mxu0 0.0
    %2086 = vmatprep.subr.mxu0 0.0
    %2087 = vmatpush1.xpose.msra.mxu0 0.0
    %2088 = vmatprep.subr.mxu0 0.0
    %2089 = vmatpush1.xpose.msra.mxu0 0.0
    %2090 = vmatprep.subr.mxu0 0.0
    %2091 = vmatpush1.xpose.msra.mxu0 0.0
    %2092 = vmatprep.subr.mxu0 0.0
    %2093 = vmatpush1.xpose.msra.mxu0 0.0
    %2094 = vmatprep.subr.mxu0 0.0
    %2095 = vmatpush1.xpose.msra.mxu0 0.0
    %2096 = vmatprep.subr.mxu0 0.0
    %2097 = vmatpush1.xpose.msra.mxu0 0.0
    %2098 = vmatprep.subr.mxu0 0.0
    %2099 = vmatpush1.xpose.msra.mxu0 0.0
    %2100 = vmatprep.subr.mxu0 0.0
    %2101 = vmatpush1.xpose.msra.mxu0 0.0
    %2102 = vmatprep.subr.mxu0 0.0
    %2103 = vmatpush1.xpose.msra.mxu0 0.0
    %2104 = vmatprep.subr.mxu0 0.0
    %2105 = vmatpush1.xpose.msra.mxu0 0.0
    %2106 = vmatprep.subr.mxu0 0.0
    %2107 = vmatpush1.xpose.msra.mxu0 0.0
    %2108 = vmatprep.subr.mxu0 0.0
    %2109 = vmatpush1.xpose.msra.mxu0 0.0
    %2110 = vmatprep.subr.mxu0 0.0
    %2111 = vmatpush1.xpose.msra.mxu0 0.0
    %2112 = vmatprep.subr.mxu0 0.0
    %2113 = vmatpush1.xpose.msra.mxu0 0.0
    %2114 = vmatprep.subr.mxu0 0.0
    %2115 = vmatpush1.xpose.msra.mxu0 0.0
    %2116 = vmatprep.subr.mxu0 0.0
    %2117 = vmatpush1.xpose.msra.mxu0 0.0
    %2118 = vmatprep.subr.mxu0 0.0
    %2119 = vmatpush1.xpose.msra.mxu0 0.0
    %2120 = vmatprep.subr.mxu0 0.0
    %2121 = vmatpush1.xpose.msra.mxu0 0.0
    %2122 = vmatprep.subr.mxu0 0.0
    %2123 = vmatpush1.xpose.msra.mxu0 0.0
    %2124 = vmatprep.subr.mxu0 0.0
    %2125 = vmatpush1.xpose.msra.mxu0 0.0
    %2126 = vmatprep.subr.mxu0 0.0
    %2127 = vmatpush1.xpose.msra.mxu0 0.0
    %2128 = vmatprep.subr.mxu0 0.0
    %2129 = vmatpush1.xpose.msra.mxu0 0.0
    %2130 = vmatprep.subr.mxu0 0.0
    %2131 = vmatpush1.xpose.msra.mxu0 0.0
    %2132 = vmatprep.subr.mxu0 0.0
    %2133 = vmatpush1.xpose.msra.mxu0 0.0
    %2134 = vmatprep.subr.mxu0 0.0
    %2135 = vmatpush1.xpose.msra.mxu0 0.0
    %2136 = vmatprep.subr.mxu0 0.0
    %2137 = vmatpush1.xpose.msra.mxu0 0.0
    %2138 = vmatprep.subr.mxu0 0.0
    %2139 = vmatpush1.xpose.msra.mxu0 0.0
    %2140 = vmatprep.mubr.f32.mxu0 0.0
    %v2141 = vand.u32 %v2013, 4294901760
    %v2142 = vsub.f32 %v2013, %v2141
    %v2143 = vand.u32 %v2142, 4294901760
    %v2144 = vsub.f32 %v2142, %v2143
    %v2145 = vand.u32 %v2144, 4294901760
    %2146 = vmatmul.mubr.f32.gmra.mrb[0].mxu0 %v2145
    %v2147 = vpop.f32.mrb[0].mxu0
    %v2148 = vadd.f32 %v1996, %v2147
    %v2149 = vpop.f32.mrb[0].mxu0
    %2150 = vmatprep.mubr.f32.mxu0 0.0
    %v2151 = vand.u32 %v2016, 4294901760
    %v2152 = vsub.f32 %v2016, %v2151
    %v2153 = vand.u32 %v2152, 4294901760
    %v2154 = vsub.f32 %v2152, %v2153
    %v2155 = vand.u32 %v2154, 4294901760
    %2156 = vmatmul.mubr.f32.gmra.mrb[0].mxu0 %v2155
    %v2157 = vpop.f32.mrb[0].mxu0
    %v2158 = vadd.f32 %v1997, %v2157
    %v2159 = vpop.f32.mrb[0].mxu0
    %2160 = vmatprep.mubr.f32.mxu0 0.0
    %v2161 = vand.u32 %v2019, 4294901760
    %v2162 = vsub.f32 %v2019, %v2161
    %v2163 = vand.u32 %v2162, 4294901760
    %v2164 = vsub.f32 %v2162, %v2163
    %v2165 = vand.u32 %v2164, 4294901760
    %2166 = vmatmul.mubr.f32.gmra.mrb[0].mxu0 %v2165
    %v2167 = vpop.f32.mrb[0].mxu0
    %v2168 = vadd.f32 %v1998, %v2167
    %v2169 = vpop.f32.mrb[0].mxu0
    %2170 = vmatprep.mubr.f32.mxu0 0.0
    %v2171 = vand.u32 %v2022, 4294901760
    %v2172 = vsub.f32 %v2022, %v2171
    %v2173 = vand.u32 %v2172, 4294901760
    %v2174 = vsub.f32 %v2172, %v2173
    %v2175 = vand.u32 %v2174, 4294901760
    %2176 = vmatmul.mubr.f32.gmra.mrb[0].mxu0 %v2175
    %v2177 = vpop.f32.mrb[0].mxu0
    %v2178 = vadd.f32 %v1999, %v2177
    %v2179 = vpop.f32.mrb[0].mxu0
    %2180 = vmatprep.mubr.f32.mxu0 0.0
    %v2181 = vand.u32 %v2025, 4294901760
    %v2182 = vsub.f32 %v2025, %v2181
    %v2183 = vand.u32 %v2182, 4294901760
    %v2184 = vsub.f32 %v2182, %v2183
    %v2185 = vand.u32 %v2184, 4294901760
    %2186 = vmatmul.mubr.f32.gmra.mrb[0].mxu0 %v2185
    %v2187 = vpop.f32.mrb[0].mxu0
    %v2188 = vadd.f32 %v2000, %v2187
    %v2189 = vpop.f32.mrb[0].mxu0
    %2190 = vmatprep.mubr.f32.mxu0 0.0
    %v2191 = vand.u32 %v2028, 4294901760
    %v2192 = vsub.f32 %v2028, %v2191
    %v2193 = vand.u32 %v2192, 4294901760
    %v2194 = vsub.f32 %v2192, %v2193
    %v2195 = vand.u32 %v2194, 4294901760
    %2196 = vmatmul.mubr.f32.gmra.mrb[0].mxu0 %v2195
    %v2197 = vpop.f32.mrb[0].mxu0
    %v2198 = vadd.f32 %v2001, %v2197
    %v2199 = vpop.f32.mrb[0].mxu0
    %2200 = vmatprep.mubr.f32.mxu0 0.0
    %v2201 = vand.u32 %v2031, 4294901760
    %v2202 = vsub.f32 %v2031, %v2201
    %v2203 = vand.u32 %v2202, 4294901760
    %v2204 = vsub.f32 %v2202, %v2203
    %v2205 = vand.u32 %v2204, 4294901760
    %2206 = vmatmul.mubr.f32.gmra.mrb[0].mxu0 %v2205
    %v2207 = vpop.f32.mrb[0].mxu0
    %v2208 = vadd.f32 %v2002, %v2207
    %v2209 = vpop.f32.mrb[0].mxu0
    %2210 = vmatprep.mubr.f32.mxu0 0.0
    %v2211 = vand.u32 %v2034, 4294901760
    %v2212 = vsub.f32 %v2034, %v2211
    %v2213 = vand.u32 %v2212, 4294901760
    %v2214 = vsub.f32 %v2212, %v2213
    %v2215 = vand.u32 %v2214, 4294901760
    %2216 = vmatmul.mubr.f32.gmra.mrb[0].mxu0 %v2215
    %v2217 = vpop.f32.mrb[0].mxu0
    %v2218 = vadd.f32 %v2003, %v2217
    %v2219 = vpop.f32.mrb[0].mxu0
    %2220 = vmatprep.mubr.f32.mxu0 0.0
    %v2221 = vand.u32 %v2037, 4294901760
    %v2222 = vsub.f32 %v2037, %v2221
    %v2223 = vand.u32 %v2222, 4294901760
    %v2224 = vsub.f32 %v2222, %v2223
    %v2225 = vand.u32 %v2224, 4294901760
    %2226 = vmatmul.mubr.f32.gmra.mrb[0].mxu0 %v2225
    %v2227 = vpop.f32.mrb[0].mxu0
    %v2228 = vadd.f32 %v2004, %v2227
    %v2229 = vpop.f32.mrb[0].mxu0
    %2230 = vmatprep.mubr.f32.mxu0 0.0
    %v2231 = vand.u32 %v2040, 4294901760
    %v2232 = vsub.f32 %v2040, %v2231
    %v2233 = vand.u32 %v2232, 4294901760
    %v2234 = vsub.f32 %v2232, %v2233
    %v2235 = vand.u32 %v2234, 4294901760
    %2236 = vmatmul.mubr.f32.gmra.mrb[0].mxu0 %v2235
    %v2237 = vpop.f32.mrb[0].mxu0
    %v2238 = vadd.f32 %v2005, %v2237
    %v2239 = vpop.f32.mrb[0].mxu0
    %2240 = vmatprep.mubr.f32.mxu0 0.0
    %v2241 = vand.u32 %v2043, 4294901760
    %v2242 = vsub.f32 %v2043, %v2241
    %v2243 = vand.u32 %v2242, 4294901760
    %v2244 = vsub.f32 %v2242, %v2243
    %v2245 = vand.u32 %v2244, 4294901760
    %2246 = vmatmul.mubr.f32.gmra.mrb[0].mxu0 %v2245
    %v2247 = vpop.f32.mrb[0].mxu0
    %v2248 = vadd.f32 %v2006, %v2247
    %v2249 = vpop.f32.mrb[0].mxu0
    %2250 = vmatprep.mubr.f32.mxu0 0.0
    %v2251 = vand.u32 %v2046, 4294901760
    %v2252 = vsub.f32 %v2046, %v2251
    %v2253 = vand.u32 %v2252, 4294901760
    %v2254 = vsub.f32 %v2252, %v2253
    %v2255 = vand.u32 %v2254, 4294901760
    %2256 = vmatmul.mubr.f32.gmra.mrb[0].mxu0 %v2255
    %v2257 = vpop.f32.mrb[0].mxu0
    %v2258 = vadd.f32 %v2007, %v2257
    %v2259 = vpop.f32.mrb[0].mxu0
    %2260 = vmatprep.mubr.f32.mxu0 0.0
    %v2261 = vand.u32 %v2049, 4294901760
    %v2262 = vsub.f32 %v2049, %v2261
    %v2263 = vand.u32 %v2262, 4294901760
    %v2264 = vsub.f32 %v2262, %v2263
    %v2265 = vand.u32 %v2264, 4294901760
    %2266 = vmatmul.mubr.f32.gmra.mrb[0].mxu0 %v2265
    %v2267 = vpop.f32.mrb[0].mxu0
    %v2268 = vadd.f32 %v2008, %v2267
    %v2269 = vpop.f32.mrb[0].mxu0
    %2270 = vmatprep.mubr.f32.mxu0 0.0
    %v2271 = vand.u32 %v2052, 4294901760
    %v2272 = vsub.f32 %v2052, %v2271
    %v2273 = vand.u32 %v2272, 4294901760
    %v2274 = vsub.f32 %v2272, %v2273
    %v2275 = vand.u32 %v2274, 4294901760
    %2276 = vmatmul.mubr.f32.gmra.mrb[0].mxu0 %v2275
    %v2277 = vpop.f32.mrb[0].mxu0
    %v2278 = vadd.f32 %v2009, %v2277
    %v2279 = vpop.f32.mrb[0].mxu0
    %2280 = vmatprep.mubr.f32.mxu0 0.0
    %v2281 = vand.u32 %v2055, 4294901760
    %v2282 = vsub.f32 %v2055, %v2281
    %v2283 = vand.u32 %v2282, 4294901760
    %v2284 = vsub.f32 %v2282, %v2283
    %v2285 = vand.u32 %v2284, 4294901760
    %2286 = vmatmul.mubr.f32.gmra.mrb[0].mxu0 %v2285
    %v2287 = vpop.f32.mrb[0].mxu0
    %v2288 = vadd.f32 %v2010, %v2287
    %v2289 = vpop.f32.mrb[0].mxu0
    %2290 = vmatprep.mubr.f32.mxu0 0.0
    %v2291 = vand.u32 %v2058, 4294901760
    %v2292 = vsub.f32 %v2058, %v2291
    %v2293 = vand.u32 %v2292, 4294901760
    %v2294 = vsub.f32 %v2292, %v2293
    %v2295 = vand.u32 %v2294, 4294901760
    %2296 = vmatmul.mubr.f32.gmra.mrb[0].mxu0 %v2295
    %v2297 = vpop.f32.mrb[0].mxu0
    %v2298 = vadd.f32 %v2011, %v2297
    %v2299 = vpop.f32.mrb[0].mxu0
    %2300 = vdwg.mxu0
    %2301 = vmatprep.subr.mxu0 0.0
    %v2302 = vand.u32 %v2061, 4294901760
    %v2303 = vsub.f32 %v2061, %v2302
    %v2304 = vand.u32 %v2303, 4294901760
    %v2305 = vsub.f32 %v2303, %v2304
    %v2306 = vand.u32 %v2305, 4294901760
    %2307 = vmatpush1.xpose.msra.mxu0 %v2306
    %2308 = vmatprep.subr.mxu0 0.0
    %v2309 = vand.u32 %v2064, 4294901760
    %v2310 = vsub.f32 %v2064, %v2309
    %v2311 = vand.u32 %v2310, 4294901760
    %v2312 = vsub.f32 %v2310, %v2311
    %v2313 = vand.u32 %v2312, 4294901760
    %2314 = vmatpush1.xpose.msra.mxu0 %v2313
    %2315 = vmatprep.subr.mxu0 0.0
    %v2316 = vand.u32 %v2067, 4294901760
    %v2317 = vsub.f32 %v2067, %v2316
    %v2318 = vand.u32 %v2317, 4294901760
    %v2319 = vsub.f32 %v2317, %v2318
    %v2320 = vand.u32 %v2319, 4294901760
    %2321 = vmatpush1.xpose.msra.mxu0 %v2320
    %2322 = vmatprep.subr.mxu0 0.0
    %v2323 = vand.u32 %v2070, 4294901760
    %v2324 = vsub.f32 %v2070, %v2323
    %v2325 = vand.u32 %v2324, 4294901760
    %v2326 = vsub.f32 %v2324, %v2325
    %v2327 = vand.u32 %v2326, 4294901760
    %2328 = vmatpush1.xpose.msra.mxu0 %v2327
    %2329 = vmatprep.subr.mxu0 0.0
    %2330 = vmatpush1.xpose.msra.mxu0 0.0
    %2331 = vmatprep.subr.mxu0 0.0
    %2332 = vmatpush1.xpose.msra.mxu0 0.0
    %2333 = vmatprep.subr.mxu0 0.0
    %2334 = vmatpush1.xpose.msra.mxu0 0.0
    %2335 = vmatprep.subr.mxu0 0.0
    %2336 = vmatpush1.xpose.msra.mxu0 0.0
    %2337 = vmatprep.subr.mxu0 0.0
    %2338 = vmatpush1.xpose.msra.mxu0 0.0
    %2339 = vmatprep.subr.mxu0 0.0
    %2340 = vmatpush1.xpose.msra.mxu0 0.0
    %2341 = vmatprep.subr.mxu0 0.0
    %2342 = vmatpush1.xpose.msra.mxu0 0.0
    %2343 = vmatprep.subr.mxu0 0.0
    %2344 = vmatpush1.xpose.msra.mxu0 0.0
    %2345 = vmatprep.subr.mxu0 0.0
    %2346 = vmatpush1.xpose.msra.mxu0 0.0
    %2347 = vmatprep.subr.mxu0 0.0
    %2348 = vmatpush1.xpose.msra.mxu0 0.0
    %2349 = vmatprep.subr.mxu0 0.0
    %2350 = vmatpush1.xpose.msra.mxu0 0.0
    %2351 = vmatprep.subr.mxu0 0.0
    %2352 = vmatpush1.xpose.msra.mxu0 0.0
    %2353 = vmatprep.subr.mxu0 0.0
    %2354 = vmatpush1.xpose.msra.mxu0 0.0
    %2355 = vmatprep.subr.mxu0 0.0
    %2356 = vmatpush1.xpose.msra.mxu0 0.0
    %2357 = vmatprep.subr.mxu0 0.0
    %2358 = vmatpush1.xpose.msra.mxu0 0.0
    %2359 = vmatprep.subr.mxu0 0.0
    %2360 = vmatpush1.xpose.msra.mxu0 0.0
    %2361 = vmatprep.subr.mxu0 0.0
    %2362 = vmatpush1.xpose.msra.mxu0 0.0
    %2363 = vmatprep.subr.mxu0 0.0
    %2364 = vmatpush1.xpose.msra.mxu0 0.0
    %2365 = vmatprep.subr.mxu0 0.0
    %2366 = vmatpush1.xpose.msra.mxu0 0.0
    %2367 = vmatprep.subr.mxu0 0.0
    %2368 = vmatpush1.xpose.msra.mxu0 0.0
    %2369 = vmatprep.subr.mxu0 0.0
    %2370 = vmatpush1.xpose.msra.mxu0 0.0
    %2371 = vmatprep.subr.mxu0 0.0
    %2372 = vmatpush1.xpose.msra.mxu0 0.0
    %2373 = vmatprep.subr.mxu0 0.0
    %2374 = vmatpush1.xpose.msra.mxu0 0.0
    %2375 = vmatprep.subr.mxu0 0.0
    %2376 = vmatpush1.xpose.msra.mxu0 0.0
    %2377 = vmatprep.subr.mxu0 0.0
    %2378 = vmatpush1.xpose.msra.mxu0 0.0
    %2379 = vmatprep.subr.mxu0 0.0
    %2380 = vmatpush1.xpose.msra.mxu0 0.0
    %2381 = vmatprep.subr.mxu0 0.0
    %2382 = vmatpush1.xpose.msra.mxu0 0.0
    %2383 = vmatprep.subr.mxu0 0.0
    %2384 = vmatpush1.xpose.msra.mxu0 0.0
    %2385 = vmatprep.mubr.f32.mxu0 0.0
    %v2386 = vand.u32 %v2013, 4294901760
    %2387 = vmatmul.mubr.f32.gmra.mrb[0].mxu0 %v2386
    %v2388 = vpop.f32.mrb[0].mxu0
    %v2389 = vadd.f32 %v2148, %v2388
    %v2390 = vpop.f32.mrb[0].mxu0
    %2391 = vmatprep.mubr.f32.mxu0 0.0
    %v2392 = vand.u32 %v2016, 4294901760
    %2393 = vmatmul.mubr.f32.gmra.mrb[0].mxu0 %v2392
    %v2394 = vpop.f32.mrb[0].mxu0
    %v2395 = vadd.f32 %v2158, %v2394
    %v2396 = vpop.f32.mrb[0].mxu0
    %2397 = vmatprep.mubr.f32.mxu0 0.0
    %v2398 = vand.u32 %v2019, 4294901760
    %2399 = vmatmul.mubr.f32.gmra.mrb[0].mxu0 %v2398
    %v2400 = vpop.f32.mrb[0].mxu0
    %v2401 = vadd.f32 %v2168, %v2400
    %v2402 = vpop.f32.mrb[0].mxu0
    %2403 = vmatprep.mubr.f32.mxu0 0.0
    %v2404 = vand.u32 %v2022, 4294901760
    %2405 = vmatmul.mubr.f32.gmra.mrb[0].mxu0 %v2404
    %v2406 = vpop.f32.mrb[0].mxu0
    %v2407 = vadd.f32 %v2178, %v2406
    %v2408 = vpop.f32.mrb[0].mxu0
    %2409 = vmatprep.mubr.f32.mxu0 0.0
    %v2410 = vand.u32 %v2025, 4294901760
    %2411 = vmatmul.mubr.f32.gmra.mrb[0].mxu0 %v2410
    %v2412 = vpop.f32.mrb[0].mxu0
    %v2413 = vadd.f32 %v2188, %v2412
    %v2414 = vpop.f32.mrb[0].mxu0
    %2415 = vmatprep.mubr.f32.mxu0 0.0
    %v2416 = vand.u32 %v2028, 4294901760
    %2417 = vmatmul.mubr.f32.gmra.mrb[0].mxu0 %v2416
    %v2418 = vpop.f32.mrb[0].mxu0
    %v2419 = vadd.f32 %v2198, %v2418
    %v2420 = vpop.f32.mrb[0].mxu0
    %2421 = vmatprep.mubr.f32.mxu0 0.0
    %v2422 = vand.u32 %v2031, 4294901760
    %2423 = vmatmul.mubr.f32.gmra.mrb[0].mxu0 %v2422
    %v2424 = vpop.f32.mrb[0].mxu0
    %v2425 = vadd.f32 %v2208, %v2424
    %v2426 = vpop.f32.mrb[0].mxu0
    %2427 = vmatprep.mubr.f32.mxu0 0.0
    %v2428 = vand.u32 %v2034, 4294901760
    %2429 = vmatmul.mubr.f32.gmra.mrb[0].mxu0 %v2428
    %v2430 = vpop.f32.mrb[0].mxu0
    %v2431 = vadd.f32 %v2218, %v2430
    %v2432 = vpop.f32.mrb[0].mxu0
    %2433 = vmatprep.mubr.f32.mxu0 0.0
    %v2434 = vand.u32 %v2037, 4294901760
    %2435 = vmatmul.mubr.f32.gmra.mrb[0].mxu0 %v2434
    %v2436 = vpop.f32.mrb[0].mxu0
    %v2437 = vadd.f32 %v2228, %v2436
    %v2438 = vpop.f32.mrb[0].mxu0
    %2439 = vmatprep.mubr.f32.mxu0 0.0
    %v2440 = vand.u32 %v2040, 4294901760
    %2441 = vmatmul.mubr.f32.gmra.mrb[0].mxu0 %v2440
    %v2442 = vpop.f32.mrb[0].mxu0
    %v2443 = vadd.f32 %v2238, %v2442
    %v2444 = vpop.f32.mrb[0].mxu0
    %2445 = vmatprep.mubr.f32.mxu0 0.0
    %v2446 = vand.u32 %v2043, 4294901760
    %2447 = vmatmul.mubr.f32.gmra.mrb[0].mxu0 %v2446
    %v2448 = vpop.f32.mrb[0].mxu0
    %v2449 = vadd.f32 %v2248, %v2448
    %v2450 = vpop.f32.mrb[0].mxu0
    %2451 = vmatprep.mubr.f32.mxu0 0.0
    %v2452 = vand.u32 %v2046, 4294901760
    %2453 = vmatmul.mubr.f32.gmra.mrb[0].mxu0 %v2452
    %v2454 = vpop.f32.mrb[0].mxu0
    %v2455 = vadd.f32 %v2258, %v2454
    %v2456 = vpop.f32.mrb[0].mxu0
    %2457 = vmatprep.mubr.f32.mxu0 0.0
    %v2458 = vand.u32 %v2049, 4294901760
    %2459 = vmatmul.mubr.f32.gmra.mrb[0].mxu0 %v2458
    %v2460 = vpop.f32.mrb[0].mxu0
    %v2461 = vadd.f32 %v2268, %v2460
    %v2462 = vpop.f32.mrb[0].mxu0
    %2463 = vmatprep.mubr.f32.mxu0 0.0
    %v2464 = vand.u32 %v2052, 4294901760
    %2465 = vmatmul.mubr.f32.gmra.mrb[0].mxu0 %v2464
    %v2466 = vpop.f32.mrb[0].mxu0
    %v2467 = vadd.f32 %v2278, %v2466
    %v2468 = vpop.f32.mrb[0].mxu0
    %2469 = vmatprep.mubr.f32.mxu0 0.0
    %v2470 = vand.u32 %v2055, 4294901760
    %2471 = vmatmul.mubr.f32.gmra.mrb[0].mxu0 %v2470
    %v2472 = vpop.f32.mrb[0].mxu0
    %v2473 = vadd.f32 %v2288, %v2472
    %v2474 = vpop.f32.mrb[0].mxu0
    %2475 = vmatprep.mubr.f32.mxu0 0.0
    %v2476 = vand.u32 %v2058, 4294901760
    %2477 = vmatmul.mubr.f32.gmra.mrb[0].mxu0 %v2476
    %v2478 = vpop.f32.mrb[0].mxu0
    %v2479 = vadd.f32 %v2298, %v2478
    %v2480 = vpop.f32.mrb[0].mxu0
    %2481 = vdwg.mxu0
    %2482 = vmatprep.subr.mxu0 0.0
    %v2483 = vand.u32 %v2061, 4294901760
    %v2484 = vsub.f32 %v2061, %v2483
    %2485 = vmatpush1.xpose.msra.mxu0 %v2484
    %2486 = vmatprep.subr.mxu0 0.0
    %v2487 = vand.u32 %v2064, 4294901760
    %v2488 = vsub.f32 %v2064, %v2487
    %2489 = vmatpush1.xpose.msra.mxu0 %v2488
    %2490 = vmatprep.subr.mxu0 0.0
    %v2491 = vand.u32 %v2067, 4294901760
    %v2492 = vsub.f32 %v2067, %v2491
    %2493 = vmatpush1.xpose.msra.mxu0 %v2492
    %2494 = vmatprep.subr.mxu0 0.0
    %v2495 = vand.u32 %v2070, 4294901760
    %v2496 = vsub.f32 %v2070, %v2495
    %2497 = vmatpush1.xpose.msra.mxu0 %v2496
    %2498 = vmatprep.subr.mxu0 0.0
    %2499 = vmatpush1.xpose.msra.mxu0 0.0
    %2500 = vmatprep.subr.mxu0 0.0
    %2501 = vmatpush1.xpose.msra.mxu0 0.0
    %2502 = vmatprep.subr.mxu0 0.0
    %2503 = vmatpush1.xpose.msra.mxu0 0.0
    %2504 = vmatprep.subr.mxu0 0.0
    %2505 = vmatpush1.xpose.msra.mxu0 0.0
    %2506 = vmatprep.subr.mxu0 0.0
    %2507 = vmatpush1.xpose.msra.mxu0 0.0
    %2508 = vmatprep.subr.mxu0 0.0
    %2509 = vmatpush1.xpose.msra.mxu0 0.0
    %2510 = vmatprep.subr.mxu0 0.0
    %2511 = vmatpush1.xpose.msra.mxu0 0.0
    %2512 = vmatprep.subr.mxu0 0.0
    %2513 = vmatpush1.xpose.msra.mxu0 0.0
    %2514 = vmatprep.subr.mxu0 0.0
    %2515 = vmatpush1.xpose.msra.mxu0 0.0
    %2516 = vmatprep.subr.mxu0 0.0
    %2517 = vmatpush1.xpose.msra.mxu0 0.0
    %2518 = vmatprep.subr.mxu0 0.0
    %2519 = vmatpush1.xpose.msra.mxu0 0.0
    %2520 = vmatprep.subr.mxu0 0.0
    %2521 = vmatpush1.xpose.msra.mxu0 0.0
    %2522 = vmatprep.subr.mxu0 0.0
    %2523 = vmatpush1.xpose.msra.mxu0 0.0
    %2524 = vmatprep.subr.mxu0 0.0
    %2525 = vmatpush1.xpose.msra.mxu0 0.0
    %2526 = vmatprep.subr.mxu0 0.0
    %2527 = vmatpush1.xpose.msra.mxu0 0.0
    %2528 = vmatprep.subr.mxu0 0.0
    %2529 = vmatpush1.xpose.msra.mxu0 0.0
    %2530 = vmatprep.subr.mxu0 0.0
    %2531 = vmatpush1.xpose.msra.mxu0 0.0
    %2532 = vmatprep.subr.mxu0 0.0
    %2533 = vmatpush1.xpose.msra.mxu0 0.0
    %2534 = vmatprep.subr.mxu0 0.0
    %2535 = vmatpush1.xpose.msra.mxu0 0.0
    %2536 = vmatprep.subr.mxu0 0.0
    %2537 = vmatpush1.xpose.msra.mxu0 0.0
    %2538 = vmatprep.subr.mxu0 0.0
    %2539 = vmatpush1.xpose.msra.mxu0 0.0
    %2540 = vmatprep.subr.mxu0 0.0
    %2541 = vmatpush1.xpose.msra.mxu0 0.0
    %2542 = vmatprep.subr.mxu0 0.0
    %2543 = vmatpush1.xpose.msra.mxu0 0.0
    %2544 = vmatprep.subr.mxu0 0.0
    %2545 = vmatpush1.xpose.msra.mxu0 0.0
    %2546 = vmatprep.subr.mxu0 0.0
    %2547 = vmatpush1.xpose.msra.mxu0 0.0
    %2548 = vmatprep.subr.mxu0 0.0
    %2549 = vmatpush1.xpose.msra.mxu0 0.0
    %2550 = vmatprep.subr.mxu0 0.0
    %2551 = vmatpush1.xpose.msra.mxu0 0.0
    %2552 = vmatprep.subr.mxu0 0.0
    %2553 = vmatpush1.xpose.msra.mxu0 0.0
    %2554 = vmatprep.mubr.f32.mxu0 0.0
    %v2555 = vand.u32 %v2013, 4294901760
    %v2556 = vsub.f32 %v2013, %v2555
    %2557 = vmatmul.mubr.f32.gmra.mrb[0].mxu0 %v2556
    %v2558 = vpop.f32.mrb[0].mxu0
    %v2559 = vadd.f32 %v2389, %v2558
    %v2560 = vpop.f32.mrb[0].mxu0
    %2561 = vmatprep.mubr.f32.mxu0 0.0
    %v2562 = vand.u32 %v2016, 4294901760
    %v2563 = vsub.f32 %v2016, %v2562
    %2564 = vmatmul.mubr.f32.gmra.mrb[0].mxu0 %v2563
    %v2565 = vpop.f32.mrb[0].mxu0
    %v2566 = vadd.f32 %v2395, %v2565
    %v2567 = vpop.f32.mrb[0].mxu0
    %2568 = vmatprep.mubr.f32.mxu0 0.0
    %v2569 = vand.u32 %v2019, 4294901760
    %v2570 = vsub.f32 %v2019, %v2569
    %2571 = vmatmul.mubr.f32.gmra.mrb[0].mxu0 %v2570
    %v2572 = vpop.f32.mrb[0].mxu0
    %v2573 = vadd.f32 %v2401, %v2572
    %v2574 = vpop.f32.mrb[0].mxu0
    %2575 = vmatprep.mubr.f32.mxu0 0.0
    %v2576 = vand.u32 %v2022, 4294901760
    %v2577 = vsub.f32 %v2022, %v2576
    %2578 = vmatmul.mubr.f32.gmra.mrb[0].mxu0 %v2577
    %v2579 = vpop.f32.mrb[0].mxu0
    %v2580 = vadd.f32 %v2407, %v2579
    %v2581 = vpop.f32.mrb[0].mxu0
    %2582 = vmatprep.mubr.f32.mxu0 0.0
    %v2583 = vand.u32 %v2025, 4294901760
    %v2584 = vsub.f32 %v2025, %v2583
    %2585 = vmatmul.mubr.f32.gmra.mrb[0].mxu0 %v2584
    %v2586 = vpop.f32.mrb[0].mxu0
    %v2587 = vadd.f32 %v2413, %v2586
    %v2588 = vpop.f32.mrb[0].mxu0
    %2589 = vmatprep.mubr.f32.mxu0 0.0
    %v2590 = vand.u32 %v2028, 4294901760
    %v2591 = vsub.f32 %v2028, %v2590
    %2592 = vmatmul.mubr.f32.gmra.mrb[0].mxu0 %v2591
    %v2593 = vpop.f32.mrb[0].mxu0
    %v2594 = vadd.f32 %v2419, %v2593
    %v2595 = vpop.f32.mrb[0].mxu0
    %2596 = vmatprep.mubr.f32.mxu0 0.0
    %v2597 = vand.u32 %v2031, 4294901760
    %v2598 = vsub.f32 %v2031, %v2597
    %2599 = vmatmul.mubr.f32.gmra.mrb[0].mxu0 %v2598
    %v2600 = vpop.f32.mrb[0].mxu0
    %v2601 = vadd.f32 %v2425, %v2600
    %v2602 = vpop.f32.mrb[0].mxu0
    %2603 = vmatprep.mubr.f32.mxu0 0.0
    %v2604 = vand.u32 %v2034, 4294901760
    %v2605 = vsub.f32 %v2034, %v2604
    %2606 = vmatmul.mubr.f32.gmra.mrb[0].mxu0 %v2605
    %v2607 = vpop.f32.mrb[0].mxu0
    %v2608 = vadd.f32 %v2431, %v2607
    %v2609 = vpop.f32.mrb[0].mxu0
    %2610 = vmatprep.mubr.f32.mxu0 0.0
    %v2611 = vand.u32 %v2037, 4294901760
    %v2612 = vsub.f32 %v2037, %v2611
    %2613 = vmatmul.mubr.f32.gmra.mrb[0].mxu0 %v2612
    %v2614 = vpop.f32.mrb[0].mxu0
    %v2615 = vadd.f32 %v2437, %v2614
    %v2616 = vpop.f32.mrb[0].mxu0
    %2617 = vmatprep.mubr.f32.mxu0 0.0
    %v2618 = vand.u32 %v2040, 4294901760
    %v2619 = vsub.f32 %v2040, %v2618
    %2620 = vmatmul.mubr.f32.gmra.mrb[0].mxu0 %v2619
    %v2621 = vpop.f32.mrb[0].mxu0
    %v2622 = vadd.f32 %v2443, %v2621
    %v2623 = vpop.f32.mrb[0].mxu0
    %2624 = vmatprep.mubr.f32.mxu0 0.0
    %v2625 = vand.u32 %v2043, 4294901760
    %v2626 = vsub.f32 %v2043, %v2625
    %2627 = vmatmul.mubr.f32.gmra.mrb[0].mxu0 %v2626
    %v2628 = vpop.f32.mrb[0].mxu0
    %v2629 = vadd.f32 %v2449, %v2628
    %v2630 = vpop.f32.mrb[0].mxu0
    %2631 = vmatprep.mubr.f32.mxu0 0.0
    %v2632 = vand.u32 %v2046, 4294901760
    %v2633 = vsub.f32 %v2046, %v2632
    %2634 = vmatmul.mubr.f32.gmra.mrb[0].mxu0 %v2633
    %v2635 = vpop.f32.mrb[0].mxu0
    %v2636 = vadd.f32 %v2455, %v2635
    %v2637 = vpop.f32.mrb[0].mxu0
    %2638 = vmatprep.mubr.f32.mxu0 0.0
    %v2639 = vand.u32 %v2049, 4294901760
    %v2640 = vsub.f32 %v2049, %v2639
    %2641 = vmatmul.mubr.f32.gmra.mrb[0].mxu0 %v2640
    %v2642 = vpop.f32.mrb[0].mxu0
    %v2643 = vadd.f32 %v2461, %v2642
    %v2644 = vpop.f32.mrb[0].mxu0
    %2645 = vmatprep.mubr.f32.mxu0 0.0
    %v2646 = vand.u32 %v2052, 4294901760
    %v2647 = vsub.f32 %v2052, %v2646
    %2648 = vmatmul.mubr.f32.gmra.mrb[0].mxu0 %v2647
    %v2649 = vpop.f32.mrb[0].mxu0
    %v2650 = vadd.f32 %v2467, %v2649
    %v2651 = vpop.f32.mrb[0].mxu0
    %2652 = vmatprep.mubr.f32.mxu0 0.0
    %v2653 = vand.u32 %v2055, 4294901760
    %v2654 = vsub.f32 %v2055, %v2653
    %2655 = vmatmul.mubr.f32.gmra.mrb[0].mxu0 %v2654
    %v2656 = vpop.f32.mrb[0].mxu0
    %v2657 = vadd.f32 %v2473, %v2656
    %v2658 = vpop.f32.mrb[0].mxu0
    %2659 = vmatprep.mubr.f32.mxu0 0.0
    %v2660 = vand.u32 %v2058, 4294901760
    %v2661 = vsub.f32 %v2058, %v2660
    %2662 = vmatmul.mubr.f32.gmra.mrb[0].mxu0 %v2661
    %v2663 = vpop.f32.mrb[0].mxu0
    %v2664 = vadd.f32 %v2479, %v2663
    %v2665 = vpop.f32.mrb[0].mxu0
    %2666 = vdwg.mxu0
    %2667 = vmatprep.subr.mxu0 0.0
    %v2668 = vand.u32 %v2061, 4294901760
    %2669 = vmatpush1.xpose.msra.mxu0 %v2668
    %2670 = vmatprep.subr.mxu0 0.0
    %v2671 = vand.u32 %v2064, 4294901760
    %2672 = vmatpush1.xpose.msra.mxu0 %v2671
    %2673 = vmatprep.subr.mxu0 0.0
    %v2674 = vand.u32 %v2067, 4294901760
    %2675 = vmatpush1.xpose.msra.mxu0 %v2674
    %2676 = vmatprep.subr.mxu0 0.0
    %v2677 = vand.u32 %v2070, 4294901760
    %2678 = vmatpush1.xpose.msra.mxu0 %v2677
    %2679 = vmatprep.subr.mxu0 0.0
    %2680 = vmatpush1.xpose.msra.mxu0 0.0
    %2681 = vmatprep.subr.mxu0 0.0
    %2682 = vmatpush1.xpose.msra.mxu0 0.0
    %2683 = vmatprep.subr.mxu0 0.0
    %2684 = vmatpush1.xpose.msra.mxu0 0.0
    %2685 = vmatprep.subr.mxu0 0.0
    %2686 = vmatpush1.xpose.msra.mxu0 0.0
    %2687 = vmatprep.subr.mxu0 0.0
    %2688 = vmatpush1.xpose.msra.mxu0 0.0
    %2689 = vmatprep.subr.mxu0 0.0
    %2690 = vmatpush1.xpose.msra.mxu0 0.0
    %2691 = vmatprep.subr.mxu0 0.0
    %2692 = vmatpush1.xpose.msra.mxu0 0.0
    %2693 = vmatprep.subr.mxu0 0.0
    %2694 = vmatpush1.xpose.msra.mxu0 0.0
    %2695 = vmatprep.subr.mxu0 0.0
    %2696 = vmatpush1.xpose.msra.mxu0 0.0
    %2697 = vmatprep.subr.mxu0 0.0
    %2698 = vmatpush1.xpose.msra.mxu0 0.0
    %2699 = vmatprep.subr.mxu0 0.0
    %2700 = vmatpush1.xpose.msra.mxu0 0.0
    %2701 = vmatprep.subr.mxu0 0.0
    %2702 = vmatpush1.xpose.msra.mxu0 0.0
    %2703 = vmatprep.subr.mxu0 0.0
    %2704 = vmatpush1.xpose.msra.mxu0 0.0
    %2705 = vmatprep.subr.mxu0 0.0
    %2706 = vmatpush1.xpose.msra.mxu0 0.0
    %2707 = vmatprep.subr.mxu0 0.0
    %2708 = vmatpush1.xpose.msra.mxu0 0.0
    %2709 = vmatprep.subr.mxu0 0.0
    %2710 = vmatpush1.xpose.msra.mxu0 0.0
    %2711 = vmatprep.subr.mxu0 0.0
    %2712 = vmatpush1.xpose.msra.mxu0 0.0
    %2713 = vmatprep.subr.mxu0 0.0
    %2714 = vmatpush1.xpose.msra.mxu0 0.0
    %2715 = vmatprep.subr.mxu0 0.0
    %2716 = vmatpush1.xpose.msra.mxu0 0.0
    %2717 = vmatprep.subr.mxu0 0.0
    %2718 = vmatpush1.xpose.msra.mxu0 0.0
    %2719 = vmatprep.subr.mxu0 0.0
    %2720 = vmatpush1.xpose.msra.mxu0 0.0
    %2721 = vmatprep.subr.mxu0 0.0
    %2722 = vmatpush1.xpose.msra.mxu0 0.0
    %2723 = vmatprep.subr.mxu0 0.0
    %2724 = vmatpush1.xpose.msra.mxu0 0.0
    %2725 = vmatprep.subr.mxu0 0.0
    %2726 = vmatpush1.xpose.msra.mxu0 0.0
    %2727 = vmatprep.subr.mxu0 0.0
    %2728 = vmatpush1.xpose.msra.mxu0 0.0
    %2729 = vmatprep.subr.mxu0 0.0
    %2730 = vmatpush1.xpose.msra.mxu0 0.0
    %2731 = vmatprep.subr.mxu0 0.0
    %2732 = vmatpush1.xpose.msra.mxu0 0.0
    %2733 = vmatprep.subr.mxu0 0.0
    %2734 = vmatpush1.xpose.msra.mxu0 0.0
    %2735 = vmatprep.mubr.f32.mxu0 0.0
    %v2736 = vand.u32 %v2013, 4294901760
    %v2737 = vsub.f32 %v2013, %v2736
    %v2738 = vand.u32 %v2737, 4294901760
    %2739 = vmatmul.mubr.f32.gmra.mrb[0].mxu0 %v2738
    %v2740 = vpop.f32.mrb[0].mxu0
    %v2741 = vadd.f32 %v2559, %v2740
    %v2742 = vpop.f32.mrb[0].mxu0
    %2743 = vmatprep.mubr.f32.mxu0 0.0
    %v2744 = vand.u32 %v2016, 4294901760
    %v2745 = vsub.f32 %v2016, %v2744
    %v2746 = vand.u32 %v2745, 4294901760
    %2747 = vmatmul.mubr.f32.gmra.mrb[0].mxu0 %v2746
    %v2748 = vpop.f32.mrb[0].mxu0
    %v2749 = vadd.f32 %v2566, %v2748
    %v2750 = vpop.f32.mrb[0].mxu0
    %2751 = vmatprep.mubr.f32.mxu0 0.0
    %v2752 = vand.u32 %v2019, 4294901760
    %v2753 = vsub.f32 %v2019, %v2752
    %v2754 = vand.u32 %v2753, 4294901760
    %2755 = vmatmul.mubr.f32.gmra.mrb[0].mxu0 %v2754
    %v2756 = vpop.f32.mrb[0].mxu0
    %v2757 = vadd.f32 %v2573, %v2756
    %v2758 = vpop.f32.mrb[0].mxu0
    %2759 = vmatprep.mubr.f32.mxu0 0.0
    %v2760 = vand.u32 %v2022, 4294901760
    %v2761 = vsub.f32 %v2022, %v2760
    %v2762 = vand.u32 %v2761, 4294901760
    %2763 = vmatmul.mubr.f32.gmra.mrb[0].mxu0 %v2762
    %v2764 = vpop.f32.mrb[0].mxu0
    %v2765 = vadd.f32 %v2580, %v2764
    %v2766 = vpop.f32.mrb[0].mxu0
    %2767 = vmatprep.mubr.f32.mxu0 0.0
    %v2768 = vand.u32 %v2025, 4294901760
    %v2769 = vsub.f32 %v2025, %v2768
    %v2770 = vand.u32 %v2769, 4294901760
    %2771 = vmatmul.mubr.f32.gmra.mrb[0].mxu0 %v2770
    %v2772 = vpop.f32.mrb[0].mxu0
    %v2773 = vadd.f32 %v2587, %v2772
    %v2774 = vpop.f32.mrb[0].mxu0
    %2775 = vmatprep.mubr.f32.mxu0 0.0
    %v2776 = vand.u32 %v2028, 4294901760
    %v2777 = vsub.f32 %v2028, %v2776
    %v2778 = vand.u32 %v2777, 4294901760
    %2779 = vmatmul.mubr.f32.gmra.mrb[0].mxu0 %v2778
    %v2780 = vpop.f32.mrb[0].mxu0
    %v2781 = vadd.f32 %v2594, %v2780
    %v2782 = vpop.f32.mrb[0].mxu0
    %2783 = vmatprep.mubr.f32.mxu0 0.0
    %v2784 = vand.u32 %v2031, 4294901760
    %v2785 = vsub.f32 %v2031, %v2784
    %v2786 = vand.u32 %v2785, 4294901760
    %2787 = vmatmul.mubr.f32.gmra.mrb[0].mxu0 %v2786
    %v2788 = vpop.f32.mrb[0].mxu0
    %v2789 = vadd.f32 %v2601, %v2788
    %v2790 = vpop.f32.mrb[0].mxu0
    %2791 = vmatprep.mubr.f32.mxu0 0.0
    %v2792 = vand.u32 %v2034, 4294901760
    %v2793 = vsub.f32 %v2034, %v2792
    %v2794 = vand.u32 %v2793, 4294901760
    %2795 = vmatmul.mubr.f32.gmra.mrb[0].mxu0 %v2794
    %v2796 = vpop.f32.mrb[0].mxu0
    %v2797 = vadd.f32 %v2608, %v2796
    %v2798 = vpop.f32.mrb[0].mxu0
    %2799 = vmatprep.mubr.f32.mxu0 0.0
    %v2800 = vand.u32 %v2037, 4294901760
    %v2801 = vsub.f32 %v2037, %v2800
    %v2802 = vand.u32 %v2801, 4294901760
    %2803 = vmatmul.mubr.f32.gmra.mrb[0].mxu0 %v2802
    %v2804 = vpop.f32.mrb[0].mxu0
    %v2805 = vadd.f32 %v2615, %v2804
    %v2806 = vpop.f32.mrb[0].mxu0
    %2807 = vmatprep.mubr.f32.mxu0 0.0
    %v2808 = vand.u32 %v2040, 4294901760
    %v2809 = vsub.f32 %v2040, %v2808
    %v2810 = vand.u32 %v2809, 4294901760
    %2811 = vmatmul.mubr.f32.gmra.mrb[0].mxu0 %v2810
    %v2812 = vpop.f32.mrb[0].mxu0
    %v2813 = vadd.f32 %v2622, %v2812
    %v2814 = vpop.f32.mrb[0].mxu0
    %2815 = vmatprep.mubr.f32.mxu0 0.0
    %v2816 = vand.u32 %v2043, 4294901760
    %v2817 = vsub.f32 %v2043, %v2816
    %v2818 = vand.u32 %v2817, 4294901760
    %2819 = vmatmul.mubr.f32.gmra.mrb[0].mxu0 %v2818
    %v2820 = vpop.f32.mrb[0].mxu0
    %v2821 = vadd.f32 %v2629, %v2820
    %v2822 = vpop.f32.mrb[0].mxu0
    %2823 = vmatprep.mubr.f32.mxu0 0.0
    %v2824 = vand.u32 %v2046, 4294901760
    %v2825 = vsub.f32 %v2046, %v2824
    %v2826 = vand.u32 %v2825, 4294901760
    %2827 = vmatmul.mubr.f32.gmra.mrb[0].mxu0 %v2826
    %v2828 = vpop.f32.mrb[0].mxu0
    %v2829 = vadd.f32 %v2636, %v2828
    %v2830 = vpop.f32.mrb[0].mxu0
    %2831 = vmatprep.mubr.f32.mxu0 0.0
    %v2832 = vand.u32 %v2049, 4294901760
    %v2833 = vsub.f32 %v2049, %v2832
    %v2834 = vand.u32 %v2833, 4294901760
    %2835 = vmatmul.mubr.f32.gmra.mrb[0].mxu0 %v2834
    %v2836 = vpop.f32.mrb[0].mxu0
    %v2837 = vadd.f32 %v2643, %v2836
    %v2838 = vpop.f32.mrb[0].mxu0
    %2839 = vmatprep.mubr.f32.mxu0 0.0
    %v2840 = vand.u32 %v2052, 4294901760
    %v2841 = vsub.f32 %v2052, %v2840
    %v2842 = vand.u32 %v2841, 4294901760
    %2843 = vmatmul.mubr.f32.gmra.mrb[0].mxu0 %v2842
    %v2844 = vpop.f32.mrb[0].mxu0
    %v2845 = vadd.f32 %v2650, %v2844
    %v2846 = vpop.f32.mrb[0].mxu0
    %2847 = vmatprep.mubr.f32.mxu0 0.0
    %v2848 = vand.u32 %v2055, 4294901760
    %v2849 = vsub.f32 %v2055, %v2848
    %v2850 = vand.u32 %v2849, 4294901760
    %2851 = vmatmul.mubr.f32.gmra.mrb[0].mxu0 %v2850
    %v2852 = vpop.f32.mrb[0].mxu0
    %v2853 = vadd.f32 %v2657, %v2852
    %v2854 = vpop.f32.mrb[0].mxu0
    %2855 = vmatprep.mubr.f32.mxu0 0.0
    %v2856 = vand.u32 %v2058, 4294901760
    %v2857 = vsub.f32 %v2058, %v2856
    %v2858 = vand.u32 %v2857, 4294901760
    %2859 = vmatmul.mubr.f32.gmra.mrb[0].mxu0 %v2858
    %v2860 = vpop.f32.mrb[0].mxu0
    %v2861 = vadd.f32 %v2664, %v2860
    %v2862 = vpop.f32.mrb[0].mxu0
    %2863 = vdwg.mxu0
    %2864 = vmatprep.subr.mxu0 0.0
    %v2865 = vand.u32 %v2061, 4294901760
    %v2866 = vsub.f32 %v2061, %v2865
    %v2867 = vand.u32 %v2866, 4294901760
    %2868 = vmatpush1.xpose.msra.mxu0 %v2867
    %2869 = vmatprep.subr.mxu0 0.0
    %v2870 = vand.u32 %v2064, 4294901760
    %v2871 = vsub.f32 %v2064, %v2870
    %v2872 = vand.u32 %v2871, 4294901760
    %2873 = vmatpush1.xpose.msra.mxu0 %v2872
    %2874 = vmatprep.subr.mxu0 0.0
    %v2875 = vand.u32 %v2067, 4294901760
    %v2876 = vsub.f32 %v2067, %v2875
    %v2877 = vand.u32 %v2876, 4294901760
    %2878 = vmatpush1.xpose.msra.mxu0 %v2877
    %2879 = vmatprep.subr.mxu0 0.0
    %v2880 = vand.u32 %v2070, 4294901760
    %v2881 = vsub.f32 %v2070, %v2880
    %v2882 = vand.u32 %v2881, 4294901760
    %2883 = vmatpush1.xpose.msra.mxu0 %v2882
    %2884 = vmatprep.subr.mxu0 0.0
    %2885 = vmatpush1.xpose.msra.mxu0 0.0
    %2886 = vmatprep.subr.mxu0 0.0
    %2887 = vmatpush1.xpose.msra.mxu0 0.0
    %2888 = vmatprep.subr.mxu0 0.0
    %2889 = vmatpush1.xpose.msra.mxu0 0.0
    %2890 = vmatprep.subr.mxu0 0.0
    %2891 = vmatpush1.xpose.msra.mxu0 0.0
    %2892 = vmatprep.subr.mxu0 0.0
    %2893 = vmatpush1.xpose.msra.mxu0 0.0
    %2894 = vmatprep.subr.mxu0 0.0
    %2895 = vmatpush1.xpose.msra.mxu0 0.0
    %2896 = vmatprep.subr.mxu0 0.0
    %2897 = vmatpush1.xpose.msra.mxu0 0.0
    %2898 = vmatprep.subr.mxu0 0.0
    %2899 = vmatpush1.xpose.msra.mxu0 0.0
    %2900 = vmatprep.subr.mxu0 0.0
    %2901 = vmatpush1.xpose.msra.mxu0 0.0
    %2902 = vmatprep.subr.mxu0 0.0
    %2903 = vmatpush1.xpose.msra.mxu0 0.0
    %2904 = vmatprep.subr.mxu0 0.0
    %2905 = vmatpush1.xpose.msra.mxu0 0.0
    %2906 = vmatprep.subr.mxu0 0.0
    %2907 = vmatpush1.xpose.msra.mxu0 0.0
    %2908 = vmatprep.subr.mxu0 0.0
    %2909 = vmatpush1.xpose.msra.mxu0 0.0
    %2910 = vmatprep.subr.mxu0 0.0
    %2911 = vmatpush1.xpose.msra.mxu0 0.0
    %2912 = vmatprep.subr.mxu0 0.0
    %2913 = vmatpush1.xpose.msra.mxu0 0.0
    %2914 = vmatprep.subr.mxu0 0.0
    %2915 = vmatpush1.xpose.msra.mxu0 0.0
    %2916 = vmatprep.subr.mxu0 0.0
    %2917 = vmatpush1.xpose.msra.mxu0 0.0
    %2918 = vmatprep.subr.mxu0 0.0
    %2919 = vmatpush1.xpose.msra.mxu0 0.0
    %2920 = vmatprep.subr.mxu0 0.0
    %2921 = vmatpush1.xpose.msra.mxu0 0.0
    %2922 = vmatprep.subr.mxu0 0.0
    %2923 = vmatpush1.xpose.msra.mxu0 0.0
    %2924 = vmatprep.subr.mxu0 0.0
    %2925 = vmatpush1.xpose.msra.mxu0 0.0
    %2926 = vmatprep.subr.mxu0 0.0
    %2927 = vmatpush1.xpose.msra.mxu0 0.0
    %2928 = vmatprep.subr.mxu0 0.0
    %2929 = vmatpush1.xpose.msra.mxu0 0.0
    %2930 = vmatprep.subr.mxu0 0.0
    %2931 = vmatpush1.xpose.msra.mxu0 0.0
    %2932 = vmatprep.subr.mxu0 0.0
    %2933 = vmatpush1.xpose.msra.mxu0 0.0
    %2934 = vmatprep.subr.mxu0 0.0
    %2935 = vmatpush1.xpose.msra.mxu0 0.0
    %2936 = vmatprep.subr.mxu0 0.0
    %2937 = vmatpush1.xpose.msra.mxu0 0.0
    %2938 = vmatprep.subr.mxu0 0.0
    %2939 = vmatpush1.xpose.msra.mxu0 0.0
    %2940 = vmatprep.mubr.f32.mxu0 0.0
    %v2941 = vand.u32 %v2013, 4294901760
    %2942 = vmatmul.mubr.f32.gmra.mrb[0].mxu0 %v2941
    %v2943 = vpop.f32.mrb[0].mxu0
    %v2944 = vadd.f32 %v2741, %v2943
    %v2945 = vpop.f32.mrb[0].mxu0
    %2946 = vmatprep.mubr.f32.mxu0 0.0
    %v2947 = vand.u32 %v2016, 4294901760
    %2948 = vmatmul.mubr.f32.gmra.mrb[0].mxu0 %v2947
    %v2949 = vpop.f32.mrb[0].mxu0
    %v2950 = vadd.f32 %v2749, %v2949
    %v2951 = vpop.f32.mrb[0].mxu0
    %2952 = vmatprep.mubr.f32.mxu0 0.0
    %v2953 = vand.u32 %v2019, 4294901760
    %2954 = vmatmul.mubr.f32.gmra.mrb[0].mxu0 %v2953
    %v2955 = vpop.f32.mrb[0].mxu0
    %v2956 = vadd.f32 %v2757, %v2955
    %v2957 = vpop.f32.mrb[0].mxu0
    %2958 = vmatprep.mubr.f32.mxu0 0.0
    %v2959 = vand.u32 %v2022, 4294901760
    %2960 = vmatmul.mubr.f32.gmra.mrb[0].mxu0 %v2959
    %v2961 = vpop.f32.mrb[0].mxu0
    %v2962 = vadd.f32 %v2765, %v2961
    %v2963 = vpop.f32.mrb[0].mxu0
    %2964 = vmatprep.mubr.f32.mxu0 0.0
    %v2965 = vand.u32 %v2025, 4294901760
    %2966 = vmatmul.mubr.f32.gmra.mrb[0].mxu0 %v2965
    %v2967 = vpop.f32.mrb[0].mxu0
    %v2968 = vadd.f32 %v2773, %v2967
    %v2969 = vpop.f32.mrb[0].mxu0
    %2970 = vmatprep.mubr.f32.mxu0 0.0
    %v2971 = vand.u32 %v2028, 4294901760
    %2972 = vmatmul.mubr.f32.gmra.mrb[0].mxu0 %v2971
    %v2973 = vpop.f32.mrb[0].mxu0
    %v2974 = vadd.f32 %v2781, %v2973
    %v2975 = vpop.f32.mrb[0].mxu0
    %2976 = vmatprep.mubr.f32.mxu0 0.0
    %v2977 = vand.u32 %v2031, 4294901760
    %2978 = vmatmul.mubr.f32.gmra.mrb[0].mxu0 %v2977
    %v2979 = vpop.f32.mrb[0].mxu0
    %v2980 = vadd.f32 %v2789, %v2979
    %v2981 = vpop.f32.mrb[0].mxu0
    %2982 = vmatprep.mubr.f32.mxu0 0.0
    %v2983 = vand.u32 %v2034, 4294901760
    %2984 = vmatmul.mubr.f32.gmra.mrb[0].mxu0 %v2983
    %v2985 = vpop.f32.mrb[0].mxu0
    %v2986 = vadd.f32 %v2797, %v2985
    %v2987 = vpop.f32.mrb[0].mxu0
    %2988 = vmatprep.mubr.f32.mxu0 0.0
    %v2989 = vand.u32 %v2037, 4294901760
    %2990 = vmatmul.mubr.f32.gmra.mrb[0].mxu0 %v2989
    %v2991 = vpop.f32.mrb[0].mxu0
    %v2992 = vadd.f32 %v2805, %v2991
    %v2993 = vpop.f32.mrb[0].mxu0
    %2994 = vmatprep.mubr.f32.mxu0 0.0
    %v2995 = vand.u32 %v2040, 4294901760
    %2996 = vmatmul.mubr.f32.gmra.mrb[0].mxu0 %v2995
    %v2997 = vpop.f32.mrb[0].mxu0
    %v2998 = vadd.f32 %v2813, %v2997
    %v2999 = vpop.f32.mrb[0].mxu0
    %3000 = vmatprep.mubr.f32.mxu0 0.0
    %v3001 = vand.u32 %v2043, 4294901760
    %3002 = vmatmul.mubr.f32.gmra.mrb[0].mxu0 %v3001
    %v3003 = vpop.f32.mrb[0].mxu0
    %v3004 = vadd.f32 %v2821, %v3003
    %v3005 = vpop.f32.mrb[0].mxu0
    %3006 = vmatprep.mubr.f32.mxu0 0.0
    %v3007 = vand.u32 %v2046, 4294901760
    %3008 = vmatmul.mubr.f32.gmra.mrb[0].mxu0 %v3007
    %v3009 = vpop.f32.mrb[0].mxu0
    %v3010 = vadd.f32 %v2829, %v3009
    %v3011 = vpop.f32.mrb[0].mxu0
    %3012 = vmatprep.mubr.f32.mxu0 0.0
    %v3013 = vand.u32 %v2049, 4294901760
    %3014 = vmatmul.mubr.f32.gmra.mrb[0].mxu0 %v3013
    %v3015 = vpop.f32.mrb[0].mxu0
    %v3016 = vadd.f32 %v2837, %v3015
    %v3017 = vpop.f32.mrb[0].mxu0
    %3018 = vmatprep.mubr.f32.mxu0 0.0
    %v3019 = vand.u32 %v2052, 4294901760
    %3020 = vmatmul.mubr.f32.gmra.mrb[0].mxu0 %v3019
    %v3021 = vpop.f32.mrb[0].mxu0
    %v3022 = vadd.f32 %v2845, %v3021
    %v3023 = vpop.f32.mrb[0].mxu0
    %3024 = vmatprep.mubr.f32.mxu0 0.0
    %v3025 = vand.u32 %v2055, 4294901760
    %3026 = vmatmul.mubr.f32.gmra.mrb[0].mxu0 %v3025
    %v3027 = vpop.f32.mrb[0].mxu0
    %v3028 = vadd.f32 %v2853, %v3027
    %v3029 = vpop.f32.mrb[0].mxu0
    %3030 = vmatprep.mubr.f32.mxu0 0.0
    %v3031 = vand.u32 %v2058, 4294901760
    %3032 = vmatmul.mubr.f32.gmra.mrb[0].mxu0 %v3031
    %v3033 = vpop.f32.mrb[0].mxu0
    %v3034 = vadd.f32 %v2861, %v3033
    %v3035 = vpop.f32.mrb[0].mxu0
    %3036 = vdwg.mxu0
    %3037 = vmatprep.subr.mxu0 0.0
    %v3038 = vand.u32 %v2061, 4294901760
    %3039 = vmatpush1.xpose.msra.mxu0 %v3038
    %3040 = vmatprep.subr.mxu0 0.0
    %v3041 = vand.u32 %v2064, 4294901760
    %3042 = vmatpush1.xpose.msra.mxu0 %v3041
    %3043 = vmatprep.subr.mxu0 0.0
    %v3044 = vand.u32 %v2067, 4294901760
    %3045 = vmatpush1.xpose.msra.mxu0 %v3044
    %3046 = vmatprep.subr.mxu0 0.0
    %v3047 = vand.u32 %v2070, 4294901760
    %3048 = vmatpush1.xpose.msra.mxu0 %v3047
    %3049 = vmatprep.subr.mxu0 0.0
    %3050 = vmatpush1.xpose.msra.mxu0 0.0
    %3051 = vmatprep.subr.mxu0 0.0
    %3052 = vmatpush1.xpose.msra.mxu0 0.0
    %3053 = vmatprep.subr.mxu0 0.0
    %3054 = vmatpush1.xpose.msra.mxu0 0.0
    %3055 = vmatprep.subr.mxu0 0.0
    %3056 = vmatpush1.xpose.msra.mxu0 0.0
    %3057 = vmatprep.subr.mxu0 0.0
    %3058 = vmatpush1.xpose.msra.mxu0 0.0
    %3059 = vmatprep.subr.mxu0 0.0
    %3060 = vmatpush1.xpose.msra.mxu0 0.0
    %3061 = vmatprep.subr.mxu0 0.0
    %3062 = vmatpush1.xpose.msra.mxu0 0.0
    %3063 = vmatprep.subr.mxu0 0.0
    %3064 = vmatpush1.xpose.msra.mxu0 0.0
    %3065 = vmatprep.subr.mxu0 0.0
    %3066 = vmatpush1.xpose.msra.mxu0 0.0
    %3067 = vmatprep.subr.mxu0 0.0
    %3068 = vmatpush1.xpose.msra.mxu0 0.0
    %3069 = vmatprep.subr.mxu0 0.0
    %3070 = vmatpush1.xpose.msra.mxu0 0.0
    %3071 = vmatprep.subr.mxu0 0.0
    %3072 = vmatpush1.xpose.msra.mxu0 0.0
    %3073 = vmatprep.subr.mxu0 0.0
    %3074 = vmatpush1.xpose.msra.mxu0 0.0
    %3075 = vmatprep.subr.mxu0 0.0
    %3076 = vmatpush1.xpose.msra.mxu0 0.0
    %3077 = vmatprep.subr.mxu0 0.0
    %3078 = vmatpush1.xpose.msra.mxu0 0.0
    %3079 = vmatprep.subr.mxu0 0.0
    %3080 = vmatpush1.xpose.msra.mxu0 0.0
    %3081 = vmatprep.subr.mxu0 0.0
    %3082 = vmatpush1.xpose.msra.mxu0 0.0
    %3083 = vmatprep.subr.mxu0 0.0
    %3084 = vmatpush1.xpose.msra.mxu0 0.0
    %3085 = vmatprep.subr.mxu0 0.0
    %3086 = vmatpush1.xpose.msra.mxu0 0.0
    %3087 = vmatprep.subr.mxu0 0.0
    %3088 = vmatpush1.xpose.msra.mxu0 0.0
    %3089 = vmatprep.subr.mxu0 0.0
    %3090 = vmatpush1.xpose.msra.mxu0 0.0
    %3091 = vmatprep.subr.mxu0 0.0
    %3092 = vmatpush1.xpose.msra.mxu0 0.0
    %3093 = vmatprep.subr.mxu0 0.0
    %3094 = vmatpush1.xpose.msra.mxu0 0.0
    %3095 = vmatprep.subr.mxu0 0.0
    %3096 = vmatpush1.xpose.msra.mxu0 0.0
    %3097 = vmatprep.subr.mxu0 0.0
    %3098 = vmatpush1.xpose.msra.mxu0 0.0
    %3099 = vmatprep.subr.mxu0 0.0
    %3100 = vmatpush1.xpose.msra.mxu0 0.0
    %3101 = vmatprep.subr.mxu0 0.0
    %3102 = vmatpush1.xpose.msra.mxu0 0.0
    %3103 = vmatprep.subr.mxu0 0.0
    %3104 = vmatpush1.xpose.msra.mxu0 0.0
    %3105 = vmatprep.mubr.f32.mxu0 0.0
    %v3106 = vand.u32 %v2013, 4294901760
    %3107 = vmatmul.mubr.f32.gmra.mrb[0].mxu0 %v3106
    %v3108 = vpop.f32.mrb[0].mxu0
    %v3109 = vadd.f32 %v2944, %v3108
    %v3110 = vpop.f32.mrb[0].mxu0
    %3111 = vmatprep.mubr.f32.mxu0 0.0
    %v3112 = vand.u32 %v2016, 4294901760
    %3113 = vmatmul.mubr.f32.gmra.mrb[0].mxu0 %v3112
    %v3114 = vpop.f32.mrb[0].mxu0
    %v3115 = vadd.f32 %v2950, %v3114
    %v3116 = vpop.f32.mrb[0].mxu0
    %3117 = vmatprep.mubr.f32.mxu0 0.0
    %v3118 = vand.u32 %v2019, 4294901760
    %3119 = vmatmul.mubr.f32.gmra.mrb[0].mxu0 %v3118
    %v3120 = vpop.f32.mrb[0].mxu0
    %v3121 = vadd.f32 %v2956, %v3120
    %v3122 = vpop.f32.mrb[0].mxu0
    %3123 = vmatprep.mubr.f32.mxu0 0.0
    %v3124 = vand.u32 %v2022, 4294901760
    %3125 = vmatmul.mubr.f32.gmra.mrb[0].mxu0 %v3124
    %v3126 = vpop.f32.mrb[0].mxu0
    %v3127 = vadd.f32 %v2962, %v3126
    %v3128 = vpop.f32.mrb[0].mxu0
    %3129 = vmatprep.mubr.f32.mxu0 0.0
    %v3130 = vand.u32 %v2025, 4294901760
    %3131 = vmatmul.mubr.f32.gmra.mrb[0].mxu0 %v3130
    %v3132 = vpop.f32.mrb[0].mxu0
    %v3133 = vadd.f32 %v2968, %v3132
    %v3134 = vpop.f32.mrb[0].mxu0
    %3135 = vmatprep.mubr.f32.mxu0 0.0
    %v3136 = vand.u32 %v2028, 4294901760
    %3137 = vmatmul.mubr.f32.gmra.mrb[0].mxu0 %v3136
    %v3138 = vpop.f32.mrb[0].mxu0
    %v3139 = vadd.f32 %v2974, %v3138
    %v3140 = vpop.f32.mrb[0].mxu0
    %3141 = vmatprep.mubr.f32.mxu0 0.0
    %v3142 = vand.u32 %v2031, 4294901760
    %3143 = vmatmul.mubr.f32.gmra.mrb[0].mxu0 %v3142
    %v3144 = vpop.f32.mrb[0].mxu0
    %v3145 = vadd.f32 %v2980, %v3144
    %v3146 = vpop.f32.mrb[0].mxu0
    %3147 = vmatprep.mubr.f32.mxu0 0.0
    %v3148 = vand.u32 %v2034, 4294901760
    %3149 = vmatmul.mubr.f32.gmra.mrb[0].mxu0 %v3148
    %v3150 = vpop.f32.mrb[0].mxu0
    %v3151 = vadd.f32 %v2986, %v3150
    %v3152 = vpop.f32.mrb[0].mxu0
    %3153 = vmatprep.mubr.f32.mxu0 0.0
    %v3154 = vand.u32 %v2037, 4294901760
    %3155 = vmatmul.mubr.f32.gmra.mrb[0].mxu0 %v3154
    %v3156 = vpop.f32.mrb[0].mxu0
    %v3157 = vadd.f32 %v2992, %v3156
    %v3158 = vpop.f32.mrb[0].mxu0
    %3159 = vmatprep.mubr.f32.mxu0 0.0
    %v3160 = vand.u32 %v2040, 4294901760
    %3161 = vmatmul.mubr.f32.gmra.mrb[0].mxu0 %v3160
    %v3162 = vpop.f32.mrb[0].mxu0
    %v3163 = vadd.f32 %v2998, %v3162
    %v3164 = vpop.f32.mrb[0].mxu0
    %3165 = vmatprep.mubr.f32.mxu0 0.0
    %v3166 = vand.u32 %v2043, 4294901760
    %3167 = vmatmul.mubr.f32.gmra.mrb[0].mxu0 %v3166
    %v3168 = vpop.f32.mrb[0].mxu0
    %v3169 = vadd.f32 %v3004, %v3168
    %v3170 = vpop.f32.mrb[0].mxu0
    %3171 = vmatprep.mubr.f32.mxu0 0.0
    %v3172 = vand.u32 %v2046, 4294901760
    %3173 = vmatmul.mubr.f32.gmra.mrb[0].mxu0 %v3172
    %v3174 = vpop.f32.mrb[0].mxu0
    %v3175 = vadd.f32 %v3010, %v3174
    %v3176 = vpop.f32.mrb[0].mxu0
    %3177 = vmatprep.mubr.f32.mxu0 0.0
    %v3178 = vand.u32 %v2049, 4294901760
    %3179 = vmatmul.mubr.f32.gmra.mrb[0].mxu0 %v3178
    %v3180 = vpop.f32.mrb[0].mxu0
    %v3181 = vadd.f32 %v3016, %v3180
    %v3182 = vpop.f32.mrb[0].mxu0
    %3183 = vmatprep.mubr.f32.mxu0 0.0
    %v3184 = vand.u32 %v2052, 4294901760
    %3185 = vmatmul.mubr.f32.gmra.mrb[0].mxu0 %v3184
    %v3186 = vpop.f32.mrb[0].mxu0
    %v3187 = vadd.f32 %v3022, %v3186
    %v3188 = vpop.f32.mrb[0].mxu0
    %3189 = vmatprep.mubr.f32.mxu0 0.0
    %v3190 = vand.u32 %v2055, 4294901760
    %3191 = vmatmul.mubr.f32.gmra.mrb[0].mxu0 %v3190
    %v3192 = vpop.f32.mrb[0].mxu0
    %v3193 = vadd.f32 %v3028, %v3192
    %v3194 = vpop.f32.mrb[0].mxu0
    %3195 = vmatprep.mubr.f32.mxu0 0.0
    %v3196 = vand.u32 %v2058, 4294901760
    %3197 = vmatmul.mubr.f32.gmra.mrb[0].mxu0 %v3196
    %v3198 = vpop.f32.mrb[0].mxu0
    %v3199 = vadd.f32 %v3034, %v3198
    %v3200 = vpop.f32.mrb[0].mxu0
    %3201 = vdwg.mxu0
    %v3202 = vsel %vm46, %v3109, -inf
    %3203 = vmax.xlane.f32.xlu0 %v3202
    %v3204 = vpop.xlane.xlu0 %3203
    %v3205 = vsel %vm46, %v3115, -inf
    %3206 = vmax.xlane.f32.xlu0 %v3205
    %v3207 = vpop.xlane.xlu0 %3206
    %v3208 = vsel %vm46, %v3121, -inf
    %3209 = vmax.xlane.f32.xlu0 %v3208
    %v3210 = vpop.xlane.xlu0 %3209
    %v3211 = vsel %vm46, %v3127, -inf
    %3212 = vmax.xlane.f32.xlu0 %v3211
    %v3213 = vpop.xlane.xlu0 %3212
    %v3214 = vsel %vm46, %v3133, -inf
    %3215 = vmax.xlane.f32.xlu0 %v3214
    %v3216 = vpop.xlane.xlu0 %3215
    %v3217 = vsel %vm46, %v3139, -inf
    %3218 = vmax.xlane.f32.xlu0 %v3217
    %v3219 = vpop.xlane.xlu0 %3218
    %v3220 = vsel %vm46, %v3145, -inf
    %3221 = vmax.xlane.f32.xlu0 %v3220
    %v3222 = vpop.xlane.xlu0 %3221
    %v3223 = vsel %vm46, %v3151, -inf
    %3224 = vmax.xlane.f32.xlu0 %v3223
    %v3225 = vpop.xlane.xlu0 %3224
    %v3226 = vsel %vm46, %v3157, -inf
    %3227 = vmax.xlane.f32.xlu0 %v3226
    %v3228 = vpop.xlane.xlu0 %3227
    %v3229 = vsel %vm46, %v3163, -inf
    %3230 = vmax.xlane.f32.xlu0 %v3229
    %v3231 = vpop.xlane.xlu0 %3230
    %v3232 = vsel %vm46, %v3169, -inf
    %3233 = vmax.xlane.f32.xlu0 %v3232
    %v3234 = vpop.xlane.xlu0 %3233
    %v3235 = vsel %vm46, %v3175, -inf
    %3236 = vmax.xlane.f32.xlu0 %v3235
    %v3237 = vpop.xlane.xlu0 %3236
    %v3238 = vsel %vm46, %v3181, -inf
    %3239 = vmax.xlane.f32.xlu0 %v3238
    %v3240 = vpop.xlane.xlu0 %3239
    %v3241 = vsel %vm46, %v3187, -inf
    %3242 = vmax.xlane.f32.xlu0 %v3241
    %v3243 = vpop.xlane.xlu0 %3242
    %v3244 = vsel %vm46, %v3193, -inf
    %3245 = vmax.xlane.f32.xlu0 %v3244
    %v3246 = vpop.xlane.xlu0 %3245
    %v3247 = vsel %vm46, %v3199, -inf
    %3248 = vmax.xlane.f32.xlu0 %v3247
    %v3249 = vpop.xlane.xlu0 %3248
    %v3250 = vsub.f32 %v3109, %v3204
    %v3251 = vsub.f32 %v3115, %v3207
    %v3252 = vsub.f32 %v3121, %v3210
    %v3253 = vsub.f32 %v3127, %v3213
    %v3254 = vsub.f32 %v3133, %v3216
    %v3255 = vsub.f32 %v3139, %v3219
    %v3256 = vsub.f32 %v3145, %v3222
    %v3257 = vsub.f32 %v3151, %v3225
    %v3258 = vsub.f32 %v3157, %v3228
    %v3259 = vsub.f32 %v3163, %v3231
    %v3260 = vsub.f32 %v3169, %v3234
    %v3261 = vsub.f32 %v3175, %v3237
    %v3262 = vsub.f32 %v3181, %v3240
    %v3263 = vsub.f32 %v3187, %v3243
    %v3264 = vsub.f32 %v3193, %v3246
    %v3265 = vsub.f32 %v3199, %v3249
    %v3266 = vmul.f32 %v3250, 1.442695
    %v3267 = vpow.pop %v3266
    %v3268 = vmul.f32 %v3251, 1.442695
    %v3269 = vpow.pop %v3268
    %v3270 = vmul.f32 %v3252, 1.442695
    %v3271 = vpow.pop %v3270
    %v3272 = vmul.f32 %v3253, 1.442695
    %v3273 = vpow.pop %v3272
    %v3274 = vmul.f32 %v3254, 1.442695
    %v3275 = vpow.pop %v3274
    %v3276 = vmul.f32 %v3255, 1.442695
    %v3277 = vpow.pop %v3276
    %v3278 = vmul.f32 %v3256, 1.442695
    %v3279 = vpow.pop %v3278
    %v3280 = vmul.f32 %v3257, 1.442695
    %v3281 = vpow.pop %v3280
    %v3282 = vmul.f32 %v3258, 1.442695
    %v3283 = vpow.pop %v3282
    %v3284 = vmul.f32 %v3259, 1.442695
    %v3285 = vpow.pop %v3284
    %v3286 = vmul.f32 %v3260, 1.442695
    %v3287 = vpow.pop %v3286
    %v3288 = vmul.f32 %v3261, 1.442695
    %v3289 = vpow.pop %v3288
    %v3290 = vmul.f32 %v3262, 1.442695
    %v3291 = vpow.pop %v3290
    %v3292 = vmul.f32 %v3263, 1.442695
    %v3293 = vpow.pop %v3292
    %v3294 = vmul.f32 %v3264, 1.442695
    %v3295 = vpow.pop %v3294
    %v3296 = vmul.f32 %v3265, 1.442695
    %v3297 = vpow.pop %v3296
    %v3298 = vsel %vm46, %v3267, 0.0
    %3299 = vadd.xlane.f32.xlu0 %v3298
    %v3300 = vpop.xlane.xlu0 %3299
    %v3301 = vsel %vm46, %v3269, 0.0
    %3302 = vadd.xlane.f32.xlu0 %v3301
    %v3303 = vpop.xlane.xlu0 %3302
    %v3304 = vsel %vm46, %v3271, 0.0
    %3305 = vadd.xlane.f32.xlu0 %v3304
    %v3306 = vpop.xlane.xlu0 %3305
    %v3307 = vsel %vm46, %v3273, 0.0
    %3308 = vadd.xlane.f32.xlu0 %v3307
    %v3309 = vpop.xlane.xlu0 %3308
    %v3310 = vsel %vm46, %v3275, 0.0
    %3311 = vadd.xlane.f32.xlu0 %v3310
    %v3312 = vpop.xlane.xlu0 %3311
    %v3313 = vsel %vm46, %v3277, 0.0
    %3314 = vadd.xlane.f32.xlu0 %v3313
    %v3315 = vpop.xlane.xlu0 %3314
    %v3316 = vsel %vm46, %v3279, 0.0
    %3317 = vadd.xlane.f32.xlu0 %v3316
    %v3318 = vpop.xlane.xlu0 %3317
    %v3319 = vsel %vm46, %v3281, 0.0
    %3320 = vadd.xlane.f32.xlu0 %v3319
    %v3321 = vpop.xlane.xlu0 %3320
    %v3322 = vsel %vm46, %v3283, 0.0
    %3323 = vadd.xlane.f32.xlu0 %v3322
    %v3324 = vpop.xlane.xlu0 %3323
    %v3325 = vsel %vm46, %v3285, 0.0
    %3326 = vadd.xlane.f32.xlu0 %v3325
    %v3327 = vpop.xlane.xlu0 %3326
    %v3328 = vsel %vm46, %v3287, 0.0
    %3329 = vadd.xlane.f32.xlu0 %v3328
    %v3330 = vpop.xlane.xlu0 %3329
    %v3331 = vsel %vm46, %v3289, 0.0
    %3332 = vadd.xlane.f32.xlu0 %v3331
    %v3333 = vpop.xlane.xlu0 %3332
    %v3334 = vsel %vm46, %v3291, 0.0
    %3335 = vadd.xlane.f32.xlu0 %v3334
    %v3336 = vpop.xlane.xlu0 %3335
    %v3337 = vsel %vm46, %v3293, 0.0
    %3338 = vadd.xlane.f32.xlu0 %v3337
    %v3339 = vpop.xlane.xlu0 %3338
    %v3340 = vsel %vm46, %v3295, 0.0
    %3341 = vadd.xlane.f32.xlu0 %v3340
    %v3342 = vpop.xlane.xlu0 %3341
    %v3343 = vsel %vm46, %v3297, 0.0
    %3344 = vadd.xlane.f32.xlu0 %v3343
    %v3345 = vpop.xlane.xlu0 %3344
    %v3346 = vrcp.pop %v3300
    %v3347 = vmul.f32 %v3267, %v3346
    %v3348 = vrcp.pop %v3303
    %v3349 = vmul.f32 %v3269, %v3348
    %v3350 = vrcp.pop %v3306
    %v3351 = vmul.f32 %v3271, %v3350
    %v3352 = vrcp.pop %v3309
    %v3353 = vmul.f32 %v3273, %v3352
    %v3354 = vrcp.pop %v3312
    %v3355 = vmul.f32 %v3275, %v3354
    %v3356 = vrcp.pop %v3315
    %v3357 = vmul.f32 %v3277, %v3356
    %v3358 = vrcp.pop %v3318
    %v3359 = vmul.f32 %v3279, %v3358
    %v3360 = vrcp.pop %v3321
    %v3361 = vmul.f32 %v3281, %v3360
    %v3362 = vrcp.pop %v3324
    %v3363 = vmul.f32 %v3283, %v3362
    %v3364 = vrcp.pop %v3327
    %v3365 = vmul.f32 %v3285, %v3364
    %v3366 = vrcp.pop %v3330
    %v3367 = vmul.f32 %v3287, %v3366
    %v3368 = vrcp.pop %v3333
    %v3369 = vmul.f32 %v3289, %v3368
    %v3370 = vrcp.pop %v3336
    %v3371 = vmul.f32 %v3291, %v3370
    %v3372 = vrcp.pop %v3339
    %v3373 = vmul.f32 %v3293, %v3372
    %v3374 = vrcp.pop %v3342
    %v3375 = vmul.f32 %v3295, %v3374
    %v3376 = vrcp.pop %v3345
    %v3377 = vmul.f32 %v3297, %v3376
    %v3379 = vsel %vm46, %v3355, 0
    %v3382 = vsel %vm46, %v3357, 0
    %v3385 = vsel %vm46, %v3359, 0
    %v3388 = vsel %vm46, %v3361, 0
    %3390 = vmatprep.subr.mxu0 0.0
    %v3391 = vand.u32 %v1984, 4294901760
    %3392 = vmatpush1.msra.mxu0 %v3391
    %3393 = vmatprep.subr.mxu0 0.0
    %v3394 = vand.u32 %v1985, 4294901760
    %3395 = vmatpush1.msra.mxu0 %v3394
    %3396 = vmatprep.subr.mxu0 0.0
    %v3397 = vand.u32 %v1986, 4294901760
    %3398 = vmatpush1.msra.mxu0 %v3397
    %3399 = vmatprep.subr.mxu0 0.0
    %v3400 = vand.u32 %v1987, 4294901760
    %3401 = vmatpush1.msra.mxu0 %v3400
    %3402 = vmatprep.subr.mxu0 0.0
    %3403 = vmatpush1.msra.mxu0 0.0
    %3404 = vmatprep.subr.mxu0 0.0
    %3405 = vmatpush1.msra.mxu0 0.0
    %3406 = vmatprep.subr.mxu0 0.0
    %3407 = vmatpush1.msra.mxu0 0.0
    %3408 = vmatprep.subr.mxu0 0.0
    %3409 = vmatpush1.msra.mxu0 0.0
    %3410 = vmatprep.subr.mxu0 0.0
    %3411 = vmatpush1.msra.mxu0 0.0
    %3412 = vmatprep.subr.mxu0 0.0
    %3413 = vmatpush1.msra.mxu0 0.0
    %3414 = vmatprep.subr.mxu0 0.0
    %3415 = vmatpush1.msra.mxu0 0.0
    %3416 = vmatprep.subr.mxu0 0.0
    %3417 = vmatpush1.msra.mxu0 0.0
    %3418 = vmatprep.subr.mxu0 0.0
    %3419 = vmatpush1.msra.mxu0 0.0
    %3420 = vmatprep.subr.mxu0 0.0
    %3421 = vmatpush1.msra.mxu0 0.0
    %3422 = vmatprep.subr.mxu0 0.0
    %3423 = vmatpush1.msra.mxu0 0.0
    %3424 = vmatprep.subr.mxu0 0.0
    %3425 = vmatpush1.msra.mxu0 0.0
    %3426 = vmatprep.subr.mxu0 0.0
    %3427 = vmatpush1.msra.mxu0 0.0
    %3428 = vmatprep.subr.mxu0 0.0
    %3429 = vmatpush1.msra.mxu0 0.0
    %3430 = vmatprep.subr.mxu0 0.0
    %3431 = vmatpush1.msra.mxu0 0.0
    %3432 = vmatprep.subr.mxu0 0.0
    %3433 = vmatpush1.msra.mxu0 0.0
    %3434 = vmatprep.subr.mxu0 0.0
    %3435 = vmatpush1.msra.mxu0 0.0
    %3436 = vmatprep.subr.mxu0 0.0
    %3437 = vmatpush1.msra.mxu0 0.0
    %3438 = vmatprep.subr.mxu0 0.0
    %3439 = vmatpush1.msra.mxu0 0.0
    %3440 = vmatprep.subr.mxu0 0.0
    %3441 = vmatpush1.msra.mxu0 0.0
    %3442 = vmatprep.subr.mxu0 0.0
    %3443 = vmatpush1.msra.mxu0 0.0
    %3444 = vmatprep.subr.mxu0 0.0
    %3445 = vmatpush1.msra.mxu0 0.0
    %3446 = vmatprep.subr.mxu0 0.0
    %3447 = vmatpush1.msra.mxu0 0.0
    %3448 = vmatprep.subr.mxu0 0.0
    %3449 = vmatpush1.msra.mxu0 0.0
    %3450 = vmatprep.subr.mxu0 0.0
    %3451 = vmatpush1.msra.mxu0 0.0
    %3452 = vmatprep.subr.mxu0 0.0
    %3453 = vmatpush1.msra.mxu0 0.0
    %3454 = vmatprep.subr.mxu0 0.0
    %3455 = vmatpush1.msra.mxu0 0.0
    %3456 = vmatprep.subr.mxu0 0.0
    %3457 = vmatpush1.msra.mxu0 0.0
    %3458 = vmatprep.mubr.f32.mxu0 0.0
    %v3459 = vand.u32 %v3379, 4294901760
    %v3460 = vsub.f32 %v3379, %v3459
    %v3461 = vand.u32 %v3460, 4294901760
    %v3462 = vsub.f32 %v3460, %v3461
    %v3463 = vand.u32 %v3462, 4294901760
    %3464 = vmatmul.mubr.f32.gmra.mrb[0].mxu0 %v3463
    %v3465 = vpop.f32.mrb[0].mxu0
    %v3466 = vadd.f32 0.0, %v3465
    %v3467 = vpop.f32.mrb[0].mxu0
    %3468 = vmatprep.mubr.f32.mxu0 0.0
    %v3469 = vand.u32 %v3382, 4294901760
    %v3470 = vsub.f32 %v3382, %v3469
    %v3471 = vand.u32 %v3470, 4294901760
    %v3472 = vsub.f32 %v3470, %v3471
    %v3473 = vand.u32 %v3472, 4294901760
    %3474 = vmatmul.mubr.f32.gmra.mrb[0].mxu0 %v3473
    %v3475 = vpop.f32.mrb[0].mxu0
    %v3476 = vadd.f32 0.0, %v3475
    %v3477 = vpop.f32.mrb[0].mxu0
    %3478 = vmatprep.mubr.f32.mxu0 0.0
    %v3479 = vand.u32 %v3385, 4294901760
    %v3480 = vsub.f32 %v3385, %v3479
    %v3481 = vand.u32 %v3480, 4294901760
    %v3482 = vsub.f32 %v3480, %v3481
    %v3483 = vand.u32 %v3482, 4294901760
    %3484 = vmatmul.mubr.f32.gmra.mrb[0].mxu0 %v3483
    %v3485 = vpop.f32.mrb[0].mxu0
    %v3486 = vadd.f32 0.0, %v3485
    %v3487 = vpop.f32.mrb[0].mxu0
    %3488 = vmatprep.mubr.f32.mxu0 0.0
    %v3489 = vand.u32 %v3388, 4294901760
    %v3490 = vsub.f32 %v3388, %v3489
    %v3491 = vand.u32 %v3490, 4294901760
    %v3492 = vsub.f32 %v3490, %v3491
    %v3493 = vand.u32 %v3492, 4294901760
    %3494 = vmatmul.mubr.f32.gmra.mrb[0].mxu0 %v3493
    %v3495 = vpop.f32.mrb[0].mxu0
    %v3496 = vadd.f32 0.0, %v3495
    %v3497 = vpop.f32.mrb[0].mxu0
    %3498 = vdwg.mxu0
    %3499 = vmatprep.subr.mxu0 0.0
    %v3500 = vand.u32 %v1984, 4294901760
    %v3501 = vsub.f32 %v1984, %v3500
    %v3502 = vand.u32 %v3501, 4294901760
    %v3503 = vsub.f32 %v3501, %v3502
    %v3504 = vand.u32 %v3503, 4294901760
    %3505 = vmatpush1.msra.mxu0 %v3504
    %3506 = vmatprep.subr.mxu0 0.0
    %v3507 = vand.u32 %v1985, 4294901760
    %v3508 = vsub.f32 %v1985, %v3507
    %v3509 = vand.u32 %v3508, 4294901760
    %v3510 = vsub.f32 %v3508, %v3509
    %v3511 = vand.u32 %v3510, 4294901760
    %3512 = vmatpush1.msra.mxu0 %v3511
    %3513 = vmatprep.subr.mxu0 0.0
    %v3514 = vand.u32 %v1986, 4294901760
    %v3515 = vsub.f32 %v1986, %v3514
    %v3516 = vand.u32 %v3515, 4294901760
    %v3517 = vsub.f32 %v3515, %v3516
    %v3518 = vand.u32 %v3517, 4294901760
    %3519 = vmatpush1.msra.mxu0 %v3518
    %3520 = vmatprep.subr.mxu0 0.0
    %v3521 = vand.u32 %v1987, 4294901760
    %v3522 = vsub.f32 %v1987, %v3521
    %v3523 = vand.u32 %v3522, 4294901760
    %v3524 = vsub.f32 %v3522, %v3523
    %v3525 = vand.u32 %v3524, 4294901760
    %3526 = vmatpush1.msra.mxu0 %v3525
    %3527 = vmatprep.subr.mxu0 0.0
    %3528 = vmatpush1.msra.mxu0 0.0
    %3529 = vmatprep.subr.mxu0 0.0
    %3530 = vmatpush1.msra.mxu0 0.0
    %3531 = vmatprep.subr.mxu0 0.0
    %3532 = vmatpush1.msra.mxu0 0.0
    %3533 = vmatprep.subr.mxu0 0.0
    %3534 = vmatpush1.msra.mxu0 0.0
    %3535 = vmatprep.subr.mxu0 0.0
    %3536 = vmatpush1.msra.mxu0 0.0
    %3537 = vmatprep.subr.mxu0 0.0
    %3538 = vmatpush1.msra.mxu0 0.0
    %3539 = vmatprep.subr.mxu0 0.0
    %3540 = vmatpush1.msra.mxu0 0.0
    %3541 = vmatprep.subr.mxu0 0.0
    %3542 = vmatpush1.msra.mxu0 0.0
    %3543 = vmatprep.subr.mxu0 0.0
    %3544 = vmatpush1.msra.mxu0 0.0
    %3545 = vmatprep.subr.mxu0 0.0
    %3546 = vmatpush1.msra.mxu0 0.0
    %3547 = vmatprep.subr.mxu0 0.0
    %3548 = vmatpush1.msra.mxu0 0.0
    %3549 = vmatprep.subr.mxu0 0.0
    %3550 = vmatpush1.msra.mxu0 0.0
    %3551 = vmatprep.subr.mxu0 0.0
    %3552 = vmatpush1.msra.mxu0 0.0
    %3553 = vmatprep.subr.mxu0 0.0
    %3554 = vmatpush1.msra.mxu0 0.0
    %3555 = vmatprep.subr.mxu0 0.0
    %3556 = vmatpush1.msra.mxu0 0.0
    %3557 = vmatprep.subr.mxu0 0.0
    %3558 = vmatpush1.msra.mxu0 0.0
    %3559 = vmatprep.subr.mxu0 0.0
    %3560 = vmatpush1.msra.mxu0 0.0
    %3561 = vmatprep.subr.mxu0 0.0
    %3562 = vmatpush1.msra.mxu0 0.0
    %3563 = vmatprep.subr.mxu0 0.0
    %3564 = vmatpush1.msra.mxu0 0.0
    %3565 = vmatprep.subr.mxu0 0.0
    %3566 = vmatpush1.msra.mxu0 0.0
    %3567 = vmatprep.subr.mxu0 0.0
    %3568 = vmatpush1.msra.mxu0 0.0
    %3569 = vmatprep.subr.mxu0 0.0
    %3570 = vmatpush1.msra.mxu0 0.0
    %3571 = vmatprep.subr.mxu0 0.0
    %3572 = vmatpush1.msra.mxu0 0.0
    %3573 = vmatprep.subr.mxu0 0.0
    %3574 = vmatpush1.msra.mxu0 0.0
    %3575 = vmatprep.subr.mxu0 0.0
    %3576 = vmatpush1.msra.mxu0 0.0
    %3577 = vmatprep.subr.mxu0 0.0
    %3578 = vmatpush1.msra.mxu0 0.0
    %3579 = vmatprep.subr.mxu0 0.0
    %3580 = vmatpush1.msra.mxu0 0.0
    %3581 = vmatprep.subr.mxu0 0.0
    %3582 = vmatpush1.msra.mxu0 0.0
    %3583 = vmatprep.mubr.f32.mxu0 0.0
    %v3584 = vand.u32 %v3379, 4294901760
    %3585 = vmatmul.mubr.f32.gmra.mrb[0].mxu0 %v3584
    %v3586 = vpop.f32.mrb[0].mxu0
    %v3587 = vadd.f32 %v3466, %v3586
    %v3588 = vpop.f32.mrb[0].mxu0
    %3589 = vmatprep.mubr.f32.mxu0 0.0
    %v3590 = vand.u32 %v3382, 4294901760
    %3591 = vmatmul.mubr.f32.gmra.mrb[0].mxu0 %v3590
    %v3592 = vpop.f32.mrb[0].mxu0
    %v3593 = vadd.f32 %v3476, %v3592
    %v3594 = vpop.f32.mrb[0].mxu0
    %3595 = vmatprep.mubr.f32.mxu0 0.0
    %v3596 = vand.u32 %v3385, 4294901760
    %3597 = vmatmul.mubr.f32.gmra.mrb[0].mxu0 %v3596
    %v3598 = vpop.f32.mrb[0].mxu0
    %v3599 = vadd.f32 %v3486, %v3598
    %v3600 = vpop.f32.mrb[0].mxu0
    %3601 = vmatprep.mubr.f32.mxu0 0.0
    %v3602 = vand.u32 %v3388, 4294901760
    %3603 = vmatmul.mubr.f32.gmra.mrb[0].mxu0 %v3602
    %v3604 = vpop.f32.mrb[0].mxu0
    %v3605 = vadd.f32 %v3496, %v3604
    %v3606 = vpop.f32.mrb[0].mxu0
    %3607 = vdwg.mxu0
    %3608 = vmatprep.subr.mxu0 0.0
    %v3609 = vand.u32 %v1984, 4294901760
    %v3610 = vsub.f32 %v1984, %v3609
    %3611 = vmatpush1.msra.mxu0 %v3610
    %3612 = vmatprep.subr.mxu0 0.0
    %v3613 = vand.u32 %v1985, 4294901760
    %v3614 = vsub.f32 %v1985, %v3613
    %3615 = vmatpush1.msra.mxu0 %v3614
    %3616 = vmatprep.subr.mxu0 0.0
    %v3617 = vand.u32 %v1986, 4294901760
    %v3618 = vsub.f32 %v1986, %v3617
    %3619 = vmatpush1.msra.mxu0 %v3618
    %3620 = vmatprep.subr.mxu0 0.0
    %v3621 = vand.u32 %v1987, 4294901760
    %v3622 = vsub.f32 %v1987, %v3621
    %3623 = vmatpush1.msra.mxu0 %v3622
    %3624 = vmatprep.subr.mxu0 0.0
    %3625 = vmatpush1.msra.mxu0 0.0
    %3626 = vmatprep.subr.mxu0 0.0
    %3627 = vmatpush1.msra.mxu0 0.0
    %3628 = vmatprep.subr.mxu0 0.0
    %3629 = vmatpush1.msra.mxu0 0.0
    %3630 = vmatprep.subr.mxu0 0.0
    %3631 = vmatpush1.msra.mxu0 0.0
    %3632 = vmatprep.subr.mxu0 0.0
    %3633 = vmatpush1.msra.mxu0 0.0
    %3634 = vmatprep.subr.mxu0 0.0
    %3635 = vmatpush1.msra.mxu0 0.0
    %3636 = vmatprep.subr.mxu0 0.0
    %3637 = vmatpush1.msra.mxu0 0.0
    %3638 = vmatprep.subr.mxu0 0.0
    %3639 = vmatpush1.msra.mxu0 0.0
    %3640 = vmatprep.subr.mxu0 0.0
    %3641 = vmatpush1.msra.mxu0 0.0
    %3642 = vmatprep.subr.mxu0 0.0
    %3643 = vmatpush1.msra.mxu0 0.0
    %3644 = vmatprep.subr.mxu0 0.0
    %3645 = vmatpush1.msra.mxu0 0.0
    %3646 = vmatprep.subr.mxu0 0.0
    %3647 = vmatpush1.msra.mxu0 0.0
    %3648 = vmatprep.subr.mxu0 0.0
    %3649 = vmatpush1.msra.mxu0 0.0
    %3650 = vmatprep.subr.mxu0 0.0
    %3651 = vmatpush1.msra.mxu0 0.0
    %3652 = vmatprep.subr.mxu0 0.0
    %3653 = vmatpush1.msra.mxu0 0.0
    %3654 = vmatprep.subr.mxu0 0.0
    %3655 = vmatpush1.msra.mxu0 0.0
    %3656 = vmatprep.subr.mxu0 0.0
    %3657 = vmatpush1.msra.mxu0 0.0
    %3658 = vmatprep.subr.mxu0 0.0
    %3659 = vmatpush1.msra.mxu0 0.0
    %3660 = vmatprep.subr.mxu0 0.0
    %3661 = vmatpush1.msra.mxu0 0.0
    %3662 = vmatprep.subr.mxu0 0.0
    %3663 = vmatpush1.msra.mxu0 0.0
    %3664 = vmatprep.subr.mxu0 0.0
    %3665 = vmatpush1.msra.mxu0 0.0
    %3666 = vmatprep.subr.mxu0 0.0
    %3667 = vmatpush1.msra.mxu0 0.0
    %3668 = vmatprep.subr.mxu0 0.0
    %3669 = vmatpush1.msra.mxu0 0.0
    %3670 = vmatprep.subr.mxu0 0.0
    %3671 = vmatpush1.msra.mxu0 0.0
    %3672 = vmatprep.subr.mxu0 0.0
    %3673 = vmatpush1.msra.mxu0 0.0
    %3674 = vmatprep.subr.mxu0 0.0
    %3675 = vmatpush1.msra.mxu0 0.0
    %3676 = vmatprep.subr.mxu0 0.0
    %3677 = vmatpush1.msra.mxu0 0.0
    %3678 = vmatprep.subr.mxu0 0.0
    %3679 = vmatpush1.msra.mxu0 0.0
    %3680 = vmatprep.mubr.f32.mxu0 0.0
    %v3681 = vand.u32 %v3379, 4294901760
    %v3682 = vsub.f32 %v3379, %v3681
    %3683 = vmatmul.mubr.f32.gmra.mrb[0].mxu0 %v3682
    %v3684 = vpop.f32.mrb[0].mxu0
    %v3685 = vadd.f32 %v3587, %v3684
    %v3686 = vpop.f32.mrb[0].mxu0
    %3687 = vmatprep.mubr.f32.mxu0 0.0
    %v3688 = vand.u32 %v3382, 4294901760
    %v3689 = vsub.f32 %v3382, %v3688
    %3690 = vmatmul.mubr.f32.gmra.mrb[0].mxu0 %v3689
    %v3691 = vpop.f32.mrb[0].mxu0
    %v3692 = vadd.f32 %v3593, %v3691
    %v3693 = vpop.f32.mrb[0].mxu0
    %3694 = vmatprep.mubr.f32.mxu0 0.0
    %v3695 = vand.u32 %v3385, 4294901760
    %v3696 = vsub.f32 %v3385, %v3695
    %3697 = vmatmul.mubr.f32.gmra.mrb[0].mxu0 %v3696
    %v3698 = vpop.f32.mrb[0].mxu0
    %v3699 = vadd.f32 %v3599, %v3698
    %v3700 = vpop.f32.mrb[0].mxu0
    %3701 = vmatprep.mubr.f32.mxu0 0.0
    %v3702 = vand.u32 %v3388, 4294901760
    %v3703 = vsub.f32 %v3388, %v3702
    %3704 = vmatmul.mubr.f32.gmra.mrb[0].mxu0 %v3703
    %v3705 = vpop.f32.mrb[0].mxu0
    %v3706 = vadd.f32 %v3605, %v3705
    %v3707 = vpop.f32.mrb[0].mxu0
    %3708 = vdwg.mxu0
    %3709 = vmatprep.subr.mxu0 0.0
    %v3710 = vand.u32 %v1984, 4294901760
    %3711 = vmatpush1.msra.mxu0 %v3710
    %3712 = vmatprep.subr.mxu0 0.0
    %v3713 = vand.u32 %v1985, 4294901760
    %3714 = vmatpush1.msra.mxu0 %v3713
    %3715 = vmatprep.subr.mxu0 0.0
    %v3716 = vand.u32 %v1986, 4294901760
    %3717 = vmatpush1.msra.mxu0 %v3716
    %3718 = vmatprep.subr.mxu0 0.0
    %v3719 = vand.u32 %v1987, 4294901760
    %3720 = vmatpush1.msra.mxu0 %v3719
    %3721 = vmatprep.subr.mxu0 0.0
    %3722 = vmatpush1.msra.mxu0 0.0
    %3723 = vmatprep.subr.mxu0 0.0
    %3724 = vmatpush1.msra.mxu0 0.0
    %3725 = vmatprep.subr.mxu0 0.0
    %3726 = vmatpush1.msra.mxu0 0.0
    %3727 = vmatprep.subr.mxu0 0.0
    %3728 = vmatpush1.msra.mxu0 0.0
    %3729 = vmatprep.subr.mxu0 0.0
    %3730 = vmatpush1.msra.mxu0 0.0
    %3731 = vmatprep.subr.mxu0 0.0
    %3732 = vmatpush1.msra.mxu0 0.0
    %3733 = vmatprep.subr.mxu0 0.0
    %3734 = vmatpush1.msra.mxu0 0.0
    %3735 = vmatprep.subr.mxu0 0.0
    %3736 = vmatpush1.msra.mxu0 0.0
    %3737 = vmatprep.subr.mxu0 0.0
    %3738 = vmatpush1.msra.mxu0 0.0
    %3739 = vmatprep.subr.mxu0 0.0
    %3740 = vmatpush1.msra.mxu0 0.0
    %3741 = vmatprep.subr.mxu0 0.0
    %3742 = vmatpush1.msra.mxu0 0.0
    %3743 = vmatprep.subr.mxu0 0.0
    %3744 = vmatpush1.msra.mxu0 0.0
    %3745 = vmatprep.subr.mxu0 0.0
    %3746 = vmatpush1.msra.mxu0 0.0
    %3747 = vmatprep.subr.mxu0 0.0
    %3748 = vmatpush1.msra.mxu0 0.0
    %3749 = vmatprep.subr.mxu0 0.0
    %3750 = vmatpush1.msra.mxu0 0.0
    %3751 = vmatprep.subr.mxu0 0.0
    %3752 = vmatpush1.msra.mxu0 0.0
    %3753 = vmatprep.subr.mxu0 0.0
    %3754 = vmatpush1.msra.mxu0 0.0
    %3755 = vmatprep.subr.mxu0 0.0
    %3756 = vmatpush1.msra.mxu0 0.0
    %3757 = vmatprep.subr.mxu0 0.0
    %3758 = vmatpush1.msra.mxu0 0.0
    %3759 = vmatprep.subr.mxu0 0.0
    %3760 = vmatpush1.msra.mxu0 0.0
    %3761 = vmatprep.subr.mxu0 0.0
    %3762 = vmatpush1.msra.mxu0 0.0
    %3763 = vmatprep.subr.mxu0 0.0
    %3764 = vmatpush1.msra.mxu0 0.0
    %3765 = vmatprep.subr.mxu0 0.0
    %3766 = vmatpush1.msra.mxu0 0.0
    %3767 = vmatprep.subr.mxu0 0.0
    %3768 = vmatpush1.msra.mxu0 0.0
    %3769 = vmatprep.subr.mxu0 0.0
    %3770 = vmatpush1.msra.mxu0 0.0
    %3771 = vmatprep.subr.mxu0 0.0
    %3772 = vmatpush1.msra.mxu0 0.0
    %3773 = vmatprep.subr.mxu0 0.0
    %3774 = vmatpush1.msra.mxu0 0.0
    %3775 = vmatprep.subr.mxu0 0.0
    %3776 = vmatpush1.msra.mxu0 0.0
    %3777 = vmatprep.mubr.f32.mxu0 0.0
    %v3778 = vand.u32 %v3379, 4294901760
    %v3779 = vsub.f32 %v3379, %v3778
    %v3780 = vand.u32 %v3779, 4294901760
    %3781 = vmatmul.mubr.f32.gmra.mrb[0].mxu0 %v3780
    %v3782 = vpop.f32.mrb[0].mxu0
    %v3783 = vadd.f32 %v3685, %v3782
    %v3784 = vpop.f32.mrb[0].mxu0
    %3785 = vmatprep.mubr.f32.mxu0 0.0
    %v3786 = vand.u32 %v3382, 4294901760
    %v3787 = vsub.f32 %v3382, %v3786
    %v3788 = vand.u32 %v3787, 4294901760
    %3789 = vmatmul.mubr.f32.gmra.mrb[0].mxu0 %v3788
    %v3790 = vpop.f32.mrb[0].mxu0
    %v3791 = vadd.f32 %v3692, %v3790
    %v3792 = vpop.f32.mrb[0].mxu0
    %3793 = vmatprep.mubr.f32.mxu0 0.0
    %v3794 = vand.u32 %v3385, 4294901760
    %v3795 = vsub.f32 %v3385, %v3794
    %v3796 = vand.u32 %v3795, 4294901760
    %3797 = vmatmul.mubr.f32.gmra.mrb[0].mxu0 %v3796
    %v3798 = vpop.f32.mrb[0].mxu0
    %v3799 = vadd.f32 %v3699, %v3798
    %v3800 = vpop.f32.mrb[0].mxu0
    %3801 = vmatprep.mubr.f32.mxu0 0.0
    %v3802 = vand.u32 %v3388, 4294901760
    %v3803 = vsub.f32 %v3388, %v3802
    %v3804 = vand.u32 %v3803, 4294901760
    %3805 = vmatmul.mubr.f32.gmra.mrb[0].mxu0 %v3804
    %v3806 = vpop.f32.mrb[0].mxu0
    %v3807 = vadd.f32 %v3706, %v3806
    %v3808 = vpop.f32.mrb[0].mxu0
    %3809 = vdwg.mxu0
    %3810 = vmatprep.subr.mxu0 0.0
    %v3811 = vand.u32 %v1984, 4294901760
    %v3812 = vsub.f32 %v1984, %v3811
    %v3813 = vand.u32 %v3812, 4294901760
    %3814 = vmatpush1.msra.mxu0 %v3813
    %3815 = vmatprep.subr.mxu0 0.0
    %v3816 = vand.u32 %v1985, 4294901760
    %v3817 = vsub.f32 %v1985, %v3816
    %v3818 = vand.u32 %v3817, 4294901760
    %3819 = vmatpush1.msra.mxu0 %v3818
    %3820 = vmatprep.subr.mxu0 0.0
    %v3821 = vand.u32 %v1986, 4294901760
    %v3822 = vsub.f32 %v1986, %v3821
    %v3823 = vand.u32 %v3822, 4294901760
    %3824 = vmatpush1.msra.mxu0 %v3823
    %3825 = vmatprep.subr.mxu0 0.0
    %v3826 = vand.u32 %v1987, 4294901760
    %v3827 = vsub.f32 %v1987, %v3826
    %v3828 = vand.u32 %v3827, 4294901760
    %3829 = vmatpush1.msra.mxu0 %v3828
    %3830 = vmatprep.subr.mxu0 0.0
    %3831 = vmatpush1.msra.mxu0 0.0
    %3832 = vmatprep.subr.mxu0 0.0
    %3833 = vmatpush1.msra.mxu0 0.0
    %3834 = vmatprep.subr.mxu0 0.0
    %3835 = vmatpush1.msra.mxu0 0.0
    %3836 = vmatprep.subr.mxu0 0.0
    %3837 = vmatpush1.msra.mxu0 0.0
    %3838 = vmatprep.subr.mxu0 0.0
    %3839 = vmatpush1.msra.mxu0 0.0
    %3840 = vmatprep.subr.mxu0 0.0
    %3841 = vmatpush1.msra.mxu0 0.0
    %3842 = vmatprep.subr.mxu0 0.0
    %3843 = vmatpush1.msra.mxu0 0.0
    %3844 = vmatprep.subr.mxu0 0.0
    %3845 = vmatpush1.msra.mxu0 0.0
    %3846 = vmatprep.subr.mxu0 0.0
    %3847 = vmatpush1.msra.mxu0 0.0
    %3848 = vmatprep.subr.mxu0 0.0
    %3849 = vmatpush1.msra.mxu0 0.0
    %3850 = vmatprep.subr.mxu0 0.0
    %3851 = vmatpush1.msra.mxu0 0.0
    %3852 = vmatprep.subr.mxu0 0.0
    %3853 = vmatpush1.msra.mxu0 0.0
    %3854 = vmatprep.subr.mxu0 0.0
    %3855 = vmatpush1.msra.mxu0 0.0
    %3856 = vmatprep.subr.mxu0 0.0
    %3857 = vmatpush1.msra.mxu0 0.0
    %3858 = vmatprep.subr.mxu0 0.0
    %3859 = vmatpush1.msra.mxu0 0.0
    %3860 = vmatprep.subr.mxu0 0.0
    %3861 = vmatpush1.msra.mxu0 0.0
    %3862 = vmatprep.subr.mxu0 0.0
    %3863 = vmatpush1.msra.mxu0 0.0
    %3864 = vmatprep.subr.mxu0 0.0
    %3865 = vmatpush1.msra.mxu0 0.0
    %3866 = vmatprep.subr.mxu0 0.0
    %3867 = vmatpush1.msra.mxu0 0.0
    %3868 = vmatprep.subr.mxu0 0.0
    %3869 = vmatpush1.msra.mxu0 0.0
    %3870 = vmatprep.subr.mxu0 0.0
    %3871 = vmatpush1.msra.mxu0 0.0
    %3872 = vmatprep.subr.mxu0 0.0
    %3873 = vmatpush1.msra.mxu0 0.0
    %3874 = vmatprep.subr.mxu0 0.0
    %3875 = vmatpush1.msra.mxu0 0.0
    %3876 = vmatprep.subr.mxu0 0.0
    %3877 = vmatpush1.msra.mxu0 0.0
    %3878 = vmatprep.subr.mxu0 0.0
    %3879 = vmatpush1.msra.mxu0 0.0
    %3880 = vmatprep.subr.mxu0 0.0
    %3881 = vmatpush1.msra.mxu0 0.0
    %3882 = vmatprep.subr.mxu0 0.0
    %3883 = vmatpush1.msra.mxu0 0.0
    %3884 = vmatprep.subr.mxu0 0.0
    %3885 = vmatpush1.msra.mxu0 0.0
    %3886 = vmatprep.mubr.f32.mxu0 0.0
    %v3887 = vand.u32 %v3379, 4294901760
    %3888 = vmatmul.mubr.f32.gmra.mrb[0].mxu0 %v3887
    %v3889 = vpop.f32.mrb[0].mxu0
    %v3890 = vadd.f32 %v3783, %v3889
    %v3891 = vpop.f32.mrb[0].mxu0
    %3892 = vmatprep.mubr.f32.mxu0 0.0
    %v3893 = vand.u32 %v3382, 4294901760
    %3894 = vmatmul.mubr.f32.gmra.mrb[0].mxu0 %v3893
    %v3895 = vpop.f32.mrb[0].mxu0
    %v3896 = vadd.f32 %v3791, %v3895
    %v3897 = vpop.f32.mrb[0].mxu0
    %3898 = vmatprep.mubr.f32.mxu0 0.0
    %v3899 = vand.u32 %v3385, 4294901760
    %3900 = vmatmul.mubr.f32.gmra.mrb[0].mxu0 %v3899
    %v3901 = vpop.f32.mrb[0].mxu0
    %v3902 = vadd.f32 %v3799, %v3901
    %v3903 = vpop.f32.mrb[0].mxu0
    %3904 = vmatprep.mubr.f32.mxu0 0.0
    %v3905 = vand.u32 %v3388, 4294901760
    %3906 = vmatmul.mubr.f32.gmra.mrb[0].mxu0 %v3905
    %v3907 = vpop.f32.mrb[0].mxu0
    %v3908 = vadd.f32 %v3807, %v3907
    %v3909 = vpop.f32.mrb[0].mxu0
    %3910 = vdwg.mxu0
    %3911 = vmatprep.subr.mxu0 0.0
    %v3912 = vand.u32 %v1984, 4294901760
    %3913 = vmatpush1.msra.mxu0 %v3912
    %3914 = vmatprep.subr.mxu0 0.0
    %v3915 = vand.u32 %v1985, 4294901760
    %3916 = vmatpush1.msra.mxu0 %v3915
    %3917 = vmatprep.subr.mxu0 0.0
    %v3918 = vand.u32 %v1986, 4294901760
    %3919 = vmatpush1.msra.mxu0 %v3918
    %3920 = vmatprep.subr.mxu0 0.0
    %v3921 = vand.u32 %v1987, 4294901760
    %3922 = vmatpush1.msra.mxu0 %v3921
    %3923 = vmatprep.subr.mxu0 0.0
    %3924 = vmatpush1.msra.mxu0 0.0
    %3925 = vmatprep.subr.mxu0 0.0
    %3926 = vmatpush1.msra.mxu0 0.0
    %3927 = vmatprep.subr.mxu0 0.0
    %3928 = vmatpush1.msra.mxu0 0.0
    %3929 = vmatprep.subr.mxu0 0.0
    %3930 = vmatpush1.msra.mxu0 0.0
    %3931 = vmatprep.subr.mxu0 0.0
    %3932 = vmatpush1.msra.mxu0 0.0
    %3933 = vmatprep.subr.mxu0 0.0
    %3934 = vmatpush1.msra.mxu0 0.0
    %3935 = vmatprep.subr.mxu0 0.0
    %3936 = vmatpush1.msra.mxu0 0.0
    %3937 = vmatprep.subr.mxu0 0.0
    %3938 = vmatpush1.msra.mxu0 0.0
    %3939 = vmatprep.subr.mxu0 0.0
    %3940 = vmatpush1.msra.mxu0 0.0
    %3941 = vmatprep.subr.mxu0 0.0
    %3942 = vmatpush1.msra.mxu0 0.0
    %3943 = vmatprep.subr.mxu0 0.0
    %3944 = vmatpush1.msra.mxu0 0.0
    %3945 = vmatprep.subr.mxu0 0.0
    %3946 = vmatpush1.msra.mxu0 0.0
    %3947 = vmatprep.subr.mxu0 0.0
    %3948 = vmatpush1.msra.mxu0 0.0
    %3949 = vmatprep.subr.mxu0 0.0
    %3950 = vmatpush1.msra.mxu0 0.0
    %3951 = vmatprep.subr.mxu0 0.0
    %3952 = vmatpush1.msra.mxu0 0.0
    %3953 = vmatprep.subr.mxu0 0.0
    %3954 = vmatpush1.msra.mxu0 0.0
    %3955 = vmatprep.subr.mxu0 0.0
    %3956 = vmatpush1.msra.mxu0 0.0
    %3957 = vmatprep.subr.mxu0 0.0
    %3958 = vmatpush1.msra.mxu0 0.0
    %3959 = vmatprep.subr.mxu0 0.0
    %3960 = vmatpush1.msra.mxu0 0.0
    %3961 = vmatprep.subr.mxu0 0.0
    %3962 = vmatpush1.msra.mxu0 0.0
    %3963 = vmatprep.subr.mxu0 0.0
    %3964 = vmatpush1.msra.mxu0 0.0
    %3965 = vmatprep.subr.mxu0 0.0
    %3966 = vmatpush1.msra.mxu0 0.0
    %3967 = vmatprep.subr.mxu0 0.0
    %3968 = vmatpush1.msra.mxu0 0.0
    %3969 = vmatprep.subr.mxu0 0.0
    %3970 = vmatpush1.msra.mxu0 0.0
    %3971 = vmatprep.subr.mxu0 0.0
    %3972 = vmatpush1.msra.mxu0 0.0
    %3973 = vmatprep.subr.mxu0 0.0
    %3974 = vmatpush1.msra.mxu0 0.0
    %3975 = vmatprep.subr.mxu0 0.0
    %3976 = vmatpush1.msra.mxu0 0.0
    %3977 = vmatprep.subr.mxu0 0.0
    %3978 = vmatpush1.msra.mxu0 0.0
    %3979 = vmatprep.mubr.f32.mxu0 0.0
    %v3980 = vand.u32 %v3379, 4294901760
    %3981 = vmatmul.mubr.f32.gmra.mrb[0].mxu0 %v3980
    %v3982 = vpop.f32.mrb[0].mxu0
    %v3983 = vadd.f32 %v3890, %v3982
    %v3984 = vpop.f32.mrb[0].mxu0
    %3985 = vmatprep.mubr.f32.mxu0 0.0
    %v3986 = vand.u32 %v3382, 4294901760
    %3987 = vmatmul.mubr.f32.gmra.mrb[0].mxu0 %v3986
    %v3988 = vpop.f32.mrb[0].mxu0
    %v3989 = vadd.f32 %v3896, %v3988
    %v3990 = vpop.f32.mrb[0].mxu0
    %3991 = vmatprep.mubr.f32.mxu0 0.0
    %v3992 = vand.u32 %v3385, 4294901760
    %3993 = vmatmul.mubr.f32.gmra.mrb[0].mxu0 %v3992
    %v3994 = vpop.f32.mrb[0].mxu0
    %v3995 = vadd.f32 %v3902, %v3994
    %v3996 = vpop.f32.mrb[0].mxu0
    %3997 = vmatprep.mubr.f32.mxu0 0.0
    %v3998 = vand.u32 %v3388, 4294901760
    %3999 = vmatmul.mubr.f32.gmra.mrb[0].mxu0 %v3998
    %v4000 = vpop.f32.mrb[0].mxu0
    %v4001 = vadd.f32 %v3908, %v4000
    %v4002 = vpop.f32.mrb[0].mxu0
    %4003 = vdwg.mxu0
    %v4005 = vsel %vm46, %v3347, 0
    %v4008 = vsel %vm46, %v3349, 0
    %v4011 = vsel %vm46, %v3351, 0
    %v4014 = vsel %vm46, %v3353, 0
    %4016 = vmatprep.subr.mxu0 0.0
    %v4017 = vand.u32 %v1980, 4294901760
    %4018 = vmatpush1.msra.mxu0 %v4017
    %4019 = vmatprep.subr.mxu0 0.0
    %v4020 = vand.u32 %v1981, 4294901760
    %4021 = vmatpush1.msra.mxu0 %v4020
    %4022 = vmatprep.subr.mxu0 0.0
    %v4023 = vand.u32 %v1982, 4294901760
    %4024 = vmatpush1.msra.mxu0 %v4023
    %4025 = vmatprep.subr.mxu0 0.0
    %v4026 = vand.u32 %v1983, 4294901760
    %4027 = vmatpush1.msra.mxu0 %v4026
    %4028 = vmatprep.subr.mxu0 0.0
    %4029 = vmatpush1.msra.mxu0 0.0
    %4030 = vmatprep.subr.mxu0 0.0
    %4031 = vmatpush1.msra.mxu0 0.0
    %4032 = vmatprep.subr.mxu0 0.0
    %4033 = vmatpush1.msra.mxu0 0.0
    %4034 = vmatprep.subr.mxu0 0.0
    %4035 = vmatpush1.msra.mxu0 0.0
    %4036 = vmatprep.subr.mxu0 0.0
    %4037 = vmatpush1.msra.mxu0 0.0
    %4038 = vmatprep.subr.mxu0 0.0
    %4039 = vmatpush1.msra.mxu0 0.0
    %4040 = vmatprep.subr.mxu0 0.0
    %4041 = vmatpush1.msra.mxu0 0.0
    %4042 = vmatprep.subr.mxu0 0.0
    %4043 = vmatpush1.msra.mxu0 0.0
    %4044 = vmatprep.subr.mxu0 0.0
    %4045 = vmatpush1.msra.mxu0 0.0
    %4046 = vmatprep.subr.mxu0 0.0
    %4047 = vmatpush1.msra.mxu0 0.0
    %4048 = vmatprep.subr.mxu0 0.0
    %4049 = vmatpush1.msra.mxu0 0.0
    %4050 = vmatprep.subr.mxu0 0.0
    %4051 = vmatpush1.msra.mxu0 0.0
    %4052 = vmatprep.subr.mxu0 0.0
    %4053 = vmatpush1.msra.mxu0 0.0
    %4054 = vmatprep.subr.mxu0 0.0
    %4055 = vmatpush1.msra.mxu0 0.0
    %4056 = vmatprep.subr.mxu0 0.0
    %4057 = vmatpush1.msra.mxu0 0.0
    %4058 = vmatprep.subr.mxu0 0.0
    %4059 = vmatpush1.msra.mxu0 0.0
    %4060 = vmatprep.subr.mxu0 0.0
    %4061 = vmatpush1.msra.mxu0 0.0
    %4062 = vmatprep.subr.mxu0 0.0
    %4063 = vmatpush1.msra.mxu0 0.0
    %4064 = vmatprep.subr.mxu0 0.0
    %4065 = vmatpush1.msra.mxu0 0.0
    %4066 = vmatprep.subr.mxu0 0.0
    %4067 = vmatpush1.msra.mxu0 0.0
    %4068 = vmatprep.subr.mxu0 0.0
    %4069 = vmatpush1.msra.mxu0 0.0
    %4070 = vmatprep.subr.mxu0 0.0
    %4071 = vmatpush1.msra.mxu0 0.0
    %4072 = vmatprep.subr.mxu0 0.0
    %4073 = vmatpush1.msra.mxu0 0.0
    %4074 = vmatprep.subr.mxu0 0.0
    %4075 = vmatpush1.msra.mxu0 0.0
    %4076 = vmatprep.subr.mxu0 0.0
    %4077 = vmatpush1.msra.mxu0 0.0
    %4078 = vmatprep.subr.mxu0 0.0
    %4079 = vmatpush1.msra.mxu0 0.0
    %4080 = vmatprep.subr.mxu0 0.0
    %4081 = vmatpush1.msra.mxu0 0.0
    %4082 = vmatprep.subr.mxu0 0.0
    %4083 = vmatpush1.msra.mxu0 0.0
    %4084 = vmatprep.mubr.f32.mxu0 0.0
    %v4085 = vand.u32 %v4005, 4294901760
    %v4086 = vsub.f32 %v4005, %v4085
    %v4087 = vand.u32 %v4086, 4294901760
    %v4088 = vsub.f32 %v4086, %v4087
    %v4089 = vand.u32 %v4088, 4294901760
    %4090 = vmatmul.mubr.f32.gmra.mrb[0].mxu0 %v4089
    %v4091 = vpop.f32.mrb[0].mxu0
    %v4092 = vadd.f32 %v3983, %v4091
    %v4093 = vpop.f32.mrb[0].mxu0
    %4094 = vmatprep.mubr.f32.mxu0 0.0
    %v4095 = vand.u32 %v4008, 4294901760
    %v4096 = vsub.f32 %v4008, %v4095
    %v4097 = vand.u32 %v4096, 4294901760
    %v4098 = vsub.f32 %v4096, %v4097
    %v4099 = vand.u32 %v4098, 4294901760
    %4100 = vmatmul.mubr.f32.gmra.mrb[0].mxu0 %v4099
    %v4101 = vpop.f32.mrb[0].mxu0
    %v4102 = vadd.f32 %v3989, %v4101
    %v4103 = vpop.f32.mrb[0].mxu0
    %4104 = vmatprep.mubr.f32.mxu0 0.0
    %v4105 = vand.u32 %v4011, 4294901760
    %v4106 = vsub.f32 %v4011, %v4105
    %v4107 = vand.u32 %v4106, 4294901760
    %v4108 = vsub.f32 %v4106, %v4107
    %v4109 = vand.u32 %v4108, 4294901760
    %4110 = vmatmul.mubr.f32.gmra.mrb[0].mxu0 %v4109
    %v4111 = vpop.f32.mrb[0].mxu0
    %v4112 = vadd.f32 %v3995, %v4111
    %v4113 = vpop.f32.mrb[0].mxu0
    %4114 = vmatprep.mubr.f32.mxu0 0.0
    %v4115 = vand.u32 %v4014, 4294901760
    %v4116 = vsub.f32 %v4014, %v4115
    %v4117 = vand.u32 %v4116, 4294901760
    %v4118 = vsub.f32 %v4116, %v4117
    %v4119 = vand.u32 %v4118, 4294901760
    %4120 = vmatmul.mubr.f32.gmra.mrb[0].mxu0 %v4119
    %v4121 = vpop.f32.mrb[0].mxu0
    %v4122 = vadd.f32 %v4001, %v4121
    %v4123 = vpop.f32.mrb[0].mxu0
    %4124 = vdwg.mxu0
    %4125 = vmatprep.subr.mxu0 0.0
    %v4126 = vand.u32 %v1980, 4294901760
    %v4127 = vsub.f32 %v1980, %v4126
    %v4128 = vand.u32 %v4127, 4294901760
    %v4129 = vsub.f32 %v4127, %v4128
    %v4130 = vand.u32 %v4129, 4294901760
    %4131 = vmatpush1.msra.mxu0 %v4130
    %4132 = vmatprep.subr.mxu0 0.0
    %v4133 = vand.u32 %v1981, 4294901760
    %v4134 = vsub.f32 %v1981, %v4133
    %v4135 = vand.u32 %v4134, 4294901760
    %v4136 = vsub.f32 %v4134, %v4135
    %v4137 = vand.u32 %v4136, 4294901760
    %4138 = vmatpush1.msra.mxu0 %v4137
    %4139 = vmatprep.subr.mxu0 0.0
    %v4140 = vand.u32 %v1982, 4294901760
    %v4141 = vsub.f32 %v1982, %v4140
    %v4142 = vand.u32 %v4141, 4294901760
    %v4143 = vsub.f32 %v4141, %v4142
    %v4144 = vand.u32 %v4143, 4294901760
    %4145 = vmatpush1.msra.mxu0 %v4144
    %4146 = vmatprep.subr.mxu0 0.0
    %v4147 = vand.u32 %v1983, 4294901760
    %v4148 = vsub.f32 %v1983, %v4147
    %v4149 = vand.u32 %v4148, 4294901760
    %v4150 = vsub.f32 %v4148, %v4149
    %v4151 = vand.u32 %v4150, 4294901760
    %4152 = vmatpush1.msra.mxu0 %v4151
    %4153 = vmatprep.subr.mxu0 0.0
    %4154 = vmatpush1.msra.mxu0 0.0
    %4155 = vmatprep.subr.mxu0 0.0
    %4156 = vmatpush1.msra.mxu0 0.0
    %4157 = vmatprep.subr.mxu0 0.0
    %4158 = vmatpush1.msra.mxu0 0.0
    %4159 = vmatprep.subr.mxu0 0.0
    %4160 = vmatpush1.msra.mxu0 0.0
    %4161 = vmatprep.subr.mxu0 0.0
    %4162 = vmatpush1.msra.mxu0 0.0
    %4163 = vmatprep.subr.mxu0 0.0
    %4164 = vmatpush1.msra.mxu0 0.0
    %4165 = vmatprep.subr.mxu0 0.0
    %4166 = vmatpush1.msra.mxu0 0.0
    %4167 = vmatprep.subr.mxu0 0.0
    %4168 = vmatpush1.msra.mxu0 0.0
    %4169 = vmatprep.subr.mxu0 0.0
    %4170 = vmatpush1.msra.mxu0 0.0
    %4171 = vmatprep.subr.mxu0 0.0
    %4172 = vmatpush1.msra.mxu0 0.0
    %4173 = vmatprep.subr.mxu0 0.0
    %4174 = vmatpush1.msra.mxu0 0.0
    %4175 = vmatprep.subr.mxu0 0.0
    %4176 = vmatpush1.msra.mxu0 0.0
    %4177 = vmatprep.subr.mxu0 0.0
    %4178 = vmatpush1.msra.mxu0 0.0
    %4179 = vmatprep.subr.mxu0 0.0
    %4180 = vmatpush1.msra.mxu0 0.0
    %4181 = vmatprep.subr.mxu0 0.0
    %4182 = vmatpush1.msra.mxu0 0.0
    %4183 = vmatprep.subr.mxu0 0.0
    %4184 = vmatpush1.msra.mxu0 0.0
    %4185 = vmatprep.subr.mxu0 0.0
    %4186 = vmatpush1.msra.mxu0 0.0
    %4187 = vmatprep.subr.mxu0 0.0
    %4188 = vmatpush1.msra.mxu0 0.0
    %4189 = vmatprep.subr.mxu0 0.0
    %4190 = vmatpush1.msra.mxu0 0.0
    %4191 = vmatprep.subr.mxu0 0.0
    %4192 = vmatpush1.msra.mxu0 0.0
    %4193 = vmatprep.subr.mxu0 0.0
    %4194 = vmatpush1.msra.mxu0 0.0
    %4195 = vmatprep.subr.mxu0 0.0
    %4196 = vmatpush1.msra.mxu0 0.0
    %4197 = vmatprep.subr.mxu0 0.0
    %4198 = vmatpush1.msra.mxu0 0.0
    %4199 = vmatprep.subr.mxu0 0.0
    %4200 = vmatpush1.msra.mxu0 0.0
    %4201 = vmatprep.subr.mxu0 0.0
    %4202 = vmatpush1.msra.mxu0 0.0
    %4203 = vmatprep.subr.mxu0 0.0
    %4204 = vmatpush1.msra.mxu0 0.0
    %4205 = vmatprep.subr.mxu0 0.0
    %4206 = vmatpush1.msra.mxu0 0.0
    %4207 = vmatprep.subr.mxu0 0.0
    %4208 = vmatpush1.msra.mxu0 0.0
    %4209 = vmatprep.mubr.f32.mxu0 0.0
    %v4210 = vand.u32 %v4005, 4294901760
    %4211 = vmatmul.mubr.f32.gmra.mrb[0].mxu0 %v4210
    %v4212 = vpop.f32.mrb[0].mxu0
    %v4213 = vadd.f32 %v4092, %v4212
    %v4214 = vpop.f32.mrb[0].mxu0
    %4215 = vmatprep.mubr.f32.mxu0 0.0
    %v4216 = vand.u32 %v4008, 4294901760
    %4217 = vmatmul.mubr.f32.gmra.mrb[0].mxu0 %v4216
    %v4218 = vpop.f32.mrb[0].mxu0
    %v4219 = vadd.f32 %v4102, %v4218
    %v4220 = vpop.f32.mrb[0].mxu0
    %4221 = vmatprep.mubr.f32.mxu0 0.0
    %v4222 = vand.u32 %v4011, 4294901760
    %4223 = vmatmul.mubr.f32.gmra.mrb[0].mxu0 %v4222
    %v4224 = vpop.f32.mrb[0].mxu0
    %v4225 = vadd.f32 %v4112, %v4224
    %v4226 = vpop.f32.mrb[0].mxu0
    %4227 = vmatprep.mubr.f32.mxu0 0.0
    %v4228 = vand.u32 %v4014, 4294901760
    %4229 = vmatmul.mubr.f32.gmra.mrb[0].mxu0 %v4228
    %v4230 = vpop.f32.mrb[0].mxu0
    %v4231 = vadd.f32 %v4122, %v4230
    %v4232 = vpop.f32.mrb[0].mxu0
    %4233 = vdwg.mxu0
    %4234 = vmatprep.subr.mxu0 0.0
    %v4235 = vand.u32 %v1980, 4294901760
    %v4236 = vsub.f32 %v1980, %v4235
    %4237 = vmatpush1.msra.mxu0 %v4236
    %4238 = vmatprep.subr.mxu0 0.0
    %v4239 = vand.u32 %v1981, 4294901760
    %v4240 = vsub.f32 %v1981, %v4239
    %4241 = vmatpush1.msra.mxu0 %v4240
    %4242 = vmatprep.subr.mxu0 0.0
    %v4243 = vand.u32 %v1982, 4294901760
    %v4244 = vsub.f32 %v1982, %v4243
    %4245 = vmatpush1.msra.mxu0 %v4244
    %4246 = vmatprep.subr.mxu0 0.0
    %v4247 = vand.u32 %v1983, 4294901760
    %v4248 = vsub.f32 %v1983, %v4247
    %4249 = vmatpush1.msra.mxu0 %v4248
    %4250 = vmatprep.subr.mxu0 0.0
    %4251 = vmatpush1.msra.mxu0 0.0
    %4252 = vmatprep.subr.mxu0 0.0
    %4253 = vmatpush1.msra.mxu0 0.0
    %4254 = vmatprep.subr.mxu0 0.0
    %4255 = vmatpush1.msra.mxu0 0.0
    %4256 = vmatprep.subr.mxu0 0.0
    %4257 = vmatpush1.msra.mxu0 0.0
    %4258 = vmatprep.subr.mxu0 0.0
    %4259 = vmatpush1.msra.mxu0 0.0
    %4260 = vmatprep.subr.mxu0 0.0
    %4261 = vmatpush1.msra.mxu0 0.0
    %4262 = vmatprep.subr.mxu0 0.0
    %4263 = vmatpush1.msra.mxu0 0.0
    %4264 = vmatprep.subr.mxu0 0.0
    %4265 = vmatpush1.msra.mxu0 0.0
    %4266 = vmatprep.subr.mxu0 0.0
    %4267 = vmatpush1.msra.mxu0 0.0
    %4268 = vmatprep.subr.mxu0 0.0
    %4269 = vmatpush1.msra.mxu0 0.0
    %4270 = vmatprep.subr.mxu0 0.0
    %4271 = vmatpush1.msra.mxu0 0.0
    %4272 = vmatprep.subr.mxu0 0.0
    %4273 = vmatpush1.msra.mxu0 0.0
    %4274 = vmatprep.subr.mxu0 0.0
    %4275 = vmatpush1.msra.mxu0 0.0
    %4276 = vmatprep.subr.mxu0 0.0
    %4277 = vmatpush1.msra.mxu0 0.0
    %4278 = vmatprep.subr.mxu0 0.0
    %4279 = vmatpush1.msra.mxu0 0.0
    %4280 = vmatprep.subr.mxu0 0.0
    %4281 = vmatpush1.msra.mxu0 0.0
    %4282 = vmatprep.subr.mxu0 0.0
    %4283 = vmatpush1.msra.mxu0 0.0
    %4284 = vmatprep.subr.mxu0 0.0
    %4285 = vmatpush1.msra.mxu0 0.0
    %4286 = vmatprep.subr.mxu0 0.0
    %4287 = vmatpush1.msra.mxu0 0.0
    %4288 = vmatprep.subr.mxu0 0.0
    %4289 = vmatpush1.msra.mxu0 0.0
    %4290 = vmatprep.subr.mxu0 0.0
    %4291 = vmatpush1.msra.mxu0 0.0
    %4292 = vmatprep.subr.mxu0 0.0
    %4293 = vmatpush1.msra.mxu0 0.0
    %4294 = vmatprep.subr.mxu0 0.0
    %4295 = vmatpush1.msra.mxu0 0.0
    %4296 = vmatprep.subr.mxu0 0.0
    %4297 = vmatpush1.msra.mxu0 0.0
    %4298 = vmatprep.subr.mxu0 0.0
    %4299 = vmatpush1.msra.mxu0 0.0
    %4300 = vmatprep.subr.mxu0 0.0
    %4301 = vmatpush1.msra.mxu0 0.0
    %4302 = vmatprep.subr.mxu0 0.0
    %4303 = vmatpush1.msra.mxu0 0.0
    %4304 = vmatprep.subr.mxu0 0.0
    %4305 = vmatpush1.msra.mxu0 0.0
    %4306 = vmatprep.mubr.f32.mxu0 0.0
    %v4307 = vand.u32 %v4005, 4294901760
    %v4308 = vsub.f32 %v4005, %v4307
    %4309 = vmatmul.mubr.f32.gmra.mrb[0].mxu0 %v4308
    %v4310 = vpop.f32.mrb[0].mxu0
    %v4311 = vadd.f32 %v4213, %v4310
    %v4312 = vpop.f32.mrb[0].mxu0
    %4313 = vmatprep.mubr.f32.mxu0 0.0
    %v4314 = vand.u32 %v4008, 4294901760
    %v4315 = vsub.f32 %v4008, %v4314
    %4316 = vmatmul.mubr.f32.gmra.mrb[0].mxu0 %v4315
    %v4317 = vpop.f32.mrb[0].mxu0
    %v4318 = vadd.f32 %v4219, %v4317
    %v4319 = vpop.f32.mrb[0].mxu0
    %4320 = vmatprep.mubr.f32.mxu0 0.0
    %v4321 = vand.u32 %v4011, 4294901760
    %v4322 = vsub.f32 %v4011, %v4321
    %4323 = vmatmul.mubr.f32.gmra.mrb[0].mxu0 %v4322
    %v4324 = vpop.f32.mrb[0].mxu0
    %v4325 = vadd.f32 %v4225, %v4324
    %v4326 = vpop.f32.mrb[0].mxu0
    %4327 = vmatprep.mubr.f32.mxu0 0.0
    %v4328 = vand.u32 %v4014, 4294901760
    %v4329 = vsub.f32 %v4014, %v4328
    %4330 = vmatmul.mubr.f32.gmra.mrb[0].mxu0 %v4329
    %v4331 = vpop.f32.mrb[0].mxu0
    %v4332 = vadd.f32 %v4231, %v4331
    %v4333 = vpop.f32.mrb[0].mxu0
    %4334 = vdwg.mxu0
    %4335 = vmatprep.subr.mxu0 0.0
    %v4336 = vand.u32 %v1980, 4294901760
    %4337 = vmatpush1.msra.mxu0 %v4336
    %4338 = vmatprep.subr.mxu0 0.0
    %v4339 = vand.u32 %v1981, 4294901760
    %4340 = vmatpush1.msra.mxu0 %v4339
    %4341 = vmatprep.subr.mxu0 0.0
    %v4342 = vand.u32 %v1982, 4294901760
    %4343 = vmatpush1.msra.mxu0 %v4342
    %4344 = vmatprep.subr.mxu0 0.0
    %v4345 = vand.u32 %v1983, 4294901760
    %4346 = vmatpush1.msra.mxu0 %v4345
    %4347 = vmatprep.subr.mxu0 0.0
    %4348 = vmatpush1.msra.mxu0 0.0
    %4349 = vmatprep.subr.mxu0 0.0
    %4350 = vmatpush1.msra.mxu0 0.0
    %4351 = vmatprep.subr.mxu0 0.0
    %4352 = vmatpush1.msra.mxu0 0.0
    %4353 = vmatprep.subr.mxu0 0.0
    %4354 = vmatpush1.msra.mxu0 0.0
    %4355 = vmatprep.subr.mxu0 0.0
    %4356 = vmatpush1.msra.mxu0 0.0
    %4357 = vmatprep.subr.mxu0 0.0
    %4358 = vmatpush1.msra.mxu0 0.0
    %4359 = vmatprep.subr.mxu0 0.0
    %4360 = vmatpush1.msra.mxu0 0.0
    %4361 = vmatprep.subr.mxu0 0.0
    %4362 = vmatpush1.msra.mxu0 0.0
    %4363 = vmatprep.subr.mxu0 0.0
    %4364 = vmatpush1.msra.mxu0 0.0
    %4365 = vmatprep.subr.mxu0 0.0
    %4366 = vmatpush1.msra.mxu0 0.0
    %4367 = vmatprep.subr.mxu0 0.0
    %4368 = vmatpush1.msra.mxu0 0.0
    %4369 = vmatprep.subr.mxu0 0.0
    %4370 = vmatpush1.msra.mxu0 0.0
    %4371 = vmatprep.subr.mxu0 0.0
    %4372 = vmatpush1.msra.mxu0 0.0
    %4373 = vmatprep.subr.mxu0 0.0
    %4374 = vmatpush1.msra.mxu0 0.0
    %4375 = vmatprep.subr.mxu0 0.0
    %4376 = vmatpush1.msra.mxu0 0.0
    %4377 = vmatprep.subr.mxu0 0.0
    %4378 = vmatpush1.msra.mxu0 0.0
    %4379 = vmatprep.subr.mxu0 0.0
    %4380 = vmatpush1.msra.mxu0 0.0
    %4381 = vmatprep.subr.mxu0 0.0
    %4382 = vmatpush1.msra.mxu0 0.0
    %4383 = vmatprep.subr.mxu0 0.0
    %4384 = vmatpush1.msra.mxu0 0.0
    %4385 = vmatprep.subr.mxu0 0.0
    %4386 = vmatpush1.msra.mxu0 0.0
    %4387 = vmatprep.subr.mxu0 0.0
    %4388 = vmatpush1.msra.mxu0 0.0
    %4389 = vmatprep.subr.mxu0 0.0
    %4390 = vmatpush1.msra.mxu0 0.0
    %4391 = vmatprep.subr.mxu0 0.0
    %4392 = vmatpush1.msra.mxu0 0.0
    %4393 = vmatprep.subr.mxu0 0.0
    %4394 = vmatpush1.msra.mxu0 0.0
    %4395 = vmatprep.subr.mxu0 0.0
    %4396 = vmatpush1.msra.mxu0 0.0
    %4397 = vmatprep.subr.mxu0 0.0
    %4398 = vmatpush1.msra.mxu0 0.0
    %4399 = vmatprep.subr.mxu0 0.0
    %4400 = vmatpush1.msra.mxu0 0.0
    %4401 = vmatprep.subr.mxu0 0.0
    %4402 = vmatpush1.msra.mxu0 0.0
    %4403 = vmatprep.mubr.f32.mxu0 0.0
    %v4404 = vand.u32 %v4005, 4294901760
    %v4405 = vsub.f32 %v4005, %v4404
    %v4406 = vand.u32 %v4405, 4294901760
    %4407 = vmatmul.mubr.f32.gmra.mrb[0].mxu0 %v4406
    %v4408 = vpop.f32.mrb[0].mxu0
    %v4409 = vadd.f32 %v4311, %v4408
    %v4410 = vpop.f32.mrb[0].mxu0
    %4411 = vmatprep.mubr.f32.mxu0 0.0
    %v4412 = vand.u32 %v4008, 4294901760
    %v4413 = vsub.f32 %v4008, %v4412
    %v4414 = vand.u32 %v4413, 4294901760
    %4415 = vmatmul.mubr.f32.gmra.mrb[0].mxu0 %v4414
    %v4416 = vpop.f32.mrb[0].mxu0
    %v4417 = vadd.f32 %v4318, %v4416
    %v4418 = vpop.f32.mrb[0].mxu0
    %4419 = vmatprep.mubr.f32.mxu0 0.0
    %v4420 = vand.u32 %v4011, 4294901760
    %v4421 = vsub.f32 %v4011, %v4420
    %v4422 = vand.u32 %v4421, 4294901760
    %4423 = vmatmul.mubr.f32.gmra.mrb[0].mxu0 %v4422
    %v4424 = vpop.f32.mrb[0].mxu0
    %v4425 = vadd.f32 %v4325, %v4424
    %v4426 = vpop.f32.mrb[0].mxu0
    %4427 = vmatprep.mubr.f32.mxu0 0.0
    %v4428 = vand.u32 %v4014, 4294901760
    %v4429 = vsub.f32 %v4014, %v4428
    %v4430 = vand.u32 %v4429, 4294901760
    %4431 = vmatmul.mubr.f32.gmra.mrb[0].mxu0 %v4430
    %v4432 = vpop.f32.mrb[0].mxu0
    %v4433 = vadd.f32 %v4332, %v4432
    %v4434 = vpop.f32.mrb[0].mxu0
    %4435 = vdwg.mxu0
    %4436 = vmatprep.subr.mxu0 0.0
    %v4437 = vand.u32 %v1980, 4294901760
    %v4438 = vsub.f32 %v1980, %v4437
    %v4439 = vand.u32 %v4438, 4294901760
    %4440 = vmatpush1.msra.mxu0 %v4439
    %4441 = vmatprep.subr.mxu0 0.0
    %v4442 = vand.u32 %v1981, 4294901760
    %v4443 = vsub.f32 %v1981, %v4442
    %v4444 = vand.u32 %v4443, 4294901760
    %4445 = vmatpush1.msra.mxu0 %v4444
    %4446 = vmatprep.subr.mxu0 0.0
    %v4447 = vand.u32 %v1982, 4294901760
    %v4448 = vsub.f32 %v1982, %v4447
    %v4449 = vand.u32 %v4448, 4294901760
    %4450 = vmatpush1.msra.mxu0 %v4449
    %4451 = vmatprep.subr.mxu0 0.0
    %v4452 = vand.u32 %v1983, 4294901760
    %v4453 = vsub.f32 %v1983, %v4452
    %v4454 = vand.u32 %v4453, 4294901760
    %4455 = vmatpush1.msra.mxu0 %v4454
    %4456 = vmatprep.subr.mxu0 0.0
    %4457 = vmatpush1.msra.mxu0 0.0
    %4458 = vmatprep.subr.mxu0 0.0
    %4459 = vmatpush1.msra.mxu0 0.0
    %4460 = vmatprep.subr.mxu0 0.0
    %4461 = vmatpush1.msra.mxu0 0.0
    %4462 = vmatprep.subr.mxu0 0.0
    %4463 = vmatpush1.msra.mxu0 0.0
    %4464 = vmatprep.subr.mxu0 0.0
    %4465 = vmatpush1.msra.mxu0 0.0
    %4466 = vmatprep.subr.mxu0 0.0
    %4467 = vmatpush1.msra.mxu0 0.0
    %4468 = vmatprep.subr.mxu0 0.0
    %4469 = vmatpush1.msra.mxu0 0.0
    %4470 = vmatprep.subr.mxu0 0.0
    %4471 = vmatpush1.msra.mxu0 0.0
    %4472 = vmatprep.subr.mxu0 0.0
    %4473 = vmatpush1.msra.mxu0 0.0
    %4474 = vmatprep.subr.mxu0 0.0
    %4475 = vmatpush1.msra.mxu0 0.0
    %4476 = vmatprep.subr.mxu0 0.0
    %4477 = vmatpush1.msra.mxu0 0.0
    %4478 = vmatprep.subr.mxu0 0.0
    %4479 = vmatpush1.msra.mxu0 0.0
    %4480 = vmatprep.subr.mxu0 0.0
    %4481 = vmatpush1.msra.mxu0 0.0
    %4482 = vmatprep.subr.mxu0 0.0
    %4483 = vmatpush1.msra.mxu0 0.0
    %4484 = vmatprep.subr.mxu0 0.0
    %4485 = vmatpush1.msra.mxu0 0.0
    %4486 = vmatprep.subr.mxu0 0.0
    %4487 = vmatpush1.msra.mxu0 0.0
    %4488 = vmatprep.subr.mxu0 0.0
    %4489 = vmatpush1.msra.mxu0 0.0
    %4490 = vmatprep.subr.mxu0 0.0
    %4491 = vmatpush1.msra.mxu0 0.0
    %4492 = vmatprep.subr.mxu0 0.0
    %4493 = vmatpush1.msra.mxu0 0.0
    %4494 = vmatprep.subr.mxu0 0.0
    %4495 = vmatpush1.msra.mxu0 0.0
    %4496 = vmatprep.subr.mxu0 0.0
    %4497 = vmatpush1.msra.mxu0 0.0
    %4498 = vmatprep.subr.mxu0 0.0
    %4499 = vmatpush1.msra.mxu0 0.0
    %4500 = vmatprep.subr.mxu0 0.0
    %4501 = vmatpush1.msra.mxu0 0.0
    %4502 = vmatprep.subr.mxu0 0.0
    %4503 = vmatpush1.msra.mxu0 0.0
    %4504 = vmatprep.subr.mxu0 0.0
    %4505 = vmatpush1.msra.mxu0 0.0
    %4506 = vmatprep.subr.mxu0 0.0
    %4507 = vmatpush1.msra.mxu0 0.0
    %4508 = vmatprep.subr.mxu0 0.0
    %4509 = vmatpush1.msra.mxu0 0.0
    %4510 = vmatprep.subr.mxu0 0.0
    %4511 = vmatpush1.msra.mxu0 0.0
    %4512 = vmatprep.mubr.f32.mxu0 0.0
    %v4513 = vand.u32 %v4005, 4294901760
    %4514 = vmatmul.mubr.f32.gmra.mrb[0].mxu0 %v4513
    %v4515 = vpop.f32.mrb[0].mxu0
    %v4516 = vadd.f32 %v4409, %v4515
    %v4517 = vpop.f32.mrb[0].mxu0
    %4518 = vmatprep.mubr.f32.mxu0 0.0
    %v4519 = vand.u32 %v4008, 4294901760
    %4520 = vmatmul.mubr.f32.gmra.mrb[0].mxu0 %v4519
    %v4521 = vpop.f32.mrb[0].mxu0
    %v4522 = vadd.f32 %v4417, %v4521
    %v4523 = vpop.f32.mrb[0].mxu0
    %4524 = vmatprep.mubr.f32.mxu0 0.0
    %v4525 = vand.u32 %v4011, 4294901760
    %4526 = vmatmul.mubr.f32.gmra.mrb[0].mxu0 %v4525
    %v4527 = vpop.f32.mrb[0].mxu0
    %v4528 = vadd.f32 %v4425, %v4527
    %v4529 = vpop.f32.mrb[0].mxu0
    %4530 = vmatprep.mubr.f32.mxu0 0.0
    %v4531 = vand.u32 %v4014, 4294901760
    %4532 = vmatmul.mubr.f32.gmra.mrb[0].mxu0 %v4531
    %v4533 = vpop.f32.mrb[0].mxu0
    %v4534 = vadd.f32 %v4433, %v4533
    %v4535 = vpop.f32.mrb[0].mxu0
    %4536 = vdwg.mxu0
    %4537 = vmatprep.subr.mxu0 0.0
    %v4538 = vand.u32 %v1980, 4294901760
    %4539 = vmatpush1.msra.mxu0 %v4538
    %4540 = vmatprep.subr.mxu0 0.0
    %v4541 = vand.u32 %v1981, 4294901760
    %4542 = vmatpush1.msra.mxu0 %v4541
    %4543 = vmatprep.subr.mxu0 0.0
    %v4544 = vand.u32 %v1982, 4294901760
    %4545 = vmatpush1.msra.mxu0 %v4544
    %4546 = vmatprep.subr.mxu0 0.0
    %v4547 = vand.u32 %v1983, 4294901760
    %4548 = vmatpush1.msra.mxu0 %v4547
    %4549 = vmatprep.subr.mxu0 0.0
    %4550 = vmatpush1.msra.mxu0 0.0
    %4551 = vmatprep.subr.mxu0 0.0
    %4552 = vmatpush1.msra.mxu0 0.0
    %4553 = vmatprep.subr.mxu0 0.0
    %4554 = vmatpush1.msra.mxu0 0.0
    %4555 = vmatprep.subr.mxu0 0.0
    %4556 = vmatpush1.msra.mxu0 0.0
    %4557 = vmatprep.subr.mxu0 0.0
    %4558 = vmatpush1.msra.mxu0 0.0
    %4559 = vmatprep.subr.mxu0 0.0
    %4560 = vmatpush1.msra.mxu0 0.0
    %4561 = vmatprep.subr.mxu0 0.0
    %4562 = vmatpush1.msra.mxu0 0.0
    %4563 = vmatprep.subr.mxu0 0.0
    %4564 = vmatpush1.msra.mxu0 0.0
    %4565 = vmatprep.subr.mxu0 0.0
    %4566 = vmatpush1.msra.mxu0 0.0
    %4567 = vmatprep.subr.mxu0 0.0
    %4568 = vmatpush1.msra.mxu0 0.0
    %4569 = vmatprep.subr.mxu0 0.0
    %4570 = vmatpush1.msra.mxu0 0.0
    %4571 = vmatprep.subr.mxu0 0.0
    %4572 = vmatpush1.msra.mxu0 0.0
    %4573 = vmatprep.subr.mxu0 0.0
    %4574 = vmatpush1.msra.mxu0 0.0
    %4575 = vmatprep.subr.mxu0 0.0
    %4576 = vmatpush1.msra.mxu0 0.0
    %4577 = vmatprep.subr.mxu0 0.0
    %4578 = vmatpush1.msra.mxu0 0.0
    %4579 = vmatprep.subr.mxu0 0.0
    %4580 = vmatpush1.msra.mxu0 0.0
    %4581 = vmatprep.subr.mxu0 0.0
    %4582 = vmatpush1.msra.mxu0 0.0
    %4583 = vmatprep.subr.mxu0 0.0
    %4584 = vmatpush1.msra.mxu0 0.0
    %4585 = vmatprep.subr.mxu0 0.0
    %4586 = vmatpush1.msra.mxu0 0.0
    %4587 = vmatprep.subr.mxu0 0.0
    %4588 = vmatpush1.msra.mxu0 0.0
    %4589 = vmatprep.subr.mxu0 0.0
    %4590 = vmatpush1.msra.mxu0 0.0
    %4591 = vmatprep.subr.mxu0 0.0
    %4592 = vmatpush1.msra.mxu0 0.0
    %4593 = vmatprep.subr.mxu0 0.0
    %4594 = vmatpush1.msra.mxu0 0.0
    %4595 = vmatprep.subr.mxu0 0.0
    %4596 = vmatpush1.msra.mxu0 0.0
    %4597 = vmatprep.subr.mxu0 0.0
    %4598 = vmatpush1.msra.mxu0 0.0
    %4599 = vmatprep.subr.mxu0 0.0
    %4600 = vmatpush1.msra.mxu0 0.0
    %4601 = vmatprep.subr.mxu0 0.0
    %4602 = vmatpush1.msra.mxu0 0.0
    %4603 = vmatprep.subr.mxu0 0.0
    %4604 = vmatpush1.msra.mxu0 0.0
    %4605 = vmatprep.mubr.f32.mxu0 0.0
    %v4606 = vand.u32 %v4005, 4294901760
    %4607 = vmatmul.mubr.f32.gmra.mrb[0].mxu0 %v4606
    %v4608 = vpop.f32.mrb[0].mxu0
    %v4609 = vadd.f32 %v4516, %v4608
    %v4610 = vpop.f32.mrb[0].mxu0
    %4611 = vmatprep.mubr.f32.mxu0 0.0
    %v4612 = vand.u32 %v4008, 4294901760
    %4613 = vmatmul.mubr.f32.gmra.mrb[0].mxu0 %v4612
    %v4614 = vpop.f32.mrb[0].mxu0
    %v4615 = vadd.f32 %v4522, %v4614
    %v4616 = vpop.f32.mrb[0].mxu0
    %4617 = vmatprep.mubr.f32.mxu0 0.0
    %v4618 = vand.u32 %v4011, 4294901760
    %4619 = vmatmul.mubr.f32.gmra.mrb[0].mxu0 %v4618
    %v4620 = vpop.f32.mrb[0].mxu0
    %v4621 = vadd.f32 %v4528, %v4620
    %v4622 = vpop.f32.mrb[0].mxu0
    %4623 = vmatprep.mubr.f32.mxu0 0.0
    %v4624 = vand.u32 %v4014, 4294901760
    %4625 = vmatmul.mubr.f32.gmra.mrb[0].mxu0 %v4624
    %v4626 = vpop.f32.mrb[0].mxu0
    %v4627 = vadd.f32 %v4534, %v4626
    %v4628 = vpop.f32.mrb[0].mxu0
    %4629 = vdwg.mxu0
    %v4631 = vsel %vm46, %v3363, 0
    %v4634 = vsel %vm46, %v3365, 0
    %v4637 = vsel %vm46, %v3367, 0
    %v4640 = vsel %vm46, %v3369, 0
    %4642 = vmatprep.subr.mxu0 0.0
    %v4643 = vand.u32 %v1988, 4294901760
    %4644 = vmatpush1.msra.mxu0 %v4643
    %4645 = vmatprep.subr.mxu0 0.0
    %v4646 = vand.u32 %v1989, 4294901760
    %4647 = vmatpush1.msra.mxu0 %v4646
    %4648 = vmatprep.subr.mxu0 0.0
    %v4649 = vand.u32 %v1990, 4294901760
    %4650 = vmatpush1.msra.mxu0 %v4649
    %4651 = vmatprep.subr.mxu0 0.0
    %v4652 = vand.u32 %v1991, 4294901760
    %4653 = vmatpush1.msra.mxu0 %v4652
    %4654 = vmatprep.subr.mxu0 0.0
    %4655 = vmatpush1.msra.mxu0 0.0
    %4656 = vmatprep.subr.mxu0 0.0
    %4657 = vmatpush1.msra.mxu0 0.0
    %4658 = vmatprep.subr.mxu0 0.0
    %4659 = vmatpush1.msra.mxu0 0.0
    %4660 = vmatprep.subr.mxu0 0.0
    %4661 = vmatpush1.msra.mxu0 0.0
    %4662 = vmatprep.subr.mxu0 0.0
    %4663 = vmatpush1.msra.mxu0 0.0
    %4664 = vmatprep.subr.mxu0 0.0
    %4665 = vmatpush1.msra.mxu0 0.0
    %4666 = vmatprep.subr.mxu0 0.0
    %4667 = vmatpush1.msra.mxu0 0.0
    %4668 = vmatprep.subr.mxu0 0.0
    %4669 = vmatpush1.msra.mxu0 0.0
    %4670 = vmatprep.subr.mxu0 0.0
    %4671 = vmatpush1.msra.mxu0 0.0
    %4672 = vmatprep.subr.mxu0 0.0
    %4673 = vmatpush1.msra.mxu0 0.0
    %4674 = vmatprep.subr.mxu0 0.0
    %4675 = vmatpush1.msra.mxu0 0.0
    %4676 = vmatprep.subr.mxu0 0.0
    %4677 = vmatpush1.msra.mxu0 0.0
    %4678 = vmatprep.subr.mxu0 0.0
    %4679 = vmatpush1.msra.mxu0 0.0
    %4680 = vmatprep.subr.mxu0 0.0
    %4681 = vmatpush1.msra.mxu0 0.0
    %4682 = vmatprep.subr.mxu0 0.0
    %4683 = vmatpush1.msra.mxu0 0.0
    %4684 = vmatprep.subr.mxu0 0.0
    %4685 = vmatpush1.msra.mxu0 0.0
    %4686 = vmatprep.subr.mxu0 0.0
    %4687 = vmatpush1.msra.mxu0 0.0
    %4688 = vmatprep.subr.mxu0 0.0
    %4689 = vmatpush1.msra.mxu0 0.0
    %4690 = vmatprep.subr.mxu0 0.0
    %4691 = vmatpush1.msra.mxu0 0.0
    %4692 = vmatprep.subr.mxu0 0.0
    %4693 = vmatpush1.msra.mxu0 0.0
    %4694 = vmatprep.subr.mxu0 0.0
    %4695 = vmatpush1.msra.mxu0 0.0
    %4696 = vmatprep.subr.mxu0 0.0
    %4697 = vmatpush1.msra.mxu0 0.0
    %4698 = vmatprep.subr.mxu0 0.0
    %4699 = vmatpush1.msra.mxu0 0.0
    %4700 = vmatprep.subr.mxu0 0.0
    %4701 = vmatpush1.msra.mxu0 0.0
    %4702 = vmatprep.subr.mxu0 0.0
    %4703 = vmatpush1.msra.mxu0 0.0
    %4704 = vmatprep.subr.mxu0 0.0
    %4705 = vmatpush1.msra.mxu0 0.0
    %4706 = vmatprep.subr.mxu0 0.0
    %4707 = vmatpush1.msra.mxu0 0.0
    %4708 = vmatprep.subr.mxu0 0.0
    %4709 = vmatpush1.msra.mxu0 0.0
    %4710 = vmatprep.mubr.f32.mxu0 0.0
    %v4711 = vand.u32 %v4631, 4294901760
    %v4712 = vsub.f32 %v4631, %v4711
    %v4713 = vand.u32 %v4712, 4294901760
    %v4714 = vsub.f32 %v4712, %v4713
    %v4715 = vand.u32 %v4714, 4294901760
    %4716 = vmatmul.mubr.f32.gmra.mrb[0].mxu0 %v4715
    %v4717 = vpop.f32.mrb[0].mxu0
    %v4718 = vadd.f32 0.0, %v4717
    %v4719 = vpop.f32.mrb[0].mxu0
    %4720 = vmatprep.mubr.f32.mxu0 0.0
    %v4721 = vand.u32 %v4634, 4294901760
    %v4722 = vsub.f32 %v4634, %v4721
    %v4723 = vand.u32 %v4722, 4294901760
    %v4724 = vsub.f32 %v4722, %v4723
    %v4725 = vand.u32 %v4724, 4294901760
    %4726 = vmatmul.mubr.f32.gmra.mrb[0].mxu0 %v4725
    %v4727 = vpop.f32.mrb[0].mxu0
    %v4728 = vadd.f32 0.0, %v4727
    %v4729 = vpop.f32.mrb[0].mxu0
    %4730 = vmatprep.mubr.f32.mxu0 0.0
    %v4731 = vand.u32 %v4637, 4294901760
    %v4732 = vsub.f32 %v4637, %v4731
    %v4733 = vand.u32 %v4732, 4294901760
    %v4734 = vsub.f32 %v4732, %v4733
    %v4735 = vand.u32 %v4734, 4294901760
    %4736 = vmatmul.mubr.f32.gmra.mrb[0].mxu0 %v4735
    %v4737 = vpop.f32.mrb[0].mxu0
    %v4738 = vadd.f32 0.0, %v4737
    %v4739 = vpop.f32.mrb[0].mxu0
    %4740 = vmatprep.mubr.f32.mxu0 0.0
    %v4741 = vand.u32 %v4640, 4294901760
    %v4742 = vsub.f32 %v4640, %v4741
    %v4743 = vand.u32 %v4742, 4294901760
    %v4744 = vsub.f32 %v4742, %v4743
    %v4745 = vand.u32 %v4744, 4294901760
    %4746 = vmatmul.mubr.f32.gmra.mrb[0].mxu0 %v4745
    %v4747 = vpop.f32.mrb[0].mxu0
    %v4748 = vadd.f32 0.0, %v4747
    %v4749 = vpop.f32.mrb[0].mxu0
    %4750 = vdwg.mxu0
    %4751 = vmatprep.subr.mxu0 0.0
    %v4752 = vand.u32 %v1988, 4294901760
    %v4753 = vsub.f32 %v1988, %v4752
    %v4754 = vand.u32 %v4753, 4294901760
    %v4755 = vsub.f32 %v4753, %v4754
    %v4756 = vand.u32 %v4755, 4294901760
    %4757 = vmatpush1.msra.mxu0 %v4756
    %4758 = vmatprep.subr.mxu0 0.0
    %v4759 = vand.u32 %v1989, 4294901760
    %v4760 = vsub.f32 %v1989, %v4759
    %v4761 = vand.u32 %v4760, 4294901760
    %v4762 = vsub.f32 %v4760, %v4761
    %v4763 = vand.u32 %v4762, 4294901760
    %4764 = vmatpush1.msra.mxu0 %v4763
    %4765 = vmatprep.subr.mxu0 0.0
    %v4766 = vand.u32 %v1990, 4294901760
    %v4767 = vsub.f32 %v1990, %v4766
    %v4768 = vand.u32 %v4767, 4294901760
    %v4769 = vsub.f32 %v4767, %v4768
    %v4770 = vand.u32 %v4769, 4294901760
    %4771 = vmatpush1.msra.mxu0 %v4770
    %4772 = vmatprep.subr.mxu0 0.0
    %v4773 = vand.u32 %v1991, 4294901760
    %v4774 = vsub.f32 %v1991, %v4773
    %v4775 = vand.u32 %v4774, 4294901760
    %v4776 = vsub.f32 %v4774, %v4775
    %v4777 = vand.u32 %v4776, 4294901760
    %4778 = vmatpush1.msra.mxu0 %v4777
    %4779 = vmatprep.subr.mxu0 0.0
    %4780 = vmatpush1.msra.mxu0 0.0
    %4781 = vmatprep.subr.mxu0 0.0
    %4782 = vmatpush1.msra.mxu0 0.0
    %4783 = vmatprep.subr.mxu0 0.0
    %4784 = vmatpush1.msra.mxu0 0.0
    %4785 = vmatprep.subr.mxu0 0.0
    %4786 = vmatpush1.msra.mxu0 0.0
    %4787 = vmatprep.subr.mxu0 0.0
    %4788 = vmatpush1.msra.mxu0 0.0
    %4789 = vmatprep.subr.mxu0 0.0
    %4790 = vmatpush1.msra.mxu0 0.0
    %4791 = vmatprep.subr.mxu0 0.0
    %4792 = vmatpush1.msra.mxu0 0.0
    %4793 = vmatprep.subr.mxu0 0.0
    %4794 = vmatpush1.msra.mxu0 0.0
    %4795 = vmatprep.subr.mxu0 0.0
    %4796 = vmatpush1.msra.mxu0 0.0
    %4797 = vmatprep.subr.mxu0 0.0
    %4798 = vmatpush1.msra.mxu0 0.0
    %4799 = vmatprep.subr.mxu0 0.0
    %4800 = vmatpush1.msra.mxu0 0.0
    %4801 = vmatprep.subr.mxu0 0.0
    %4802 = vmatpush1.msra.mxu0 0.0
    %4803 = vmatprep.subr.mxu0 0.0
    %4804 = vmatpush1.msra.mxu0 0.0
    %4805 = vmatprep.subr.mxu0 0.0
    %4806 = vmatpush1.msra.mxu0 0.0
    %4807 = vmatprep.subr.mxu0 0.0
    %4808 = vmatpush1.msra.mxu0 0.0
    %4809 = vmatprep.subr.mxu0 0.0
    %4810 = vmatpush1.msra.mxu0 0.0
    %4811 = vmatprep.subr.mxu0 0.0
    %4812 = vmatpush1.msra.mxu0 0.0
    %4813 = vmatprep.subr.mxu0 0.0
    %4814 = vmatpush1.msra.mxu0 0.0
    %4815 = vmatprep.subr.mxu0 0.0
    %4816 = vmatpush1.msra.mxu0 0.0
    %4817 = vmatprep.subr.mxu0 0.0
    %4818 = vmatpush1.msra.mxu0 0.0
    %4819 = vmatprep.subr.mxu0 0.0
    %4820 = vmatpush1.msra.mxu0 0.0
    %4821 = vmatprep.subr.mxu0 0.0
    %4822 = vmatpush1.msra.mxu0 0.0
    %4823 = vmatprep.subr.mxu0 0.0
    %4824 = vmatpush1.msra.mxu0 0.0
    %4825 = vmatprep.subr.mxu0 0.0
    %4826 = vmatpush1.msra.mxu0 0.0
    %4827 = vmatprep.subr.mxu0 0.0
    %4828 = vmatpush1.msra.mxu0 0.0
    %4829 = vmatprep.subr.mxu0 0.0
    %4830 = vmatpush1.msra.mxu0 0.0
    %4831 = vmatprep.subr.mxu0 0.0
    %4832 = vmatpush1.msra.mxu0 0.0
    %4833 = vmatprep.subr.mxu0 0.0
    %4834 = vmatpush1.msra.mxu0 0.0
    %4835 = vmatprep.mubr.f32.mxu0 0.0
    %v4836 = vand.u32 %v4631, 4294901760
    %4837 = vmatmul.mubr.f32.gmra.mrb[0].mxu0 %v4836
    %v4838 = vpop.f32.mrb[0].mxu0
    %v4839 = vadd.f32 %v4718, %v4838
    %v4840 = vpop.f32.mrb[0].mxu0
    %4841 = vmatprep.mubr.f32.mxu0 0.0
    %v4842 = vand.u32 %v4634, 4294901760
    %4843 = vmatmul.mubr.f32.gmra.mrb[0].mxu0 %v4842
    %v4844 = vpop.f32.mrb[0].mxu0
    %v4845 = vadd.f32 %v4728, %v4844
    %v4846 = vpop.f32.mrb[0].mxu0
    %4847 = vmatprep.mubr.f32.mxu0 0.0
    %v4848 = vand.u32 %v4637, 4294901760
    %4849 = vmatmul.mubr.f32.gmra.mrb[0].mxu0 %v4848
    %v4850 = vpop.f32.mrb[0].mxu0
    %v4851 = vadd.f32 %v4738, %v4850
    %v4852 = vpop.f32.mrb[0].mxu0
    %4853 = vmatprep.mubr.f32.mxu0 0.0
    %v4854 = vand.u32 %v4640, 4294901760
    %4855 = vmatmul.mubr.f32.gmra.mrb[0].mxu0 %v4854
    %v4856 = vpop.f32.mrb[0].mxu0
    %v4857 = vadd.f32 %v4748, %v4856
    %v4858 = vpop.f32.mrb[0].mxu0
    %4859 = vdwg.mxu0
    %4860 = vmatprep.subr.mxu0 0.0
    %v4861 = vand.u32 %v1988, 4294901760
    %v4862 = vsub.f32 %v1988, %v4861
    %4863 = vmatpush1.msra.mxu0 %v4862
    %4864 = vmatprep.subr.mxu0 0.0
    %v4865 = vand.u32 %v1989, 4294901760
    %v4866 = vsub.f32 %v1989, %v4865
    %4867 = vmatpush1.msra.mxu0 %v4866
    %4868 = vmatprep.subr.mxu0 0.0
    %v4869 = vand.u32 %v1990, 4294901760
    %v4870 = vsub.f32 %v1990, %v4869
    %4871 = vmatpush1.msra.mxu0 %v4870
    %4872 = vmatprep.subr.mxu0 0.0
    %v4873 = vand.u32 %v1991, 4294901760
    %v4874 = vsub.f32 %v1991, %v4873
    %4875 = vmatpush1.msra.mxu0 %v4874
    %4876 = vmatprep.subr.mxu0 0.0
    %4877 = vmatpush1.msra.mxu0 0.0
    %4878 = vmatprep.subr.mxu0 0.0
    %4879 = vmatpush1.msra.mxu0 0.0
    %4880 = vmatprep.subr.mxu0 0.0
    %4881 = vmatpush1.msra.mxu0 0.0
    %4882 = vmatprep.subr.mxu0 0.0
    %4883 = vmatpush1.msra.mxu0 0.0
    %4884 = vmatprep.subr.mxu0 0.0
    %4885 = vmatpush1.msra.mxu0 0.0
    %4886 = vmatprep.subr.mxu0 0.0
    %4887 = vmatpush1.msra.mxu0 0.0
    %4888 = vmatprep.subr.mxu0 0.0
    %4889 = vmatpush1.msra.mxu0 0.0
    %4890 = vmatprep.subr.mxu0 0.0
    %4891 = vmatpush1.msra.mxu0 0.0
    %4892 = vmatprep.subr.mxu0 0.0
    %4893 = vmatpush1.msra.mxu0 0.0
    %4894 = vmatprep.subr.mxu0 0.0
    %4895 = vmatpush1.msra.mxu0 0.0
    %4896 = vmatprep.subr.mxu0 0.0
    %4897 = vmatpush1.msra.mxu0 0.0
    %4898 = vmatprep.subr.mxu0 0.0
    %4899 = vmatpush1.msra.mxu0 0.0
    %4900 = vmatprep.subr.mxu0 0.0
    %4901 = vmatpush1.msra.mxu0 0.0
    %4902 = vmatprep.subr.mxu0 0.0
    %4903 = vmatpush1.msra.mxu0 0.0
    %4904 = vmatprep.subr.mxu0 0.0
    %4905 = vmatpush1.msra.mxu0 0.0
    %4906 = vmatprep.subr.mxu0 0.0
    %4907 = vmatpush1.msra.mxu0 0.0
    %4908 = vmatprep.subr.mxu0 0.0
    %4909 = vmatpush1.msra.mxu0 0.0
    %4910 = vmatprep.subr.mxu0 0.0
    %4911 = vmatpush1.msra.mxu0 0.0
    %4912 = vmatprep.subr.mxu0 0.0
    %4913 = vmatpush1.msra.mxu0 0.0
    %4914 = vmatprep.subr.mxu0 0.0
    %4915 = vmatpush1.msra.mxu0 0.0
    %4916 = vmatprep.subr.mxu0 0.0
    %4917 = vmatpush1.msra.mxu0 0.0
    %4918 = vmatprep.subr.mxu0 0.0
    %4919 = vmatpush1.msra.mxu0 0.0
    %4920 = vmatprep.subr.mxu0 0.0
    %4921 = vmatpush1.msra.mxu0 0.0
    %4922 = vmatprep.subr.mxu0 0.0
    %4923 = vmatpush1.msra.mxu0 0.0
    %4924 = vmatprep.subr.mxu0 0.0
    %4925 = vmatpush1.msra.mxu0 0.0
    %4926 = vmatprep.subr.mxu0 0.0
    %4927 = vmatpush1.msra.mxu0 0.0
    %4928 = vmatprep.subr.mxu0 0.0
    %4929 = vmatpush1.msra.mxu0 0.0
    %4930 = vmatprep.subr.mxu0 0.0
    %4931 = vmatpush1.msra.mxu0 0.0
    %4932 = vmatprep.mubr.f32.mxu0 0.0
    %v4933 = vand.u32 %v4631, 4294901760
    %v4934 = vsub.f32 %v4631, %v4933
    %4935 = vmatmul.mubr.f32.gmra.mrb[0].mxu0 %v4934
    %v4936 = vpop.f32.mrb[0].mxu0
    %v4937 = vadd.f32 %v4839, %v4936
    %v4938 = vpop.f32.mrb[0].mxu0
    %4939 = vmatprep.mubr.f32.mxu0 0.0
    %v4940 = vand.u32 %v4634, 4294901760
    %v4941 = vsub.f32 %v4634, %v4940
    %4942 = vmatmul.mubr.f32.gmra.mrb[0].mxu0 %v4941
    %v4943 = vpop.f32.mrb[0].mxu0
    %v4944 = vadd.f32 %v4845, %v4943
    %v4945 = vpop.f32.mrb[0].mxu0
    %4946 = vmatprep.mubr.f32.mxu0 0.0
    %v4947 = vand.u32 %v4637, 4294901760
    %v4948 = vsub.f32 %v4637, %v4947
    %4949 = vmatmul.mubr.f32.gmra.mrb[0].mxu0 %v4948
    %v4950 = vpop.f32.mrb[0].mxu0
    %v4951 = vadd.f32 %v4851, %v4950
    %v4952 = vpop.f32.mrb[0].mxu0
    %4953 = vmatprep.mubr.f32.mxu0 0.0
    %v4954 = vand.u32 %v4640, 4294901760
    %v4955 = vsub.f32 %v4640, %v4954
    %4956 = vmatmul.mubr.f32.gmra.mrb[0].mxu0 %v4955
    %v4957 = vpop.f32.mrb[0].mxu0
    %v4958 = vadd.f32 %v4857, %v4957
    %v4959 = vpop.f32.mrb[0].mxu0
    %4960 = vdwg.mxu0
    %4961 = vmatprep.subr.mxu0 0.0
    %v4962 = vand.u32 %v1988, 4294901760
    %4963 = vmatpush1.msra.mxu0 %v4962
    %4964 = vmatprep.subr.mxu0 0.0
    %v4965 = vand.u32 %v1989, 4294901760
    %4966 = vmatpush1.msra.mxu0 %v4965
    %4967 = vmatprep.subr.mxu0 0.0
    %v4968 = vand.u32 %v1990, 4294901760
    %4969 = vmatpush1.msra.mxu0 %v4968
    %4970 = vmatprep.subr.mxu0 0.0
    %v4971 = vand.u32 %v1991, 4294901760
    %4972 = vmatpush1.msra.mxu0 %v4971
    %4973 = vmatprep.subr.mxu0 0.0
    %4974 = vmatpush1.msra.mxu0 0.0
    %4975 = vmatprep.subr.mxu0 0.0
    %4976 = vmatpush1.msra.mxu0 0.0
    %4977 = vmatprep.subr.mxu0 0.0
    %4978 = vmatpush1.msra.mxu0 0.0
    %4979 = vmatprep.subr.mxu0 0.0
    %4980 = vmatpush1.msra.mxu0 0.0
    %4981 = vmatprep.subr.mxu0 0.0
    %4982 = vmatpush1.msra.mxu0 0.0
    %4983 = vmatprep.subr.mxu0 0.0
    %4984 = vmatpush1.msra.mxu0 0.0
    %4985 = vmatprep.subr.mxu0 0.0
    %4986 = vmatpush1.msra.mxu0 0.0
    %4987 = vmatprep.subr.mxu0 0.0
    %4988 = vmatpush1.msra.mxu0 0.0
    %4989 = vmatprep.subr.mxu0 0.0
    %4990 = vmatpush1.msra.mxu0 0.0
    %4991 = vmatprep.subr.mxu0 0.0
    %4992 = vmatpush1.msra.mxu0 0.0
    %4993 = vmatprep.subr.mxu0 0.0
    %4994 = vmatpush1.msra.mxu0 0.0
    %4995 = vmatprep.subr.mxu0 0.0
    %4996 = vmatpush1.msra.mxu0 0.0
    %4997 = vmatprep.subr.mxu0 0.0
    %4998 = vmatpush1.msra.mxu0 0.0
    %4999 = vmatprep.subr.mxu0 0.0
    %5000 = vmatpush1.msra.mxu0 0.0
    %5001 = vmatprep.subr.mxu0 0.0
    %5002 = vmatpush1.msra.mxu0 0.0
    %5003 = vmatprep.subr.mxu0 0.0
    %5004 = vmatpush1.msra.mxu0 0.0
    %5005 = vmatprep.subr.mxu0 0.0
    %5006 = vmatpush1.msra.mxu0 0.0
    %5007 = vmatprep.subr.mxu0 0.0
    %5008 = vmatpush1.msra.mxu0 0.0
    %5009 = vmatprep.subr.mxu0 0.0
    %5010 = vmatpush1.msra.mxu0 0.0
    %5011 = vmatprep.subr.mxu0 0.0
    %5012 = vmatpush1.msra.mxu0 0.0
    %5013 = vmatprep.subr.mxu0 0.0
    %5014 = vmatpush1.msra.mxu0 0.0
    %5015 = vmatprep.subr.mxu0 0.0
    %5016 = vmatpush1.msra.mxu0 0.0
    %5017 = vmatprep.subr.mxu0 0.0
    %5018 = vmatpush1.msra.mxu0 0.0
    %5019 = vmatprep.subr.mxu0 0.0
    %5020 = vmatpush1.msra.mxu0 0.0
    %5021 = vmatprep.subr.mxu0 0.0
    %5022 = vmatpush1.msra.mxu0 0.0
    %5023 = vmatprep.subr.mxu0 0.0
    %5024 = vmatpush1.msra.mxu0 0.0
    %5025 = vmatprep.subr.mxu0 0.0
    %5026 = vmatpush1.msra.mxu0 0.0
    %5027 = vmatprep.subr.mxu0 0.0
    %5028 = vmatpush1.msra.mxu0 0.0
    %5029 = vmatprep.mubr.f32.mxu0 0.0
    %v5030 = vand.u32 %v4631, 4294901760
    %v5031 = vsub.f32 %v4631, %v5030
    %v5032 = vand.u32 %v5031, 4294901760
    %5033 = vmatmul.mubr.f32.gmra.mrb[0].mxu0 %v5032
    %v5034 = vpop.f32.mrb[0].mxu0
    %v5035 = vadd.f32 %v4937, %v5034
    %v5036 = vpop.f32.mrb[0].mxu0
    %5037 = vmatprep.mubr.f32.mxu0 0.0
    %v5038 = vand.u32 %v4634, 4294901760
    %v5039 = vsub.f32 %v4634, %v5038
    %v5040 = vand.u32 %v5039, 4294901760
    %5041 = vmatmul.mubr.f32.gmra.mrb[0].mxu0 %v5040
    %v5042 = vpop.f32.mrb[0].mxu0
    %v5043 = vadd.f32 %v4944, %v5042
    %v5044 = vpop.f32.mrb[0].mxu0
    %5045 = vmatprep.mubr.f32.mxu0 0.0
    %v5046 = vand.u32 %v4637, 4294901760
    %v5047 = vsub.f32 %v4637, %v5046
    %v5048 = vand.u32 %v5047, 4294901760
    %5049 = vmatmul.mubr.f32.gmra.mrb[0].mxu0 %v5048
    %v5050 = vpop.f32.mrb[0].mxu0
    %v5051 = vadd.f32 %v4951, %v5050
    %v5052 = vpop.f32.mrb[0].mxu0
    %5053 = vmatprep.mubr.f32.mxu0 0.0
    %v5054 = vand.u32 %v4640, 4294901760
    %v5055 = vsub.f32 %v4640, %v5054
    %v5056 = vand.u32 %v5055, 4294901760
    %5057 = vmatmul.mubr.f32.gmra.mrb[0].mxu0 %v5056
    %v5058 = vpop.f32.mrb[0].mxu0
    %v5059 = vadd.f32 %v4958, %v5058
    %v5060 = vpop.f32.mrb[0].mxu0
    %5061 = vdwg.mxu0
    %5062 = vmatprep.subr.mxu0 0.0
    %v5063 = vand.u32 %v1988, 4294901760
    %v5064 = vsub.f32 %v1988, %v5063
    %v5065 = vand.u32 %v5064, 4294901760
    %5066 = vmatpush1.msra.mxu0 %v5065
    %5067 = vmatprep.subr.mxu0 0.0
    %v5068 = vand.u32 %v1989, 4294901760
    %v5069 = vsub.f32 %v1989, %v5068
    %v5070 = vand.u32 %v5069, 4294901760
    %5071 = vmatpush1.msra.mxu0 %v5070
    %5072 = vmatprep.subr.mxu0 0.0
    %v5073 = vand.u32 %v1990, 4294901760
    %v5074 = vsub.f32 %v1990, %v5073
    %v5075 = vand.u32 %v5074, 4294901760
    %5076 = vmatpush1.msra.mxu0 %v5075
    %5077 = vmatprep.subr.mxu0 0.0
    %v5078 = vand.u32 %v1991, 4294901760
    %v5079 = vsub.f32 %v1991, %v5078
    %v5080 = vand.u32 %v5079, 4294901760
    %5081 = vmatpush1.msra.mxu0 %v5080
    %5082 = vmatprep.subr.mxu0 0.0
    %5083 = vmatpush1.msra.mxu0 0.0
    %5084 = vmatprep.subr.mxu0 0.0
    %5085 = vmatpush1.msra.mxu0 0.0
    %5086 = vmatprep.subr.mxu0 0.0
    %5087 = vmatpush1.msra.mxu0 0.0
    %5088 = vmatprep.subr.mxu0 0.0
    %5089 = vmatpush1.msra.mxu0 0.0
    %5090 = vmatprep.subr.mxu0 0.0
    %5091 = vmatpush1.msra.mxu0 0.0
    %5092 = vmatprep.subr.mxu0 0.0
    %5093 = vmatpush1.msra.mxu0 0.0
    %5094 = vmatprep.subr.mxu0 0.0
    %5095 = vmatpush1.msra.mxu0 0.0
    %5096 = vmatprep.subr.mxu0 0.0
    %5097 = vmatpush1.msra.mxu0 0.0
    %5098 = vmatprep.subr.mxu0 0.0
    %5099 = vmatpush1.msra.mxu0 0.0
    %5100 = vmatprep.subr.mxu0 0.0
    %5101 = vmatpush1.msra.mxu0 0.0
    %5102 = vmatprep.subr.mxu0 0.0
    %5103 = vmatpush1.msra.mxu0 0.0
    %5104 = vmatprep.subr.mxu0 0.0
    %5105 = vmatpush1.msra.mxu0 0.0
    %5106 = vmatprep.subr.mxu0 0.0
    %5107 = vmatpush1.msra.mxu0 0.0
    %5108 = vmatprep.subr.mxu0 0.0
    %5109 = vmatpush1.msra.mxu0 0.0
    %5110 = vmatprep.subr.mxu0 0.0
    %5111 = vmatpush1.msra.mxu0 0.0
    %5112 = vmatprep.subr.mxu0 0.0
    %5113 = vmatpush1.msra.mxu0 0.0
    %5114 = vmatprep.subr.mxu0 0.0
    %5115 = vmatpush1.msra.mxu0 0.0
    %5116 = vmatprep.subr.mxu0 0.0
    %5117 = vmatpush1.msra.mxu0 0.0
    %5118 = vmatprep.subr.mxu0 0.0
    %5119 = vmatpush1.msra.mxu0 0.0
    %5120 = vmatprep.subr.mxu0 0.0
    %5121 = vmatpush1.msra.mxu0 0.0
    %5122 = vmatprep.subr.mxu0 0.0
    %5123 = vmatpush1.msra.mxu0 0.0
    %5124 = vmatprep.subr.mxu0 0.0
    %5125 = vmatpush1.msra.mxu0 0.0
    %5126 = vmatprep.subr.mxu0 0.0
    %5127 = vmatpush1.msra.mxu0 0.0
    %5128 = vmatprep.subr.mxu0 0.0
    %5129 = vmatpush1.msra.mxu0 0.0
    %5130 = vmatprep.subr.mxu0 0.0
    %5131 = vmatpush1.msra.mxu0 0.0
    %5132 = vmatprep.subr.mxu0 0.0
    %5133 = vmatpush1.msra.mxu0 0.0
    %5134 = vmatprep.subr.mxu0 0.0
    %5135 = vmatpush1.msra.mxu0 0.0
    %5136 = vmatprep.subr.mxu0 0.0
    %5137 = vmatpush1.msra.mxu0 0.0
    %5138 = vmatprep.mubr.f32.mxu0 0.0
    %v5139 = vand.u32 %v4631, 4294901760
    %5140 = vmatmul.mubr.f32.gmra.mrb[0].mxu0 %v5139
    %v5141 = vpop.f32.mrb[0].mxu0
    %v5142 = vadd.f32 %v5035, %v5141
    %v5143 = vpop.f32.mrb[0].mxu0
    %5144 = vmatprep.mubr.f32.mxu0 0.0
    %v5145 = vand.u32 %v4634, 4294901760
    %5146 = vmatmul.mubr.f32.gmra.mrb[0].mxu0 %v5145
    %v5147 = vpop.f32.mrb[0].mxu0
    %v5148 = vadd.f32 %v5043, %v5147
    %v5149 = vpop.f32.mrb[0].mxu0
    %5150 = vmatprep.mubr.f32.mxu0 0.0
    %v5151 = vand.u32 %v4637, 4294901760
    %5152 = vmatmul.mubr.f32.gmra.mrb[0].mxu0 %v5151
    %v5153 = vpop.f32.mrb[0].mxu0
    %v5154 = vadd.f32 %v5051, %v5153
    %v5155 = vpop.f32.mrb[0].mxu0
    %5156 = vmatprep.mubr.f32.mxu0 0.0
    %v5157 = vand.u32 %v4640, 4294901760
    %5158 = vmatmul.mubr.f32.gmra.mrb[0].mxu0 %v5157
    %v5159 = vpop.f32.mrb[0].mxu0
    %v5160 = vadd.f32 %v5059, %v5159
    %v5161 = vpop.f32.mrb[0].mxu0
    %5162 = vdwg.mxu0
    %5163 = vmatprep.subr.mxu0 0.0
    %v5164 = vand.u32 %v1988, 4294901760
    %5165 = vmatpush1.msra.mxu0 %v5164
    %5166 = vmatprep.subr.mxu0 0.0
    %v5167 = vand.u32 %v1989, 4294901760
    %5168 = vmatpush1.msra.mxu0 %v5167
    %5169 = vmatprep.subr.mxu0 0.0
    %v5170 = vand.u32 %v1990, 4294901760
    %5171 = vmatpush1.msra.mxu0 %v5170
    %5172 = vmatprep.subr.mxu0 0.0
    %v5173 = vand.u32 %v1991, 4294901760
    %5174 = vmatpush1.msra.mxu0 %v5173
    %5175 = vmatprep.subr.mxu0 0.0
    %5176 = vmatpush1.msra.mxu0 0.0
    %5177 = vmatprep.subr.mxu0 0.0
    %5178 = vmatpush1.msra.mxu0 0.0
    %5179 = vmatprep.subr.mxu0 0.0
    %5180 = vmatpush1.msra.mxu0 0.0
    %5181 = vmatprep.subr.mxu0 0.0
    %5182 = vmatpush1.msra.mxu0 0.0
    %5183 = vmatprep.subr.mxu0 0.0
    %5184 = vmatpush1.msra.mxu0 0.0
    %5185 = vmatprep.subr.mxu0 0.0
    %5186 = vmatpush1.msra.mxu0 0.0
    %5187 = vmatprep.subr.mxu0 0.0
    %5188 = vmatpush1.msra.mxu0 0.0
    %5189 = vmatprep.subr.mxu0 0.0
    %5190 = vmatpush1.msra.mxu0 0.0
    %5191 = vmatprep.subr.mxu0 0.0
    %5192 = vmatpush1.msra.mxu0 0.0
    %5193 = vmatprep.subr.mxu0 0.0
    %5194 = vmatpush1.msra.mxu0 0.0
    %5195 = vmatprep.subr.mxu0 0.0
    %5196 = vmatpush1.msra.mxu0 0.0
    %5197 = vmatprep.subr.mxu0 0.0
    %5198 = vmatpush1.msra.mxu0 0.0
    %5199 = vmatprep.subr.mxu0 0.0
    %5200 = vmatpush1.msra.mxu0 0.0
    %5201 = vmatprep.subr.mxu0 0.0
    %5202 = vmatpush1.msra.mxu0 0.0
    %5203 = vmatprep.subr.mxu0 0.0
    %5204 = vmatpush1.msra.mxu0 0.0
    %5205 = vmatprep.subr.mxu0 0.0
    %5206 = vmatpush1.msra.mxu0 0.0
    %5207 = vmatprep.subr.mxu0 0.0
    %5208 = vmatpush1.msra.mxu0 0.0
    %5209 = vmatprep.subr.mxu0 0.0
    %5210 = vmatpush1.msra.mxu0 0.0
    %5211 = vmatprep.subr.mxu0 0.0
    %5212 = vmatpush1.msra.mxu0 0.0
    %5213 = vmatprep.subr.mxu0 0.0
    %5214 = vmatpush1.msra.mxu0 0.0
    %5215 = vmatprep.subr.mxu0 0.0
    %5216 = vmatpush1.msra.mxu0 0.0
    %5217 = vmatprep.subr.mxu0 0.0
    %5218 = vmatpush1.msra.mxu0 0.0
    %5219 = vmatprep.subr.mxu0 0.0
    %5220 = vmatpush1.msra.mxu0 0.0
    %5221 = vmatprep.subr.mxu0 0.0
    %5222 = vmatpush1.msra.mxu0 0.0
    %5223 = vmatprep.subr.mxu0 0.0
    %5224 = vmatpush1.msra.mxu0 0.0
    %5225 = vmatprep.subr.mxu0 0.0
    %5226 = vmatpush1.msra.mxu0 0.0
    %5227 = vmatprep.subr.mxu0 0.0
    %5228 = vmatpush1.msra.mxu0 0.0
    %5229 = vmatprep.subr.mxu0 0.0
    %5230 = vmatpush1.msra.mxu0 0.0
    %5231 = vmatprep.mubr.f32.mxu0 0.0
    %v5232 = vand.u32 %v4631, 4294901760
    %5233 = vmatmul.mubr.f32.gmra.mrb[0].mxu0 %v5232
    %v5234 = vpop.f32.mrb[0].mxu0
    %v5235 = vadd.f32 %v5142, %v5234
    %v5236 = vpop.f32.mrb[0].mxu0
    %5237 = vmatprep.mubr.f32.mxu0 0.0
    %v5238 = vand.u32 %v4634, 4294901760
    %5239 = vmatmul.mubr.f32.gmra.mrb[0].mxu0 %v5238
    %v5240 = vpop.f32.mrb[0].mxu0
    %v5241 = vadd.f32 %v5148, %v5240
    %v5242 = vpop.f32.mrb[0].mxu0
    %5243 = vmatprep.mubr.f32.mxu0 0.0
    %v5244 = vand.u32 %v4637, 4294901760
    %5245 = vmatmul.mubr.f32.gmra.mrb[0].mxu0 %v5244
    %v5246 = vpop.f32.mrb[0].mxu0
    %v5247 = vadd.f32 %v5154, %v5246
    %v5248 = vpop.f32.mrb[0].mxu0
    %5249 = vmatprep.mubr.f32.mxu0 0.0
    %v5250 = vand.u32 %v4640, 4294901760
    %5251 = vmatmul.mubr.f32.gmra.mrb[0].mxu0 %v5250
    %v5252 = vpop.f32.mrb[0].mxu0
    %v5253 = vadd.f32 %v5160, %v5252
    %v5254 = vpop.f32.mrb[0].mxu0
    %5255 = vdwg.mxu0
    %v5256 = vadd.f32 %v4609, %v5235
    %v5257 = vadd.f32 %v4615, %v5241
    %v5258 = vadd.f32 %v4621, %v5247
    %v5259 = vadd.f32 %v4627, %v5253
    %v5261 = vsel %vm46, %v3371, 0
    %v5264 = vsel %vm46, %v3373, 0
    %v5267 = vsel %vm46, %v3375, 0
    %v5270 = vsel %vm46, %v3377, 0
    %5272 = vmatprep.subr.mxu0 0.0
    %v5273 = vand.u32 %v1992, 4294901760
    %5274 = vmatpush1.msra.mxu0 %v5273
    %5275 = vmatprep.subr.mxu0 0.0
    %v5276 = vand.u32 %v1993, 4294901760
    %5277 = vmatpush1.msra.mxu0 %v5276
    %5278 = vmatprep.subr.mxu0 0.0
    %v5279 = vand.u32 %v1994, 4294901760
    %5280 = vmatpush1.msra.mxu0 %v5279
    %5281 = vmatprep.subr.mxu0 0.0
    %v5282 = vand.u32 %v1995, 4294901760
    %5283 = vmatpush1.msra.mxu0 %v5282
    %5284 = vmatprep.subr.mxu0 0.0
    %5285 = vmatpush1.msra.mxu0 0.0
    %5286 = vmatprep.subr.mxu0 0.0
    %5287 = vmatpush1.msra.mxu0 0.0
    %5288 = vmatprep.subr.mxu0 0.0
    %5289 = vmatpush1.msra.mxu0 0.0
    %5290 = vmatprep.subr.mxu0 0.0
    %5291 = vmatpush1.msra.mxu0 0.0
    %5292 = vmatprep.subr.mxu0 0.0
    %5293 = vmatpush1.msra.mxu0 0.0
    %5294 = vmatprep.subr.mxu0 0.0
    %5295 = vmatpush1.msra.mxu0 0.0
    %5296 = vmatprep.subr.mxu0 0.0
    %5297 = vmatpush1.msra.mxu0 0.0
    %5298 = vmatprep.subr.mxu0 0.0
    %5299 = vmatpush1.msra.mxu0 0.0
    %5300 = vmatprep.subr.mxu0 0.0
    %5301 = vmatpush1.msra.mxu0 0.0
    %5302 = vmatprep.subr.mxu0 0.0
    %5303 = vmatpush1.msra.mxu0 0.0
    %5304 = vmatprep.subr.mxu0 0.0
    %5305 = vmatpush1.msra.mxu0 0.0
    %5306 = vmatprep.subr.mxu0 0.0
    %5307 = vmatpush1.msra.mxu0 0.0
    %5308 = vmatprep.subr.mxu0 0.0
    %5309 = vmatpush1.msra.mxu0 0.0
    %5310 = vmatprep.subr.mxu0 0.0
    %5311 = vmatpush1.msra.mxu0 0.0
    %5312 = vmatprep.subr.mxu0 0.0
    %5313 = vmatpush1.msra.mxu0 0.0
    %5314 = vmatprep.subr.mxu0 0.0
    %5315 = vmatpush1.msra.mxu0 0.0
    %5316 = vmatprep.subr.mxu0 0.0
    %5317 = vmatpush1.msra.mxu0 0.0
    %5318 = vmatprep.subr.mxu0 0.0
    %5319 = vmatpush1.msra.mxu0 0.0
    %5320 = vmatprep.subr.mxu0 0.0
    %5321 = vmatpush1.msra.mxu0 0.0
    %5322 = vmatprep.subr.mxu0 0.0
    %5323 = vmatpush1.msra.mxu0 0.0
    %5324 = vmatprep.subr.mxu0 0.0
    %5325 = vmatpush1.msra.mxu0 0.0
    %5326 = vmatprep.subr.mxu0 0.0
    %5327 = vmatpush1.msra.mxu0 0.0
    %5328 = vmatprep.subr.mxu0 0.0
    %5329 = vmatpush1.msra.mxu0 0.0
    %5330 = vmatprep.subr.mxu0 0.0
    %5331 = vmatpush1.msra.mxu0 0.0
    %5332 = vmatprep.subr.mxu0 0.0
    %5333 = vmatpush1.msra.mxu0 0.0
    %5334 = vmatprep.subr.mxu0 0.0
    %5335 = vmatpush1.msra.mxu0 0.0
    %5336 = vmatprep.subr.mxu0 0.0
    %5337 = vmatpush1.msra.mxu0 0.0
    %5338 = vmatprep.subr.mxu0 0.0
    %5339 = vmatpush1.msra.mxu0 0.0
    %5340 = vmatprep.mubr.f32.mxu0 0.0
    %v5341 = vand.u32 %v5261, 4294901760
    %v5342 = vsub.f32 %v5261, %v5341
    %v5343 = vand.u32 %v5342, 4294901760
    %v5344 = vsub.f32 %v5342, %v5343
    %v5345 = vand.u32 %v5344, 4294901760
    %5346 = vmatmul.mubr.f32.gmra.mrb[0].mxu0 %v5345
    %v5347 = vpop.f32.mrb[0].mxu0
    %v5348 = vadd.f32 0.0, %v5347
    %v5349 = vpop.f32.mrb[0].mxu0
    %5350 = vmatprep.mubr.f32.mxu0 0.0
    %v5351 = vand.u32 %v5264, 4294901760
    %v5352 = vsub.f32 %v5264, %v5351
    %v5353 = vand.u32 %v5352, 4294901760
    %v5354 = vsub.f32 %v5352, %v5353
    %v5355 = vand.u32 %v5354, 4294901760
    %5356 = vmatmul.mubr.f32.gmra.mrb[0].mxu0 %v5355
    %v5357 = vpop.f32.mrb[0].mxu0
    %v5358 = vadd.f32 0.0, %v5357
    %v5359 = vpop.f32.mrb[0].mxu0
    %5360 = vmatprep.mubr.f32.mxu0 0.0
    %v5361 = vand.u32 %v5267, 4294901760
    %v5362 = vsub.f32 %v5267, %v5361
    %v5363 = vand.u32 %v5362, 4294901760
    %v5364 = vsub.f32 %v5362, %v5363
    %v5365 = vand.u32 %v5364, 4294901760
    %5366 = vmatmul.mubr.f32.gmra.mrb[0].mxu0 %v5365
    %v5367 = vpop.f32.mrb[0].mxu0
    %v5368 = vadd.f32 0.0, %v5367
    %v5369 = vpop.f32.mrb[0].mxu0
    %5370 = vmatprep.mubr.f32.mxu0 0.0
    %v5371 = vand.u32 %v5270, 4294901760
    %v5372 = vsub.f32 %v5270, %v5371
    %v5373 = vand.u32 %v5372, 4294901760
    %v5374 = vsub.f32 %v5372, %v5373
    %v5375 = vand.u32 %v5374, 4294901760
    %5376 = vmatmul.mubr.f32.gmra.mrb[0].mxu0 %v5375
    %v5377 = vpop.f32.mrb[0].mxu0
    %v5378 = vadd.f32 0.0, %v5377
    %v5379 = vpop.f32.mrb[0].mxu0
    %5380 = vdwg.mxu0
    %5381 = vmatprep.subr.mxu0 0.0
    %v5382 = vand.u32 %v1992, 4294901760
    %v5383 = vsub.f32 %v1992, %v5382
    %v5384 = vand.u32 %v5383, 4294901760
    %v5385 = vsub.f32 %v5383, %v5384
    %v5386 = vand.u32 %v5385, 4294901760
    %5387 = vmatpush1.msra.mxu0 %v5386
    %5388 = vmatprep.subr.mxu0 0.0
    %v5389 = vand.u32 %v1993, 4294901760
    %v5390 = vsub.f32 %v1993, %v5389
    %v5391 = vand.u32 %v5390, 4294901760
    %v5392 = vsub.f32 %v5390, %v5391
    %v5393 = vand.u32 %v5392, 4294901760
    %5394 = vmatpush1.msra.mxu0 %v5393
    %5395 = vmatprep.subr.mxu0 0.0
    %v5396 = vand.u32 %v1994, 4294901760
    %v5397 = vsub.f32 %v1994, %v5396
    %v5398 = vand.u32 %v5397, 4294901760
    %v5399 = vsub.f32 %v5397, %v5398
    %v5400 = vand.u32 %v5399, 4294901760
    %5401 = vmatpush1.msra.mxu0 %v5400
    %5402 = vmatprep.subr.mxu0 0.0
    %v5403 = vand.u32 %v1995, 4294901760
    %v5404 = vsub.f32 %v1995, %v5403
    %v5405 = vand.u32 %v5404, 4294901760
    %v5406 = vsub.f32 %v5404, %v5405
    %v5407 = vand.u32 %v5406, 4294901760
    %5408 = vmatpush1.msra.mxu0 %v5407
    %5409 = vmatprep.subr.mxu0 0.0
    %5410 = vmatpush1.msra.mxu0 0.0
    %5411 = vmatprep.subr.mxu0 0.0
    %5412 = vmatpush1.msra.mxu0 0.0
    %5413 = vmatprep.subr.mxu0 0.0
    %5414 = vmatpush1.msra.mxu0 0.0
    %5415 = vmatprep.subr.mxu0 0.0
    %5416 = vmatpush1.msra.mxu0 0.0
    %5417 = vmatprep.subr.mxu0 0.0
    %5418 = vmatpush1.msra.mxu0 0.0
    %5419 = vmatprep.subr.mxu0 0.0
    %5420 = vmatpush1.msra.mxu0 0.0
    %5421 = vmatprep.subr.mxu0 0.0
    %5422 = vmatpush1.msra.mxu0 0.0
    %5423 = vmatprep.subr.mxu0 0.0
    %5424 = vmatpush1.msra.mxu0 0.0
    %5425 = vmatprep.subr.mxu0 0.0
    %5426 = vmatpush1.msra.mxu0 0.0
    %5427 = vmatprep.subr.mxu0 0.0
    %5428 = vmatpush1.msra.mxu0 0.0
    %5429 = vmatprep.subr.mxu0 0.0
    %5430 = vmatpush1.msra.mxu0 0.0
    %5431 = vmatprep.subr.mxu0 0.0
    %5432 = vmatpush1.msra.mxu0 0.0
    %5433 = vmatprep.subr.mxu0 0.0
    %5434 = vmatpush1.msra.mxu0 0.0
    %5435 = vmatprep.subr.mxu0 0.0
    %5436 = vmatpush1.msra.mxu0 0.0
    %5437 = vmatprep.subr.mxu0 0.0
    %5438 = vmatpush1.msra.mxu0 0.0
    %5439 = vmatprep.subr.mxu0 0.0
    %5440 = vmatpush1.msra.mxu0 0.0
    %5441 = vmatprep.subr.mxu0 0.0
    %5442 = vmatpush1.msra.mxu0 0.0
    %5443 = vmatprep.subr.mxu0 0.0
    %5444 = vmatpush1.msra.mxu0 0.0
    %5445 = vmatprep.subr.mxu0 0.0
    %5446 = vmatpush1.msra.mxu0 0.0
    %5447 = vmatprep.subr.mxu0 0.0
    %5448 = vmatpush1.msra.mxu0 0.0
    %5449 = vmatprep.subr.mxu0 0.0
    %5450 = vmatpush1.msra.mxu0 0.0
    %5451 = vmatprep.subr.mxu0 0.0
    %5452 = vmatpush1.msra.mxu0 0.0
    %5453 = vmatprep.subr.mxu0 0.0
    %5454 = vmatpush1.msra.mxu0 0.0
    %5455 = vmatprep.subr.mxu0 0.0
    %5456 = vmatpush1.msra.mxu0 0.0
    %5457 = vmatprep.subr.mxu0 0.0
    %5458 = vmatpush1.msra.mxu0 0.0
    %5459 = vmatprep.subr.mxu0 0.0
    %5460 = vmatpush1.msra.mxu0 0.0
    %5461 = vmatprep.subr.mxu0 0.0
    %5462 = vmatpush1.msra.mxu0 0.0
    %5463 = vmatprep.subr.mxu0 0.0
    %5464 = vmatpush1.msra.mxu0 0.0
    %5465 = vmatprep.mubr.f32.mxu0 0.0
    %v5466 = vand.u32 %v5261, 4294901760
    %5467 = vmatmul.mubr.f32.gmra.mrb[0].mxu0 %v5466
    %v5468 = vpop.f32.mrb[0].mxu0
    %v5469 = vadd.f32 %v5348, %v5468
    %v5470 = vpop.f32.mrb[0].mxu0
    %5471 = vmatprep.mubr.f32.mxu0 0.0
    %v5472 = vand.u32 %v5264, 4294901760
    %5473 = vmatmul.mubr.f32.gmra.mrb[0].mxu0 %v5472
    %v5474 = vpop.f32.mrb[0].mxu0
    %v5475 = vadd.f32 %v5358, %v5474
    %v5476 = vpop.f32.mrb[0].mxu0
    %5477 = vmatprep.mubr.f32.mxu0 0.0
    %v5478 = vand.u32 %v5267, 4294901760
    %5479 = vmatmul.mubr.f32.gmra.mrb[0].mxu0 %v5478
    %v5480 = vpop.f32.mrb[0].mxu0
    %v5481 = vadd.f32 %v5368, %v5480
    %v5482 = vpop.f32.mrb[0].mxu0
    %5483 = vmatprep.mubr.f32.mxu0 0.0
    %v5484 = vand.u32 %v5270, 4294901760
    %5485 = vmatmul.mubr.f32.gmra.mrb[0].mxu0 %v5484
    %v5486 = vpop.f32.mrb[0].mxu0
    %v5487 = vadd.f32 %v5378, %v5486
    %v5488 = vpop.f32.mrb[0].mxu0
    %5489 = vdwg.mxu0
    %5490 = vmatprep.subr.mxu0 0.0
    %v5491 = vand.u32 %v1992, 4294901760
    %v5492 = vsub.f32 %v1992, %v5491
    %5493 = vmatpush1.msra.mxu0 %v5492
    %5494 = vmatprep.subr.mxu0 0.0
    %v5495 = vand.u32 %v1993, 4294901760
    %v5496 = vsub.f32 %v1993, %v5495
    %5497 = vmatpush1.msra.mxu0 %v5496
    %5498 = vmatprep.subr.mxu0 0.0
    %v5499 = vand.u32 %v1994, 4294901760
    %v5500 = vsub.f32 %v1994, %v5499
    %5501 = vmatpush1.msra.mxu0 %v5500
    %5502 = vmatprep.subr.mxu0 0.0
    %v5503 = vand.u32 %v1995, 4294901760
    %v5504 = vsub.f32 %v1995, %v5503
    %5505 = vmatpush1.msra.mxu0 %v5504
    %5506 = vmatprep.subr.mxu0 0.0
    %5507 = vmatpush1.msra.mxu0 0.0
    %5508 = vmatprep.subr.mxu0 0.0
    %5509 = vmatpush1.msra.mxu0 0.0
    %5510 = vmatprep.subr.mxu0 0.0
    %5511 = vmatpush1.msra.mxu0 0.0
    %5512 = vmatprep.subr.mxu0 0.0
    %5513 = vmatpush1.msra.mxu0 0.0
    %5514 = vmatprep.subr.mxu0 0.0
    %5515 = vmatpush1.msra.mxu0 0.0
    %5516 = vmatprep.subr.mxu0 0.0
    %5517 = vmatpush1.msra.mxu0 0.0
    %5518 = vmatprep.subr.mxu0 0.0
    %5519 = vmatpush1.msra.mxu0 0.0
    %5520 = vmatprep.subr.mxu0 0.0
    %5521 = vmatpush1.msra.mxu0 0.0
    %5522 = vmatprep.subr.mxu0 0.0
    %5523 = vmatpush1.msra.mxu0 0.0
    %5524 = vmatprep.subr.mxu0 0.0
    %5525 = vmatpush1.msra.mxu0 0.0
    %5526 = vmatprep.subr.mxu0 0.0
    %5527 = vmatpush1.msra.mxu0 0.0
    %5528 = vmatprep.subr.mxu0 0.0
    %5529 = vmatpush1.msra.mxu0 0.0
    %5530 = vmatprep.subr.mxu0 0.0
    %5531 = vmatpush1.msra.mxu0 0.0
    %5532 = vmatprep.subr.mxu0 0.0
    %5533 = vmatpush1.msra.mxu0 0.0
    %5534 = vmatprep.subr.mxu0 0.0
    %5535 = vmatpush1.msra.mxu0 0.0
    %5536 = vmatprep.subr.mxu0 0.0
    %5537 = vmatpush1.msra.mxu0 0.0
    %5538 = vmatprep.subr.mxu0 0.0
    %5539 = vmatpush1.msra.mxu0 0.0
    %5540 = vmatprep.subr.mxu0 0.0
    %5541 = vmatpush1.msra.mxu0 0.0
    %5542 = vmatprep.subr.mxu0 0.0
    %5543 = vmatpush1.msra.mxu0 0.0
    %5544 = vmatprep.subr.mxu0 0.0
    %5545 = vmatpush1.msra.mxu0 0.0
    %5546 = vmatprep.subr.mxu0 0.0
    %5547 = vmatpush1.msra.mxu0 0.0
    %5548 = vmatprep.subr.mxu0 0.0
    %5549 = vmatpush1.msra.mxu0 0.0
    %5550 = vmatprep.subr.mxu0 0.0
    %5551 = vmatpush1.msra.mxu0 0.0
    %5552 = vmatprep.subr.mxu0 0.0
    %5553 = vmatpush1.msra.mxu0 0.0
    %5554 = vmatprep.subr.mxu0 0.0
    %5555 = vmatpush1.msra.mxu0 0.0
    %5556 = vmatprep.subr.mxu0 0.0
    %5557 = vmatpush1.msra.mxu0 0.0
    %5558 = vmatprep.subr.mxu0 0.0
    %5559 = vmatpush1.msra.mxu0 0.0
    %5560 = vmatprep.subr.mxu0 0.0
    %5561 = vmatpush1.msra.mxu0 0.0
    %5562 = vmatprep.mubr.f32.mxu0 0.0
    %v5563 = vand.u32 %v5261, 4294901760
    %v5564 = vsub.f32 %v5261, %v5563
    %5565 = vmatmul.mubr.f32.gmra.mrb[0].mxu0 %v5564
    %v5566 = vpop.f32.mrb[0].mxu0
    %v5567 = vadd.f32 %v5469, %v5566
    %v5568 = vpop.f32.mrb[0].mxu0
    %5569 = vmatprep.mubr.f32.mxu0 0.0
    %v5570 = vand.u32 %v5264, 4294901760
    %v5571 = vsub.f32 %v5264, %v5570
    %5572 = vmatmul.mubr.f32.gmra.mrb[0].mxu0 %v5571
    %v5573 = vpop.f32.mrb[0].mxu0
    %v5574 = vadd.f32 %v5475, %v5573
    %v5575 = vpop.f32.mrb[0].mxu0
    %5576 = vmatprep.mubr.f32.mxu0 0.0
    %v5577 = vand.u32 %v5267, 4294901760
    %v5578 = vsub.f32 %v5267, %v5577
    %5579 = vmatmul.mubr.f32.gmra.mrb[0].mxu0 %v5578
    %v5580 = vpop.f32.mrb[0].mxu0
    %v5581 = vadd.f32 %v5481, %v5580
    %v5582 = vpop.f32.mrb[0].mxu0
    %5583 = vmatprep.mubr.f32.mxu0 0.0
    %v5584 = vand.u32 %v5270, 4294901760
    %v5585 = vsub.f32 %v5270, %v5584
    %5586 = vmatmul.mubr.f32.gmra.mrb[0].mxu0 %v5585
    %v5587 = vpop.f32.mrb[0].mxu0
    %v5588 = vadd.f32 %v5487, %v5587
    %v5589 = vpop.f32.mrb[0].mxu0
    %5590 = vdwg.mxu0
    %5591 = vmatprep.subr.mxu0 0.0
    %v5592 = vand.u32 %v1992, 4294901760
    %5593 = vmatpush1.msra.mxu0 %v5592
    %5594 = vmatprep.subr.mxu0 0.0
    %v5595 = vand.u32 %v1993, 4294901760
    %5596 = vmatpush1.msra.mxu0 %v5595
    %5597 = vmatprep.subr.mxu0 0.0
    %v5598 = vand.u32 %v1994, 4294901760
    %5599 = vmatpush1.msra.mxu0 %v5598
    %5600 = vmatprep.subr.mxu0 0.0
    %v5601 = vand.u32 %v1995, 4294901760
    %5602 = vmatpush1.msra.mxu0 %v5601
    %5603 = vmatprep.subr.mxu0 0.0
    %5604 = vmatpush1.msra.mxu0 0.0
    %5605 = vmatprep.subr.mxu0 0.0
    %5606 = vmatpush1.msra.mxu0 0.0
    %5607 = vmatprep.subr.mxu0 0.0
    %5608 = vmatpush1.msra.mxu0 0.0
    %5609 = vmatprep.subr.mxu0 0.0
    %5610 = vmatpush1.msra.mxu0 0.0
    %5611 = vmatprep.subr.mxu0 0.0
    %5612 = vmatpush1.msra.mxu0 0.0
    %5613 = vmatprep.subr.mxu0 0.0
    %5614 = vmatpush1.msra.mxu0 0.0
    %5615 = vmatprep.subr.mxu0 0.0
    %5616 = vmatpush1.msra.mxu0 0.0
    %5617 = vmatprep.subr.mxu0 0.0
    %5618 = vmatpush1.msra.mxu0 0.0
    %5619 = vmatprep.subr.mxu0 0.0
    %5620 = vmatpush1.msra.mxu0 0.0
    %5621 = vmatprep.subr.mxu0 0.0
    %5622 = vmatpush1.msra.mxu0 0.0
    %5623 = vmatprep.subr.mxu0 0.0
    %5624 = vmatpush1.msra.mxu0 0.0
    %5625 = vmatprep.subr.mxu0 0.0
    %5626 = vmatpush1.msra.mxu0 0.0
    %5627 = vmatprep.subr.mxu0 0.0
    %5628 = vmatpush1.msra.mxu0 0.0
    %5629 = vmatprep.subr.mxu0 0.0
    %5630 = vmatpush1.msra.mxu0 0.0
    %5631 = vmatprep.subr.mxu0 0.0
    %5632 = vmatpush1.msra.mxu0 0.0
    %5633 = vmatprep.subr.mxu0 0.0
    %5634 = vmatpush1.msra.mxu0 0.0
    %5635 = vmatprep.subr.mxu0 0.0
    %5636 = vmatpush1.msra.mxu0 0.0
    %5637 = vmatprep.subr.mxu0 0.0
    %5638 = vmatpush1.msra.mxu0 0.0
    %5639 = vmatprep.subr.mxu0 0.0
    %5640 = vmatpush1.msra.mxu0 0.0
    %5641 = vmatprep.subr.mxu0 0.0
    %5642 = vmatpush1.msra.mxu0 0.0
    %5643 = vmatprep.subr.mxu0 0.0
    %5644 = vmatpush1.msra.mxu0 0.0
    %5645 = vmatprep.subr.mxu0 0.0
    %5646 = vmatpush1.msra.mxu0 0.0
    %5647 = vmatprep.subr.mxu0 0.0
    %5648 = vmatpush1.msra.mxu0 0.0
    %5649 = vmatprep.subr.mxu0 0.0
    %5650 = vmatpush1.msra.mxu0 0.0
    %5651 = vmatprep.subr.mxu0 0.0
    %5652 = vmatpush1.msra.mxu0 0.0
    %5653 = vmatprep.subr.mxu0 0.0
    %5654 = vmatpush1.msra.mxu0 0.0
    %5655 = vmatprep.subr.mxu0 0.0
    %5656 = vmatpush1.msra.mxu0 0.0
    %5657 = vmatprep.subr.mxu0 0.0
    %5658 = vmatpush1.msra.mxu0 0.0
    %5659 = vmatprep.mubr.f32.mxu0 0.0
    %v5660 = vand.u32 %v5261, 4294901760
    %v5661 = vsub.f32 %v5261, %v5660
    %v5662 = vand.u32 %v5661, 4294901760
    %5663 = vmatmul.mubr.f32.gmra.mrb[0].mxu0 %v5662
    %v5664 = vpop.f32.mrb[0].mxu0
    %v5665 = vadd.f32 %v5567, %v5664
    %v5666 = vpop.f32.mrb[0].mxu0
    %5667 = vmatprep.mubr.f32.mxu0 0.0
    %v5668 = vand.u32 %v5264, 4294901760
    %v5669 = vsub.f32 %v5264, %v5668
    %v5670 = vand.u32 %v5669, 4294901760
    %5671 = vmatmul.mubr.f32.gmra.mrb[0].mxu0 %v5670
    %v5672 = vpop.f32.mrb[0].mxu0
    %v5673 = vadd.f32 %v5574, %v5672
    %v5674 = vpop.f32.mrb[0].mxu0
    %5675 = vmatprep.mubr.f32.mxu0 0.0
    %v5676 = vand.u32 %v5267, 4294901760
    %v5677 = vsub.f32 %v5267, %v5676
    %v5678 = vand.u32 %v5677, 4294901760
    %5679 = vmatmul.mubr.f32.gmra.mrb[0].mxu0 %v5678
    %v5680 = vpop.f32.mrb[0].mxu0
    %v5681 = vadd.f32 %v5581, %v5680
    %v5682 = vpop.f32.mrb[0].mxu0
    %5683 = vmatprep.mubr.f32.mxu0 0.0
    %v5684 = vand.u32 %v5270, 4294901760
    %v5685 = vsub.f32 %v5270, %v5684
    %v5686 = vand.u32 %v5685, 4294901760
    %5687 = vmatmul.mubr.f32.gmra.mrb[0].mxu0 %v5686
    %v5688 = vpop.f32.mrb[0].mxu0
    %v5689 = vadd.f32 %v5588, %v5688
    %v5690 = vpop.f32.mrb[0].mxu0
    %5691 = vdwg.mxu0
    %5692 = vmatprep.subr.mxu0 0.0
    %v5693 = vand.u32 %v1992, 4294901760
    %v5694 = vsub.f32 %v1992, %v5693
    %v5695 = vand.u32 %v5694, 4294901760
    %5696 = vmatpush1.msra.mxu0 %v5695
    %5697 = vmatprep.subr.mxu0 0.0
    %v5698 = vand.u32 %v1993, 4294901760
    %v5699 = vsub.f32 %v1993, %v5698
    %v5700 = vand.u32 %v5699, 4294901760
    %5701 = vmatpush1.msra.mxu0 %v5700
    %5702 = vmatprep.subr.mxu0 0.0
    %v5703 = vand.u32 %v1994, 4294901760
    %v5704 = vsub.f32 %v1994, %v5703
    %v5705 = vand.u32 %v5704, 4294901760
    %5706 = vmatpush1.msra.mxu0 %v5705
    %5707 = vmatprep.subr.mxu0 0.0
    %v5708 = vand.u32 %v1995, 4294901760
    %v5709 = vsub.f32 %v1995, %v5708
    %v5710 = vand.u32 %v5709, 4294901760
    %5711 = vmatpush1.msra.mxu0 %v5710
    %5712 = vmatprep.subr.mxu0 0.0
    %5713 = vmatpush1.msra.mxu0 0.0
    %5714 = vmatprep.subr.mxu0 0.0
    %5715 = vmatpush1.msra.mxu0 0.0
    %5716 = vmatprep.subr.mxu0 0.0
    %5717 = vmatpush1.msra.mxu0 0.0
    %5718 = vmatprep.subr.mxu0 0.0
    %5719 = vmatpush1.msra.mxu0 0.0
    %5720 = vmatprep.subr.mxu0 0.0
    %5721 = vmatpush1.msra.mxu0 0.0
    %5722 = vmatprep.subr.mxu0 0.0
    %5723 = vmatpush1.msra.mxu0 0.0
    %5724 = vmatprep.subr.mxu0 0.0
    %5725 = vmatpush1.msra.mxu0 0.0
    %5726 = vmatprep.subr.mxu0 0.0
    %5727 = vmatpush1.msra.mxu0 0.0
    %5728 = vmatprep.subr.mxu0 0.0
    %5729 = vmatpush1.msra.mxu0 0.0
    %5730 = vmatprep.subr.mxu0 0.0
    %5731 = vmatpush1.msra.mxu0 0.0
    %5732 = vmatprep.subr.mxu0 0.0
    %5733 = vmatpush1.msra.mxu0 0.0
    %5734 = vmatprep.subr.mxu0 0.0
    %5735 = vmatpush1.msra.mxu0 0.0
    %5736 = vmatprep.subr.mxu0 0.0
    %5737 = vmatpush1.msra.mxu0 0.0
    %5738 = vmatprep.subr.mxu0 0.0
    %5739 = vmatpush1.msra.mxu0 0.0
    %5740 = vmatprep.subr.mxu0 0.0
    %5741 = vmatpush1.msra.mxu0 0.0
    %5742 = vmatprep.subr.mxu0 0.0
    %5743 = vmatpush1.msra.mxu0 0.0
    %5744 = vmatprep.subr.mxu0 0.0
    %5745 = vmatpush1.msra.mxu0 0.0
    %5746 = vmatprep.subr.mxu0 0.0
    %5747 = vmatpush1.msra.mxu0 0.0
    %5748 = vmatprep.subr.mxu0 0.0
    %5749 = vmatpush1.msra.mxu0 0.0
    %5750 = vmatprep.subr.mxu0 0.0
    %5751 = vmatpush1.msra.mxu0 0.0
    %5752 = vmatprep.subr.mxu0 0.0
    %5753 = vmatpush1.msra.mxu0 0.0
    %5754 = vmatprep.subr.mxu0 0.0
    %5755 = vmatpush1.msra.mxu0 0.0
    %5756 = vmatprep.subr.mxu0 0.0
    %5757 = vmatpush1.msra.mxu0 0.0
    %5758 = vmatprep.subr.mxu0 0.0
    %5759 = vmatpush1.msra.mxu0 0.0
    %5760 = vmatprep.subr.mxu0 0.0
    %5761 = vmatpush1.msra.mxu0 0.0
    %5762 = vmatprep.subr.mxu0 0.0
    %5763 = vmatpush1.msra.mxu0 0.0
    %5764 = vmatprep.subr.mxu0 0.0
    %5765 = vmatpush1.msra.mxu0 0.0
    %5766 = vmatprep.subr.mxu0 0.0
    %5767 = vmatpush1.msra.mxu0 0.0
    %5768 = vmatprep.mubr.f32.mxu0 0.0
    %v5769 = vand.u32 %v5261, 4294901760
    %5770 = vmatmul.mubr.f32.gmra.mrb[0].mxu0 %v5769
    %v5771 = vpop.f32.mrb[0].mxu0
    %v5772 = vadd.f32 %v5665, %v5771
    %v5773 = vpop.f32.mrb[0].mxu0
    %5774 = vmatprep.mubr.f32.mxu0 0.0
    %v5775 = vand.u32 %v5264, 4294901760
    %5776 = vmatmul.mubr.f32.gmra.mrb[0].mxu0 %v5775
    %v5777 = vpop.f32.mrb[0].mxu0
    %v5778 = vadd.f32 %v5673, %v5777
    %v5779 = vpop.f32.mrb[0].mxu0
    %5780 = vmatprep.mubr.f32.mxu0 0.0
    %v5781 = vand.u32 %v5267, 4294901760
    %5782 = vmatmul.mubr.f32.gmra.mrb[0].mxu0 %v5781
    %v5783 = vpop.f32.mrb[0].mxu0
    %v5784 = vadd.f32 %v5681, %v5783
    %v5785 = vpop.f32.mrb[0].mxu0
    %5786 = vmatprep.mubr.f32.mxu0 0.0
    %v5787 = vand.u32 %v5270, 4294901760
    %5788 = vmatmul.mubr.f32.gmra.mrb[0].mxu0 %v5787
    %v5789 = vpop.f32.mrb[0].mxu0
    %v5790 = vadd.f32 %v5689, %v5789
    %v5791 = vpop.f32.mrb[0].mxu0
    %5792 = vdwg.mxu0
    %5793 = vmatprep.subr.mxu0 0.0
    %v5794 = vand.u32 %v1992, 4294901760
    %5795 = vmatpush1.msra.mxu0 %v5794
    %5796 = vmatprep.subr.mxu0 0.0
    %v5797 = vand.u32 %v1993, 4294901760
    %5798 = vmatpush1.msra.mxu0 %v5797
    %5799 = vmatprep.subr.mxu0 0.0
    %v5800 = vand.u32 %v1994, 4294901760
    %5801 = vmatpush1.msra.mxu0 %v5800
    %5802 = vmatprep.subr.mxu0 0.0
    %v5803 = vand.u32 %v1995, 4294901760
    %5804 = vmatpush1.msra.mxu0 %v5803
    %5805 = vmatprep.subr.mxu0 0.0
    %5806 = vmatpush1.msra.mxu0 0.0
    %5807 = vmatprep.subr.mxu0 0.0
    %5808 = vmatpush1.msra.mxu0 0.0
    %5809 = vmatprep.subr.mxu0 0.0
    %5810 = vmatpush1.msra.mxu0 0.0
    %5811 = vmatprep.subr.mxu0 0.0
    %5812 = vmatpush1.msra.mxu0 0.0
    %5813 = vmatprep.subr.mxu0 0.0
    %5814 = vmatpush1.msra.mxu0 0.0
    %5815 = vmatprep.subr.mxu0 0.0
    %5816 = vmatpush1.msra.mxu0 0.0
    %5817 = vmatprep.subr.mxu0 0.0
    %5818 = vmatpush1.msra.mxu0 0.0
    %5819 = vmatprep.subr.mxu0 0.0
    %5820 = vmatpush1.msra.mxu0 0.0
    %5821 = vmatprep.subr.mxu0 0.0
    %5822 = vmatpush1.msra.mxu0 0.0
    %5823 = vmatprep.subr.mxu0 0.0
    %5824 = vmatpush1.msra.mxu0 0.0
    %5825 = vmatprep.subr.mxu0 0.0
    %5826 = vmatpush1.msra.mxu0 0.0
    %5827 = vmatprep.subr.mxu0 0.0
    %5828 = vmatpush1.msra.mxu0 0.0
    %5829 = vmatprep.subr.mxu0 0.0
    %5830 = vmatpush1.msra.mxu0 0.0
    %5831 = vmatprep.subr.mxu0 0.0
    %5832 = vmatpush1.msra.mxu0 0.0
    %5833 = vmatprep.subr.mxu0 0.0
    %5834 = vmatpush1.msra.mxu0 0.0
    %5835 = vmatprep.subr.mxu0 0.0
    %5836 = vmatpush1.msra.mxu0 0.0
    %5837 = vmatprep.subr.mxu0 0.0
    %5838 = vmatpush1.msra.mxu0 0.0
    %5839 = vmatprep.subr.mxu0 0.0
    %5840 = vmatpush1.msra.mxu0 0.0
    %5841 = vmatprep.subr.mxu0 0.0
    %5842 = vmatpush1.msra.mxu0 0.0
    %5843 = vmatprep.subr.mxu0 0.0
    %5844 = vmatpush1.msra.mxu0 0.0
    %5845 = vmatprep.subr.mxu0 0.0
    %5846 = vmatpush1.msra.mxu0 0.0
    %5847 = vmatprep.subr.mxu0 0.0
    %5848 = vmatpush1.msra.mxu0 0.0
    %5849 = vmatprep.subr.mxu0 0.0
    %5850 = vmatpush1.msra.mxu0 0.0
    %5851 = vmatprep.subr.mxu0 0.0
    %5852 = vmatpush1.msra.mxu0 0.0
    %5853 = vmatprep.subr.mxu0 0.0
    %5854 = vmatpush1.msra.mxu0 0.0
    %5855 = vmatprep.subr.mxu0 0.0
    %5856 = vmatpush1.msra.mxu0 0.0
    %5857 = vmatprep.subr.mxu0 0.0
    %5858 = vmatpush1.msra.mxu0 0.0
    %5859 = vmatprep.subr.mxu0 0.0
    %5860 = vmatpush1.msra.mxu0 0.0
    %5861 = vmatprep.mubr.f32.mxu0 0.0
    %v5862 = vand.u32 %v5261, 4294901760
    %5863 = vmatmul.mubr.f32.gmra.mrb[0].mxu0 %v5862
    %v5864 = vpop.f32.mrb[0].mxu0
    %v5865 = vadd.f32 %v5772, %v5864
    %v5866 = vpop.f32.mrb[0].mxu0
    %5867 = vmatprep.mubr.f32.mxu0 0.0
    %v5868 = vand.u32 %v5264, 4294901760
    %5869 = vmatmul.mubr.f32.gmra.mrb[0].mxu0 %v5868
    %v5870 = vpop.f32.mrb[0].mxu0
    %v5871 = vadd.f32 %v5778, %v5870
    %v5872 = vpop.f32.mrb[0].mxu0
    %5873 = vmatprep.mubr.f32.mxu0 0.0
    %v5874 = vand.u32 %v5267, 4294901760
    %5875 = vmatmul.mubr.f32.gmra.mrb[0].mxu0 %v5874
    %v5876 = vpop.f32.mrb[0].mxu0
    %v5877 = vadd.f32 %v5784, %v5876
    %v5878 = vpop.f32.mrb[0].mxu0
    %5879 = vmatprep.mubr.f32.mxu0 0.0
    %v5880 = vand.u32 %v5270, 4294901760
    %5881 = vmatmul.mubr.f32.gmra.mrb[0].mxu0 %v5880
    %v5882 = vpop.f32.mrb[0].mxu0
    %v5883 = vadd.f32 %v5790, %v5882
    %v5884 = vpop.f32.mrb[0].mxu0
    %5885 = vdwg.mxu0
    %v5886 = vadd.f32 %v5256, %v5865
    %v5887 = vadd.f32 %v5257, %v5871
    %v5888 = vadd.f32 %v5258, %v5877
    %v5889 = vadd.f32 %v5259, %v5883
    %s5890 = scalar_lea.vmem %s1, 96
    %v5891 = vld [vmem:[%s5890] sm:$0xff]
    %v5892 = vld [vmem:[%s5890 + $0x8] sm:$0xff]
    %v5893 = vld [vmem:[%s5890 + $0x10] sm:$0xff]
    %v5894 = vld [vmem:[%s5890 + $0x18] sm:$0xff]
    %v5895 = vlaneseq
    %v5896 = vshrl.u32 %v5895, 7
    %v5897 = vsub.s32 7, %v5896
    %v5898 = vrot.slane %v36, %v5897
    %v5900 = vsel %vm46, %v5886, 0
    %v5903 = vsel %vm46, %v5887, 0
    %v5906 = vsel %vm46, %v5888, 0
    %v5909 = vsel %vm46, %v5889, 0
    %5911 = vmatprep.subr.mxu0 0.0
    %v5912 = vand.u32 %v5891, 4294901760
    %5913 = vmatpush1.msra.mxu0 %v5912
    %5914 = vmatprep.subr.mxu0 0.0
    %v5915 = vand.u32 %v5892, 4294901760
    %5916 = vmatpush1.msra.mxu0 %v5915
    %5917 = vmatprep.subr.mxu0 0.0
    %v5918 = vand.u32 %v5893, 4294901760
    %5919 = vmatpush1.msra.mxu0 %v5918
    %5920 = vmatprep.subr.mxu0 0.0
    %v5921 = vand.u32 %v5894, 4294901760
    %5922 = vmatpush1.msra.mxu0 %v5921
    %5923 = vmatprep.subr.mxu0 0.0
    %5924 = vmatpush1.msra.mxu0 0.0
    %5925 = vmatprep.subr.mxu0 0.0
    %5926 = vmatpush1.msra.mxu0 0.0
    %5927 = vmatprep.subr.mxu0 0.0
    %5928 = vmatpush1.msra.mxu0 0.0
    %5929 = vmatprep.subr.mxu0 0.0
    %5930 = vmatpush1.msra.mxu0 0.0
    %5931 = vmatprep.subr.mxu0 0.0
    %5932 = vmatpush1.msra.mxu0 0.0
    %5933 = vmatprep.subr.mxu0 0.0
    %5934 = vmatpush1.msra.mxu0 0.0
    %5935 = vmatprep.subr.mxu0 0.0
    %5936 = vmatpush1.msra.mxu0 0.0
    %5937 = vmatprep.subr.mxu0 0.0
    %5938 = vmatpush1.msra.mxu0 0.0
    %5939 = vmatprep.subr.mxu0 0.0
    %5940 = vmatpush1.msra.mxu0 0.0
    %5941 = vmatprep.subr.mxu0 0.0
    %5942 = vmatpush1.msra.mxu0 0.0
    %5943 = vmatprep.subr.mxu0 0.0
    %5944 = vmatpush1.msra.mxu0 0.0
    %5945 = vmatprep.subr.mxu0 0.0
    %5946 = vmatpush1.msra.mxu0 0.0
    %5947 = vmatprep.subr.mxu0 0.0
    %5948 = vmatpush1.msra.mxu0 0.0
    %5949 = vmatprep.subr.mxu0 0.0
    %5950 = vmatpush1.msra.mxu0 0.0
    %5951 = vmatprep.subr.mxu0 0.0
    %5952 = vmatpush1.msra.mxu0 0.0
    %5953 = vmatprep.subr.mxu0 0.0
    %5954 = vmatpush1.msra.mxu0 0.0
    %5955 = vmatprep.subr.mxu0 0.0
    %5956 = vmatpush1.msra.mxu0 0.0
    %5957 = vmatprep.subr.mxu0 0.0
    %5958 = vmatpush1.msra.mxu0 0.0
    %5959 = vmatprep.subr.mxu0 0.0
    %5960 = vmatpush1.msra.mxu0 0.0
    %5961 = vmatprep.subr.mxu0 0.0
    %5962 = vmatpush1.msra.mxu0 0.0
    %5963 = vmatprep.subr.mxu0 0.0
    %5964 = vmatpush1.msra.mxu0 0.0
    %5965 = vmatprep.subr.mxu0 0.0
    %5966 = vmatpush1.msra.mxu0 0.0
    %5967 = vmatprep.subr.mxu0 0.0
    %5968 = vmatpush1.msra.mxu0 0.0
    %5969 = vmatprep.subr.mxu0 0.0
    %5970 = vmatpush1.msra.mxu0 0.0
    %5971 = vmatprep.subr.mxu0 0.0
    %5972 = vmatpush1.msra.mxu0 0.0
    %5973 = vmatprep.subr.mxu0 0.0
    %5974 = vmatpush1.msra.mxu0 0.0
    %5975 = vmatprep.subr.mxu0 0.0
    %5976 = vmatpush1.msra.mxu0 0.0
    %5977 = vmatprep.subr.mxu0 0.0
    %5978 = vmatpush1.msra.mxu0 0.0
    %5979 = vmatprep.mubr.f32.mxu0 0.0
    %v5980 = vand.u32 %v5900, 4294901760
    %v5981 = vsub.f32 %v5900, %v5980
    %v5982 = vand.u32 %v5981, 4294901760
    %v5983 = vsub.f32 %v5981, %v5982
    %v5984 = vand.u32 %v5983, 4294901760
    %5985 = vmatmul.mubr.f32.gmra.mrb[0].mxu0 %v5984
    %v5986 = vpop.f32.mrb[0].mxu0
    %v5987 = vadd.f32 %v5898, %v5986
    %v5988 = vpop.f32.mrb[0].mxu0
    %5989 = vmatprep.mubr.f32.mxu0 0.0
    %v5990 = vand.u32 %v5903, 4294901760
    %v5991 = vsub.f32 %v5903, %v5990
    %v5992 = vand.u32 %v5991, 4294901760
    %v5993 = vsub.f32 %v5991, %v5992
    %v5994 = vand.u32 %v5993, 4294901760
    %5995 = vmatmul.mubr.f32.gmra.mrb[0].mxu0 %v5994
    %v5996 = vpop.f32.mrb[0].mxu0
    %v5997 = vadd.f32 %v5898, %v5996
    %v5998 = vpop.f32.mrb[0].mxu0
    %5999 = vmatprep.mubr.f32.mxu0 0.0
    %v6000 = vand.u32 %v5906, 4294901760
    %v6001 = vsub.f32 %v5906, %v6000
    %v6002 = vand.u32 %v6001, 4294901760
    %v6003 = vsub.f32 %v6001, %v6002
    %v6004 = vand.u32 %v6003, 4294901760
    %6005 = vmatmul.mubr.f32.gmra.mrb[0].mxu0 %v6004
    %v6006 = vpop.f32.mrb[0].mxu0
    %v6007 = vadd.f32 %v5898, %v6006
    %v6008 = vpop.f32.mrb[0].mxu0
    %6009 = vmatprep.mubr.f32.mxu0 0.0
    %v6010 = vand.u32 %v5909, 4294901760
    %v6011 = vsub.f32 %v5909, %v6010
    %v6012 = vand.u32 %v6011, 4294901760
    %v6013 = vsub.f32 %v6011, %v6012
    %v6014 = vand.u32 %v6013, 4294901760
    %6015 = vmatmul.mubr.f32.gmra.mrb[0].mxu0 %v6014
    %v6016 = vpop.f32.mrb[0].mxu0
    %v6017 = vadd.f32 %v5898, %v6016
    %v6018 = vpop.f32.mrb[0].mxu0
    %6019 = vdwg.mxu0
    %6020 = vmatprep.subr.mxu0 0.0
    %v6021 = vand.u32 %v5891, 4294901760
    %v6022 = vsub.f32 %v5891, %v6021
    %v6023 = vand.u32 %v6022, 4294901760
    %v6024 = vsub.f32 %v6022, %v6023
    %v6025 = vand.u32 %v6024, 4294901760
    %6026 = vmatpush1.msra.mxu0 %v6025
    %6027 = vmatprep.subr.mxu0 0.0
    %v6028 = vand.u32 %v5892, 4294901760
    %v6029 = vsub.f32 %v5892, %v6028
    %v6030 = vand.u32 %v6029, 4294901760
    %v6031 = vsub.f32 %v6029, %v6030
    %v6032 = vand.u32 %v6031, 4294901760
    %6033 = vmatpush1.msra.mxu0 %v6032
    %6034 = vmatprep.subr.mxu0 0.0
    %v6035 = vand.u32 %v5893, 4294901760
    %v6036 = vsub.f32 %v5893, %v6035
    %v6037 = vand.u32 %v6036, 4294901760
    %v6038 = vsub.f32 %v6036, %v6037
    %v6039 = vand.u32 %v6038, 4294901760
    %6040 = vmatpush1.msra.mxu0 %v6039
    %6041 = vmatprep.subr.mxu0 0.0
    %v6042 = vand.u32 %v5894, 4294901760
    %v6043 = vsub.f32 %v5894, %v6042
    %v6044 = vand.u32 %v6043, 4294901760
    %v6045 = vsub.f32 %v6043, %v6044
    %v6046 = vand.u32 %v6045, 4294901760
    %6047 = vmatpush1.msra.mxu0 %v6046
    %6048 = vmatprep.subr.mxu0 0.0
    %6049 = vmatpush1.msra.mxu0 0.0
    %6050 = vmatprep.subr.mxu0 0.0
    %6051 = vmatpush1.msra.mxu0 0.0
    %6052 = vmatprep.subr.mxu0 0.0
    %6053 = vmatpush1.msra.mxu0 0.0
    %6054 = vmatprep.subr.mxu0 0.0
    %6055 = vmatpush1.msra.mxu0 0.0
    %6056 = vmatprep.subr.mxu0 0.0
    %6057 = vmatpush1.msra.mxu0 0.0
    %6058 = vmatprep.subr.mxu0 0.0
    %6059 = vmatpush1.msra.mxu0 0.0
    %6060 = vmatprep.subr.mxu0 0.0
    %6061 = vmatpush1.msra.mxu0 0.0
    %6062 = vmatprep.subr.mxu0 0.0
    %6063 = vmatpush1.msra.mxu0 0.0
    %6064 = vmatprep.subr.mxu0 0.0
    %6065 = vmatpush1.msra.mxu0 0.0
    %6066 = vmatprep.subr.mxu0 0.0
    %6067 = vmatpush1.msra.mxu0 0.0
    %6068 = vmatprep.subr.mxu0 0.0
    %6069 = vmatpush1.msra.mxu0 0.0
    %6070 = vmatprep.subr.mxu0 0.0
    %6071 = vmatpush1.msra.mxu0 0.0
    %6072 = vmatprep.subr.mxu0 0.0
    %6073 = vmatpush1.msra.mxu0 0.0
    %6074 = vmatprep.subr.mxu0 0.0
    %6075 = vmatpush1.msra.mxu0 0.0
    %6076 = vmatprep.subr.mxu0 0.0
    %6077 = vmatpush1.msra.mxu0 0.0
    %6078 = vmatprep.subr.mxu0 0.0
    %6079 = vmatpush1.msra.mxu0 0.0
    %6080 = vmatprep.subr.mxu0 0.0
    %6081 = vmatpush1.msra.mxu0 0.0
    %6082 = vmatprep.subr.mxu0 0.0
    %6083 = vmatpush1.msra.mxu0 0.0
    %6084 = vmatprep.subr.mxu0 0.0
    %6085 = vmatpush1.msra.mxu0 0.0
    %6086 = vmatprep.subr.mxu0 0.0
    %6087 = vmatpush1.msra.mxu0 0.0
    %6088 = vmatprep.subr.mxu0 0.0
    %6089 = vmatpush1.msra.mxu0 0.0
    %6090 = vmatprep.subr.mxu0 0.0
    %6091 = vmatpush1.msra.mxu0 0.0
    %6092 = vmatprep.subr.mxu0 0.0
    %6093 = vmatpush1.msra.mxu0 0.0
    %6094 = vmatprep.subr.mxu0 0.0
    %6095 = vmatpush1.msra.mxu0 0.0
    %6096 = vmatprep.subr.mxu0 0.0
    %6097 = vmatpush1.msra.mxu0 0.0
    %6098 = vmatprep.subr.mxu0 0.0
    %6099 = vmatpush1.msra.mxu0 0.0
    %6100 = vmatprep.subr.mxu0 0.0
    %6101 = vmatpush1.msra.mxu0 0.0
    %6102 = vmatprep.subr.mxu0 0.0
    %6103 = vmatpush1.msra.mxu0 0.0
    %6104 = vmatprep.mubr.f32.mxu0 0.0
    %v6105 = vand.u32 %v5900, 4294901760
    %6106 = vmatmul.mubr.f32.gmra.mrb[0].mxu0 %v6105
    %v6107 = vpop.f32.mrb[0].mxu0
    %v6108 = vadd.f32 %v5987, %v6107
    %v6109 = vpop.f32.mrb[0].mxu0
    %6110 = vmatprep.mubr.f32.mxu0 0.0
    %v6111 = vand.u32 %v5903, 4294901760
    %6112 = vmatmul.mubr.f32.gmra.mrb[0].mxu0 %v6111
    %v6113 = vpop.f32.mrb[0].mxu0
    %v6114 = vadd.f32 %v5997, %v6113
    %v6115 = vpop.f32.mrb[0].mxu0
    %6116 = vmatprep.mubr.f32.mxu0 0.0
    %v6117 = vand.u32 %v5906, 4294901760
    %6118 = vmatmul.mubr.f32.gmra.mrb[0].mxu0 %v6117
    %v6119 = vpop.f32.mrb[0].mxu0
    %v6120 = vadd.f32 %v6007, %v6119
    %v6121 = vpop.f32.mrb[0].mxu0
    %6122 = vmatprep.mubr.f32.mxu0 0.0
    %v6123 = vand.u32 %v5909, 4294901760
    %6124 = vmatmul.mubr.f32.gmra.mrb[0].mxu0 %v6123
    %v6125 = vpop.f32.mrb[0].mxu0
    %v6126 = vadd.f32 %v6017, %v6125
    %v6127 = vpop.f32.mrb[0].mxu0
    %6128 = vdwg.mxu0
    %6129 = vmatprep.subr.mxu0 0.0
    %v6130 = vand.u32 %v5891, 4294901760
    %v6131 = vsub.f32 %v5891, %v6130
    %6132 = vmatpush1.msra.mxu0 %v6131
    %6133 = vmatprep.subr.mxu0 0.0
    %v6134 = vand.u32 %v5892, 4294901760
    %v6135 = vsub.f32 %v5892, %v6134
    %6136 = vmatpush1.msra.mxu0 %v6135
    %6137 = vmatprep.subr.mxu0 0.0
    %v6138 = vand.u32 %v5893, 4294901760
    %v6139 = vsub.f32 %v5893, %v6138
    %6140 = vmatpush1.msra.mxu0 %v6139
    %6141 = vmatprep.subr.mxu0 0.0
    %v6142 = vand.u32 %v5894, 4294901760
    %v6143 = vsub.f32 %v5894, %v6142
    %6144 = vmatpush1.msra.mxu0 %v6143
    %6145 = vmatprep.subr.mxu0 0.0
    %6146 = vmatpush1.msra.mxu0 0.0
    %6147 = vmatprep.subr.mxu0 0.0
    %6148 = vmatpush1.msra.mxu0 0.0
    %6149 = vmatprep.subr.mxu0 0.0
    %6150 = vmatpush1.msra.mxu0 0.0
    %6151 = vmatprep.subr.mxu0 0.0
    %6152 = vmatpush1.msra.mxu0 0.0
    %6153 = vmatprep.subr.mxu0 0.0
    %6154 = vmatpush1.msra.mxu0 0.0
    %6155 = vmatprep.subr.mxu0 0.0
    %6156 = vmatpush1.msra.mxu0 0.0
    %6157 = vmatprep.subr.mxu0 0.0
    %6158 = vmatpush1.msra.mxu0 0.0
    %6159 = vmatprep.subr.mxu0 0.0
    %6160 = vmatpush1.msra.mxu0 0.0
    %6161 = vmatprep.subr.mxu0 0.0
    %6162 = vmatpush1.msra.mxu0 0.0
    %6163 = vmatprep.subr.mxu0 0.0
    %6164 = vmatpush1.msra.mxu0 0.0
    %6165 = vmatprep.subr.mxu0 0.0
    %6166 = vmatpush1.msra.mxu0 0.0
    %6167 = vmatprep.subr.mxu0 0.0
    %6168 = vmatpush1.msra.mxu0 0.0
    %6169 = vmatprep.subr.mxu0 0.0
    %6170 = vmatpush1.msra.mxu0 0.0
    %6171 = vmatprep.subr.mxu0 0.0
    %6172 = vmatpush1.msra.mxu0 0.0
    %6173 = vmatprep.subr.mxu0 0.0
    %6174 = vmatpush1.msra.mxu0 0.0
    %6175 = vmatprep.subr.mxu0 0.0
    %6176 = vmatpush1.msra.mxu0 0.0
    %6177 = vmatprep.subr.mxu0 0.0
    %6178 = vmatpush1.msra.mxu0 0.0
    %6179 = vmatprep.subr.mxu0 0.0
    %6180 = vmatpush1.msra.mxu0 0.0
    %6181 = vmatprep.subr.mxu0 0.0
    %6182 = vmatpush1.msra.mxu0 0.0
    %6183 = vmatprep.subr.mxu0 0.0
    %6184 = vmatpush1.msra.mxu0 0.0
    %6185 = vmatprep.subr.mxu0 0.0
    %6186 = vmatpush1.msra.mxu0 0.0
    %6187 = vmatprep.subr.mxu0 0.0
    %6188 = vmatpush1.msra.mxu0 0.0
    %6189 = vmatprep.subr.mxu0 0.0
    %6190 = vmatpush1.msra.mxu0 0.0
    %6191 = vmatprep.subr.mxu0 0.0
    %6192 = vmatpush1.msra.mxu0 0.0
    %6193 = vmatprep.subr.mxu0 0.0
    %6194 = vmatpush1.msra.mxu0 0.0
    %6195 = vmatprep.subr.mxu0 0.0
    %6196 = vmatpush1.msra.mxu0 0.0
    %6197 = vmatprep.subr.mxu0 0.0
    %6198 = vmatpush1.msra.mxu0 0.0
    %6199 = vmatprep.subr.mxu0 0.0
    %6200 = vmatpush1.msra.mxu0 0.0
    %6201 = vmatprep.mubr.f32.mxu0 0.0
    %v6202 = vand.u32 %v5900, 4294901760
    %v6203 = vsub.f32 %v5900, %v6202
    %6204 = vmatmul.mubr.f32.gmra.mrb[0].mxu0 %v6203
    %v6205 = vpop.f32.mrb[0].mxu0
    %v6206 = vadd.f32 %v6108, %v6205
    %v6207 = vpop.f32.mrb[0].mxu0
    %6208 = vmatprep.mubr.f32.mxu0 0.0
    %v6209 = vand.u32 %v5903, 4294901760
    %v6210 = vsub.f32 %v5903, %v6209
    %6211 = vmatmul.mubr.f32.gmra.mrb[0].mxu0 %v6210
    %v6212 = vpop.f32.mrb[0].mxu0
    %v6213 = vadd.f32 %v6114, %v6212
    %v6214 = vpop.f32.mrb[0].mxu0
    %6215 = vmatprep.mubr.f32.mxu0 0.0
    %v6216 = vand.u32 %v5906, 4294901760
    %v6217 = vsub.f32 %v5906, %v6216
    %6218 = vmatmul.mubr.f32.gmra.mrb[0].mxu0 %v6217
    %v6219 = vpop.f32.mrb[0].mxu0
    %v6220 = vadd.f32 %v6120, %v6219
    %v6221 = vpop.f32.mrb[0].mxu0
    %6222 = vmatprep.mubr.f32.mxu0 0.0
    %v6223 = vand.u32 %v5909, 4294901760
    %v6224 = vsub.f32 %v5909, %v6223
    %6225 = vmatmul.mubr.f32.gmra.mrb[0].mxu0 %v6224
    %v6226 = vpop.f32.mrb[0].mxu0
    %v6227 = vadd.f32 %v6126, %v6226
    %v6228 = vpop.f32.mrb[0].mxu0
    %6229 = vdwg.mxu0
    %6230 = vmatprep.subr.mxu0 0.0
    %v6231 = vand.u32 %v5891, 4294901760
    %6232 = vmatpush1.msra.mxu0 %v6231
    %6233 = vmatprep.subr.mxu0 0.0
    %v6234 = vand.u32 %v5892, 4294901760
    %6235 = vmatpush1.msra.mxu0 %v6234
    %6236 = vmatprep.subr.mxu0 0.0
    %v6237 = vand.u32 %v5893, 4294901760
    %6238 = vmatpush1.msra.mxu0 %v6237
    %6239 = vmatprep.subr.mxu0 0.0
    %v6240 = vand.u32 %v5894, 4294901760
    %6241 = vmatpush1.msra.mxu0 %v6240
    %6242 = vmatprep.subr.mxu0 0.0
    %6243 = vmatpush1.msra.mxu0 0.0
    %6244 = vmatprep.subr.mxu0 0.0
    %6245 = vmatpush1.msra.mxu0 0.0
    %6246 = vmatprep.subr.mxu0 0.0
    %6247 = vmatpush1.msra.mxu0 0.0
    %6248 = vmatprep.subr.mxu0 0.0
    %6249 = vmatpush1.msra.mxu0 0.0
    %6250 = vmatprep.subr.mxu0 0.0
    %6251 = vmatpush1.msra.mxu0 0.0
    %6252 = vmatprep.subr.mxu0 0.0
    %6253 = vmatpush1.msra.mxu0 0.0
    %6254 = vmatprep.subr.mxu0 0.0
    %6255 = vmatpush1.msra.mxu0 0.0
    %6256 = vmatprep.subr.mxu0 0.0
    %6257 = vmatpush1.msra.mxu0 0.0
    %6258 = vmatprep.subr.mxu0 0.0
    %6259 = vmatpush1.msra.mxu0 0.0
    %6260 = vmatprep.subr.mxu0 0.0
    %6261 = vmatpush1.msra.mxu0 0.0
    %6262 = vmatprep.subr.mxu0 0.0
    %6263 = vmatpush1.msra.mxu0 0.0
    %6264 = vmatprep.subr.mxu0 0.0
    %6265 = vmatpush1.msra.mxu0 0.0
    %6266 = vmatprep.subr.mxu0 0.0
    %6267 = vmatpush1.msra.mxu0 0.0
    %6268 = vmatprep.subr.mxu0 0.0
    %6269 = vmatpush1.msra.mxu0 0.0
    %6270 = vmatprep.subr.mxu0 0.0
    %6271 = vmatpush1.msra.mxu0 0.0
    %6272 = vmatprep.subr.mxu0 0.0
    %6273 = vmatpush1.msra.mxu0 0.0
    %6274 = vmatprep.subr.mxu0 0.0
    %6275 = vmatpush1.msra.mxu0 0.0
    %6276 = vmatprep.subr.mxu0 0.0
    %6277 = vmatpush1.msra.mxu0 0.0
    %6278 = vmatprep.subr.mxu0 0.0
    %6279 = vmatpush1.msra.mxu0 0.0
    %6280 = vmatprep.subr.mxu0 0.0
    %6281 = vmatpush1.msra.mxu0 0.0
    %6282 = vmatprep.subr.mxu0 0.0
    %6283 = vmatpush1.msra.mxu0 0.0
    %6284 = vmatprep.subr.mxu0 0.0
    %6285 = vmatpush1.msra.mxu0 0.0
    %6286 = vmatprep.subr.mxu0 0.0
    %6287 = vmatpush1.msra.mxu0 0.0
    %6288 = vmatprep.subr.mxu0 0.0
    %6289 = vmatpush1.msra.mxu0 0.0
    %6290 = vmatprep.subr.mxu0 0.0
    %6291 = vmatpush1.msra.mxu0 0.0
    %6292 = vmatprep.subr.mxu0 0.0
    %6293 = vmatpush1.msra.mxu0 0.0
    %6294 = vmatprep.subr.mxu0 0.0
    %6295 = vmatpush1.msra.mxu0 0.0
    %6296 = vmatprep.subr.mxu0 0.0
    %6297 = vmatpush1.msra.mxu0 0.0
    %6298 = vmatprep.mubr.f32.mxu0 0.0
    %v6299 = vand.u32 %v5900, 4294901760
    %v6300 = vsub.f32 %v5900, %v6299
    %v6301 = vand.u32 %v6300, 4294901760
    %6302 = vmatmul.mubr.f32.gmra.mrb[0].mxu0 %v6301
    %v6303 = vpop.f32.mrb[0].mxu0
    %v6304 = vadd.f32 %v6206, %v6303
    %v6305 = vpop.f32.mrb[0].mxu0
    %6306 = vmatprep.mubr.f32.mxu0 0.0
    %v6307 = vand.u32 %v5903, 4294901760
    %v6308 = vsub.f32 %v5903, %v6307
    %v6309 = vand.u32 %v6308, 4294901760
    %6310 = vmatmul.mubr.f32.gmra.mrb[0].mxu0 %v6309
    %v6311 = vpop.f32.mrb[0].mxu0
    %v6312 = vadd.f32 %v6213, %v6311
    %v6313 = vpop.f32.mrb[0].mxu0
    %6314 = vmatprep.mubr.f32.mxu0 0.0
    %v6315 = vand.u32 %v5906, 4294901760
    %v6316 = vsub.f32 %v5906, %v6315
    %v6317 = vand.u32 %v6316, 4294901760
    %6318 = vmatmul.mubr.f32.gmra.mrb[0].mxu0 %v6317
    %v6319 = vpop.f32.mrb[0].mxu0
    %v6320 = vadd.f32 %v6220, %v6319
    %v6321 = vpop.f32.mrb[0].mxu0
    %6322 = vmatprep.mubr.f32.mxu0 0.0
    %v6323 = vand.u32 %v5909, 4294901760
    %v6324 = vsub.f32 %v5909, %v6323
    %v6325 = vand.u32 %v6324, 4294901760
    %6326 = vmatmul.mubr.f32.gmra.mrb[0].mxu0 %v6325
    %v6327 = vpop.f32.mrb[0].mxu0
    %v6328 = vadd.f32 %v6227, %v6327
    %v6329 = vpop.f32.mrb[0].mxu0
    %6330 = vdwg.mxu0
    %6331 = vmatprep.subr.mxu0 0.0
    %v6332 = vand.u32 %v5891, 4294901760
    %v6333 = vsub.f32 %v5891, %v6332
    %v6334 = vand.u32 %v6333, 4294901760
    %6335 = vmatpush1.msra.mxu0 %v6334
    %6336 = vmatprep.subr.mxu0 0.0
    %v6337 = vand.u32 %v5892, 4294901760
    %v6338 = vsub.f32 %v5892, %v6337
    %v6339 = vand.u32 %v6338, 4294901760
    %6340 = vmatpush1.msra.mxu0 %v6339
    %6341 = vmatprep.subr.mxu0 0.0
    %v6342 = vand.u32 %v5893, 4294901760
    %v6343 = vsub.f32 %v5893, %v6342
    %v6344 = vand.u32 %v6343, 4294901760
    %6345 = vmatpush1.msra.mxu0 %v6344
    %6346 = vmatprep.subr.mxu0 0.0
    %v6347 = vand.u32 %v5894, 4294901760
    %v6348 = vsub.f32 %v5894, %v6347
    %v6349 = vand.u32 %v6348, 4294901760
    %6350 = vmatpush1.msra.mxu0 %v6349
    %6351 = vmatprep.subr.mxu0 0.0
    %6352 = vmatpush1.msra.mxu0 0.0
    %6353 = vmatprep.subr.mxu0 0.0
    %6354 = vmatpush1.msra.mxu0 0.0
    %6355 = vmatprep.subr.mxu0 0.0
    %6356 = vmatpush1.msra.mxu0 0.0
    %6357 = vmatprep.subr.mxu0 0.0
    %6358 = vmatpush1.msra.mxu0 0.0
    %6359 = vmatprep.subr.mxu0 0.0
    %6360 = vmatpush1.msra.mxu0 0.0
    %6361 = vmatprep.subr.mxu0 0.0
    %6362 = vmatpush1.msra.mxu0 0.0
    %6363 = vmatprep.subr.mxu0 0.0
    %6364 = vmatpush1.msra.mxu0 0.0
    %6365 = vmatprep.subr.mxu0 0.0
    %6366 = vmatpush1.msra.mxu0 0.0
    %6367 = vmatprep.subr.mxu0 0.0
    %6368 = vmatpush1.msra.mxu0 0.0
    %6369 = vmatprep.subr.mxu0 0.0
    %6370 = vmatpush1.msra.mxu0 0.0
    %6371 = vmatprep.subr.mxu0 0.0
    %6372 = vmatpush1.msra.mxu0 0.0
    %6373 = vmatprep.subr.mxu0 0.0
    %6374 = vmatpush1.msra.mxu0 0.0
    %6375 = vmatprep.subr.mxu0 0.0
    %6376 = vmatpush1.msra.mxu0 0.0
    %6377 = vmatprep.subr.mxu0 0.0
    %6378 = vmatpush1.msra.mxu0 0.0
    %6379 = vmatprep.subr.mxu0 0.0
    %6380 = vmatpush1.msra.mxu0 0.0
    %6381 = vmatprep.subr.mxu0 0.0
    %6382 = vmatpush1.msra.mxu0 0.0
    %6383 = vmatprep.subr.mxu0 0.0
    %6384 = vmatpush1.msra.mxu0 0.0
    %6385 = vmatprep.subr.mxu0 0.0
    %6386 = vmatpush1.msra.mxu0 0.0
    %6387 = vmatprep.subr.mxu0 0.0
    %6388 = vmatpush1.msra.mxu0 0.0
    %6389 = vmatprep.subr.mxu0 0.0
    %6390 = vmatpush1.msra.mxu0 0.0
    %6391 = vmatprep.subr.mxu0 0.0
    %6392 = vmatpush1.msra.mxu0 0.0
    %6393 = vmatprep.subr.mxu0 0.0
    %6394 = vmatpush1.msra.mxu0 0.0
    %6395 = vmatprep.subr.mxu0 0.0
    %6396 = vmatpush1.msra.mxu0 0.0
    %6397 = vmatprep.subr.mxu0 0.0
    %6398 = vmatpush1.msra.mxu0 0.0
    %6399 = vmatprep.subr.mxu0 0.0
    %6400 = vmatpush1.msra.mxu0 0.0
    %6401 = vmatprep.subr.mxu0 0.0
    %6402 = vmatpush1.msra.mxu0 0.0
    %6403 = vmatprep.subr.mxu0 0.0
    %6404 = vmatpush1.msra.mxu0 0.0
    %6405 = vmatprep.subr.mxu0 0.0
    %6406 = vmatpush1.msra.mxu0 0.0
    %6407 = vmatprep.mubr.f32.mxu0 0.0
    %v6408 = vand.u32 %v5900, 4294901760
    %6409 = vmatmul.mubr.f32.gmra.mrb[0].mxu0 %v6408
    %v6410 = vpop.f32.mrb[0].mxu0
    %v6411 = vadd.f32 %v6304, %v6410
    %v6412 = vpop.f32.mrb[0].mxu0
    %6413 = vmatprep.mubr.f32.mxu0 0.0
    %v6414 = vand.u32 %v5903, 4294901760
    %6415 = vmatmul.mubr.f32.gmra.mrb[0].mxu0 %v6414
    %v6416 = vpop.f32.mrb[0].mxu0
    %v6417 = vadd.f32 %v6312, %v6416
    %v6418 = vpop.f32.mrb[0].mxu0
    %6419 = vmatprep.mubr.f32.mxu0 0.0
    %v6420 = vand.u32 %v5906, 4294901760
    %6421 = vmatmul.mubr.f32.gmra.mrb[0].mxu0 %v6420
    %v6422 = vpop.f32.mrb[0].mxu0
    %v6423 = vadd.f32 %v6320, %v6422
    %v6424 = vpop.f32.mrb[0].mxu0
    %6425 = vmatprep.mubr.f32.mxu0 0.0
    %v6426 = vand.u32 %v5909, 4294901760
    %6427 = vmatmul.mubr.f32.gmra.mrb[0].mxu0 %v6426
    %v6428 = vpop.f32.mrb[0].mxu0
    %v6429 = vadd.f32 %v6328, %v6428
    %v6430 = vpop.f32.mrb[0].mxu0
    %6431 = vdwg.mxu0
    %6432 = vmatprep.subr.mxu0 0.0
    %v6433 = vand.u32 %v5891, 4294901760
    %6434 = vmatpush1.msra.mxu0 %v6433
    %6435 = vmatprep.subr.mxu0 0.0
    %v6436 = vand.u32 %v5892, 4294901760
    %6437 = vmatpush1.msra.mxu0 %v6436
    %6438 = vmatprep.subr.mxu0 0.0
    %v6439 = vand.u32 %v5893, 4294901760
    %6440 = vmatpush1.msra.mxu0 %v6439
    %6441 = vmatprep.subr.mxu0 0.0
    %v6442 = vand.u32 %v5894, 4294901760
    %6443 = vmatpush1.msra.mxu0 %v6442
    %6444 = vmatprep.subr.mxu0 0.0
    %6445 = vmatpush1.msra.mxu0 0.0
    %6446 = vmatprep.subr.mxu0 0.0
    %6447 = vmatpush1.msra.mxu0 0.0
    %6448 = vmatprep.subr.mxu0 0.0
    %6449 = vmatpush1.msra.mxu0 0.0
    %6450 = vmatprep.subr.mxu0 0.0
    %6451 = vmatpush1.msra.mxu0 0.0
    %6452 = vmatprep.subr.mxu0 0.0
    %6453 = vmatpush1.msra.mxu0 0.0
    %6454 = vmatprep.subr.mxu0 0.0
    %6455 = vmatpush1.msra.mxu0 0.0
    %6456 = vmatprep.subr.mxu0 0.0
    %6457 = vmatpush1.msra.mxu0 0.0
    %6458 = vmatprep.subr.mxu0 0.0
    %6459 = vmatpush1.msra.mxu0 0.0
    %6460 = vmatprep.subr.mxu0 0.0
    %6461 = vmatpush1.msra.mxu0 0.0
    %6462 = vmatprep.subr.mxu0 0.0
    %6463 = vmatpush1.msra.mxu0 0.0
    %6464 = vmatprep.subr.mxu0 0.0
    %6465 = vmatpush1.msra.mxu0 0.0
    %6466 = vmatprep.subr.mxu0 0.0
    %6467 = vmatpush1.msra.mxu0 0.0
    %6468 = vmatprep.subr.mxu0 0.0
    %6469 = vmatpush1.msra.mxu0 0.0
    %6470 = vmatprep.subr.mxu0 0.0
    %6471 = vmatpush1.msra.mxu0 0.0
    %6472 = vmatprep.subr.mxu0 0.0
    %6473 = vmatpush1.msra.mxu0 0.0
    %6474 = vmatprep.subr.mxu0 0.0
    %6475 = vmatpush1.msra.mxu0 0.0
    %6476 = vmatprep.subr.mxu0 0.0
    %6477 = vmatpush1.msra.mxu0 0.0
    %6478 = vmatprep.subr.mxu0 0.0
    %6479 = vmatpush1.msra.mxu0 0.0
    %6480 = vmatprep.subr.mxu0 0.0
    %6481 = vmatpush1.msra.mxu0 0.0
    %6482 = vmatprep.subr.mxu0 0.0
    %6483 = vmatpush1.msra.mxu0 0.0
    %6484 = vmatprep.subr.mxu0 0.0
    %6485 = vmatpush1.msra.mxu0 0.0
    %6486 = vmatprep.subr.mxu0 0.0
    %6487 = vmatpush1.msra.mxu0 0.0
    %6488 = vmatprep.subr.mxu0 0.0
    %6489 = vmatpush1.msra.mxu0 0.0
    %6490 = vmatprep.subr.mxu0 0.0
    %6491 = vmatpush1.msra.mxu0 0.0
    %6492 = vmatprep.subr.mxu0 0.0
    %6493 = vmatpush1.msra.mxu0 0.0
    %6494 = vmatprep.subr.mxu0 0.0
    %6495 = vmatpush1.msra.mxu0 0.0
    %6496 = vmatprep.subr.mxu0 0.0
    %6497 = vmatpush1.msra.mxu0 0.0
    %6498 = vmatprep.subr.mxu0 0.0
    %6499 = vmatpush1.msra.mxu0 0.0
    %6500 = vmatprep.mubr.f32.mxu0 0.0
    %v6501 = vand.u32 %v5900, 4294901760
    %6502 = vmatmul.mubr.f32.gmra.mrb[0].mxu0 %v6501
    %v6503 = vpop.f32.mrb[0].mxu0
    %v6504 = vadd.f32 %v6411, %v6503
    %v6505 = vpop.f32.mrb[0].mxu0
    %6506 = vmatprep.mubr.f32.mxu0 0.0
    %v6507 = vand.u32 %v5903, 4294901760
    %6508 = vmatmul.mubr.f32.gmra.mrb[0].mxu0 %v6507
    %v6509 = vpop.f32.mrb[0].mxu0
    %v6510 = vadd.f32 %v6417, %v6509
    %v6511 = vpop.f32.mrb[0].mxu0
    %6512 = vmatprep.mubr.f32.mxu0 0.0
    %v6513 = vand.u32 %v5906, 4294901760
    %6514 = vmatmul.mubr.f32.gmra.mrb[0].mxu0 %v6513
    %v6515 = vpop.f32.mrb[0].mxu0
    %v6516 = vadd.f32 %v6423, %v6515
    %v6517 = vpop.f32.mrb[0].mxu0
    %6518 = vmatprep.mubr.f32.mxu0 0.0
    %v6519 = vand.u32 %v5909, 4294901760
    %6520 = vmatmul.mubr.f32.gmra.mrb[0].mxu0 %v6519
    %v6521 = vpop.f32.mrb[0].mxu0
    %v6522 = vadd.f32 %v6429, %v6521
    %v6523 = vpop.f32.mrb[0].mxu0
    %6524 = vdwg.mxu0
    %v6525 = vadd.f32 %v6504, %v32
    %v6526 = vadd.f32 %v6510, %v33
    %v6527 = vadd.f32 %v6516, %v34
    %v6528 = vadd.f32 %v6522, %v35
    %v6529 = vsel %vm46, %v6525, 0.0
    %6530 = vadd.xlane.f32.xlu0 %v6529
    %v6531 = vpop.xlane.xlu0 %6530
    %v6532 = vsel %vm46, %v6526, 0.0
    %6533 = vadd.xlane.f32.xlu0 %v6532
    %v6534 = vpop.xlane.xlu0 %6533
    %v6535 = vsel %vm46, %v6527, 0.0
    %6536 = vadd.xlane.f32.xlu0 %v6535
    %v6537 = vpop.xlane.xlu0 %6536
    %v6538 = vsel %vm46, %v6528, 0.0
    %6539 = vadd.xlane.f32.xlu0 %v6538
    %v6540 = vpop.xlane.xlu0 %6539
    %v6541 = vrcp.pop 32.0
    %v6542 = vmul.f32 %v6531, %v6541
    %v6543 = vmul.f32 %v6534, %v6541
    %v6544 = vmul.f32 %v6537, %v6541
    %v6545 = vmul.f32 %v6540, %v6541
    %v6546 = vsub.f32 %v6525, %v6542
    %v6547 = vsub.f32 %v6526, %v6543
    %v6548 = vsub.f32 %v6527, %v6544
    %v6549 = vsub.f32 %v6528, %v6545
    %v6550 = vmul.f32 %v6546, %v6546
    %v6551 = vmul.f32 %v6547, %v6547
    %v6552 = vmul.f32 %v6548, %v6548
    %v6553 = vmul.f32 %v6549, %v6549
    %v6554 = vsel %vm46, %v6550, 0.0
    %6555 = vadd.xlane.f32.xlu0 %v6554
    %v6556 = vpop.xlane.xlu0 %6555
    %v6557 = vsel %vm46, %v6551, 0.0
    %6558 = vadd.xlane.f32.xlu0 %v6557
    %v6559 = vpop.xlane.xlu0 %6558
    %v6560 = vsel %vm46, %v6552, 0.0
    %6561 = vadd.xlane.f32.xlu0 %v6560
    %v6562 = vpop.xlane.xlu0 %6561
    %v6563 = vsel %vm46, %v6553, 0.0
    %6564 = vadd.xlane.f32.xlu0 %v6563
    %v6565 = vpop.xlane.xlu0 %6564
    %v6566 = vmul.f32 %v6556, %v6541
    %v6567 = vmul.f32 %v6559, %v6541
    %v6568 = vmul.f32 %v6562, %v6541
    %v6569 = vmul.f32 %v6565, %v6541
    %v6570 = vadd.f32 %v6566, 1e-12
    %v6571 = vadd.f32 %v6567, 1e-12
    %v6572 = vadd.f32 %v6568, 1e-12
    %v6573 = vadd.f32 %v6569, 1e-12
    %v6574 = vrsqrt.pop %v6570
    %v6575 = vrsqrt.pop %v6571
    %v6576 = vrsqrt.pop %v6572
    %v6577 = vrsqrt.pop %v6573
    %v6578 = vmul.f32 %v6546, %v6574
    %v6579 = vmul.f32 %v6547, %v6575
    %v6580 = vmul.f32 %v6548, %v6576
    %v6581 = vmul.f32 %v6549, %v6577
    %v6582 = vlaneseq
    %v6583 = vshrl.u32 %v6582, 7
    %v6584 = vsub.s32 0, %v6583
    %v6585 = vrot.slane %v37, %v6584
    %v6586 = vmul.f32 %v6578, %v6585
    %v6587 = vmul.f32 %v6579, %v6585
    %v6588 = vmul.f32 %v6580, %v6585
    %v6589 = vmul.f32 %v6581, %v6585
    %v6590 = vlaneseq
    %v6591 = vshrl.u32 %v6590, 7
    %v6592 = vsub.s32 1, %v6591
    %v6593 = vrot.slane %v37, %v6592
    %v6594 = vadd.f32 %v6586, %v6593
    %v6595 = vadd.f32 %v6587, %v6593
    %v6596 = vadd.f32 %v6588, %v6593
    %v6597 = vadd.f32 %v6589, %v6593
    %6598 = vst.msk [vmem:[#allocation5] sm:$0xff] %vm46, %v6594
    %6599 = vst.msk [vmem:[#allocation5 + $0x8] sm:$0xff] %vm46, %v6595
    %6600 = vst.msk [vmem:[#allocation5 + $0x10] sm:$0xff] %vm46, %v6596
    %6601 = vst.msk [vmem:[#allocation5 + $0x18] sm:$0xff] %vm46, %v6597
    // Predicated region
    $region22: #{tpu_custom_call.1} parent=1 // pred_check
      _
    $region23: #{tpu_custom_call.1} parent=1 // pred_check_branch
      %6603 = sbr.rel (0) target = $region25
    $region24: #{tpu_custom_call.1} parent=1 // pred_region
      %s6605 = ssub.s32 512, 512
      %6606 = vsyncadd [#allocation4], %s6605
      %s6607 = sshll.u32 [#allocation5], 4
      %s6608 = int_to_ptr.vmem [resolvable:$true] %s6607
      %6613 = dma.vmem_to_hbm [thread:$0]  %s6608, 512, %s4, [#allocation4], 128, 128, 8
    $region25: #{tpu_custom_call.1} parent=1 // pred_fallthru
      _
    // Predicated region
    $region26: #{tpu_custom_call.1} parent=1 // pred_check
      _
    $region27: #{tpu_custom_call.1} parent=1 // pred_check_branch
      %6615 = sbr.rel (0) target = $region29
    $region28: #{tpu_custom_call.1} parent=1 // pred_region
      %6616 = dma.done [#allocation4], 512
    $region29: #{tpu_custom_call.1} parent=1 // pred_fallthru
      _
    %6617 = vsyncpa [#allocation3], 1
    %6618 = vsyncpa [#allocation4], 1

</llo_original>
